<compile_context>
chip_gen: v5e
topology: v5e:2x2
jax: 0.10.0
libtpu: 0.0.40
codegen_flags: <defaults>
</compile_context>

<pallas_src>
import jax
import jax.numpy as jnp
from jax.experimental import pallas as pl
from jax.experimental.pallas import tpu as pltpu

EPS = 1e-5


def _bn_relu(y, gamma, beta):
    # Training-mode BatchNorm2d over flattened (N*H*W, C) activations + ReLU.
    # One-pass stats: mean and E[y^2] from a single traversal of y (biased
    # variance, matching PyTorch's normalization); clamp var >= 0 to guard
    # against f32 cancellation.
    mean = jnp.mean(y, axis=0, keepdims=True)
    mean_sq = jnp.mean(y * y, axis=0, keepdims=True)
    var = jnp.maximum(mean_sq - mean * mean, 0.0)
    inv = jax.lax.rsqrt(var + EPS)
    return jnp.maximum((y - mean) * (inv * gamma) + beta, 0.0)


def _maxpool2x2(y):
    # y: (N,H,W,C) -> (N,H//2,W//2,C), kernel 2, stride 2, lane-aligned slices.
    n, h, w, c = y.shape
    y = y.reshape(n, h // 2, 2, w, c)              # split H (leading dims: free)
    y = jnp.maximum(y[:, :, 0], y[:, :, 1])        # pool over H
    y = y.reshape(n, h // 2, w // 2, 2 * c)        # fold W pairs onto lane axis
    return jnp.maximum(y[..., :c], y[..., c:])     # pool over W (aligned slices)


def basic_block_kernel(p1_ref, w1_ref, g1_ref, b1_ref,
                       w2_ref, g2_ref, b2_ref, xres_ref,
                       o_ref, mid_ref):
    n, hp, wp, cp = mid_ref.shape
    h, w = hp - 2, wp - 2
    rows = n * h * w

    # ---- conv1: taps pre-folded into K (wrapper im2col) -> single MXU matmul --
    y1 = jnp.dot(p1_ref[...], w1_ref[...], preferred_element_type=jnp.float32)
    out1 = _bn_relu(y1, g1_ref[...], b1_ref[...])

    # ---- stage conv2 input: zero only the halo ring, then write the interior --
    zrow = jnp.zeros((n, 1, wp, cp), jnp.bfloat16)
    zcol = jnp.zeros((n, hp, 1, cp), jnp.bfloat16)
    mid_ref[:, 0:1, :, :] = zrow
    mid_ref[:, hp - 1:hp, :, :] = zrow
    mid_ref[:, :, 0:1, :] = zcol
    mid_ref[:, :, wp - 1:wp, :] = zcol
    mid_ref[:, 1:1 + h, 1:1 + w, :] = out1.astype(jnp.bfloat16).reshape(n, h, w, cp)

    # ---- conv2: in-kernel im2col -> one matmul (K-accumulation inside MXU) ----
    cols = [mid_ref[:, kh:kh + h, kw:kw + w, :].reshape(rows, cp)
            for kh in range(3) for kw in range(3)]
    patch2 = jnp.concatenate(cols, axis=-1)                    # (rows, 9*cp) bf16
    y2 = jnp.dot(patch2, w2_ref[...], preferred_element_type=jnp.float32)
    out2 = _bn_relu(y2, g2_ref[...], b2_ref[...])

    # ---- residual add (bf16 x upcast to f32) + 2x2/2 maxpool, lane-dense store -
    res = out2.reshape(n, h, w, cp) + xres_ref[...].astype(jnp.float32)
    o_ref[...] = _maxpool2x2(res).astype(o_ref.dtype)


def basic_block_forward(x_nchw, params):
    w1, g1, b1, w2, g2, b2 = params
    n, c, h, wd = x_nchw.shape
    p = w1.shape[-1]
    assert c == p, "residual `out += x` requires in_planes == planes"
    assert h % 2 == 0 and wd % 2 == 0

    cp = pl.cdiv(p, 128) * 128           # lane-dense mid/output channels
    k1 = 9 * c
    k1p = pl.cdiv(k1, 128) * 128         # conv1 K: taps folded BEFORE padding
    rows = n * h * wd
    # Layout invariants (see perf-review correctness notes).
    assert rows % 8 == 0 and cp % 128 == 0 and k1p % 128 == 0

    # NCHW -> NHWC in XLA; spatial halo pad only (channels stay at C here).
    x_nhwc = jnp.transpose(x_nchw, (0, 2, 3, 1)).astype(jnp.float32)
    x_sp = jnp.pad(x_nhwc, ((0, 0), (1, 1), (1, 1), (0, 0)))

    # conv1 im2col in XLA: columns ordered [kh][kw][ci]; K padded to k1p; bf16.
    cols = [x_sp[:, kh:kh + h, kw:kw + wd, :]
            for kh in range(3) for kw in range(3)]
    patch1 = jnp.concatenate(cols, axis=-1).reshape(rows, k1)
    patch1 = jnp.pad(patch1, ((0, 0), (0, k1p - k1))).astype(jnp.bfloat16)

    # Residual operand: interior x, channels zero-padded to cp, shipped bf16.
    x_res = jnp.pad(x_nhwc, ((0, 0), (0, 0), (0, 0), (0, cp - c))).astype(jnp.bfloat16)

    # Weights (HWIO) -> (K, Co) matching the im2col column order; bf16.
    w1p = jnp.pad(w1.reshape(k1, p), ((0, k1p - k1), (0, cp - p))).astype(jnp.bfloat16)
    w2p = jnp.pad(w2, ((0, 0), (0, 0), (0, cp - p), (0, cp - p)))
    w2p = w2p.reshape(9 * cp, cp).astype(jnp.bfloat16)

    def pack_gb(v, fill):
        v = v.reshape(1, -1).astype(jnp.float32)
        return jnp.pad(v, ((0, 0), (0, cp - v.shape[1])), constant_values=fill)

    # gamma padded with 1, beta with 0, weights/x padded with 0
    # => padded channels stay exactly 0 through BN/ReLU/residual/maxpool.
    args = (patch1, w1p, pack_gb(g1, 1.0), pack_gb(b1, 0.0),
            w2p, pack_gb(g2, 1.0), pack_gb(b2, 0.0), x_res)

    out_shape = jax.ShapeDtypeStruct((n, h // 2, wd // 2, cp), jnp.float32)

    def full_spec(shape):
        nd = len(shape)
        return pl.BlockSpec(shape, lambda i, _nd=nd: (0,) * _nd)

    flops = 2 * rows * (k1p * cp + 9 * cp * cp)          # two conv matmuls
    bytes_accessed = sum(int(a.size) * a.dtype.itemsize for a in args) \
        + int(out_shape.size) * 4
    cost = pl.CostEstimate(flops=int(flops), transcendentals=2 * cp,
                           bytes_accessed=int(bytes_accessed))

    out = pl.pallas_call(
        basic_block_kernel,
        out_shape=out_shape,
        grid=(1,),
        in_specs=[full_spec(a.shape) for a in args],
        out_specs=full_spec(out_shape.shape),
        scratch_shapes=[
            pltpu.VMEM((n, h + 2, wd + 2, cp), jnp.bfloat16),   # halo-padded mid
        ],
        compiler_params=pltpu.CompilerParams(
            dimension_semantics=("arbitrary",),
            vmem_limit_bytes=32 * 1024 * 1024),
        cost_estimate=cost,
    )(*args)

    out = out[:, :, :, :p]                               # drop padded channels
    return jnp.transpose(out, (0, 3, 1, 2))              # NHWC -> NCHW


def _reference(x_nchw, params):
    # Pure-JAX reference of the PyTorch forward (NCHW) for a sanity check.
    w1, g1, b1, w2, g2, b2 = params

    def conv(x, w_hwio):
        w_oihw = jnp.transpose(w_hwio, (3, 2, 0, 1))
        return jax.lax.conv_general_dilated(
            x, w_oihw, (1, 1), ((1, 1), (1, 1)),
            dimension_numbers=("NCHW", "OIHW", "NCHW"))

    def bn_relu(y, g, b):
        mean = jnp.mean(y, axis=(0, 2, 3), keepdims=True)
        var = jnp.mean((y - mean) ** 2, axis=(0, 2, 3), keepdims=True)
        yn = (y - mean) / jnp.sqrt(var + EPS)
        return jnp.maximum(yn * g.reshape(1, -1, 1, 1) + b.reshape(1, -1, 1, 1),
                           0.0)

    o = bn_relu(conv(x_nchw, w1), g1, b1)
    o = bn_relu(conv(o, w2), g2, b2)
    o = o + x_nchw
    return jax.lax.reduce_window(o, -jnp.inf, jax.lax.max,
                                 (1, 1, 2, 2), (1, 1, 2, 2), "VALID")


if __name__ == "__main__":
    key = jax.random.PRNGKey(0)
    k1, k2, kx = jax.random.split(key, 3)

    N, C, H, W = 2, 4, 16, 16
    P = C  # residual `out += x` requires in_planes == planes

    x = jax.random.normal(kx, (N, C, H, W), jnp.float32)          # NCHW input
    # conv weights stored as HWIO (3,3,Cin,Cout); deterministic init
    w1 = jax.random.normal(k1, (3, 3, C, P), jnp.float32) * 0.1
    w2 = jax.random.normal(k2, (3, 3, P, P), jnp.float32) * 0.1
    # BatchNorm2d defaults: gamma=1, beta=0
    g1 = jnp.ones((P,), jnp.float32)
    b1 = jnp.zeros((P,), jnp.float32)
    g2 = jnp.ones((P,), jnp.float32)
    b2 = jnp.zeros((P,), jnp.float32)
    params = (w1, g1, b1, w2, g2, b2)

    out = basic_block_forward(x, params)
    out = jax.block_until_ready(out)

    ref = _reference(x, params)
    assert out.shape == ref.shape == (N, P, H // 2, W // 2), out.shape
    # tolerance covers bf16 conv inputs/weights/residual (f32 acc, f32 BN)
    assert jnp.allclose(out, ref, atol=3e-2, rtol=3e-2), float(
        jnp.max(jnp.abs(out - ref)))

    print("KERNEL_OK")
</pallas_src>

<mosaic_0001>
module attributes {stable_mosaic.version = 11 : i64} {
  func.func @basic_block_kernel(%arg0: i32, %arg1: memref<512x128xbf16, #tpu.memory_space<vmem>>, %arg2: memref<128x128xbf16, #tpu.memory_space<vmem>>, %arg3: memref<1x128xf32, #tpu.memory_space<vmem>>, %arg4: memref<1x128xf32, #tpu.memory_space<vmem>>, %arg5: memref<1152x128xbf16, #tpu.memory_space<vmem>>, %arg6: memref<1x128xf32, #tpu.memory_space<vmem>>, %arg7: memref<1x128xf32, #tpu.memory_space<vmem>>, %arg8: memref<2x16x16x128xbf16, #tpu.memory_space<vmem>>, %arg9: memref<2x8x8x128xf32, #tpu.memory_space<vmem>>, %arg10: memref<2x18x18x128xbf16, #tpu.memory_space<vmem>>) attributes {dimension_semantics = [#tpu.dimension_semantics<arbitrary>], iteration_bounds = array<i64: 1>, scalar_prefetch = 0 : i64, scratch_operands = 1 : i64, tpu.core_type = #tpu.core_type<tc>, window_params = [{pipeline_mode = #tpu.pipeline_mode<synchronous>, transform_indices = @transform_0, window_bounds = array<i64: 512, 128>}, {pipeline_mode = #tpu.pipeline_mode<synchronous>, transform_indices = @transform_1, window_bounds = array<i64: 128, 128>}, {pipeline_mode = #tpu.pipeline_mode<synchronous>, transform_indices = @transform_2, window_bounds = array<i64: 1, 128>}, {pipeline_mode = #tpu.pipeline_mode<synchronous>, transform_indices = @transform_3, window_bounds = array<i64: 1, 128>}, {pipeline_mode = #tpu.pipeline_mode<synchronous>, transform_indices = @transform_4, window_bounds = array<i64: 1152, 128>}, {pipeline_mode = #tpu.pipeline_mode<synchronous>, transform_indices = @transform_5, window_bounds = array<i64: 1, 128>}, {pipeline_mode = #tpu.pipeline_mode<synchronous>, transform_indices = @transform_6, window_bounds = array<i64: 1, 128>}, {pipeline_mode = #tpu.pipeline_mode<synchronous>, transform_indices = @transform_7, window_bounds = array<i64: 2, 16, 16, 128>}, {pipeline_mode = #tpu.pipeline_mode<synchronous>, transform_indices = @transform_8, window_bounds = array<i64: 2, 8, 8, 128>}]} {
    %c0 = arith.constant 0 : index
    %c0_0 = arith.constant 0 : index
    %0 = vector.load %arg1[%c0, %c0_0] : memref<512x128xbf16, #tpu.memory_space<vmem>>, vector<512x128xbf16>
    %c0_1 = arith.constant 0 : index
    %c0_2 = arith.constant 0 : index
    %1 = vector.load %arg2[%c0_1, %c0_2] : memref<128x128xbf16, #tpu.memory_space<vmem>>, vector<128x128xbf16>
    %cst = arith.constant dense<0.000000e+00> : vector<512x128xf32>
    %2 = tpu.matmul %0, %1, %cst {dimension_numbers = #tpu.dot_dimension_numbers<[1], [0], [0], [1], [0, 0, 1, 1], [], []>} : vector<512x128xbf16>, vector<128x128xbf16>, vector<512x128xf32> -> vector<512x128xf32>
    %c0_3 = arith.constant 0 : index
    %c0_4 = arith.constant 0 : index
    %3 = vector.load %arg3[%c0_3, %c0_4] : memref<1x128xf32, #tpu.memory_space<vmem>>, vector<1x128xf32>
    %c0_5 = arith.constant 0 : index
    %c0_6 = arith.constant 0 : index
    %4 = vector.load %arg4[%c0_5, %c0_6] : memref<1x128xf32, #tpu.memory_space<vmem>>, vector<1x128xf32>
    %cst_7 = arith.constant dense<0.000000e+00> : vector<128xf32>
    %5 = vector.multi_reduction <add>, %2, %cst_7 [0] : vector<512x128xf32> to vector<128xf32>
    %6 = vector.shape_cast %5 : vector<128xf32> to vector<1x128xf32>
    %cst_8 = arith.constant 5.120000e+02 : f32
    %7 = vector.broadcast %cst_8 : f32 to vector<1x128xf32>
    %8 = arith.divf %6, %7 : vector<1x128xf32>
    %9 = arith.mulf %2, %2 : vector<512x128xf32>
    %cst_9 = arith.constant dense<0.000000e+00> : vector<128xf32>
    %10 = vector.multi_reduction <add>, %9, %cst_9 [0] : vector<512x128xf32> to vector<128xf32>
    %11 = vector.shape_cast %10 : vector<128xf32> to vector<1x128xf32>
    %cst_10 = arith.constant 5.120000e+02 : f32
    %12 = vector.broadcast %cst_10 : f32 to vector<1x128xf32>
    %13 = arith.divf %11, %12 : vector<1x128xf32>
    %14 = arith.mulf %8, %8 : vector<1x128xf32>
    %15 = arith.subf %13, %14 : vector<1x128xf32>
    %cst_11 = arith.constant 0.000000e+00 : f32
    %16 = vector.broadcast %cst_11 : f32 to vector<1x128xf32>
    %17 = arith.maximumf %15, %16 : vector<1x128xf32>
    %cst_12 = arith.constant 9.99999974E-6 : f32
    %18 = vector.broadcast %cst_12 : f32 to vector<1x128xf32>
    %19 = arith.addf %17, %18 : vector<1x128xf32>
    %20 = math.rsqrt %19 : vector<1x128xf32>
    %21 = vector.broadcast %8 : vector<1x128xf32> to vector<512x128xf32>
    %22 = arith.subf %2, %21 : vector<512x128xf32>
    %23 = arith.mulf %20, %3 : vector<1x128xf32>
    %24 = vector.broadcast %23 : vector<1x128xf32> to vector<512x128xf32>
    %25 = arith.mulf %22, %24 : vector<512x128xf32>
    %26 = vector.broadcast %4 : vector<1x128xf32> to vector<512x128xf32>
    %27 = arith.addf %25, %26 : vector<512x128xf32>
    %cst_13 = arith.constant 0.000000e+00 : f32
    %28 = vector.broadcast %cst_13 : f32 to vector<512x128xf32>
    %29 = arith.maximumf %27, %28 : vector<512x128xf32>
    %cst_14 = arith.constant 0.000000e+00 : bf16
    %30 = vector.broadcast %cst_14 : bf16 to vector<2x1x18x128xbf16>
    %cst_15 = arith.constant 0.000000e+00 : bf16
    %31 = vector.broadcast %cst_15 : bf16 to vector<2x18x1x128xbf16>
    %c0_16 = arith.constant 0 : index
    %c0_17 = arith.constant 0 : index
    %c0_18 = arith.constant 0 : index
    %c0_19 = arith.constant 0 : index
    %32 = vector.load %arg10[%c0_16, %c0_17, %c0_18, %c0_19] : memref<2x18x18x128xbf16, #tpu.memory_space<vmem>>, vector<2x1x18x128xbf16>
    tpu.vector_store %arg10[%c0_16, %c0_17, %c0_18, %c0_19], %30 {strides = array<i32>} : memref<2x18x18x128xbf16, #tpu.memory_space<vmem>>, vector<2x1x18x128xbf16>,
    %c0_20 = arith.constant 0 : index
    %c17 = arith.constant 17 : index
    %c0_21 = arith.constant 0 : index
    %c0_22 = arith.constant 0 : index
    %33 = vector.load %arg10[%c0_20, %c17, %c0_21, %c0_22] : memref<2x18x18x128xbf16, #tpu.memory_space<vmem>>, vector<2x1x18x128xbf16>
    tpu.vector_store %arg10[%c0_20, %c17, %c0_21, %c0_22], %30 {strides = array<i32>} : memref<2x18x18x128xbf16, #tpu.memory_space<vmem>>, vector<2x1x18x128xbf16>,
    %c0_23 = arith.constant 0 : index
    %c0_24 = arith.constant 0 : index
    %c0_25 = arith.constant 0 : index
    %c0_26 = arith.constant 0 : index
    %34 = vector.load %arg10[%c0_23, %c0_24, %c0_25, %c0_26] : memref<2x18x18x128xbf16, #tpu.memory_space<vmem>>, vector<2x18x1x128xbf16>
    tpu.vector_store %arg10[%c0_23, %c0_24, %c0_25, %c0_26], %31 {strides = array<i32>} : memref<2x18x18x128xbf16, #tpu.memory_space<vmem>>, vector<2x18x1x128xbf16>,
    %c0_27 = arith.constant 0 : index
    %c0_28 = arith.constant 0 : index
    %c17_29 = arith.constant 17 : index
    %c0_30 = arith.constant 0 : index
    %35 = vector.load %arg10[%c0_27, %c0_28, %c17_29, %c0_30] : memref<2x18x18x128xbf16, #tpu.memory_space<vmem>>, vector<2x18x1x128xbf16>
    tpu.vector_store %arg10[%c0_27, %c0_28, %c17_29, %c0_30], %31 {strides = array<i32>} : memref<2x18x18x128xbf16, #tpu.memory_space<vmem>>, vector<2x18x1x128xbf16>,
    %36 = arith.truncf %29 : vector<512x128xf32> to vector<512x128xbf16>
    %37 = vector.shape_cast %36 : vector<512x128xbf16> to vector<2x16x16x128xbf16>
    %c0_31 = arith.constant 0 : index
    %c1 = arith.constant 1 : index
    %c1_32 = arith.constant 1 : index
    %c0_33 = arith.constant 0 : index
    %38 = vector.load %arg10[%c0_31, %c1, %c1_32, %c0_33] : memref<2x18x18x128xbf16, #tpu.memory_space<vmem>>, vector<2x16x16x128xbf16>
    tpu.vector_store %arg10[%c0_31, %c1, %c1_32, %c0_33], %37 {strides = array<i32>} : memref<2x18x18x128xbf16, #tpu.memory_space<vmem>>, vector<2x16x16x128xbf16>,
    %c0_34 = arith.constant 0 : index
    %c0_35 = arith.constant 0 : index
    %c0_36 = arith.constant 0 : index
    %c0_37 = arith.constant 0 : index
    %39 = vector.load %arg10[%c0_34, %c0_35, %c0_36, %c0_37] : memref<2x18x18x128xbf16, #tpu.memory_space<vmem>>, vector<2x16x16x128xbf16>
    %40 = vector.shape_cast %39 : vector<2x16x16x128xbf16> to vector<512x128xbf16>
    %c0_38 = arith.constant 0 : index
    %c0_39 = arith.constant 0 : index
    %c1_40 = arith.constant 1 : index
    %c0_41 = arith.constant 0 : index
    %41 = vector.load %arg10[%c0_38, %c0_39, %c1_40, %c0_41] : memref<2x18x18x128xbf16, #tpu.memory_space<vmem>>, vector<2x16x16x128xbf16>
    %42 = vector.shape_cast %41 : vector<2x16x16x128xbf16> to vector<512x128xbf16>
    %c0_42 = arith.constant 0 : index
    %c0_43 = arith.constant 0 : index
    %c2 = arith.constant 2 : index
    %c0_44 = arith.constant 0 : index
    %43 = vector.load %arg10[%c0_42, %c0_43, %c2, %c0_44] : memref<2x18x18x128xbf16, #tpu.memory_space<vmem>>, vector<2x16x16x128xbf16>
    %44 = vector.shape_cast %43 : vector<2x16x16x128xbf16> to vector<512x128xbf16>
    %c0_45 = arith.constant 0 : index
    %c1_46 = arith.constant 1 : index
    %c0_47 = arith.constant 0 : index
    %c0_48 = arith.constant 0 : index
    %45 = vector.load %arg10[%c0_45, %c1_46, %c0_47, %c0_48] : memref<2x18x18x128xbf16, #tpu.memory_space<vmem>>, vector<2x16x16x128xbf16>
    %46 = vector.shape_cast %45 : vector<2x16x16x128xbf16> to vector<512x128xbf16>
    %c0_49 = arith.constant 0 : index
    %c1_50 = arith.constant 1 : index
    %c1_51 = arith.constant 1 : index
    %c0_52 = arith.constant 0 : index
    %47 = vector.load %arg10[%c0_49, %c1_50, %c1_51, %c0_52] : memref<2x18x18x128xbf16, #tpu.memory_space<vmem>>, vector<2x16x16x128xbf16>
    %48 = vector.shape_cast %47 : vector<2x16x16x128xbf16> to vector<512x128xbf16>
    %c0_53 = arith.constant 0 : index
    %c1_54 = arith.constant 1 : index
    %c2_55 = arith.constant 2 : index
    %c0_56 = arith.constant 0 : index
    %49 = vector.load %arg10[%c0_53, %c1_54, %c2_55, %c0_56] : memref<2x18x18x128xbf16, #tpu.memory_space<vmem>>, vector<2x16x16x128xbf16>
    %50 = vector.shape_cast %49 : vector<2x16x16x128xbf16> to vector<512x128xbf16>
    %c0_57 = arith.constant 0 : index
    %c2_58 = arith.constant 2 : index
    %c0_59 = arith.constant 0 : index
    %c0_60 = arith.constant 0 : index
    %51 = vector.load %arg10[%c0_57, %c2_58, %c0_59, %c0_60] : memref<2x18x18x128xbf16, #tpu.memory_space<vmem>>, vector<2x16x16x128xbf16>
    %52 = vector.shape_cast %51 : vector<2x16x16x128xbf16> to vector<512x128xbf16>
    %c0_61 = arith.constant 0 : index
    %c2_62 = arith.constant 2 : index
    %c1_63 = arith.constant 1 : index
    %c0_64 = arith.constant 0 : index
    %53 = vector.load %arg10[%c0_61, %c2_62, %c1_63, %c0_64] : memref<2x18x18x128xbf16, #tpu.memory_space<vmem>>, vector<2x16x16x128xbf16>
    %54 = vector.shape_cast %53 : vector<2x16x16x128xbf16> to vector<512x128xbf16>
    %c0_65 = arith.constant 0 : index
    %c2_66 = arith.constant 2 : index
    %c2_67 = arith.constant 2 : index
    %c0_68 = arith.constant 0 : index
    %55 = vector.load %arg10[%c0_65, %c2_66, %c2_67, %c0_68] : memref<2x18x18x128xbf16, #tpu.memory_space<vmem>>, vector<2x16x16x128xbf16>
    %56 = vector.shape_cast %55 : vector<2x16x16x128xbf16> to vector<512x128xbf16>
    %57 = tpu.concatenate %40, %42, %44, %46, %48, %50, %52, %54, %56 in 1 : vector<512x128xbf16>, vector<512x128xbf16>, vector<512x128xbf16>, vector<512x128xbf16>, vector<512x128xbf16>, vector<512x128xbf16>, vector<512x128xbf16>, vector<512x128xbf16>, vector<512x128xbf16> -> vector<512x1152xbf16>
    %c0_69 = arith.constant 0 : index
    %c0_70 = arith.constant 0 : index
    %58 = vector.load %arg5[%c0_69, %c0_70] : memref<1152x128xbf16, #tpu.memory_space<vmem>>, vector<1152x128xbf16>
    %cst_71 = arith.constant dense<0.000000e+00> : vector<512x128xf32>
    %59 = tpu.matmul %57, %58, %cst_71 {dimension_numbers = #tpu.dot_dimension_numbers<[1], [0], [0], [1], [0, 0, 1, 1], [], []>} : vector<512x1152xbf16>, vector<1152x128xbf16>, vector<512x128xf32> -> vector<512x128xf32>
    %c0_72 = arith.constant 0 : index
    %c0_73 = arith.constant 0 : index
    %60 = vector.load %arg6[%c0_72, %c0_73] : memref<1x128xf32, #tpu.memory_space<vmem>>, vector<1x128xf32>
    %c0_74 = arith.constant 0 : index
    %c0_75 = arith.constant 0 : index
    %61 = vector.load %arg7[%c0_74, %c0_75] : memref<1x128xf32, #tpu.memory_space<vmem>>, vector<1x128xf32>
    %cst_76 = arith.constant dense<0.000000e+00> : vector<128xf32>
    %62 = vector.multi_reduction <add>, %59, %cst_76 [0] : vector<512x128xf32> to vector<128xf32>
    %63 = vector.shape_cast %62 : vector<128xf32> to vector<1x128xf32>
    %cst_77 = arith.constant 5.120000e+02 : f32
    %64 = vector.broadcast %cst_77 : f32 to vector<1x128xf32>
    %65 = arith.divf %63, %64 : vector<1x128xf32>
    %66 = arith.mulf %59, %59 : vector<512x128xf32>
    %cst_78 = arith.constant dense<0.000000e+00> : vector<128xf32>
    %67 = vector.multi_reduction <add>, %66, %cst_78 [0] : vector<512x128xf32> to vector<128xf32>
    %68 = vector.shape_cast %67 : vector<128xf32> to vector<1x128xf32>
    %cst_79 = arith.constant 5.120000e+02 : f32
    %69 = vector.broadcast %cst_79 : f32 to vector<1x128xf32>
    %70 = arith.divf %68, %69 : vector<1x128xf32>
    %71 = arith.mulf %65, %65 : vector<1x128xf32>
    %72 = arith.subf %70, %71 : vector<1x128xf32>
    %cst_80 = arith.constant 0.000000e+00 : f32
    %73 = vector.broadcast %cst_80 : f32 to vector<1x128xf32>
    %74 = arith.maximumf %72, %73 : vector<1x128xf32>
    %cst_81 = arith.constant 9.99999974E-6 : f32
    %75 = vector.broadcast %cst_81 : f32 to vector<1x128xf32>
    %76 = arith.addf %74, %75 : vector<1x128xf32>
    %77 = math.rsqrt %76 : vector<1x128xf32>
    %78 = vector.broadcast %65 : vector<1x128xf32> to vector<512x128xf32>
    %79 = arith.subf %59, %78 : vector<512x128xf32>
    %80 = arith.mulf %77, %60 : vector<1x128xf32>
    %81 = vector.broadcast %80 : vector<1x128xf32> to vector<512x128xf32>
    %82 = arith.mulf %79, %81 : vector<512x128xf32>
    %83 = vector.broadcast %61 : vector<1x128xf32> to vector<512x128xf32>
    %84 = arith.addf %82, %83 : vector<512x128xf32>
    %cst_82 = arith.constant 0.000000e+00 : f32
    %85 = vector.broadcast %cst_82 : f32 to vector<512x128xf32>
    %86 = arith.maximumf %84, %85 : vector<512x128xf32>
    %87 = vector.shape_cast %86 : vector<512x128xf32> to vector<2x16x16x128xf32>
    %c0_83 = arith.constant 0 : index
    %c0_84 = arith.constant 0 : index
    %c0_85 = arith.constant 0 : index
    %c0_86 = arith.constant 0 : index
    %88 = vector.load %arg8[%c0_83, %c0_84, %c0_85, %c0_86] : memref<2x16x16x128xbf16, #tpu.memory_space<vmem>>, vector<2x16x16x128xbf16>
    %89 = arith.extf %88 : vector<2x16x16x128xbf16> to vector<2x16x16x128xf32>
    %90 = arith.addf %87, %89 : vector<2x16x16x128xf32>
    %91 = vector.shape_cast %90 : vector<2x16x16x128xf32> to vector<2x8x2x16x128xf32>
    %92 = vector.extract_strided_slice %91 {offsets = [0, 0, 0, 0, 0], sizes = [2, 8, 1, 16, 128], strides = [1, 1, 1, 1, 1]} : vector<2x8x2x16x128xf32> to vector<2x8x1x16x128xf32>
    %93 = vector.shape_cast %92 : vector<2x8x1x16x128xf32> to vector<2x8x16x128xf32>
    %94 = vector.extract_strided_slice %91 {offsets = [0, 0, 1, 0, 0], sizes = [2, 8, 1, 16, 128], strides = [1, 1, 1, 1, 1]} : vector<2x8x2x16x128xf32> to vector<2x8x1x16x128xf32>
    %95 = vector.shape_cast %94 : vector<2x8x1x16x128xf32> to vector<2x8x16x128xf32>
    %96 = arith.maximumf %93, %95 : vector<2x8x16x128xf32>
    %97 = vector.shape_cast %96 : vector<2x8x16x128xf32> to vector<2x8x8x256xf32>
    %98 = vector.extract_strided_slice %97 {offsets = [0, 0, 0, 0], sizes = [2, 8, 8, 128], strides = [1, 1, 1, 1]} : vector<2x8x8x256xf32> to vector<2x8x8x128xf32>
    %99 = vector.extract_strided_slice %97 {offsets = [0, 0, 0, 128], sizes = [2, 8, 8, 128], strides = [1, 1, 1, 1]} : vector<2x8x8x256xf32> to vector<2x8x8x128xf32>
    %100 = arith.maximumf %98, %99 : vector<2x8x8x128xf32>
    %c0_87 = arith.constant 0 : index
    %c0_88 = arith.constant 0 : index
    %c0_89 = arith.constant 0 : index
    %c0_90 = arith.constant 0 : index
    %101 = vector.load %arg9[%c0_87, %c0_88, %c0_89, %c0_90] : memref<2x8x8x128xf32, #tpu.memory_space<vmem>>, vector<2x8x8x128xf32>
    tpu.vector_store %arg9[%c0_87, %c0_88, %c0_89, %c0_90], %100 {strides = array<i32>} : memref<2x8x8x128xf32, #tpu.memory_space<vmem>>, vector<2x8x8x128xf32>,
    return
  }
  func.func @transform_0(%arg0: i32) -> (i32, i32) {
    %c0_i32 = arith.constant 0 : i32
    %c0_i32_0 = arith.constant 0 : i32
    %c0_i32_1 = arith.constant 0 : i32
    return %c0_i32, %c0_i32_0 : i32, i32
  }
  func.func @transform_1(%arg0: i32) -> (i32, i32) {
    %c0_i32 = arith.constant 0 : i32
    %c0_i32_0 = arith.constant 0 : i32
    %c0_i32_1 = arith.constant 0 : i32
    return %c0_i32, %c0_i32_0 : i32, i32
  }
  func.func @transform_2(%arg0: i32) -> (i32, i32) {
    %c0_i32 = arith.constant 0 : i32
    %c0_i32_0 = arith.constant 0 : i32
    %c0_i32_1 = arith.constant 0 : i32
    return %c0_i32, %c0_i32_0 : i32, i32
  }
  func.func @transform_3(%arg0: i32) -> (i32, i32) {
    %c0_i32 = arith.constant 0 : i32
    %c0_i32_0 = arith.constant 0 : i32
    %c0_i32_1 = arith.constant 0 : i32
    return %c0_i32, %c0_i32_0 : i32, i32
  }
  func.func @transform_4(%arg0: i32) -> (i32, i32) {
    %c0_i32 = arith.constant 0 : i32
    %c0_i32_0 = arith.constant 0 : i32
    %c0_i32_1 = arith.constant 0 : i32
    return %c0_i32, %c0_i32_0 : i32, i32
  }
  func.func @transform_5(%arg0: i32) -> (i32, i32) {
    %c0_i32 = arith.constant 0 : i32
    %c0_i32_0 = arith.constant 0 : i32
    %c0_i32_1 = arith.constant 0 : i32
    return %c0_i32, %c0_i32_0 : i32, i32
  }
  func.func @transform_6(%arg0: i32) -> (i32, i32) {
    %c0_i32 = arith.constant 0 : i32
    %c0_i32_0 = arith.constant 0 : i32
    %c0_i32_1 = arith.constant 0 : i32
    return %c0_i32, %c0_i32_0 : i32, i32
  }
  func.func @transform_7(%arg0: i32) -> (i32, i32, i32, i32) {
    %c0_i32 = arith.constant 0 : i32
    %c0_i32_0 = arith.constant 0 : i32
    %c0_i32_1 = arith.constant 0 : i32
    %c0_i32_2 = arith.constant 0 : i32
    %c0_i32_3 = arith.constant 0 : i32
    return %c0_i32, %c0_i32_0, %c0_i32_1, %c0_i32_2 : i32, i32, i32, i32
  }
  func.func @transform_8(%arg0: i32) -> (i32, i32, i32, i32) {
    %c0_i32 = arith.constant 0 : i32
    %c0_i32_0 = arith.constant 0 : i32
    %c0_i32_1 = arith.constant 0 : i32
    %c0_i32_2 = arith.constant 0 : i32
    %c0_i32_3 = arith.constant 0 : i32
    return %c0_i32, %c0_i32_0, %c0_i32_1, %c0_i32_2 : i32, i32, i32, i32
  }
}

</mosaic_0001>

<llo_original>
// kernel: tpu_custom_call.1
$region0: #{tpu_custom_call.1}
  #allocation0 [shape = 'u32[]', space=smem, size = 0x4, offset = 0x4, fixed_abs, tag = 'smem constant byte address 0x4 - core index']
  #allocation1 [shape = 'u32[72,128]{1,0:T(1,128)}', space=vmem, size = 0x9000, scoped, tag = 'internal scratch']
  #allocation2 [shape = 'bf16[2,18,18,128]{3,2,1,0:T(8,128)(2,1)}', space=vmem, size = 0x36000, scoped, tag = 'scratch operand']
  %s0 = inlined_call_operand.hbm [shape: bf16[512,128], index: 0, kind: input, shape index: {}]
  %s1 = inlined_call_operand.hbm [shape: bf16[128,128], index: 1, kind: input, shape index: {}]
  %s2 = inlined_call_operand.vmem [shape: f32[1,128], index: 2, kind: input, shape index: {}]
  %s3 = inlined_call_operand.vmem [shape: f32[1,128], index: 3, kind: input, shape index: {}]
  %s4 = inlined_call_operand.hbm [shape: bf16[1152,128], index: 4, kind: input, shape index: {}]
  %s5 = inlined_call_operand.vmem [shape: f32[1,128], index: 5, kind: input, shape index: {}]
  %s6 = inlined_call_operand.vmem [shape: f32[1,128], index: 6, kind: input, shape index: {}]
  %s7 = inlined_call_operand.hbm [shape: bf16[2,16,16,128], index: 7, kind: input, shape index: {}]
  %s8 = inlined_call_operand.hbm [shape: f32[2,8,8,128], index: 8, kind: output, shape index: {}]
  %s9 = sld [smem:[#allocation0]]
  $region58: #{tpu_custom_call.1} parent=0
    _
  %s11 = ssub.s32 1, %s9
  %s12 = scalar_select 0, %s11, %s9
  $region1: #{tpu_custom_call.1} parent=0
    #allocation3 [shape = 'u8[131072]{0}', space=vmem, size = 0x20000, scoped, tag = 'input window, operand 0, single buffered']
    #allocation4 [shape = 's32[1]{0}', space=sflag, size = 0x4, scoped, tag = 'scoped memory for tpu_custom_call.1']
    #allocation5 [shape = 's32[1]{0}', space=sflag, size = 0x4, scoped, tag = 'scoped memory for tpu_custom_call.1']
    #allocation6 [shape = 'u8[32768]{0}', space=vmem, size = 0x8000, scoped, tag = 'input window, operand 1, single buffered']
    #allocation7 [shape = 's32[1]{0}', space=sflag, size = 0x4, scoped, tag = 'scoped memory for tpu_custom_call.1']
    #allocation8 [shape = 'u8[294912]{0}', space=vmem, size = 0x48000, scoped, tag = 'input window, operand 4, single buffered']
    #allocation9 [shape = 'u8[131072]{0}', space=vmem, size = 0x20000, scoped, tag = 'input window, operand 7, single buffered']
    #allocation10 [shape = 's32[1]{0}', space=sflag, size = 0x4, scoped, tag = 'scoped memory for tpu_custom_call.1']
    #allocation11 [shape = 'u8[65536]{0}', space=vmem, size = 0x10000, scoped, tag = 'output window, operand 0, single buffered']
    %13 = vsyncpa [#allocation4], 0
    %14 = vsyncpa [#allocation7], 0
    %15 = vsyncpa [#allocation10], 0
    %16 = vsyncpa [#allocation5], 0
    // Predicated region
    $region2: #{tpu_custom_call.1} parent=1 // pred_check
      _
    $region3: #{tpu_custom_call.1} parent=1 // pred_check_branch
      %18 = sbr.rel (0) target = $region5
    $region4: #{tpu_custom_call.1} parent=1 // pred_region
      %20 = vsyncadd [#allocation4], 0
      %s21 = sshll.u32 %s0, 4
      %s22 = int_to_ptr.hbm [resolvable:$true] %s21
      %s23 = sshll.u32 [#allocation3], 4
      %s24 = int_to_ptr.vmem [resolvable:$true] %s23
      %29 = dma.hbm_to_vmem [thread:$0]  %s22, 4096, %s24, [#allocation4], 64, 64, 4
    $region5: #{tpu_custom_call.1} parent=1 // pred_fallthru
      _
    // Predicated region
    $region6: #{tpu_custom_call.1} parent=1 // pred_check
      _
    $region7: #{tpu_custom_call.1} parent=1 // pred_check_branch
      %31 = sbr.rel (0) target = $region9
    $region8: #{tpu_custom_call.1} parent=1 // pred_region
      %33 = vsyncadd [#allocation7], 0
      %s34 = sshll.u32 %s1, 4
      %s35 = int_to_ptr.hbm [resolvable:$true] %s34
      %s36 = sshll.u32 [#allocation6], 4
      %s37 = int_to_ptr.vmem [resolvable:$true] %s36
      %42 = dma.hbm_to_vmem [thread:$0]  %s35, 1024, %s37, [#allocation7], 64, 64, 4
    $region9: #{tpu_custom_call.1} parent=1 // pred_fallthru
      _
    // Predicated region
    $region10: #{tpu_custom_call.1} parent=1 // pred_check
      _
    $region11: #{tpu_custom_call.1} parent=1 // pred_check_branch
      %44 = sbr.rel (0) target = $region13
    $region12: #{tpu_custom_call.1} parent=1 // pred_region
      _
    $region13: #{tpu_custom_call.1} parent=1 // pred_fallthru
      _
    // Predicated region
    $region14: #{tpu_custom_call.1} parent=1 // pred_check
      _
    $region15: #{tpu_custom_call.1} parent=1 // pred_check_branch
      %46 = sbr.rel (0) target = $region17
    $region16: #{tpu_custom_call.1} parent=1 // pred_region
      _
    $region17: #{tpu_custom_call.1} parent=1 // pred_fallthru
      _
    // Predicated region
    $region18: #{tpu_custom_call.1} parent=1 // pred_check
      _
    $region19: #{tpu_custom_call.1} parent=1 // pred_check_branch
      %48 = sbr.rel (0) target = $region21
    $region20: #{tpu_custom_call.1} parent=1 // pred_region
      %50 = vsyncadd [#allocation7], 0
      %s51 = sshll.u32 %s4, 4
      %s52 = int_to_ptr.hbm [resolvable:$true] %s51
      %s53 = sshll.u32 [#allocation8], 4
      %s54 = int_to_ptr.vmem [resolvable:$true] %s53
      %59 = dma.hbm_to_vmem [thread:$0]  %s52, 9216, %s54, [#allocation7], 64, 64, 4
    $region21: #{tpu_custom_call.1} parent=1 // pred_fallthru
      _
    // Predicated region
    $region22: #{tpu_custom_call.1} parent=1 // pred_check
      _
    $region23: #{tpu_custom_call.1} parent=1 // pred_check_branch
      %61 = sbr.rel (0) target = $region25
    $region24: #{tpu_custom_call.1} parent=1 // pred_region
      _
    $region25: #{tpu_custom_call.1} parent=1 // pred_fallthru
      _
    // Predicated region
    $region26: #{tpu_custom_call.1} parent=1 // pred_check
      _
    $region27: #{tpu_custom_call.1} parent=1 // pred_check_branch
      %63 = sbr.rel (0) target = $region29
    $region28: #{tpu_custom_call.1} parent=1 // pred_region
      _
    $region29: #{tpu_custom_call.1} parent=1 // pred_fallthru
      _
    // Predicated region
    $region30: #{tpu_custom_call.1} parent=1 // pred_check
      _
    $region31: #{tpu_custom_call.1} parent=1 // pred_check_branch
      %65 = sbr.rel (0) target = $region33
    $region32: #{tpu_custom_call.1} parent=1 // pred_region
      %67 = vsyncadd [#allocation10], 0
      %s68 = sshll.u32 %s7, 4
      %s69 = int_to_ptr.hbm [resolvable:$true] %s68
      %s70 = sshll.u32 [#allocation9], 4
      %s71 = int_to_ptr.vmem [resolvable:$true] %s70
      %76 = dma.hbm_to_vmem [thread:$0]  %s69, 4096, %s71, [#allocation10], 64, 64, 4
    $region33: #{tpu_custom_call.1} parent=1 // pred_fallthru
      _
    // Predicated region
    $region34: #{tpu_custom_call.1} parent=1 // pred_check
      _
    $region35: #{tpu_custom_call.1} parent=1 // pred_check_branch
      %78 = sbr.rel (0) target = $region37
    $region36: #{tpu_custom_call.1} parent=1 // pred_region
      %80 = dma.done [#allocation4], 4096
    $region37: #{tpu_custom_call.1} parent=1 // pred_fallthru
      _
    // Predicated region
    $region38: #{tpu_custom_call.1} parent=1 // pred_check
      _
    $region39: #{tpu_custom_call.1} parent=1 // pred_check_branch
      %82 = sbr.rel (0) target = $region41
    $region40: #{tpu_custom_call.1} parent=1 // pred_region
      %84 = dma.done [#allocation7], 1024
    $region41: #{tpu_custom_call.1} parent=1 // pred_fallthru
      _
    // Predicated region
    $region42: #{tpu_custom_call.1} parent=1 // pred_check
      _
    $region43: #{tpu_custom_call.1} parent=1 // pred_check_branch
      %86 = sbr.rel (0) target = $region45
    $region44: #{tpu_custom_call.1} parent=1 // pred_region
      %88 = dma.done [#allocation7], 9216
    $region45: #{tpu_custom_call.1} parent=1 // pred_fallthru
      _
    // Predicated region
    $region46: #{tpu_custom_call.1} parent=1 // pred_check
      _
    $region47: #{tpu_custom_call.1} parent=1 // pred_check_branch
      %90 = sbr.rel (0) target = $region49
    $region48: #{tpu_custom_call.1} parent=1 // pred_region
      %92 = dma.done [#allocation10], 4096
    $region49: #{tpu_custom_call.1} parent=1 // pred_fallthru
      _
    %v94 = vld [vmem:[#allocation3] sm:$0xf]
    %v95 = vld [vmem:[#allocation3 + $0x4] sm:$0xf]
    %v96 = vld [vmem:[#allocation3 + $0x8] sm:$0xf]
    %v97 = vld [vmem:[#allocation3 + $0xc] sm:$0xf]
    %v98 = vld [vmem:[#allocation3 + $0x10] sm:$0xf]
    %v99 = vld [vmem:[#allocation3 + $0x14] sm:$0xf]
    %v100 = vld [vmem:[#allocation3 + $0x18] sm:$0xf]
    %v101 = vld [vmem:[#allocation3 + $0x1c] sm:$0xf]
    %v102 = vld [vmem:[#allocation3 + $0x20] sm:$0xf]
    %v103 = vld [vmem:[#allocation3 + $0x24] sm:$0xf]
    %v104 = vld [vmem:[#allocation3 + $0x28] sm:$0xf]
    %v105 = vld [vmem:[#allocation3 + $0x2c] sm:$0xf]
    %v106 = vld [vmem:[#allocation3 + $0x30] sm:$0xf]
    %v107 = vld [vmem:[#allocation3 + $0x34] sm:$0xf]
    %v108 = vld [vmem:[#allocation3 + $0x38] sm:$0xf]
    %v109 = vld [vmem:[#allocation3 + $0x3c] sm:$0xf]
    %v110 = vld [vmem:[#allocation3 + $0x40] sm:$0xf]
    %v111 = vld [vmem:[#allocation3 + $0x44] sm:$0xf]
    %v112 = vld [vmem:[#allocation3 + $0x48] sm:$0xf]
    %v113 = vld [vmem:[#allocation3 + $0x4c] sm:$0xf]
    %v114 = vld [vmem:[#allocation3 + $0x50] sm:$0xf]
    %v115 = vld [vmem:[#allocation3 + $0x54] sm:$0xf]
    %v116 = vld [vmem:[#allocation3 + $0x58] sm:$0xf]
    %v117 = vld [vmem:[#allocation3 + $0x5c] sm:$0xf]
    %v118 = vld [vmem:[#allocation3 + $0x60] sm:$0xf]
    %v119 = vld [vmem:[#allocation3 + $0x64] sm:$0xf]
    %v120 = vld [vmem:[#allocation3 + $0x68] sm:$0xf]
    %v121 = vld [vmem:[#allocation3 + $0x6c] sm:$0xf]
    %v122 = vld [vmem:[#allocation3 + $0x70] sm:$0xf]
    %v123 = vld [vmem:[#allocation3 + $0x74] sm:$0xf]
    %v124 = vld [vmem:[#allocation3 + $0x78] sm:$0xf]
    %v125 = vld [vmem:[#allocation3 + $0x7c] sm:$0xf]
    %v126 = vld [vmem:[#allocation3 + $0x80] sm:$0xf]
    %v127 = vld [vmem:[#allocation3 + $0x84] sm:$0xf]
    %v128 = vld [vmem:[#allocation3 + $0x88] sm:$0xf]
    %v129 = vld [vmem:[#allocation3 + $0x8c] sm:$0xf]
    %v130 = vld [vmem:[#allocation3 + $0x90] sm:$0xf]
    %v131 = vld [vmem:[#allocation3 + $0x94] sm:$0xf]
    %v132 = vld [vmem:[#allocation3 + $0x98] sm:$0xf]
    %v133 = vld [vmem:[#allocation3 + $0x9c] sm:$0xf]
    %v134 = vld [vmem:[#allocation3 + $0xa0] sm:$0xf]
    %v135 = vld [vmem:[#allocation3 + $0xa4] sm:$0xf]
    %v136 = vld [vmem:[#allocation3 + $0xa8] sm:$0xf]
    %v137 = vld [vmem:[#allocation3 + $0xac] sm:$0xf]
    %v138 = vld [vmem:[#allocation3 + $0xb0] sm:$0xf]
    %v139 = vld [vmem:[#allocation3 + $0xb4] sm:$0xf]
    %v140 = vld [vmem:[#allocation3 + $0xb8] sm:$0xf]
    %v141 = vld [vmem:[#allocation3 + $0xbc] sm:$0xf]
    %v142 = vld [vmem:[#allocation3 + $0xc0] sm:$0xf]
    %v143 = vld [vmem:[#allocation3 + $0xc4] sm:$0xf]
    %v144 = vld [vmem:[#allocation3 + $0xc8] sm:$0xf]
    %v145 = vld [vmem:[#allocation3 + $0xcc] sm:$0xf]
    %v146 = vld [vmem:[#allocation3 + $0xd0] sm:$0xf]
    %v147 = vld [vmem:[#allocation3 + $0xd4] sm:$0xf]
    %v148 = vld [vmem:[#allocation3 + $0xd8] sm:$0xf]
    %v149 = vld [vmem:[#allocation3 + $0xdc] sm:$0xf]
    %v150 = vld [vmem:[#allocation3 + $0xe0] sm:$0xf]
    %v151 = vld [vmem:[#allocation3 + $0xe4] sm:$0xf]
    %v152 = vld [vmem:[#allocation3 + $0xe8] sm:$0xf]
    %v153 = vld [vmem:[#allocation3 + $0xec] sm:$0xf]
    %v154 = vld [vmem:[#allocation3 + $0xf0] sm:$0xf]
    %v155 = vld [vmem:[#allocation3 + $0xf4] sm:$0xf]
    %v156 = vld [vmem:[#allocation3 + $0xf8] sm:$0xf]
    %v157 = vld [vmem:[#allocation3 + $0xfc] sm:$0xf]
    %v158 = vld [vmem:[#allocation6] sm:$0xf]
    %v159 = vld [vmem:[#allocation6 + $0x4] sm:$0xf]
    %v160 = vld [vmem:[#allocation6 + $0x8] sm:$0xf]
    %v161 = vld [vmem:[#allocation6 + $0xc] sm:$0xf]
    %v162 = vld [vmem:[#allocation6 + $0x10] sm:$0xf]
    %v163 = vld [vmem:[#allocation6 + $0x14] sm:$0xf]
    %v164 = vld [vmem:[#allocation6 + $0x18] sm:$0xf]
    %v165 = vld [vmem:[#allocation6 + $0x1c] sm:$0xf]
    %v166 = vld [vmem:[#allocation6 + $0x20] sm:$0xf]
    %v167 = vld [vmem:[#allocation6 + $0x24] sm:$0xf]
    %v168 = vld [vmem:[#allocation6 + $0x28] sm:$0xf]
    %v169 = vld [vmem:[#allocation6 + $0x2c] sm:$0xf]
    %v170 = vld [vmem:[#allocation6 + $0x30] sm:$0xf]
    %v171 = vld [vmem:[#allocation6 + $0x34] sm:$0xf]
    %v172 = vld [vmem:[#allocation6 + $0x38] sm:$0xf]
    %v173 = vld [vmem:[#allocation6 + $0x3c] sm:$0xf]
    %v238 = vunpack.c.l.b16 %v94
    %v239 = vunpack.c.l.b16 %v95
    %v240 = vunpack.c.l.b16 %v96
    %v241 = vunpack.c.l.b16 %v97
    %v242 = vunpack.c.l.b16 %v98
    %v243 = vunpack.c.l.b16 %v99
    %v244 = vunpack.c.l.b16 %v100
    %v245 = vunpack.c.l.b16 %v101
    %v246 = vunpack.c.l.b16 %v102
    %v247 = vunpack.c.l.b16 %v103
    %v248 = vunpack.c.l.b16 %v104
    %v249 = vunpack.c.l.b16 %v105
    %v250 = vunpack.c.l.b16 %v106
    %v251 = vunpack.c.l.b16 %v107
    %v252 = vunpack.c.l.b16 %v108
    %v253 = vunpack.c.l.b16 %v109
    %v254 = vunpack.c.l.b16 %v110
    %v255 = vunpack.c.l.b16 %v111
    %v256 = vunpack.c.l.b16 %v112
    %v257 = vunpack.c.l.b16 %v113
    %v258 = vunpack.c.l.b16 %v114
    %v259 = vunpack.c.l.b16 %v115
    %v260 = vunpack.c.l.b16 %v116
    %v261 = vunpack.c.l.b16 %v117
    %v262 = vunpack.c.l.b16 %v118
    %v263 = vunpack.c.l.b16 %v119
    %v264 = vunpack.c.l.b16 %v120
    %v265 = vunpack.c.l.b16 %v121
    %v266 = vunpack.c.l.b16 %v122
    %v267 = vunpack.c.l.b16 %v123
    %v268 = vunpack.c.l.b16 %v124
    %v269 = vunpack.c.l.b16 %v125
    %v270 = vunpack.c.l.b16 %v126
    %v271 = vunpack.c.l.b16 %v127
    %v272 = vunpack.c.l.b16 %v128
    %v273 = vunpack.c.l.b16 %v129
    %v274 = vunpack.c.l.b16 %v130
    %v275 = vunpack.c.l.b16 %v131
    %v276 = vunpack.c.l.b16 %v132
    %v277 = vunpack.c.l.b16 %v133
    %v278 = vunpack.c.l.b16 %v134
    %v279 = vunpack.c.l.b16 %v135
    %v280 = vunpack.c.l.b16 %v136
    %v281 = vunpack.c.l.b16 %v137
    %v282 = vunpack.c.l.b16 %v138
    %v283 = vunpack.c.l.b16 %v139
    %v284 = vunpack.c.l.b16 %v140
    %v285 = vunpack.c.l.b16 %v141
    %v286 = vunpack.c.l.b16 %v142
    %v287 = vunpack.c.l.b16 %v143
    %v288 = vunpack.c.l.b16 %v144
    %v289 = vunpack.c.l.b16 %v145
    %v290 = vunpack.c.l.b16 %v146
    %v291 = vunpack.c.l.b16 %v147
    %v292 = vunpack.c.l.b16 %v148
    %v293 = vunpack.c.l.b16 %v149
    %v294 = vunpack.c.l.b16 %v150
    %v295 = vunpack.c.l.b16 %v151
    %v296 = vunpack.c.l.b16 %v152
    %v297 = vunpack.c.l.b16 %v153
    %v298 = vunpack.c.l.b16 %v154
    %v299 = vunpack.c.l.b16 %v155
    %v300 = vunpack.c.l.b16 %v156
    %v301 = vunpack.c.l.b16 %v157
    %v302 = vpack.c.b16 %v239, %v238
    %v303 = vpack.c.b16 %v241, %v240
    %v304 = vpack.c.b16 %v243, %v242
    %v305 = vpack.c.b16 %v245, %v244
    %v306 = vpack.c.b16 %v247, %v246
    %v307 = vpack.c.b16 %v249, %v248
    %v308 = vpack.c.b16 %v251, %v250
    %v309 = vpack.c.b16 %v253, %v252
    %v310 = vpack.c.b16 %v255, %v254
    %v311 = vpack.c.b16 %v257, %v256
    %v312 = vpack.c.b16 %v259, %v258
    %v313 = vpack.c.b16 %v261, %v260
    %v314 = vpack.c.b16 %v263, %v262
    %v315 = vpack.c.b16 %v265, %v264
    %v316 = vpack.c.b16 %v267, %v266
    %v317 = vpack.c.b16 %v269, %v268
    %v318 = vpack.c.b16 %v271, %v270
    %v319 = vpack.c.b16 %v273, %v272
    %v320 = vpack.c.b16 %v275, %v274
    %v321 = vpack.c.b16 %v277, %v276
    %v322 = vpack.c.b16 %v279, %v278
    %v323 = vpack.c.b16 %v281, %v280
    %v324 = vpack.c.b16 %v283, %v282
    %v325 = vpack.c.b16 %v285, %v284
    %v326 = vpack.c.b16 %v287, %v286
    %v327 = vpack.c.b16 %v289, %v288
    %v328 = vpack.c.b16 %v291, %v290
    %v329 = vpack.c.b16 %v293, %v292
    %v330 = vpack.c.b16 %v295, %v294
    %v331 = vpack.c.b16 %v297, %v296
    %v332 = vpack.c.b16 %v299, %v298
    %v333 = vpack.c.b16 %v301, %v300
    %v382 = vunpack.c.l.b16 %v158
    %v383 = vunpack.c.l.b16 %v159
    %v384 = vunpack.c.l.b16 %v160
    %v385 = vunpack.c.l.b16 %v161
    %v386 = vunpack.c.l.b16 %v162
    %v387 = vunpack.c.l.b16 %v163
    %v388 = vunpack.c.l.b16 %v164
    %v389 = vunpack.c.l.b16 %v165
    %v390 = vunpack.c.l.b16 %v166
    %v391 = vunpack.c.l.b16 %v167
    %v392 = vunpack.c.l.b16 %v168
    %v393 = vunpack.c.l.b16 %v169
    %v394 = vunpack.c.l.b16 %v170
    %v395 = vunpack.c.l.b16 %v171
    %v396 = vunpack.c.l.b16 %v172
    %v397 = vunpack.c.l.b16 %v173
    %v398 = vpack.c.b16 %v383, %v382
    %v399 = vpack.c.b16 %v385, %v384
    %v400 = vpack.c.b16 %v387, %v386
    %v401 = vpack.c.b16 %v389, %v388
    %v402 = vpack.c.b16 %v391, %v390
    %v403 = vpack.c.b16 %v393, %v392
    %v404 = vpack.c.b16 %v395, %v394
    %v405 = vpack.c.b16 %v397, %v396
    %414 = vmatpush.bf16.msra.mxu0 %v405
    %415 = vmatpush.bf16.msra.mxu0 %v404
    %416 = vmatpush.bf16.msra.mxu0 %v403
    %417 = vmatpush.bf16.msra.mxu0 %v402
    %418 = vmatpush.bf16.msra.mxu0 %v401
    %419 = vmatpush.bf16.msra.mxu0 %v400
    %420 = vmatpush.bf16.msra.mxu0 %v399
    %421 = vmatpush.bf16.msra.mxu0 %v398
    %422 = vmatmul.bf16.gmra.mxu0 %v302
    %v423 = vpop.f32.mrf.mxu0
    %v424 = vadd.f32 0.0, %v423
    %v425 = vpop.f32.mrf.mxu0
    %v426 = vadd.f32 0.0, %v425
    %427 = vmatmul.bf16.gmra.mxu0 %v303
    %v428 = vpop.f32.mrf.mxu0
    %v429 = vadd.f32 0.0, %v428
    %v430 = vpop.f32.mrf.mxu0
    %v431 = vadd.f32 0.0, %v430
    %432 = vmatmul.bf16.gmra.mxu0 %v304
    %v433 = vpop.f32.mrf.mxu0
    %v434 = vadd.f32 0.0, %v433
    %v435 = vpop.f32.mrf.mxu0
    %v436 = vadd.f32 0.0, %v435
    %437 = vmatmul.bf16.gmra.mxu0 %v305
    %v438 = vpop.f32.mrf.mxu0
    %v439 = vadd.f32 0.0, %v438
    %v440 = vpop.f32.mrf.mxu0
    %v441 = vadd.f32 0.0, %v440
    %442 = vmatmul.bf16.gmra.mxu0 %v306
    %v443 = vpop.f32.mrf.mxu0
    %v444 = vadd.f32 0.0, %v443
    %v445 = vpop.f32.mrf.mxu0
    %v446 = vadd.f32 0.0, %v445
    %447 = vmatmul.bf16.gmra.mxu0 %v307
    %v448 = vpop.f32.mrf.mxu0
    %v449 = vadd.f32 0.0, %v448
    %v450 = vpop.f32.mrf.mxu0
    %v451 = vadd.f32 0.0, %v450
    %452 = vmatmul.bf16.gmra.mxu0 %v308
    %v453 = vpop.f32.mrf.mxu0
    %v454 = vadd.f32 0.0, %v453
    %v455 = vpop.f32.mrf.mxu0
    %v456 = vadd.f32 0.0, %v455
    %457 = vmatmul.bf16.gmra.mxu0 %v309
    %v458 = vpop.f32.mrf.mxu0
    %v459 = vadd.f32 0.0, %v458
    %v460 = vpop.f32.mrf.mxu0
    %v461 = vadd.f32 0.0, %v460
    %462 = vmatmul.bf16.gmra.mxu0 %v310
    %v463 = vpop.f32.mrf.mxu0
    %v464 = vadd.f32 0.0, %v463
    %v465 = vpop.f32.mrf.mxu0
    %v466 = vadd.f32 0.0, %v465
    %467 = vmatmul.bf16.gmra.mxu0 %v311
    %v468 = vpop.f32.mrf.mxu0
    %v469 = vadd.f32 0.0, %v468
    %v470 = vpop.f32.mrf.mxu0
    %v471 = vadd.f32 0.0, %v470
    %472 = vmatmul.bf16.gmra.mxu0 %v312
    %v473 = vpop.f32.mrf.mxu0
    %v474 = vadd.f32 0.0, %v473
    %v475 = vpop.f32.mrf.mxu0
    %v476 = vadd.f32 0.0, %v475
    %477 = vmatmul.bf16.gmra.mxu0 %v313
    %v478 = vpop.f32.mrf.mxu0
    %v479 = vadd.f32 0.0, %v478
    %v480 = vpop.f32.mrf.mxu0
    %v481 = vadd.f32 0.0, %v480
    %482 = vmatmul.bf16.gmra.mxu0 %v314
    %v483 = vpop.f32.mrf.mxu0
    %v484 = vadd.f32 0.0, %v483
    %v485 = vpop.f32.mrf.mxu0
    %v486 = vadd.f32 0.0, %v485
    %487 = vmatmul.bf16.gmra.mxu0 %v315
    %v488 = vpop.f32.mrf.mxu0
    %v489 = vadd.f32 0.0, %v488
    %v490 = vpop.f32.mrf.mxu0
    %v491 = vadd.f32 0.0, %v490
    %492 = vmatmul.bf16.gmra.mxu0 %v316
    %v493 = vpop.f32.mrf.mxu0
    %v494 = vadd.f32 0.0, %v493
    %v495 = vpop.f32.mrf.mxu0
    %v496 = vadd.f32 0.0, %v495
    %497 = vmatmul.bf16.gmra.mxu0 %v317
    %v498 = vpop.f32.mrf.mxu0
    %v499 = vadd.f32 0.0, %v498
    %v500 = vpop.f32.mrf.mxu0
    %v501 = vadd.f32 0.0, %v500
    %502 = vmatmul.bf16.gmra.mxu0 %v318
    %v503 = vpop.f32.mrf.mxu0
    %v504 = vadd.f32 0.0, %v503
    %v505 = vpop.f32.mrf.mxu0
    %v506 = vadd.f32 0.0, %v505
    %507 = vmatmul.bf16.gmra.mxu0 %v319
    %v508 = vpop.f32.mrf.mxu0
    %v509 = vadd.f32 0.0, %v508
    %v510 = vpop.f32.mrf.mxu0
    %v511 = vadd.f32 0.0, %v510
    %512 = vmatmul.bf16.gmra.mxu0 %v320
    %v513 = vpop.f32.mrf.mxu0
    %v514 = vadd.f32 0.0, %v513
    %v515 = vpop.f32.mrf.mxu0
    %v516 = vadd.f32 0.0, %v515
    %517 = vmatmul.bf16.gmra.mxu0 %v321
    %v518 = vpop.f32.mrf.mxu0
    %v519 = vadd.f32 0.0, %v518
    %v520 = vpop.f32.mrf.mxu0
    %v521 = vadd.f32 0.0, %v520
    %522 = vmatmul.bf16.gmra.mxu0 %v322
    %v523 = vpop.f32.mrf.mxu0
    %v524 = vadd.f32 0.0, %v523
    %v525 = vpop.f32.mrf.mxu0
    %v526 = vadd.f32 0.0, %v525
    %527 = vmatmul.bf16.gmra.mxu0 %v323
    %v528 = vpop.f32.mrf.mxu0
    %v529 = vadd.f32 0.0, %v528
    %v530 = vpop.f32.mrf.mxu0
    %v531 = vadd.f32 0.0, %v530
    %532 = vmatmul.bf16.gmra.mxu0 %v324
    %v533 = vpop.f32.mrf.mxu0
    %v534 = vadd.f32 0.0, %v533
    %v535 = vpop.f32.mrf.mxu0
    %v536 = vadd.f32 0.0, %v535
    %537 = vmatmul.bf16.gmra.mxu0 %v325
    %v538 = vpop.f32.mrf.mxu0
    %v539 = vadd.f32 0.0, %v538
    %v540 = vpop.f32.mrf.mxu0
    %v541 = vadd.f32 0.0, %v540
    %542 = vmatmul.bf16.gmra.mxu0 %v326
    %v543 = vpop.f32.mrf.mxu0
    %v544 = vadd.f32 0.0, %v543
    %v545 = vpop.f32.mrf.mxu0
    %v546 = vadd.f32 0.0, %v545
    %547 = vmatmul.bf16.gmra.mxu0 %v327
    %v548 = vpop.f32.mrf.mxu0
    %v549 = vadd.f32 0.0, %v548
    %v550 = vpop.f32.mrf.mxu0
    %v551 = vadd.f32 0.0, %v550
    %552 = vmatmul.bf16.gmra.mxu0 %v328
    %v553 = vpop.f32.mrf.mxu0
    %v554 = vadd.f32 0.0, %v553
    %v555 = vpop.f32.mrf.mxu0
    %v556 = vadd.f32 0.0, %v555
    %557 = vmatmul.bf16.gmra.mxu0 %v329
    %v558 = vpop.f32.mrf.mxu0
    %v559 = vadd.f32 0.0, %v558
    %v560 = vpop.f32.mrf.mxu0
    %v561 = vadd.f32 0.0, %v560
    %562 = vmatmul.bf16.gmra.mxu0 %v330
    %v563 = vpop.f32.mrf.mxu0
    %v564 = vadd.f32 0.0, %v563
    %v565 = vpop.f32.mrf.mxu0
    %v566 = vadd.f32 0.0, %v565
    %567 = vmatmul.bf16.gmra.mxu0 %v331
    %v568 = vpop.f32.mrf.mxu0
    %v569 = vadd.f32 0.0, %v568
    %v570 = vpop.f32.mrf.mxu0
    %v571 = vadd.f32 0.0, %v570
    %572 = vmatmul.bf16.gmra.mxu0 %v332
    %v573 = vpop.f32.mrf.mxu0
    %v574 = vadd.f32 0.0, %v573
    %v575 = vpop.f32.mrf.mxu0
    %v576 = vadd.f32 0.0, %v575
    %577 = vmatmul.bf16.gmra.mxu0 %v333
    %v578 = vpop.f32.mrf.mxu0
    %v579 = vadd.f32 0.0, %v578
    %v580 = vpop.f32.mrf.mxu0
    %v581 = vadd.f32 0.0, %v580
    %582 = vdwg.mxu0
    %v583 = vld [vmem:[%s2] sm:$0x1]
    %v584 = vld [vmem:[%s3] sm:$0x1]
    %v585 = vadd.f32 %v424, %v426
    %v586 = vadd.f32 %v585, %v429
    %v587 = vadd.f32 %v586, %v431
    %v588 = vadd.f32 %v587, %v434
    %v589 = vadd.f32 %v588, %v436
    %v590 = vadd.f32 %v589, %v439
    %v591 = vadd.f32 %v590, %v441
    %v592 = vadd.f32 %v591, %v444
    %v593 = vadd.f32 %v592, %v446
    %v594 = vadd.f32 %v593, %v449
    %v595 = vadd.f32 %v594, %v451
    %v596 = vadd.f32 %v595, %v454
    %v597 = vadd.f32 %v596, %v456
    %v598 = vadd.f32 %v597, %v459
    %v599 = vadd.f32 %v598, %v461
    %v600 = vadd.f32 %v599, %v464
    %v601 = vadd.f32 %v600, %v466
    %v602 = vadd.f32 %v601, %v469
    %v603 = vadd.f32 %v602, %v471
    %v604 = vadd.f32 %v603, %v474
    %v605 = vadd.f32 %v604, %v476
    %v606 = vadd.f32 %v605, %v479
    %v607 = vadd.f32 %v606, %v481
    %v608 = vadd.f32 %v607, %v484
    %v609 = vadd.f32 %v608, %v486
    %v610 = vadd.f32 %v609, %v489
    %v611 = vadd.f32 %v610, %v491
    %v612 = vadd.f32 %v611, %v494
    %v613 = vadd.f32 %v612, %v496
    %v614 = vadd.f32 %v613, %v499
    %v615 = vadd.f32 %v614, %v501
    %v616 = vadd.f32 %v615, %v504
    %v617 = vadd.f32 %v616, %v506
    %v618 = vadd.f32 %v617, %v509
    %v619 = vadd.f32 %v618, %v511
    %v620 = vadd.f32 %v619, %v514
    %v621 = vadd.f32 %v620, %v516
    %v622 = vadd.f32 %v621, %v519
    %v623 = vadd.f32 %v622, %v521
    %v624 = vadd.f32 %v623, %v524
    %v625 = vadd.f32 %v624, %v526
    %v626 = vadd.f32 %v625, %v529
    %v627 = vadd.f32 %v626, %v531
    %v628 = vadd.f32 %v627, %v534
    %v629 = vadd.f32 %v628, %v536
    %v630 = vadd.f32 %v629, %v539
    %v631 = vadd.f32 %v630, %v541
    %v632 = vadd.f32 %v631, %v544
    %v633 = vadd.f32 %v632, %v546
    %v634 = vadd.f32 %v633, %v549
    %v635 = vadd.f32 %v634, %v551
    %v636 = vadd.f32 %v635, %v554
    %v637 = vadd.f32 %v636, %v556
    %v638 = vadd.f32 %v637, %v559
    %v639 = vadd.f32 %v638, %v561
    %v640 = vadd.f32 %v639, %v564
    %v641 = vadd.f32 %v640, %v566
    %v642 = vadd.f32 %v641, %v569
    %v643 = vadd.f32 %v642, %v571
    %v644 = vadd.f32 %v643, %v574
    %v645 = vadd.f32 %v644, %v576
    %v646 = vadd.f32 %v645, %v579
    %v647 = vadd.f32 %v646, %v581
    %v648 = vrot.slane %v647, 4
    %v649 = vadd.f32 %v647, %v648
    %v650 = vrot.slane %v649, 2
    %v651 = vadd.f32 %v649, %v650
    %v652 = vrot.slane %v651, 1
    %v653 = vadd.f32 %v651, %v652
    %v654 = vrcp.pop 512.0
    %v655 = vmul.f32 512.0, %v654
    %v656 = vsub.f32 1.0, %v655
    %v657 = vmul.f32 %v654, %v656
    %v658 = vadd.f32 %v654, %v657
    %vm659 = vweird.f32 %v654
    %v660 = vsel %vm659, %v654, %v658
    %v661 = vmul.f32 %v653, %v660
    %v662 = vmul.f32 %v424, %v424
    %v663 = vmul.f32 %v426, %v426
    %v664 = vmul.f32 %v429, %v429
    %v665 = vmul.f32 %v431, %v431
    %v666 = vmul.f32 %v434, %v434
    %v667 = vmul.f32 %v436, %v436
    %v668 = vmul.f32 %v439, %v439
    %v669 = vmul.f32 %v441, %v441
    %v670 = vmul.f32 %v444, %v444
    %v671 = vmul.f32 %v446, %v446
    %v672 = vmul.f32 %v449, %v449
    %v673 = vmul.f32 %v451, %v451
    %v674 = vmul.f32 %v454, %v454
    %v675 = vmul.f32 %v456, %v456
    %v676 = vmul.f32 %v459, %v459
    %v677 = vmul.f32 %v461, %v461
    %v678 = vmul.f32 %v464, %v464
    %v679 = vmul.f32 %v466, %v466
    %v680 = vmul.f32 %v469, %v469
    %v681 = vmul.f32 %v471, %v471
    %v682 = vmul.f32 %v474, %v474
    %v683 = vmul.f32 %v476, %v476
    %v684 = vmul.f32 %v479, %v479
    %v685 = vmul.f32 %v481, %v481
    %v686 = vmul.f32 %v484, %v484
    %v687 = vmul.f32 %v486, %v486
    %v688 = vmul.f32 %v489, %v489
    %v689 = vmul.f32 %v491, %v491
    %v690 = vmul.f32 %v494, %v494
    %v691 = vmul.f32 %v496, %v496
    %v692 = vmul.f32 %v499, %v499
    %v693 = vmul.f32 %v501, %v501
    %v694 = vmul.f32 %v504, %v504
    %v695 = vmul.f32 %v506, %v506
    %v696 = vmul.f32 %v509, %v509
    %v697 = vmul.f32 %v511, %v511
    %v698 = vmul.f32 %v514, %v514
    %v699 = vmul.f32 %v516, %v516
    %v700 = vmul.f32 %v519, %v519
    %v701 = vmul.f32 %v521, %v521
    %v702 = vmul.f32 %v524, %v524
    %v703 = vmul.f32 %v526, %v526
    %v704 = vmul.f32 %v529, %v529
    %v705 = vmul.f32 %v531, %v531
    %v706 = vmul.f32 %v534, %v534
    %v707 = vmul.f32 %v536, %v536
    %v708 = vmul.f32 %v539, %v539
    %v709 = vmul.f32 %v541, %v541
    %v710 = vmul.f32 %v544, %v544
    %v711 = vmul.f32 %v546, %v546
    %v712 = vmul.f32 %v549, %v549
    %v713 = vmul.f32 %v551, %v551
    %v714 = vmul.f32 %v554, %v554
    %v715 = vmul.f32 %v556, %v556
    %v716 = vmul.f32 %v559, %v559
    %v717 = vmul.f32 %v561, %v561
    %v718 = vmul.f32 %v564, %v564
    %v719 = vmul.f32 %v566, %v566
    %v720 = vmul.f32 %v569, %v569
    %v721 = vmul.f32 %v571, %v571
    %v722 = vmul.f32 %v574, %v574
    %v723 = vmul.f32 %v576, %v576
    %v724 = vmul.f32 %v579, %v579
    %v725 = vmul.f32 %v581, %v581
    %v726 = vadd.f32 %v662, %v663
    %v727 = vadd.f32 %v726, %v664
    %v728 = vadd.f32 %v727, %v665
    %v729 = vadd.f32 %v728, %v666
    %v730 = vadd.f32 %v729, %v667
    %v731 = vadd.f32 %v730, %v668
    %v732 = vadd.f32 %v731, %v669
    %v733 = vadd.f32 %v732, %v670
    %v734 = vadd.f32 %v733, %v671
    %v735 = vadd.f32 %v734, %v672
    %v736 = vadd.f32 %v735, %v673
    %v737 = vadd.f32 %v736, %v674
    %v738 = vadd.f32 %v737, %v675
    %v739 = vadd.f32 %v738, %v676
    %v740 = vadd.f32 %v739, %v677
    %v741 = vadd.f32 %v740, %v678
    %v742 = vadd.f32 %v741, %v679
    %v743 = vadd.f32 %v742, %v680
    %v744 = vadd.f32 %v743, %v681
    %v745 = vadd.f32 %v744, %v682
    %v746 = vadd.f32 %v745, %v683
    %v747 = vadd.f32 %v746, %v684
    %v748 = vadd.f32 %v747, %v685
    %v749 = vadd.f32 %v748, %v686
    %v750 = vadd.f32 %v749, %v687
    %v751 = vadd.f32 %v750, %v688
    %v752 = vadd.f32 %v751, %v689
    %v753 = vadd.f32 %v752, %v690
    %v754 = vadd.f32 %v753, %v691
    %v755 = vadd.f32 %v754, %v692
    %v756 = vadd.f32 %v755, %v693
    %v757 = vadd.f32 %v756, %v694
    %v758 = vadd.f32 %v757, %v695
    %v759 = vadd.f32 %v758, %v696
    %v760 = vadd.f32 %v759, %v697
    %v761 = vadd.f32 %v760, %v698
    %v762 = vadd.f32 %v761, %v699
    %v763 = vadd.f32 %v762, %v700
    %v764 = vadd.f32 %v763, %v701
    %v765 = vadd.f32 %v764, %v702
    %v766 = vadd.f32 %v765, %v703
    %v767 = vadd.f32 %v766, %v704
    %v768 = vadd.f32 %v767, %v705
    %v769 = vadd.f32 %v768, %v706
    %v770 = vadd.f32 %v769, %v707
    %v771 = vadd.f32 %v770, %v708
    %v772 = vadd.f32 %v771, %v709
    %v773 = vadd.f32 %v772, %v710
    %v774 = vadd.f32 %v773, %v711
    %v775 = vadd.f32 %v774, %v712
    %v776 = vadd.f32 %v775, %v713
    %v777 = vadd.f32 %v776, %v714
    %v778 = vadd.f32 %v777, %v715
    %v779 = vadd.f32 %v778, %v716
    %v780 = vadd.f32 %v779, %v717
    %v781 = vadd.f32 %v780, %v718
    %v782 = vadd.f32 %v781, %v719
    %v783 = vadd.f32 %v782, %v720
    %v784 = vadd.f32 %v783, %v721
    %v785 = vadd.f32 %v784, %v722
    %v786 = vadd.f32 %v785, %v723
    %v787 = vadd.f32 %v786, %v724
    %v788 = vadd.f32 %v787, %v725
    %v789 = vrot.slane %v788, 4
    %v790 = vadd.f32 %v788, %v789
    %v791 = vrot.slane %v790, 2
    %v792 = vadd.f32 %v790, %v791
    %v793 = vrot.slane %v792, 1
    %v794 = vadd.f32 %v792, %v793
    %v795 = vmul.f32 %v794, %v660
    %v796 = vmul.f32 %v661, %v661
    %v797 = vsub.f32 %v795, %v796
    %v798 = vmax.f32 %v797, 0.0
    %v799 = vadd.f32 %v798, 1e-05
    %v800 = vrsqrt.pop %v799
    %v801 = vmul.f32 %v800, %v799
    %v802 = vmul.f32 %v801, %v800
    %v803 = vmul.f32 0.5, %v802
    %v804 = vsub.f32 1.5, %v803
    %v805 = vmul.f32 %v800, %v804
    %vm806 = vweird.f32 %v799
    %vm807 = vweird.f32 %v800
    %vm808 = vmor %vm806, %vm807
    %v809 = vsel %vm808, %v800, %v805
    %v810 = vsub.f32 %v424, %v661
    %v811 = vsub.f32 %v426, %v661
    %v812 = vsub.f32 %v429, %v661
    %v813 = vsub.f32 %v431, %v661
    %v814 = vsub.f32 %v434, %v661
    %v815 = vsub.f32 %v436, %v661
    %v816 = vsub.f32 %v439, %v661
    %v817 = vsub.f32 %v441, %v661
    %v818 = vsub.f32 %v444, %v661
    %v819 = vsub.f32 %v446, %v661
    %v820 = vsub.f32 %v449, %v661
    %v821 = vsub.f32 %v451, %v661
    %v822 = vsub.f32 %v454, %v661
    %v823 = vsub.f32 %v456, %v661
    %v824 = vsub.f32 %v459, %v661
    %v825 = vsub.f32 %v461, %v661
    %v826 = vsub.f32 %v464, %v661
    %v827 = vsub.f32 %v466, %v661
    %v828 = vsub.f32 %v469, %v661
    %v829 = vsub.f32 %v471, %v661
    %v830 = vsub.f32 %v474, %v661
    %v831 = vsub.f32 %v476, %v661
    %v832 = vsub.f32 %v479, %v661
    %v833 = vsub.f32 %v481, %v661
    %v834 = vsub.f32 %v484, %v661
    %v835 = vsub.f32 %v486, %v661
    %v836 = vsub.f32 %v489, %v661
    %v837 = vsub.f32 %v491, %v661
    %v838 = vsub.f32 %v494, %v661
    %v839 = vsub.f32 %v496, %v661
    %v840 = vsub.f32 %v499, %v661
    %v841 = vsub.f32 %v501, %v661
    %v842 = vsub.f32 %v504, %v661
    %v843 = vsub.f32 %v506, %v661
    %v844 = vsub.f32 %v509, %v661
    %v845 = vsub.f32 %v511, %v661
    %v846 = vsub.f32 %v514, %v661
    %v847 = vsub.f32 %v516, %v661
    %v848 = vsub.f32 %v519, %v661
    %v849 = vsub.f32 %v521, %v661
    %v850 = vsub.f32 %v524, %v661
    %v851 = vsub.f32 %v526, %v661
    %v852 = vsub.f32 %v529, %v661
    %v853 = vsub.f32 %v531, %v661
    %v854 = vsub.f32 %v534, %v661
    %v855 = vsub.f32 %v536, %v661
    %v856 = vsub.f32 %v539, %v661
    %v857 = vsub.f32 %v541, %v661
    %v858 = vsub.f32 %v544, %v661
    %v859 = vsub.f32 %v546, %v661
    %v860 = vsub.f32 %v549, %v661
    %v861 = vsub.f32 %v551, %v661
    %v862 = vsub.f32 %v554, %v661
    %v863 = vsub.f32 %v556, %v661
    %v864 = vsub.f32 %v559, %v661
    %v865 = vsub.f32 %v561, %v661
    %v866 = vsub.f32 %v564, %v661
    %v867 = vsub.f32 %v566, %v661
    %v868 = vsub.f32 %v569, %v661
    %v869 = vsub.f32 %v571, %v661
    %v870 = vsub.f32 %v574, %v661
    %v871 = vsub.f32 %v576, %v661
    %v872 = vsub.f32 %v579, %v661
    %v873 = vsub.f32 %v581, %v661
    %v874 = vmul.f32 %v809, %v583
    %v875 = vperm.slane %v874, 0
    %v876 = vmul.f32 %v810, %v875
    %v877 = vmul.f32 %v811, %v875
    %v878 = vmul.f32 %v812, %v875
    %v879 = vmul.f32 %v813, %v875
    %v880 = vmul.f32 %v814, %v875
    %v881 = vmul.f32 %v815, %v875
    %v882 = vmul.f32 %v816, %v875
    %v883 = vmul.f32 %v817, %v875
    %v884 = vmul.f32 %v818, %v875
    %v885 = vmul.f32 %v819, %v875
    %v886 = vmul.f32 %v820, %v875
    %v887 = vmul.f32 %v821, %v875
    %v888 = vmul.f32 %v822, %v875
    %v889 = vmul.f32 %v823, %v875
    %v890 = vmul.f32 %v824, %v875
    %v891 = vmul.f32 %v825, %v875
    %v892 = vmul.f32 %v826, %v875
    %v893 = vmul.f32 %v827, %v875
    %v894 = vmul.f32 %v828, %v875
    %v895 = vmul.f32 %v829, %v875
    %v896 = vmul.f32 %v830, %v875
    %v897 = vmul.f32 %v831, %v875
    %v898 = vmul.f32 %v832, %v875
    %v899 = vmul.f32 %v833, %v875
    %v900 = vmul.f32 %v834, %v875
    %v901 = vmul.f32 %v835, %v875
    %v902 = vmul.f32 %v836, %v875
    %v903 = vmul.f32 %v837, %v875
    %v904 = vmul.f32 %v838, %v875
    %v905 = vmul.f32 %v839, %v875
    %v906 = vmul.f32 %v840, %v875
    %v907 = vmul.f32 %v841, %v875
    %v908 = vmul.f32 %v842, %v875
    %v909 = vmul.f32 %v843, %v875
    %v910 = vmul.f32 %v844, %v875
    %v911 = vmul.f32 %v845, %v875
    %v912 = vmul.f32 %v846, %v875
    %v913 = vmul.f32 %v847, %v875
    %v914 = vmul.f32 %v848, %v875
    %v915 = vmul.f32 %v849, %v875
    %v916 = vmul.f32 %v850, %v875
    %v917 = vmul.f32 %v851, %v875
    %v918 = vmul.f32 %v852, %v875
    %v919 = vmul.f32 %v853, %v875
    %v920 = vmul.f32 %v854, %v875
    %v921 = vmul.f32 %v855, %v875
    %v922 = vmul.f32 %v856, %v875
    %v923 = vmul.f32 %v857, %v875
    %v924 = vmul.f32 %v858, %v875
    %v925 = vmul.f32 %v859, %v875
    %v926 = vmul.f32 %v860, %v875
    %v927 = vmul.f32 %v861, %v875
    %v928 = vmul.f32 %v862, %v875
    %v929 = vmul.f32 %v863, %v875
    %v930 = vmul.f32 %v864, %v875
    %v931 = vmul.f32 %v865, %v875
    %v932 = vmul.f32 %v866, %v875
    %v933 = vmul.f32 %v867, %v875
    %v934 = vmul.f32 %v868, %v875
    %v935 = vmul.f32 %v869, %v875
    %v936 = vmul.f32 %v870, %v875
    %v937 = vmul.f32 %v871, %v875
    %v938 = vmul.f32 %v872, %v875
    %v939 = vmul.f32 %v873, %v875
    %v941 = vperm.slane %v584, 0
    %v943 = vadd.f32 %v876, %v941
    %v944 = vadd.f32 %v877, %v941
    %v945 = vadd.f32 %v878, %v941
    %v946 = vadd.f32 %v879, %v941
    %v947 = vadd.f32 %v880, %v941
    %v948 = vadd.f32 %v881, %v941
    %v949 = vadd.f32 %v882, %v941
    %v950 = vadd.f32 %v883, %v941
    %v951 = vadd.f32 %v884, %v941
    %v952 = vadd.f32 %v885, %v941
    %v953 = vadd.f32 %v886, %v941
    %v954 = vadd.f32 %v887, %v941
    %v955 = vadd.f32 %v888, %v941
    %v956 = vadd.f32 %v889, %v941
    %v957 = vadd.f32 %v890, %v941
    %v958 = vadd.f32 %v891, %v941
    %v959 = vadd.f32 %v892, %v941
    %v960 = vadd.f32 %v893, %v941
    %v961 = vadd.f32 %v894, %v941
    %v962 = vadd.f32 %v895, %v941
    %v963 = vadd.f32 %v896, %v941
    %v964 = vadd.f32 %v897, %v941
    %v965 = vadd.f32 %v898, %v941
    %v966 = vadd.f32 %v899, %v941
    %v967 = vadd.f32 %v900, %v941
    %v968 = vadd.f32 %v901, %v941
    %v969 = vadd.f32 %v902, %v941
    %v970 = vadd.f32 %v903, %v941
    %v971 = vadd.f32 %v904, %v941
    %v972 = vadd.f32 %v905, %v941
    %v973 = vadd.f32 %v906, %v941
    %v974 = vadd.f32 %v907, %v941
    %v975 = vadd.f32 %v908, %v941
    %v976 = vadd.f32 %v909, %v941
    %v977 = vadd.f32 %v910, %v941
    %v978 = vadd.f32 %v911, %v941
    %v979 = vadd.f32 %v912, %v941
    %v980 = vadd.f32 %v913, %v941
    %v981 = vadd.f32 %v914, %v941
    %v982 = vadd.f32 %v915, %v941
    %v983 = vadd.f32 %v916, %v941
    %v984 = vadd.f32 %v917, %v941
    %v985 = vadd.f32 %v918, %v941
    %v986 = vadd.f32 %v919, %v941
    %v987 = vadd.f32 %v920, %v941
    %v988 = vadd.f32 %v921, %v941
    %v989 = vadd.f32 %v922, %v941
    %v990 = vadd.f32 %v923, %v941
    %v991 = vadd.f32 %v924, %v941
    %v992 = vadd.f32 %v925, %v941
    %v993 = vadd.f32 %v926, %v941
    %v994 = vadd.f32 %v927, %v941
    %v995 = vadd.f32 %v928, %v941
    %v996 = vadd.f32 %v929, %v941
    %v997 = vadd.f32 %v930, %v941
    %v998 = vadd.f32 %v931, %v941
    %v999 = vadd.f32 %v932, %v941
    %v1000 = vadd.f32 %v933, %v941
    %v1001 = vadd.f32 %v934, %v941
    %v1002 = vadd.f32 %v935, %v941
    %v1003 = vadd.f32 %v936, %v941
    %v1004 = vadd.f32 %v937, %v941
    %v1005 = vadd.f32 %v938, %v941
    %v1006 = vadd.f32 %v939, %v941
    %v1007 = vmax.f32 %v943, 0.0
    %v1008 = vmax.f32 %v944, 0.0
    %v1009 = vmax.f32 %v945, 0.0
    %v1010 = vmax.f32 %v946, 0.0
    %v1011 = vmax.f32 %v947, 0.0
    %v1012 = vmax.f32 %v948, 0.0
    %v1013 = vmax.f32 %v949, 0.0
    %v1014 = vmax.f32 %v950, 0.0
    %v1015 = vmax.f32 %v951, 0.0
    %v1016 = vmax.f32 %v952, 0.0
    %v1017 = vmax.f32 %v953, 0.0
    %v1018 = vmax.f32 %v954, 0.0
    %v1019 = vmax.f32 %v955, 0.0
    %v1020 = vmax.f32 %v956, 0.0
    %v1021 = vmax.f32 %v957, 0.0
    %v1022 = vmax.f32 %v958, 0.0
    %v1023 = vmax.f32 %v959, 0.0
    %v1024 = vmax.f32 %v960, 0.0
    %v1025 = vmax.f32 %v961, 0.0
    %v1026 = vmax.f32 %v962, 0.0
    %v1027 = vmax.f32 %v963, 0.0
    %v1028 = vmax.f32 %v964, 0.0
    %v1029 = vmax.f32 %v965, 0.0
    %v1030 = vmax.f32 %v966, 0.0
    %v1031 = vmax.f32 %v967, 0.0
    %v1032 = vmax.f32 %v968, 0.0
    %v1033 = vmax.f32 %v969, 0.0
    %v1034 = vmax.f32 %v970, 0.0
    %v1035 = vmax.f32 %v971, 0.0
    %v1036 = vmax.f32 %v972, 0.0
    %v1037 = vmax.f32 %v973, 0.0
    %v1038 = vmax.f32 %v974, 0.0
    %v1039 = vmax.f32 %v975, 0.0
    %v1040 = vmax.f32 %v976, 0.0
    %v1041 = vmax.f32 %v977, 0.0
    %v1042 = vmax.f32 %v978, 0.0
    %v1043 = vmax.f32 %v979, 0.0
    %v1044 = vmax.f32 %v980, 0.0
    %v1045 = vmax.f32 %v981, 0.0
    %v1046 = vmax.f32 %v982, 0.0
    %v1047 = vmax.f32 %v983, 0.0
    %v1048 = vmax.f32 %v984, 0.0
    %v1049 = vmax.f32 %v985, 0.0
    %v1050 = vmax.f32 %v986, 0.0
    %v1051 = vmax.f32 %v987, 0.0
    %v1052 = vmax.f32 %v988, 0.0
    %v1053 = vmax.f32 %v989, 0.0
    %v1054 = vmax.f32 %v990, 0.0
    %v1055 = vmax.f32 %v991, 0.0
    %v1056 = vmax.f32 %v992, 0.0
    %v1057 = vmax.f32 %v993, 0.0
    %v1058 = vmax.f32 %v994, 0.0
    %v1059 = vmax.f32 %v995, 0.0
    %v1060 = vmax.f32 %v996, 0.0
    %v1061 = vmax.f32 %v997, 0.0
    %v1062 = vmax.f32 %v998, 0.0
    %v1063 = vmax.f32 %v999, 0.0
    %v1064 = vmax.f32 %v1000, 0.0
    %v1065 = vmax.f32 %v1001, 0.0
    %v1066 = vmax.f32 %v1002, 0.0
    %v1067 = vmax.f32 %v1003, 0.0
    %v1068 = vmax.f32 %v1004, 0.0
    %v1069 = vmax.f32 %v1005, 0.0
    %v1070 = vmax.f32 %v1006, 0.0
    %1071 = vst [vmem:[#allocation2] sm:$0xf] 0
    %1072 = vst [vmem:[#allocation2 + $0x4] sm:$0xf] 0
    %1073 = vst [vmem:[#allocation2 + $0x8] sm:$0x1] 0
    %1074 = vst [vmem:[#allocation2 + $0xd8] sm:$0xf] 0
    %1075 = vst [vmem:[#allocation2 + $0xdc] sm:$0xf] 0
    %1076 = vst [vmem:[#allocation2 + $0xe0] sm:$0x1] 0
    %s1077 = scalar_lea.vmem [#allocation2], 204
    %1078 = vst [vmem:[%s1077] sm:$0xf] 0
    %1079 = vst [vmem:[%s1077 + $0x4] sm:$0xf] 0
    %1080 = vst [vmem:[%s1077 + $0x8] sm:$0x1] 0
    %1081 = vst [vmem:[%s1077 + $0xd8] sm:$0xf] 0
    %1082 = vst [vmem:[%s1077 + $0xdc] sm:$0xf] 0
    %1083 = vst [vmem:[%s1077 + $0xe0] sm:$0x1] 0
    %vm1084 = vcmask 1040384
    %vm1085 = vsmask.f32 256
    %vm1086 = vmand %vm1084, %vm1085
    %v1087 = vld [vmem:[#allocation2] sm:$0x1]
    %v1088 = vsel %vm1086, 0, %v1087
    %1089 = vst [vmem:[#allocation2] sm:$0x1] %v1088
    %v1090 = vld [vmem:[#allocation2 + $0xc] sm:$0x1]
    %v1091 = vsel %vm1086, 0, %v1090
    %1092 = vst [vmem:[#allocation2 + $0xc] sm:$0x1] %v1091
    %v1093 = vld [vmem:[#allocation2 + $0x18] sm:$0x1]
    %v1094 = vsel %vm1086, 0, %v1093
    %1095 = vst [vmem:[#allocation2 + $0x18] sm:$0x1] %v1094
    %v1096 = vld [vmem:[#allocation2 + $0x24] sm:$0x1]
    %v1097 = vsel %vm1086, 0, %v1096
    %1098 = vst [vmem:[#allocation2 + $0x24] sm:$0x1] %v1097
    %v1099 = vld [vmem:[#allocation2 + $0x30] sm:$0x1]
    %v1100 = vsel %vm1086, 0, %v1099
    %1101 = vst [vmem:[#allocation2 + $0x30] sm:$0x1] %v1100
    %v1102 = vld [vmem:[#allocation2 + $0x3c] sm:$0x1]
    %v1103 = vsel %vm1086, 0, %v1102
    %1104 = vst [vmem:[#allocation2 + $0x3c] sm:$0x1] %v1103
    %v1105 = vld [vmem:[#allocation2 + $0x48] sm:$0x1]
    %v1106 = vsel %vm1086, 0, %v1105
    %1107 = vst [vmem:[#allocation2 + $0x48] sm:$0x1] %v1106
    %v1108 = vld [vmem:[#allocation2 + $0x54] sm:$0x1]
    %v1109 = vsel %vm1086, 0, %v1108
    %1110 = vst [vmem:[#allocation2 + $0x54] sm:$0x1] %v1109
    %v1111 = vld [vmem:[#allocation2 + $0x60] sm:$0x1]
    %v1112 = vsel %vm1086, 0, %v1111
    %1113 = vst [vmem:[#allocation2 + $0x60] sm:$0x1] %v1112
    %v1114 = vld [vmem:[#allocation2 + $0x6c] sm:$0x1]
    %v1115 = vsel %vm1086, 0, %v1114
    %1116 = vst [vmem:[#allocation2 + $0x6c] sm:$0x1] %v1115
    %v1117 = vld [vmem:[#allocation2 + $0x78] sm:$0x1]
    %v1118 = vsel %vm1086, 0, %v1117
    %1119 = vst [vmem:[#allocation2 + $0x78] sm:$0x1] %v1118
    %v1120 = vld [vmem:[#allocation2 + $0x84] sm:$0x1]
    %v1121 = vsel %vm1086, 0, %v1120
    %1122 = vst [vmem:[#allocation2 + $0x84] sm:$0x1] %v1121
    %v1123 = vld [vmem:[#allocation2 + $0x90] sm:$0x1]
    %v1124 = vsel %vm1086, 0, %v1123
    %1125 = vst [vmem:[#allocation2 + $0x90] sm:$0x1] %v1124
    %v1126 = vld [vmem:[#allocation2 + $0x9c] sm:$0x1]
    %v1127 = vsel %vm1086, 0, %v1126
    %1128 = vst [vmem:[#allocation2 + $0x9c] sm:$0x1] %v1127
    %v1129 = vld [vmem:[#allocation2 + $0xa8] sm:$0x1]
    %v1130 = vsel %vm1086, 0, %v1129
    %1131 = vst [vmem:[#allocation2 + $0xa8] sm:$0x1] %v1130
    %v1132 = vld [vmem:[#allocation2 + $0xb4] sm:$0x1]
    %v1133 = vsel %vm1086, 0, %v1132
    %1134 = vst [vmem:[#allocation2 + $0xb4] sm:$0x1] %v1133
    %v1135 = vld [vmem:[#allocation2 + $0xc0] sm:$0x1]
    %v1136 = vsel %vm1086, 0, %v1135
    %1137 = vst [vmem:[#allocation2 + $0xc0] sm:$0x1] %v1136
    %v1138 = vld [vmem:[#allocation2 + $0xcc] sm:$0x1]
    %v1139 = vsel %vm1086, 0, %v1138
    %1140 = vst [vmem:[#allocation2 + $0xcc] sm:$0x1] %v1139
    %v1141 = vld [vmem:[#allocation2 + $0xd8] sm:$0x1]
    %v1142 = vsel %vm1086, 0, %v1141
    %1143 = vst [vmem:[#allocation2 + $0xd8] sm:$0x1] %v1142
    %v1144 = vld [vmem:[#allocation2 + $0xe4] sm:$0x1]
    %v1145 = vsel %vm1086, 0, %v1144
    %1146 = vst [vmem:[#allocation2 + $0xe4] sm:$0x1] %v1145
    %v1147 = vld [vmem:[#allocation2 + $0xf0] sm:$0x1]
    %v1148 = vsel %vm1086, 0, %v1147
    %1149 = vst [vmem:[#allocation2 + $0xf0] sm:$0x1] %v1148
    %v1150 = vld [vmem:[#allocation2 + $0xfc] sm:$0x1]
    %v1151 = vsel %vm1086, 0, %v1150
    %1152 = vst [vmem:[#allocation2 + $0xfc] sm:$0x1] %v1151
    %v1153 = vld [vmem:[#allocation2 + $0x108] sm:$0x1]
    %v1154 = vsel %vm1086, 0, %v1153
    %1155 = vst [vmem:[#allocation2 + $0x108] sm:$0x1] %v1154
    %v1156 = vld [vmem:[#allocation2 + $0x114] sm:$0x1]
    %v1157 = vsel %vm1086, 0, %v1156
    %1158 = vst [vmem:[#allocation2 + $0x114] sm:$0x1] %v1157
    %v1159 = vld [vmem:[#allocation2 + $0x120] sm:$0x1]
    %v1160 = vsel %vm1086, 0, %v1159
    %1161 = vst [vmem:[#allocation2 + $0x120] sm:$0x1] %v1160
    %v1162 = vld [vmem:[#allocation2 + $0x12c] sm:$0x1]
    %v1163 = vsel %vm1086, 0, %v1162
    %1164 = vst [vmem:[#allocation2 + $0x12c] sm:$0x1] %v1163
    %v1165 = vld [vmem:[#allocation2 + $0x138] sm:$0x1]
    %v1166 = vsel %vm1086, 0, %v1165
    %1167 = vst [vmem:[#allocation2 + $0x138] sm:$0x1] %v1166
    %v1168 = vld [vmem:[#allocation2 + $0x144] sm:$0x1]
    %v1169 = vsel %vm1086, 0, %v1168
    %1170 = vst [vmem:[#allocation2 + $0x144] sm:$0x1] %v1169
    %v1171 = vld [vmem:[#allocation2 + $0x150] sm:$0x1]
    %v1172 = vsel %vm1086, 0, %v1171
    %1173 = vst [vmem:[#allocation2 + $0x150] sm:$0x1] %v1172
    %v1174 = vld [vmem:[#allocation2 + $0x15c] sm:$0x1]
    %v1175 = vsel %vm1086, 0, %v1174
    %1176 = vst [vmem:[#allocation2 + $0x15c] sm:$0x1] %v1175
    %v1177 = vld [vmem:[#allocation2 + $0x168] sm:$0x1]
    %v1178 = vsel %vm1086, 0, %v1177
    %1179 = vst [vmem:[#allocation2 + $0x168] sm:$0x1] %v1178
    %v1180 = vld [vmem:[#allocation2 + $0x174] sm:$0x1]
    %v1181 = vsel %vm1086, 0, %v1180
    %1182 = vst [vmem:[#allocation2 + $0x174] sm:$0x1] %v1181
    %v1183 = vld [vmem:[#allocation2 + $0x180] sm:$0x1]
    %v1184 = vsel %vm1086, 0, %v1183
    %1185 = vst [vmem:[#allocation2 + $0x180] sm:$0x1] %v1184
    %v1186 = vld [vmem:[#allocation2 + $0x18c] sm:$0x1]
    %v1187 = vsel %vm1086, 0, %v1186
    %1188 = vst [vmem:[#allocation2 + $0x18c] sm:$0x1] %v1187
    %v1189 = vld [vmem:[#allocation2 + $0x198] sm:$0x1]
    %v1190 = vsel %vm1086, 0, %v1189
    %1191 = vst [vmem:[#allocation2 + $0x198] sm:$0x1] %v1190
    %v1192 = vld [vmem:[#allocation2 + $0x1a4] sm:$0x1]
    %v1193 = vsel %vm1086, 0, %v1192
    %1194 = vst [vmem:[#allocation2 + $0x1a4] sm:$0x1] %v1193
    %vm1195 = vsmask.f32 7938
    %vm1196 = vmand %vm1084, %vm1195
    %v1197 = vld [vmem:[#allocation2 + $0x8] sm:$0x1]
    %v1198 = vsel %vm1196, 0, %v1197
    %1199 = vst [vmem:[#allocation2 + $0x8] sm:$0x1] %v1198
    %v1200 = vld [vmem:[#allocation2 + $0x14] sm:$0x1]
    %v1201 = vsel %vm1196, 0, %v1200
    %1202 = vst [vmem:[#allocation2 + $0x14] sm:$0x1] %v1201
    %v1203 = vld [vmem:[#allocation2 + $0x20] sm:$0x1]
    %v1204 = vsel %vm1196, 0, %v1203
    %1205 = vst [vmem:[#allocation2 + $0x20] sm:$0x1] %v1204
    %v1206 = vld [vmem:[#allocation2 + $0x2c] sm:$0x1]
    %v1207 = vsel %vm1196, 0, %v1206
    %1208 = vst [vmem:[#allocation2 + $0x2c] sm:$0x1] %v1207
    %v1209 = vld [vmem:[#allocation2 + $0x38] sm:$0x1]
    %v1210 = vsel %vm1196, 0, %v1209
    %1211 = vst [vmem:[#allocation2 + $0x38] sm:$0x1] %v1210
    %v1212 = vld [vmem:[#allocation2 + $0x44] sm:$0x1]
    %v1213 = vsel %vm1196, 0, %v1212
    %1214 = vst [vmem:[#allocation2 + $0x44] sm:$0x1] %v1213
    %v1215 = vld [vmem:[#allocation2 + $0x50] sm:$0x1]
    %v1216 = vsel %vm1196, 0, %v1215
    %1217 = vst [vmem:[#allocation2 + $0x50] sm:$0x1] %v1216
    %v1218 = vld [vmem:[#allocation2 + $0x5c] sm:$0x1]
    %v1219 = vsel %vm1196, 0, %v1218
    %1220 = vst [vmem:[#allocation2 + $0x5c] sm:$0x1] %v1219
    %v1221 = vld [vmem:[#allocation2 + $0x68] sm:$0x1]
    %v1222 = vsel %vm1196, 0, %v1221
    %1223 = vst [vmem:[#allocation2 + $0x68] sm:$0x1] %v1222
    %v1224 = vld [vmem:[#allocation2 + $0x74] sm:$0x1]
    %v1225 = vsel %vm1196, 0, %v1224
    %1226 = vst [vmem:[#allocation2 + $0x74] sm:$0x1] %v1225
    %v1227 = vld [vmem:[#allocation2 + $0x80] sm:$0x1]
    %v1228 = vsel %vm1196, 0, %v1227
    %1229 = vst [vmem:[#allocation2 + $0x80] sm:$0x1] %v1228
    %v1230 = vld [vmem:[#allocation2 + $0x8c] sm:$0x1]
    %v1231 = vsel %vm1196, 0, %v1230
    %1232 = vst [vmem:[#allocation2 + $0x8c] sm:$0x1] %v1231
    %v1233 = vld [vmem:[#allocation2 + $0x98] sm:$0x1]
    %v1234 = vsel %vm1196, 0, %v1233
    %1235 = vst [vmem:[#allocation2 + $0x98] sm:$0x1] %v1234
    %v1236 = vld [vmem:[#allocation2 + $0xa4] sm:$0x1]
    %v1237 = vsel %vm1196, 0, %v1236
    %1238 = vst [vmem:[#allocation2 + $0xa4] sm:$0x1] %v1237
    %v1239 = vld [vmem:[#allocation2 + $0xb0] sm:$0x1]
    %v1240 = vsel %vm1196, 0, %v1239
    %1241 = vst [vmem:[#allocation2 + $0xb0] sm:$0x1] %v1240
    %v1242 = vld [vmem:[#allocation2 + $0xbc] sm:$0x1]
    %v1243 = vsel %vm1196, 0, %v1242
    %1244 = vst [vmem:[#allocation2 + $0xbc] sm:$0x1] %v1243
    %v1245 = vld [vmem:[#allocation2 + $0xc8] sm:$0x1]
    %v1246 = vsel %vm1196, 0, %v1245
    %1247 = vst [vmem:[#allocation2 + $0xc8] sm:$0x1] %v1246
    %v1248 = vld [vmem:[#allocation2 + $0xd4] sm:$0x1]
    %v1249 = vsel %vm1196, 0, %v1248
    %1250 = vst [vmem:[#allocation2 + $0xd4] sm:$0x1] %v1249
    %v1251 = vld [vmem:[#allocation2 + $0xe0] sm:$0x1]
    %v1252 = vsel %vm1196, 0, %v1251
    %1253 = vst [vmem:[#allocation2 + $0xe0] sm:$0x1] %v1252
    %v1254 = vld [vmem:[#allocation2 + $0xec] sm:$0x1]
    %v1255 = vsel %vm1196, 0, %v1254
    %1256 = vst [vmem:[#allocation2 + $0xec] sm:$0x1] %v1255
    %v1257 = vld [vmem:[#allocation2 + $0xf8] sm:$0x1]
    %v1258 = vsel %vm1196, 0, %v1257
    %1259 = vst [vmem:[#allocation2 + $0xf8] sm:$0x1] %v1258
    %v1260 = vld [vmem:[#allocation2 + $0x104] sm:$0x1]
    %v1261 = vsel %vm1196, 0, %v1260
    %1262 = vst [vmem:[#allocation2 + $0x104] sm:$0x1] %v1261
    %v1263 = vld [vmem:[#allocation2 + $0x110] sm:$0x1]
    %v1264 = vsel %vm1196, 0, %v1263
    %1265 = vst [vmem:[#allocation2 + $0x110] sm:$0x1] %v1264
    %v1266 = vld [vmem:[#allocation2 + $0x11c] sm:$0x1]
    %v1267 = vsel %vm1196, 0, %v1266
    %1268 = vst [vmem:[#allocation2 + $0x11c] sm:$0x1] %v1267
    %v1269 = vld [vmem:[#allocation2 + $0x128] sm:$0x1]
    %v1270 = vsel %vm1196, 0, %v1269
    %1271 = vst [vmem:[#allocation2 + $0x128] sm:$0x1] %v1270
    %v1272 = vld [vmem:[#allocation2 + $0x134] sm:$0x1]
    %v1273 = vsel %vm1196, 0, %v1272
    %1274 = vst [vmem:[#allocation2 + $0x134] sm:$0x1] %v1273
    %v1275 = vld [vmem:[#allocation2 + $0x140] sm:$0x1]
    %v1276 = vsel %vm1196, 0, %v1275
    %1277 = vst [vmem:[#allocation2 + $0x140] sm:$0x1] %v1276
    %v1278 = vld [vmem:[#allocation2 + $0x14c] sm:$0x1]
    %v1279 = vsel %vm1196, 0, %v1278
    %1280 = vst [vmem:[#allocation2 + $0x14c] sm:$0x1] %v1279
    %v1281 = vld [vmem:[#allocation2 + $0x158] sm:$0x1]
    %v1282 = vsel %vm1196, 0, %v1281
    %1283 = vst [vmem:[#allocation2 + $0x158] sm:$0x1] %v1282
    %v1284 = vld [vmem:[#allocation2 + $0x164] sm:$0x1]
    %v1285 = vsel %vm1196, 0, %v1284
    %1286 = vst [vmem:[#allocation2 + $0x164] sm:$0x1] %v1285
    %v1287 = vld [vmem:[#allocation2 + $0x170] sm:$0x1]
    %v1288 = vsel %vm1196, 0, %v1287
    %1289 = vst [vmem:[#allocation2 + $0x170] sm:$0x1] %v1288
    %v1290 = vld [vmem:[#allocation2 + $0x17c] sm:$0x1]
    %v1291 = vsel %vm1196, 0, %v1290
    %1292 = vst [vmem:[#allocation2 + $0x17c] sm:$0x1] %v1291
    %v1293 = vld [vmem:[#allocation2 + $0x188] sm:$0x1]
    %v1294 = vsel %vm1196, 0, %v1293
    %1295 = vst [vmem:[#allocation2 + $0x188] sm:$0x1] %v1294
    %v1296 = vld [vmem:[#allocation2 + $0x194] sm:$0x1]
    %v1297 = vsel %vm1196, 0, %v1296
    %1298 = vst [vmem:[#allocation2 + $0x194] sm:$0x1] %v1297
    %v1299 = vld [vmem:[#allocation2 + $0x1a0] sm:$0x1]
    %v1300 = vsel %vm1196, 0, %v1299
    %1301 = vst [vmem:[#allocation2 + $0x1a0] sm:$0x1] %v1300
    %v1302 = vld [vmem:[#allocation2 + $0x1ac] sm:$0x1]
    %v1303 = vsel %vm1196, 0, %v1302
    %1304 = vst [vmem:[#allocation2 + $0x1ac] sm:$0x1] %v1303
    %v1305 = vpack.c.bf16 %v1007, %v1007
    %v1306 = vpack.c.bf16 %v1008, %v1008
    %v1307 = vpack.c.bf16 %v1009, %v1009
    %v1308 = vpack.c.bf16 %v1010, %v1010
    %v1309 = vpack.c.bf16 %v1011, %v1011
    %v1310 = vpack.c.bf16 %v1012, %v1012
    %v1311 = vpack.c.bf16 %v1013, %v1013
    %v1312 = vpack.c.bf16 %v1014, %v1014
    %v1313 = vpack.c.bf16 %v1015, %v1015
    %v1314 = vpack.c.bf16 %v1016, %v1016
    %v1315 = vpack.c.bf16 %v1017, %v1017
    %v1316 = vpack.c.bf16 %v1018, %v1018
    %v1317 = vpack.c.bf16 %v1019, %v1019
    %v1318 = vpack.c.bf16 %v1020, %v1020
    %v1319 = vpack.c.bf16 %v1021, %v1021
    %v1320 = vpack.c.bf16 %v1022, %v1022
    %v1321 = vpack.c.bf16 %v1023, %v1023
    %v1322 = vpack.c.bf16 %v1024, %v1024
    %v1323 = vpack.c.bf16 %v1025, %v1025
    %v1324 = vpack.c.bf16 %v1026, %v1026
    %v1325 = vpack.c.bf16 %v1027, %v1027
    %v1326 = vpack.c.bf16 %v1028, %v1028
    %v1327 = vpack.c.bf16 %v1029, %v1029
    %v1328 = vpack.c.bf16 %v1030, %v1030
    %v1329 = vpack.c.bf16 %v1031, %v1031
    %v1330 = vpack.c.bf16 %v1032, %v1032
    %v1331 = vpack.c.bf16 %v1033, %v1033
    %v1332 = vpack.c.bf16 %v1034, %v1034
    %v1333 = vpack.c.bf16 %v1035, %v1035
    %v1334 = vpack.c.bf16 %v1036, %v1036
    %v1335 = vpack.c.bf16 %v1037, %v1037
    %v1336 = vpack.c.bf16 %v1038, %v1038
    %v1337 = vpack.c.bf16 %v1039, %v1039
    %v1338 = vpack.c.bf16 %v1040, %v1040
    %v1339 = vpack.c.bf16 %v1041, %v1041
    %v1340 = vpack.c.bf16 %v1042, %v1042
    %v1341 = vpack.c.bf16 %v1043, %v1043
    %v1342 = vpack.c.bf16 %v1044, %v1044
    %v1343 = vpack.c.bf16 %v1045, %v1045
    %v1344 = vpack.c.bf16 %v1046, %v1046
    %v1345 = vpack.c.bf16 %v1047, %v1047
    %v1346 = vpack.c.bf16 %v1048, %v1048
    %v1347 = vpack.c.bf16 %v1049, %v1049
    %v1348 = vpack.c.bf16 %v1050, %v1050
    %v1349 = vpack.c.bf16 %v1051, %v1051
    %v1350 = vpack.c.bf16 %v1052, %v1052
    %v1351 = vpack.c.bf16 %v1053, %v1053
    %v1352 = vpack.c.bf16 %v1054, %v1054
    %v1353 = vpack.c.bf16 %v1055, %v1055
    %v1354 = vpack.c.bf16 %v1056, %v1056
    %v1355 = vpack.c.bf16 %v1057, %v1057
    %v1356 = vpack.c.bf16 %v1058, %v1058
    %v1357 = vpack.c.bf16 %v1059, %v1059
    %v1358 = vpack.c.bf16 %v1060, %v1060
    %v1359 = vpack.c.bf16 %v1061, %v1061
    %v1360 = vpack.c.bf16 %v1062, %v1062
    %v1361 = vpack.c.bf16 %v1063, %v1063
    %v1362 = vpack.c.bf16 %v1064, %v1064
    %v1363 = vpack.c.bf16 %v1065, %v1065
    %v1364 = vpack.c.bf16 %v1066, %v1066
    %v1365 = vpack.c.bf16 %v1067, %v1067
    %v1366 = vpack.c.bf16 %v1068, %v1068
    %v1367 = vpack.c.bf16 %v1069, %v1069
    %v1368 = vpack.c.bf16 %v1070, %v1070
    %vm1369 = vsmask.f32 4368
    %vm1370 = vmor %vm1085, %vm1369
    %v1372 = vshrl.u32 %v1305, 16
    %v1374 = vrot.slane %v1372, 7
    %v1375 = vshll.u32 %v1305, 16
    %v1377 = vor.u32 %v1374, %v1375
    %v1378 = vrot.slane %v1374, 4
    %v1380 = vshrl.u32 %v1306, 16
    %v1382 = vrot.slane %v1380, 7
    %v1383 = vshll.u32 %v1306, 16
    %v1385 = vor.u32 %v1382, %v1383
    %v1386 = vsel %vm1370, %v1378, %v1385
    %v1387 = vrot.slane %v1382, 4
    %v1389 = vshrl.u32 %v1307, 16
    %v1391 = vrot.slane %v1389, 7
    %v1392 = vshll.u32 %v1307, 16
    %v1394 = vor.u32 %v1391, %v1392
    %v1395 = vrot.slane %v1391, 4
    %v1397 = vshrl.u32 %v1308, 16
    %v1399 = vrot.slane %v1397, 7
    %v1400 = vshll.u32 %v1308, 16
    %v1402 = vor.u32 %v1399, %v1400
    %v1403 = vsel %vm1370, %v1395, %v1402
    %v1404 = vrot.slane %v1399, 4
    %v1406 = vshrl.u32 %v1309, 16
    %v1408 = vrot.slane %v1406, 7
    %v1409 = vshll.u32 %v1309, 16
    %v1411 = vor.u32 %v1408, %v1409
    %v1412 = vrot.slane %v1408, 4
    %v1414 = vshrl.u32 %v1310, 16
    %v1416 = vrot.slane %v1414, 7
    %v1417 = vshll.u32 %v1310, 16
    %v1419 = vor.u32 %v1416, %v1417
    %v1420 = vsel %vm1370, %v1412, %v1419
    %v1421 = vrot.slane %v1416, 4
    %v1423 = vshrl.u32 %v1311, 16
    %v1425 = vrot.slane %v1423, 7
    %v1426 = vshll.u32 %v1311, 16
    %v1428 = vor.u32 %v1425, %v1426
    %v1429 = vrot.slane %v1425, 4
    %v1431 = vshrl.u32 %v1312, 16
    %v1433 = vrot.slane %v1431, 7
    %v1434 = vshll.u32 %v1312, 16
    %v1436 = vor.u32 %v1433, %v1434
    %v1437 = vsel %vm1370, %v1429, %v1436
    %v1438 = vrot.slane %v1433, 4
    %v1440 = vshrl.u32 %v1313, 16
    %v1442 = vrot.slane %v1440, 7
    %v1443 = vshll.u32 %v1313, 16
    %v1445 = vor.u32 %v1442, %v1443
    %v1446 = vrot.slane %v1442, 4
    %v1448 = vshrl.u32 %v1314, 16
    %v1450 = vrot.slane %v1448, 7
    %v1451 = vshll.u32 %v1314, 16
    %v1453 = vor.u32 %v1450, %v1451
    %v1454 = vsel %vm1370, %v1446, %v1453
    %v1455 = vrot.slane %v1450, 4
    %v1457 = vshrl.u32 %v1315, 16
    %v1459 = vrot.slane %v1457, 7
    %v1460 = vshll.u32 %v1315, 16
    %v1462 = vor.u32 %v1459, %v1460
    %v1463 = vrot.slane %v1459, 4
    %v1465 = vshrl.u32 %v1316, 16
    %v1467 = vrot.slane %v1465, 7
    %v1468 = vshll.u32 %v1316, 16
    %v1470 = vor.u32 %v1467, %v1468
    %v1471 = vsel %vm1370, %v1463, %v1470
    %v1472 = vrot.slane %v1467, 4
    %v1474 = vshrl.u32 %v1317, 16
    %v1476 = vrot.slane %v1474, 7
    %v1477 = vshll.u32 %v1317, 16
    %v1479 = vor.u32 %v1476, %v1477
    %v1480 = vrot.slane %v1476, 4
    %v1482 = vshrl.u32 %v1318, 16
    %v1484 = vrot.slane %v1482, 7
    %v1485 = vshll.u32 %v1318, 16
    %v1487 = vor.u32 %v1484, %v1485
    %v1488 = vsel %vm1370, %v1480, %v1487
    %v1489 = vrot.slane %v1484, 4
    %v1491 = vshrl.u32 %v1319, 16
    %v1493 = vrot.slane %v1491, 7
    %v1494 = vshll.u32 %v1319, 16
    %v1496 = vor.u32 %v1493, %v1494
    %v1497 = vrot.slane %v1493, 4
    %v1499 = vshrl.u32 %v1320, 16
    %v1501 = vrot.slane %v1499, 7
    %v1502 = vshll.u32 %v1320, 16
    %v1504 = vor.u32 %v1501, %v1502
    %v1505 = vsel %vm1370, %v1497, %v1504
    %v1506 = vrot.slane %v1501, 4
    %v1508 = vshrl.u32 %v1321, 16
    %v1510 = vrot.slane %v1508, 7
    %v1511 = vshll.u32 %v1321, 16
    %v1513 = vor.u32 %v1510, %v1511
    %v1514 = vrot.slane %v1510, 4
    %v1516 = vshrl.u32 %v1322, 16
    %v1518 = vrot.slane %v1516, 7
    %v1519 = vshll.u32 %v1322, 16
    %v1521 = vor.u32 %v1518, %v1519
    %v1522 = vsel %vm1370, %v1514, %v1521
    %v1523 = vrot.slane %v1518, 4
    %v1525 = vshrl.u32 %v1323, 16
    %v1527 = vrot.slane %v1525, 7
    %v1528 = vshll.u32 %v1323, 16
    %v1530 = vor.u32 %v1527, %v1528
    %v1531 = vrot.slane %v1527, 4
    %v1533 = vshrl.u32 %v1324, 16
    %v1535 = vrot.slane %v1533, 7
    %v1536 = vshll.u32 %v1324, 16
    %v1538 = vor.u32 %v1535, %v1536
    %v1539 = vsel %vm1370, %v1531, %v1538
    %v1540 = vrot.slane %v1535, 4
    %v1542 = vshrl.u32 %v1325, 16
    %v1544 = vrot.slane %v1542, 7
    %v1545 = vshll.u32 %v1325, 16
    %v1547 = vor.u32 %v1544, %v1545
    %v1548 = vrot.slane %v1544, 4
    %v1550 = vshrl.u32 %v1326, 16
    %v1552 = vrot.slane %v1550, 7
    %v1553 = vshll.u32 %v1326, 16
    %v1555 = vor.u32 %v1552, %v1553
    %v1556 = vsel %vm1370, %v1548, %v1555
    %v1557 = vrot.slane %v1552, 4
    %v1559 = vshrl.u32 %v1327, 16
    %v1561 = vrot.slane %v1559, 7
    %v1562 = vshll.u32 %v1327, 16
    %v1564 = vor.u32 %v1561, %v1562
    %v1565 = vrot.slane %v1561, 4
    %v1567 = vshrl.u32 %v1328, 16
    %v1569 = vrot.slane %v1567, 7
    %v1570 = vshll.u32 %v1328, 16
    %v1572 = vor.u32 %v1569, %v1570
    %v1573 = vsel %vm1370, %v1565, %v1572
    %v1574 = vrot.slane %v1569, 4
    %v1576 = vshrl.u32 %v1329, 16
    %v1578 = vrot.slane %v1576, 7
    %v1579 = vshll.u32 %v1329, 16
    %v1581 = vor.u32 %v1578, %v1579
    %v1582 = vrot.slane %v1578, 4
    %v1584 = vshrl.u32 %v1330, 16
    %v1586 = vrot.slane %v1584, 7
    %v1587 = vshll.u32 %v1330, 16
    %v1589 = vor.u32 %v1586, %v1587
    %v1590 = vsel %vm1370, %v1582, %v1589
    %v1591 = vrot.slane %v1586, 4
    %v1593 = vshrl.u32 %v1331, 16
    %v1595 = vrot.slane %v1593, 7
    %v1596 = vshll.u32 %v1331, 16
    %v1598 = vor.u32 %v1595, %v1596
    %v1599 = vrot.slane %v1595, 4
    %v1601 = vshrl.u32 %v1332, 16
    %v1603 = vrot.slane %v1601, 7
    %v1604 = vshll.u32 %v1332, 16
    %v1606 = vor.u32 %v1603, %v1604
    %v1607 = vsel %vm1370, %v1599, %v1606
    %v1608 = vrot.slane %v1603, 4
    %v1610 = vshrl.u32 %v1333, 16
    %v1612 = vrot.slane %v1610, 7
    %v1613 = vshll.u32 %v1333, 16
    %v1615 = vor.u32 %v1612, %v1613
    %v1616 = vrot.slane %v1612, 4
    %v1618 = vshrl.u32 %v1334, 16
    %v1620 = vrot.slane %v1618, 7
    %v1621 = vshll.u32 %v1334, 16
    %v1623 = vor.u32 %v1620, %v1621
    %v1624 = vsel %vm1370, %v1616, %v1623
    %v1625 = vrot.slane %v1620, 4
    %v1627 = vshrl.u32 %v1335, 16
    %v1629 = vrot.slane %v1627, 7
    %v1630 = vshll.u32 %v1335, 16
    %v1632 = vor.u32 %v1629, %v1630
    %v1633 = vrot.slane %v1629, 4
    %v1635 = vshrl.u32 %v1336, 16
    %v1637 = vrot.slane %v1635, 7
    %v1638 = vshll.u32 %v1336, 16
    %v1640 = vor.u32 %v1637, %v1638
    %v1641 = vsel %vm1370, %v1633, %v1640
    %v1642 = vrot.slane %v1637, 4
    %v1644 = vshrl.u32 %v1337, 16
    %v1646 = vrot.slane %v1644, 7
    %v1647 = vshll.u32 %v1337, 16
    %v1649 = vor.u32 %v1646, %v1647
    %v1650 = vrot.slane %v1646, 4
    %v1652 = vshrl.u32 %v1338, 16
    %v1654 = vrot.slane %v1652, 7
    %v1655 = vshll.u32 %v1338, 16
    %v1657 = vor.u32 %v1654, %v1655
    %v1658 = vsel %vm1370, %v1650, %v1657
    %v1659 = vrot.slane %v1654, 4
    %v1661 = vshrl.u32 %v1339, 16
    %v1663 = vrot.slane %v1661, 7
    %v1664 = vshll.u32 %v1339, 16
    %v1666 = vor.u32 %v1663, %v1664
    %v1667 = vrot.slane %v1663, 4
    %v1669 = vshrl.u32 %v1340, 16
    %v1671 = vrot.slane %v1669, 7
    %v1672 = vshll.u32 %v1340, 16
    %v1674 = vor.u32 %v1671, %v1672
    %v1675 = vsel %vm1370, %v1667, %v1674
    %v1676 = vrot.slane %v1671, 4
    %v1678 = vshrl.u32 %v1341, 16
    %v1680 = vrot.slane %v1678, 7
    %v1681 = vshll.u32 %v1341, 16
    %v1683 = vor.u32 %v1680, %v1681
    %v1684 = vrot.slane %v1680, 4
    %v1686 = vshrl.u32 %v1342, 16
    %v1688 = vrot.slane %v1686, 7
    %v1689 = vshll.u32 %v1342, 16
    %v1691 = vor.u32 %v1688, %v1689
    %v1692 = vsel %vm1370, %v1684, %v1691
    %v1693 = vrot.slane %v1688, 4
    %v1695 = vshrl.u32 %v1343, 16
    %v1697 = vrot.slane %v1695, 7
    %v1698 = vshll.u32 %v1343, 16
    %v1700 = vor.u32 %v1697, %v1698
    %v1701 = vrot.slane %v1697, 4
    %v1703 = vshrl.u32 %v1344, 16
    %v1705 = vrot.slane %v1703, 7
    %v1706 = vshll.u32 %v1344, 16
    %v1708 = vor.u32 %v1705, %v1706
    %v1709 = vsel %vm1370, %v1701, %v1708
    %v1710 = vrot.slane %v1705, 4
    %v1712 = vshrl.u32 %v1345, 16
    %v1714 = vrot.slane %v1712, 7
    %v1715 = vshll.u32 %v1345, 16
    %v1717 = vor.u32 %v1714, %v1715
    %v1718 = vrot.slane %v1714, 4
    %v1720 = vshrl.u32 %v1346, 16
    %v1722 = vrot.slane %v1720, 7
    %v1723 = vshll.u32 %v1346, 16
    %v1725 = vor.u32 %v1722, %v1723
    %v1726 = vsel %vm1370, %v1718, %v1725
    %v1727 = vrot.slane %v1722, 4
    %v1729 = vshrl.u32 %v1347, 16
    %v1731 = vrot.slane %v1729, 7
    %v1732 = vshll.u32 %v1347, 16
    %v1734 = vor.u32 %v1731, %v1732
    %v1735 = vrot.slane %v1731, 4
    %v1737 = vshrl.u32 %v1348, 16
    %v1739 = vrot.slane %v1737, 7
    %v1740 = vshll.u32 %v1348, 16
    %v1742 = vor.u32 %v1739, %v1740
    %v1743 = vsel %vm1370, %v1735, %v1742
    %v1744 = vrot.slane %v1739, 4
    %v1746 = vshrl.u32 %v1349, 16
    %v1748 = vrot.slane %v1746, 7
    %v1749 = vshll.u32 %v1349, 16
    %v1751 = vor.u32 %v1748, %v1749
    %v1752 = vrot.slane %v1748, 4
    %v1754 = vshrl.u32 %v1350, 16
    %v1756 = vrot.slane %v1754, 7
    %v1757 = vshll.u32 %v1350, 16
    %v1759 = vor.u32 %v1756, %v1757
    %v1760 = vsel %vm1370, %v1752, %v1759
    %v1761 = vrot.slane %v1756, 4
    %v1763 = vshrl.u32 %v1351, 16
    %v1765 = vrot.slane %v1763, 7
    %v1766 = vshll.u32 %v1351, 16
    %v1768 = vor.u32 %v1765, %v1766
    %v1769 = vrot.slane %v1765, 4
    %v1771 = vshrl.u32 %v1352, 16
    %v1773 = vrot.slane %v1771, 7
    %v1774 = vshll.u32 %v1352, 16
    %v1776 = vor.u32 %v1773, %v1774
    %v1777 = vsel %vm1370, %v1769, %v1776
    %v1778 = vrot.slane %v1773, 4
    %v1780 = vshrl.u32 %v1353, 16
    %v1782 = vrot.slane %v1780, 7
    %v1783 = vshll.u32 %v1353, 16
    %v1785 = vor.u32 %v1782, %v1783
    %v1786 = vrot.slane %v1782, 4
    %v1788 = vshrl.u32 %v1354, 16
    %v1790 = vrot.slane %v1788, 7
    %v1791 = vshll.u32 %v1354, 16
    %v1793 = vor.u32 %v1790, %v1791
    %v1794 = vsel %vm1370, %v1786, %v1793
    %v1795 = vrot.slane %v1790, 4
    %v1797 = vshrl.u32 %v1355, 16
    %v1799 = vrot.slane %v1797, 7
    %v1800 = vshll.u32 %v1355, 16
    %v1802 = vor.u32 %v1799, %v1800
    %v1803 = vrot.slane %v1799, 4
    %v1805 = vshrl.u32 %v1356, 16
    %v1807 = vrot.slane %v1805, 7
    %v1808 = vshll.u32 %v1356, 16
    %v1810 = vor.u32 %v1807, %v1808
    %v1811 = vsel %vm1370, %v1803, %v1810
    %v1812 = vrot.slane %v1807, 4
    %v1814 = vshrl.u32 %v1357, 16
    %v1816 = vrot.slane %v1814, 7
    %v1817 = vshll.u32 %v1357, 16
    %v1819 = vor.u32 %v1816, %v1817
    %v1820 = vrot.slane %v1816, 4
    %v1822 = vshrl.u32 %v1358, 16
    %v1824 = vrot.slane %v1822, 7
    %v1825 = vshll.u32 %v1358, 16
    %v1827 = vor.u32 %v1824, %v1825
    %v1828 = vsel %vm1370, %v1820, %v1827
    %v1829 = vrot.slane %v1824, 4
    %v1831 = vshrl.u32 %v1359, 16
    %v1833 = vrot.slane %v1831, 7
    %v1834 = vshll.u32 %v1359, 16
    %v1836 = vor.u32 %v1833, %v1834
    %v1837 = vrot.slane %v1833, 4
    %v1839 = vshrl.u32 %v1360, 16
    %v1841 = vrot.slane %v1839, 7
    %v1842 = vshll.u32 %v1360, 16
    %v1844 = vor.u32 %v1841, %v1842
    %v1845 = vsel %vm1370, %v1837, %v1844
    %v1846 = vrot.slane %v1841, 4
    %v1848 = vshrl.u32 %v1361, 16
    %v1850 = vrot.slane %v1848, 7
    %v1851 = vshll.u32 %v1361, 16
    %v1853 = vor.u32 %v1850, %v1851
    %v1854 = vrot.slane %v1850, 4
    %v1856 = vshrl.u32 %v1362, 16
    %v1858 = vrot.slane %v1856, 7
    %v1859 = vshll.u32 %v1362, 16
    %v1861 = vor.u32 %v1858, %v1859
    %v1862 = vsel %vm1370, %v1854, %v1861
    %v1863 = vrot.slane %v1858, 4
    %v1865 = vshrl.u32 %v1363, 16
    %v1867 = vrot.slane %v1865, 7
    %v1868 = vshll.u32 %v1363, 16
    %v1870 = vor.u32 %v1867, %v1868
    %v1871 = vrot.slane %v1867, 4
    %v1873 = vshrl.u32 %v1364, 16
    %v1875 = vrot.slane %v1873, 7
    %v1876 = vshll.u32 %v1364, 16
    %v1878 = vor.u32 %v1875, %v1876
    %v1879 = vsel %vm1370, %v1871, %v1878
    %v1880 = vrot.slane %v1875, 4
    %v1882 = vshrl.u32 %v1365, 16
    %v1884 = vrot.slane %v1882, 7
    %v1885 = vshll.u32 %v1365, 16
    %v1887 = vor.u32 %v1884, %v1885
    %v1888 = vrot.slane %v1884, 4
    %v1890 = vshrl.u32 %v1366, 16
    %v1892 = vrot.slane %v1890, 7
    %v1893 = vshll.u32 %v1366, 16
    %v1895 = vor.u32 %v1892, %v1893
    %v1896 = vsel %vm1370, %v1888, %v1895
    %v1897 = vrot.slane %v1892, 4
    %v1899 = vshrl.u32 %v1367, 16
    %v1901 = vrot.slane %v1899, 7
    %v1902 = vshll.u32 %v1367, 16
    %v1904 = vor.u32 %v1901, %v1902
    %v1905 = vrot.slane %v1901, 4
    %v1907 = vshrl.u32 %v1368, 16
    %v1909 = vrot.slane %v1907, 7
    %v1910 = vshll.u32 %v1368, 16
    %v1912 = vor.u32 %v1909, %v1910
    %v1913 = vsel %vm1370, %v1905, %v1912
    %v1914 = vrot.slane %v1909, 4
    %s2011 = scalar_lea.vmem [#allocation2], 12
    %vm2012 = vcmask 1043456
    %vm2013 = vmand %vm2012, %vm1195
    %v2014 = vld [vmem:[%s2011] sm:$0xf]
    %v2015 = vsel %vm2013, %v1377, %v2014
    %2016 = vst [vmem:[%s2011] sm:$0xf] %v2015
    %2017 = vst [vmem:[%s2011 + $0x4] sm:$0xf] %v1386
    %v2018 = vld [vmem:[%s2011 + $0x8] sm:$0x1]
    %v2019 = vsel %vm1086, %v1387, %v2018
    %2020 = vst [vmem:[%s2011 + $0x8] sm:$0x1] %v2019
    %v2021 = vld [vmem:[%s2011 + $0xc] sm:$0xf]
    %v2022 = vsel %vm2013, %v1394, %v2021
    %2023 = vst [vmem:[%s2011 + $0xc] sm:$0xf] %v2022
    %2024 = vst [vmem:[%s2011 + $0x10] sm:$0xf] %v1403
    %v2025 = vld [vmem:[%s2011 + $0x14] sm:$0x1]
    %v2026 = vsel %vm1086, %v1404, %v2025
    %2027 = vst [vmem:[%s2011 + $0x14] sm:$0x1] %v2026
    %v2028 = vld [vmem:[%s2011 + $0x18] sm:$0xf]
    %v2029 = vsel %vm2013, %v1411, %v2028
    %2030 = vst [vmem:[%s2011 + $0x18] sm:$0xf] %v2029
    %2031 = vst [vmem:[%s2011 + $0x1c] sm:$0xf] %v1420
    %v2032 = vld [vmem:[%s2011 + $0x20] sm:$0x1]
    %v2033 = vsel %vm1086, %v1421, %v2032
    %2034 = vst [vmem:[%s2011 + $0x20] sm:$0x1] %v2033
    %v2035 = vld [vmem:[%s2011 + $0x24] sm:$0xf]
    %v2036 = vsel %vm2013, %v1428, %v2035
    %2037 = vst [vmem:[%s2011 + $0x24] sm:$0xf] %v2036
    %2038 = vst [vmem:[%s2011 + $0x28] sm:$0xf] %v1437
    %v2039 = vld [vmem:[%s2011 + $0x2c] sm:$0x1]
    %v2040 = vsel %vm1086, %v1438, %v2039
    %2041 = vst [vmem:[%s2011 + $0x2c] sm:$0x1] %v2040
    %v2042 = vld [vmem:[%s2011 + $0x30] sm:$0xf]
    %v2043 = vsel %vm2013, %v1445, %v2042
    %2044 = vst [vmem:[%s2011 + $0x30] sm:$0xf] %v2043
    %2045 = vst [vmem:[%s2011 + $0x34] sm:$0xf] %v1454
    %v2046 = vld [vmem:[%s2011 + $0x38] sm:$0x1]
    %v2047 = vsel %vm1086, %v1455, %v2046
    %2048 = vst [vmem:[%s2011 + $0x38] sm:$0x1] %v2047
    %v2049 = vld [vmem:[%s2011 + $0x3c] sm:$0xf]
    %v2050 = vsel %vm2013, %v1462, %v2049
    %2051 = vst [vmem:[%s2011 + $0x3c] sm:$0xf] %v2050
    %2052 = vst [vmem:[%s2011 + $0x40] sm:$0xf] %v1471
    %v2053 = vld [vmem:[%s2011 + $0x44] sm:$0x1]
    %v2054 = vsel %vm1086, %v1472, %v2053
    %2055 = vst [vmem:[%s2011 + $0x44] sm:$0x1] %v2054
    %v2056 = vld [vmem:[%s2011 + $0x48] sm:$0xf]
    %v2057 = vsel %vm2013, %v1479, %v2056
    %2058 = vst [vmem:[%s2011 + $0x48] sm:$0xf] %v2057
    %2059 = vst [vmem:[%s2011 + $0x4c] sm:$0xf] %v1488
    %v2060 = vld [vmem:[%s2011 + $0x50] sm:$0x1]
    %v2061 = vsel %vm1086, %v1489, %v2060
    %2062 = vst [vmem:[%s2011 + $0x50] sm:$0x1] %v2061
    %v2063 = vld [vmem:[%s2011 + $0x54] sm:$0xf]
    %v2064 = vsel %vm2013, %v1496, %v2063
    %2065 = vst [vmem:[%s2011 + $0x54] sm:$0xf] %v2064
    %2066 = vst [vmem:[%s2011 + $0x58] sm:$0xf] %v1505
    %v2067 = vld [vmem:[%s2011 + $0x5c] sm:$0x1]
    %v2068 = vsel %vm1086, %v1506, %v2067
    %2069 = vst [vmem:[%s2011 + $0x5c] sm:$0x1] %v2068
    %v2070 = vld [vmem:[%s2011 + $0x60] sm:$0xf]
    %v2071 = vsel %vm2013, %v1513, %v2070
    %2072 = vst [vmem:[%s2011 + $0x60] sm:$0xf] %v2071
    %2073 = vst [vmem:[%s2011 + $0x64] sm:$0xf] %v1522
    %v2074 = vld [vmem:[%s2011 + $0x68] sm:$0x1]
    %v2075 = vsel %vm1086, %v1523, %v2074
    %2076 = vst [vmem:[%s2011 + $0x68] sm:$0x1] %v2075
    %v2077 = vld [vmem:[%s2011 + $0x6c] sm:$0xf]
    %v2078 = vsel %vm2013, %v1530, %v2077
    %2079 = vst [vmem:[%s2011 + $0x6c] sm:$0xf] %v2078
    %2080 = vst [vmem:[%s2011 + $0x70] sm:$0xf] %v1539
    %v2081 = vld [vmem:[%s2011 + $0x74] sm:$0x1]
    %v2082 = vsel %vm1086, %v1540, %v2081
    %2083 = vst [vmem:[%s2011 + $0x74] sm:$0x1] %v2082
    %v2084 = vld [vmem:[%s2011 + $0x78] sm:$0xf]
    %v2085 = vsel %vm2013, %v1547, %v2084
    %2086 = vst [vmem:[%s2011 + $0x78] sm:$0xf] %v2085
    %2087 = vst [vmem:[%s2011 + $0x7c] sm:$0xf] %v1556
    %v2088 = vld [vmem:[%s2011 + $0x80] sm:$0x1]
    %v2089 = vsel %vm1086, %v1557, %v2088
    %2090 = vst [vmem:[%s2011 + $0x80] sm:$0x1] %v2089
    %v2091 = vld [vmem:[%s2011 + $0x84] sm:$0xf]
    %v2092 = vsel %vm2013, %v1564, %v2091
    %2093 = vst [vmem:[%s2011 + $0x84] sm:$0xf] %v2092
    %2094 = vst [vmem:[%s2011 + $0x88] sm:$0xf] %v1573
    %v2095 = vld [vmem:[%s2011 + $0x8c] sm:$0x1]
    %v2096 = vsel %vm1086, %v1574, %v2095
    %2097 = vst [vmem:[%s2011 + $0x8c] sm:$0x1] %v2096
    %v2098 = vld [vmem:[%s2011 + $0x90] sm:$0xf]
    %v2099 = vsel %vm2013, %v1581, %v2098
    %2100 = vst [vmem:[%s2011 + $0x90] sm:$0xf] %v2099
    %2101 = vst [vmem:[%s2011 + $0x94] sm:$0xf] %v1590
    %v2102 = vld [vmem:[%s2011 + $0x98] sm:$0x1]
    %v2103 = vsel %vm1086, %v1591, %v2102
    %2104 = vst [vmem:[%s2011 + $0x98] sm:$0x1] %v2103
    %v2105 = vld [vmem:[%s2011 + $0x9c] sm:$0xf]
    %v2106 = vsel %vm2013, %v1598, %v2105
    %2107 = vst [vmem:[%s2011 + $0x9c] sm:$0xf] %v2106
    %2108 = vst [vmem:[%s2011 + $0xa0] sm:$0xf] %v1607
    %v2109 = vld [vmem:[%s2011 + $0xa4] sm:$0x1]
    %v2110 = vsel %vm1086, %v1608, %v2109
    %2111 = vst [vmem:[%s2011 + $0xa4] sm:$0x1] %v2110
    %v2112 = vld [vmem:[%s2011 + $0xa8] sm:$0xf]
    %v2113 = vsel %vm2013, %v1615, %v2112
    %2114 = vst [vmem:[%s2011 + $0xa8] sm:$0xf] %v2113
    %2115 = vst [vmem:[%s2011 + $0xac] sm:$0xf] %v1624
    %v2116 = vld [vmem:[%s2011 + $0xb0] sm:$0x1]
    %v2117 = vsel %vm1086, %v1625, %v2116
    %2118 = vst [vmem:[%s2011 + $0xb0] sm:$0x1] %v2117
    %v2119 = vld [vmem:[%s2011 + $0xb4] sm:$0xf]
    %v2120 = vsel %vm2013, %v1632, %v2119
    %2121 = vst [vmem:[%s2011 + $0xb4] sm:$0xf] %v2120
    %2122 = vst [vmem:[%s2011 + $0xb8] sm:$0xf] %v1641
    %v2123 = vld [vmem:[%s2011 + $0xbc] sm:$0x1]
    %v2124 = vsel %vm1086, %v1642, %v2123
    %2125 = vst [vmem:[%s2011 + $0xbc] sm:$0x1] %v2124
    %v2126 = vld [vmem:[%s2011 + $0xd8] sm:$0xf]
    %v2127 = vsel %vm2013, %v1649, %v2126
    %2128 = vst [vmem:[%s2011 + $0xd8] sm:$0xf] %v2127
    %2129 = vst [vmem:[%s2011 + $0xdc] sm:$0xf] %v1658
    %v2130 = vld [vmem:[%s2011 + $0xe0] sm:$0x1]
    %v2131 = vsel %vm1086, %v1659, %v2130
    %2132 = vst [vmem:[%s2011 + $0xe0] sm:$0x1] %v2131
    %v2133 = vld [vmem:[%s2011 + $0xe4] sm:$0xf]
    %v2134 = vsel %vm2013, %v1666, %v2133
    %2135 = vst [vmem:[%s2011 + $0xe4] sm:$0xf] %v2134
    %2136 = vst [vmem:[%s2011 + $0xe8] sm:$0xf] %v1675
    %v2137 = vld [vmem:[%s2011 + $0xec] sm:$0x1]
    %v2138 = vsel %vm1086, %v1676, %v2137
    %2139 = vst [vmem:[%s2011 + $0xec] sm:$0x1] %v2138
    %v2140 = vld [vmem:[%s2011 + $0xf0] sm:$0xf]
    %v2141 = vsel %vm2013, %v1683, %v2140
    %2142 = vst [vmem:[%s2011 + $0xf0] sm:$0xf] %v2141
    %2143 = vst [vmem:[%s2011 + $0xf4] sm:$0xf] %v1692
    %v2144 = vld [vmem:[%s2011 + $0xf8] sm:$0x1]
    %v2145 = vsel %vm1086, %v1693, %v2144
    %2146 = vst [vmem:[%s2011 + $0xf8] sm:$0x1] %v2145
    %v2147 = vld [vmem:[%s2011 + $0xfc] sm:$0xf]
    %v2148 = vsel %vm2013, %v1700, %v2147
    %2149 = vst [vmem:[%s2011 + $0xfc] sm:$0xf] %v2148
    %2150 = vst [vmem:[%s2011 + $0x100] sm:$0xf] %v1709
    %v2151 = vld [vmem:[%s2011 + $0x104] sm:$0x1]
    %v2152 = vsel %vm1086, %v1710, %v2151
    %2153 = vst [vmem:[%s2011 + $0x104] sm:$0x1] %v2152
    %v2154 = vld [vmem:[%s2011 + $0x108] sm:$0xf]
    %v2155 = vsel %vm2013, %v1717, %v2154
    %2156 = vst [vmem:[%s2011 + $0x108] sm:$0xf] %v2155
    %2157 = vst [vmem:[%s2011 + $0x10c] sm:$0xf] %v1726
    %v2158 = vld [vmem:[%s2011 + $0x110] sm:$0x1]
    %v2159 = vsel %vm1086, %v1727, %v2158
    %2160 = vst [vmem:[%s2011 + $0x110] sm:$0x1] %v2159
    %v2161 = vld [vmem:[%s2011 + $0x114] sm:$0xf]
    %v2162 = vsel %vm2013, %v1734, %v2161
    %2163 = vst [vmem:[%s2011 + $0x114] sm:$0xf] %v2162
    %2164 = vst [vmem:[%s2011 + $0x118] sm:$0xf] %v1743
    %v2165 = vld [vmem:[%s2011 + $0x11c] sm:$0x1]
    %v2166 = vsel %vm1086, %v1744, %v2165
    %2167 = vst [vmem:[%s2011 + $0x11c] sm:$0x1] %v2166
    %v2168 = vld [vmem:[%s2011 + $0x120] sm:$0xf]
    %v2169 = vsel %vm2013, %v1751, %v2168
    %2170 = vst [vmem:[%s2011 + $0x120] sm:$0xf] %v2169
    %2171 = vst [vmem:[%s2011 + $0x124] sm:$0xf] %v1760
    %v2172 = vld [vmem:[%s2011 + $0x128] sm:$0x1]
    %v2173 = vsel %vm1086, %v1761, %v2172
    %2174 = vst [vmem:[%s2011 + $0x128] sm:$0x1] %v2173
    %v2175 = vld [vmem:[%s2011 + $0x12c] sm:$0xf]
    %v2176 = vsel %vm2013, %v1768, %v2175
    %2177 = vst [vmem:[%s2011 + $0x12c] sm:$0xf] %v2176
    %2178 = vst [vmem:[%s2011 + $0x130] sm:$0xf] %v1777
    %v2179 = vld [vmem:[%s2011 + $0x134] sm:$0x1]
    %v2180 = vsel %vm1086, %v1778, %v2179
    %2181 = vst [vmem:[%s2011 + $0x134] sm:$0x1] %v2180
    %v2182 = vld [vmem:[%s2011 + $0x138] sm:$0xf]
    %v2183 = vsel %vm2013, %v1785, %v2182
    %2184 = vst [vmem:[%s2011 + $0x138] sm:$0xf] %v2183
    %2185 = vst [vmem:[%s2011 + $0x13c] sm:$0xf] %v1794
    %v2186 = vld [vmem:[%s2011 + $0x140] sm:$0x1]
    %v2187 = vsel %vm1086, %v1795, %v2186
    %2188 = vst [vmem:[%s2011 + $0x140] sm:$0x1] %v2187
    %v2189 = vld [vmem:[%s2011 + $0x144] sm:$0xf]
    %v2190 = vsel %vm2013, %v1802, %v2189
    %2191 = vst [vmem:[%s2011 + $0x144] sm:$0xf] %v2190
    %2192 = vst [vmem:[%s2011 + $0x148] sm:$0xf] %v1811
    %v2193 = vld [vmem:[%s2011 + $0x14c] sm:$0x1]
    %v2194 = vsel %vm1086, %v1812, %v2193
    %2195 = vst [vmem:[%s2011 + $0x14c] sm:$0x1] %v2194
    %v2196 = vld [vmem:[%s2011 + $0x150] sm:$0xf]
    %v2197 = vsel %vm2013, %v1819, %v2196
    %2198 = vst [vmem:[%s2011 + $0x150] sm:$0xf] %v2197
    %2199 = vst [vmem:[%s2011 + $0x154] sm:$0xf] %v1828
    %v2200 = vld [vmem:[%s2011 + $0x158] sm:$0x1]
    %v2201 = vsel %vm1086, %v1829, %v2200
    %2202 = vst [vmem:[%s2011 + $0x158] sm:$0x1] %v2201
    %v2203 = vld [vmem:[%s2011 + $0x15c] sm:$0xf]
    %v2204 = vsel %vm2013, %v1836, %v2203
    %2205 = vst [vmem:[%s2011 + $0x15c] sm:$0xf] %v2204
    %2206 = vst [vmem:[%s2011 + $0x160] sm:$0xf] %v1845
    %v2207 = vld [vmem:[%s2011 + $0x164] sm:$0x1]
    %v2208 = vsel %vm1086, %v1846, %v2207
    %2209 = vst [vmem:[%s2011 + $0x164] sm:$0x1] %v2208
    %v2210 = vld [vmem:[%s2011 + $0x168] sm:$0xf]
    %v2211 = vsel %vm2013, %v1853, %v2210
    %2212 = vst [vmem:[%s2011 + $0x168] sm:$0xf] %v2211
    %2213 = vst [vmem:[%s2011 + $0x16c] sm:$0xf] %v1862
    %v2214 = vld [vmem:[%s2011 + $0x170] sm:$0x1]
    %v2215 = vsel %vm1086, %v1863, %v2214
    %2216 = vst [vmem:[%s2011 + $0x170] sm:$0x1] %v2215
    %v2217 = vld [vmem:[%s2011 + $0x174] sm:$0xf]
    %v2218 = vsel %vm2013, %v1870, %v2217
    %2219 = vst [vmem:[%s2011 + $0x174] sm:$0xf] %v2218
    %2220 = vst [vmem:[%s2011 + $0x178] sm:$0xf] %v1879
    %v2221 = vld [vmem:[%s2011 + $0x17c] sm:$0x1]
    %v2222 = vsel %vm1086, %v1880, %v2221
    %2223 = vst [vmem:[%s2011 + $0x17c] sm:$0x1] %v2222
    %v2224 = vld [vmem:[%s2011 + $0x180] sm:$0xf]
    %v2225 = vsel %vm2013, %v1887, %v2224
    %2226 = vst [vmem:[%s2011 + $0x180] sm:$0xf] %v2225
    %2227 = vst [vmem:[%s2011 + $0x184] sm:$0xf] %v1896
    %v2228 = vld [vmem:[%s2011 + $0x188] sm:$0x1]
    %v2229 = vsel %vm1086, %v1897, %v2228
    %2230 = vst [vmem:[%s2011 + $0x188] sm:$0x1] %v2229
    %v2231 = vld [vmem:[%s2011 + $0x18c] sm:$0xf]
    %v2232 = vsel %vm2013, %v1904, %v2231
    %2233 = vst [vmem:[%s2011 + $0x18c] sm:$0xf] %v2232
    %2234 = vst [vmem:[%s2011 + $0x190] sm:$0xf] %v1913
    %v2235 = vld [vmem:[%s2011 + $0x194] sm:$0x1]
    %v2236 = vsel %vm1086, %v1914, %v2235
    %2237 = vst [vmem:[%s2011 + $0x194] sm:$0x1] %v2236
    %v2238 = vld [vmem:[#allocation2] sm:$0xf]
    %v2239 = vld [vmem:[#allocation2 + $0x4] sm:$0xf]
    %v2240 = vld [vmem:[#allocation2 + $0xc] sm:$0xf]
    %v2241 = vld [vmem:[#allocation2 + $0x10] sm:$0xf]
    %v2242 = vld [vmem:[#allocation2 + $0x18] sm:$0xf]
    %v2243 = vld [vmem:[#allocation2 + $0x1c] sm:$0xf]
    %v2244 = vld [vmem:[#allocation2 + $0x24] sm:$0xf]
    %v2245 = vld [vmem:[#allocation2 + $0x28] sm:$0xf]
    %v2246 = vld [vmem:[#allocation2 + $0x30] sm:$0xf]
    %v2247 = vld [vmem:[#allocation2 + $0x34] sm:$0xf]
    %v2248 = vld [vmem:[#allocation2 + $0x3c] sm:$0xf]
    %v2249 = vld [vmem:[#allocation2 + $0x40] sm:$0xf]
    %v2250 = vld [vmem:[#allocation2 + $0x48] sm:$0xf]
    %v2251 = vld [vmem:[#allocation2 + $0x4c] sm:$0xf]
    %v2252 = vld [vmem:[#allocation2 + $0x54] sm:$0xf]
    %v2253 = vld [vmem:[#allocation2 + $0x58] sm:$0xf]
    %v2254 = vld [vmem:[#allocation2 + $0x60] sm:$0xf]
    %v2255 = vld [vmem:[#allocation2 + $0x64] sm:$0xf]
    %v2256 = vld [vmem:[#allocation2 + $0x6c] sm:$0xf]
    %v2257 = vld [vmem:[#allocation2 + $0x70] sm:$0xf]
    %v2258 = vld [vmem:[#allocation2 + $0x78] sm:$0xf]
    %v2259 = vld [vmem:[#allocation2 + $0x7c] sm:$0xf]
    %v2260 = vld [vmem:[#allocation2 + $0x84] sm:$0xf]
    %v2261 = vld [vmem:[#allocation2 + $0x88] sm:$0xf]
    %v2262 = vld [vmem:[#allocation2 + $0x90] sm:$0xf]
    %v2263 = vld [vmem:[#allocation2 + $0x94] sm:$0xf]
    %v2264 = vld [vmem:[#allocation2 + $0x9c] sm:$0xf]
    %v2265 = vld [vmem:[#allocation2 + $0xa0] sm:$0xf]
    %v2266 = vld [vmem:[#allocation2 + $0xa8] sm:$0xf]
    %v2267 = vld [vmem:[#allocation2 + $0xac] sm:$0xf]
    %v2268 = vld [vmem:[#allocation2 + $0xb4] sm:$0xf]
    %v2269 = vld [vmem:[#allocation2 + $0xb8] sm:$0xf]
    %v2270 = vld [vmem:[#allocation2 + $0xd8] sm:$0xf]
    %v2271 = vld [vmem:[#allocation2 + $0xdc] sm:$0xf]
    %v2272 = vld [vmem:[#allocation2 + $0xe4] sm:$0xf]
    %v2273 = vld [vmem:[#allocation2 + $0xe8] sm:$0xf]
    %v2274 = vld [vmem:[#allocation2 + $0xf0] sm:$0xf]
    %v2275 = vld [vmem:[#allocation2 + $0xf4] sm:$0xf]
    %v2276 = vld [vmem:[#allocation2 + $0xfc] sm:$0xf]
    %v2277 = vld [vmem:[#allocation2 + $0x100] sm:$0xf]
    %v2278 = vld [vmem:[#allocation2 + $0x108] sm:$0xf]
    %v2279 = vld [vmem:[#allocation2 + $0x10c] sm:$0xf]
    %v2280 = vld [vmem:[#allocation2 + $0x114] sm:$0xf]
    %v2281 = vld [vmem:[#allocation2 + $0x118] sm:$0xf]
    %v2282 = vld [vmem:[#allocation2 + $0x120] sm:$0xf]
    %v2283 = vld [vmem:[#allocation2 + $0x124] sm:$0xf]
    %v2284 = vld [vmem:[#allocation2 + $0x12c] sm:$0xf]
    %v2285 = vld [vmem:[#allocation2 + $0x130] sm:$0xf]
    %v2286 = vld [vmem:[#allocation2 + $0x138] sm:$0xf]
    %v2287 = vld [vmem:[#allocation2 + $0x13c] sm:$0xf]
    %v2288 = vld [vmem:[#allocation2 + $0x144] sm:$0xf]
    %v2289 = vld [vmem:[#allocation2 + $0x148] sm:$0xf]
    %v2290 = vld [vmem:[#allocation2 + $0x150] sm:$0xf]
    %v2291 = vld [vmem:[#allocation2 + $0x154] sm:$0xf]
    %v2292 = vld [vmem:[#allocation2 + $0x15c] sm:$0xf]
    %v2293 = vld [vmem:[#allocation2 + $0x160] sm:$0xf]
    %v2294 = vld [vmem:[#allocation2 + $0x168] sm:$0xf]
    %v2295 = vld [vmem:[#allocation2 + $0x16c] sm:$0xf]
    %v2296 = vld [vmem:[#allocation2 + $0x174] sm:$0xf]
    %v2297 = vld [vmem:[#allocation2 + $0x178] sm:$0xf]
    %v2298 = vld [vmem:[#allocation2 + $0x180] sm:$0xf]
    %v2299 = vld [vmem:[#allocation2 + $0x184] sm:$0xf]
    %v2300 = vld [vmem:[#allocation2 + $0x18c] sm:$0xf]
    %v2301 = vld [vmem:[#allocation2 + $0x190] sm:$0xf]
    %v2302 = vld [vmem:[#allocation2 + $0x8] sm:$0x1]
    %v2303 = vld [vmem:[#allocation2 + $0x14] sm:$0x1]
    %v2304 = vld [vmem:[#allocation2 + $0x20] sm:$0x1]
    %v2305 = vld [vmem:[#allocation2 + $0x2c] sm:$0x1]
    %v2306 = vld [vmem:[#allocation2 + $0x38] sm:$0x1]
    %v2307 = vld [vmem:[#allocation2 + $0x44] sm:$0x1]
    %v2308 = vld [vmem:[#allocation2 + $0x50] sm:$0x1]
    %v2309 = vld [vmem:[#allocation2 + $0x5c] sm:$0x1]
    %v2310 = vld [vmem:[#allocation2 + $0x68] sm:$0x1]
    %v2311 = vld [vmem:[#allocation2 + $0x74] sm:$0x1]
    %v2312 = vld [vmem:[#allocation2 + $0x80] sm:$0x1]
    %v2313 = vld [vmem:[#allocation2 + $0x8c] sm:$0x1]
    %v2314 = vld [vmem:[#allocation2 + $0x98] sm:$0x1]
    %v2315 = vld [vmem:[#allocation2 + $0xa4] sm:$0x1]
    %v2316 = vld [vmem:[#allocation2 + $0xb0] sm:$0x1]
    %v2317 = vld [vmem:[#allocation2 + $0xbc] sm:$0x1]
    %v2318 = vld [vmem:[#allocation2 + $0xe0] sm:$0x1]
    %v2319 = vld [vmem:[#allocation2 + $0xec] sm:$0x1]
    %v2320 = vld [vmem:[#allocation2 + $0xf8] sm:$0x1]
    %v2321 = vld [vmem:[#allocation2 + $0x104] sm:$0x1]
    %v2322 = vld [vmem:[#allocation2 + $0x110] sm:$0x1]
    %v2323 = vld [vmem:[#allocation2 + $0x11c] sm:$0x1]
    %v2324 = vld [vmem:[#allocation2 + $0x128] sm:$0x1]
    %v2325 = vld [vmem:[#allocation2 + $0x134] sm:$0x1]
    %v2326 = vld [vmem:[#allocation2 + $0x140] sm:$0x1]
    %v2327 = vld [vmem:[#allocation2 + $0x14c] sm:$0x1]
    %v2328 = vld [vmem:[#allocation2 + $0x158] sm:$0x1]
    %v2329 = vld [vmem:[#allocation2 + $0x164] sm:$0x1]
    %v2330 = vld [vmem:[#allocation2 + $0x170] sm:$0x1]
    %v2331 = vld [vmem:[#allocation2 + $0x17c] sm:$0x1]
    %v2332 = vld [vmem:[#allocation2 + $0x188] sm:$0x1]
    %v2333 = vld [vmem:[#allocation2 + $0x194] sm:$0x1]
    %vm2334 = vsmask.f32 3328
    %vm2335 = vsmask.f32 7440
    %vm2336 = vmor %vm2334, %vm2335
    %v2338 = vshrl.u32 %v2238, 16
    %v2340 = vrot.slane %v2338, 4
    %v2341 = vshll.u32 %v2238, 16
    %v2343 = vrot.slane %v2341, 5
    %v2344 = vor.u32 %v2340, %v2343
    %v2345 = vrot.slane %v2344, 4
    %v2347 = vshll.u32 %v2239, 16
    %v2349 = vrot.slane %v2347, 5
    %v2350 = vsel %vm2336, %v2345, %v2349
    %v2351 = vshrl.u32 %v2239, 16
    %v2353 = vrot.slane %v2351, 4
    %v2354 = vor.u32 %v2353, %v2349
    %v2355 = vrot.slane %v2354, 4
    %v2357 = vshll.u32 %v2302, 16
    %v2359 = vrot.slane %v2357, 5
    %v2360 = vsel %vm2336, %v2355, %v2359
    %v2362 = vshrl.u32 %v2240, 16
    %v2364 = vrot.slane %v2362, 4
    %v2365 = vshll.u32 %v2240, 16
    %v2367 = vrot.slane %v2365, 5
    %v2368 = vor.u32 %v2364, %v2367
    %v2369 = vrot.slane %v2368, 4
    %v2371 = vshll.u32 %v2241, 16
    %v2373 = vrot.slane %v2371, 5
    %v2374 = vsel %vm2336, %v2369, %v2373
    %v2375 = vshrl.u32 %v2241, 16
    %v2377 = vrot.slane %v2375, 4
    %v2378 = vor.u32 %v2377, %v2373
    %v2379 = vrot.slane %v2378, 4
    %v2381 = vshll.u32 %v2303, 16
    %v2383 = vrot.slane %v2381, 5
    %v2384 = vsel %vm2336, %v2379, %v2383
    %v2386 = vshrl.u32 %v2242, 16
    %v2388 = vrot.slane %v2386, 4
    %v2389 = vshll.u32 %v2242, 16
    %v2391 = vrot.slane %v2389, 5
    %v2392 = vor.u32 %v2388, %v2391
    %v2393 = vrot.slane %v2392, 4
    %v2395 = vshll.u32 %v2243, 16
    %v2397 = vrot.slane %v2395, 5
    %v2398 = vsel %vm2336, %v2393, %v2397
    %v2399 = vshrl.u32 %v2243, 16
    %v2401 = vrot.slane %v2399, 4
    %v2402 = vor.u32 %v2401, %v2397
    %v2403 = vrot.slane %v2402, 4
    %v2405 = vshll.u32 %v2304, 16
    %v2407 = vrot.slane %v2405, 5
    %v2408 = vsel %vm2336, %v2403, %v2407
    %v2410 = vshrl.u32 %v2244, 16
    %v2412 = vrot.slane %v2410, 4
    %v2413 = vshll.u32 %v2244, 16
    %v2415 = vrot.slane %v2413, 5
    %v2416 = vor.u32 %v2412, %v2415
    %v2417 = vrot.slane %v2416, 4
    %v2419 = vshll.u32 %v2245, 16
    %v2421 = vrot.slane %v2419, 5
    %v2422 = vsel %vm2336, %v2417, %v2421
    %v2423 = vshrl.u32 %v2245, 16
    %v2425 = vrot.slane %v2423, 4
    %v2426 = vor.u32 %v2425, %v2421
    %v2427 = vrot.slane %v2426, 4
    %v2429 = vshll.u32 %v2305, 16
    %v2431 = vrot.slane %v2429, 5
    %v2432 = vsel %vm2336, %v2427, %v2431
    %v2434 = vshrl.u32 %v2246, 16
    %v2436 = vrot.slane %v2434, 4
    %v2437 = vshll.u32 %v2246, 16
    %v2439 = vrot.slane %v2437, 5
    %v2440 = vor.u32 %v2436, %v2439
    %v2441 = vrot.slane %v2440, 4
    %v2443 = vshll.u32 %v2247, 16
    %v2445 = vrot.slane %v2443, 5
    %v2446 = vsel %vm2336, %v2441, %v2445
    %v2447 = vshrl.u32 %v2247, 16
    %v2449 = vrot.slane %v2447, 4
    %v2450 = vor.u32 %v2449, %v2445
    %v2451 = vrot.slane %v2450, 4
    %v2453 = vshll.u32 %v2306, 16
    %v2455 = vrot.slane %v2453, 5
    %v2456 = vsel %vm2336, %v2451, %v2455
    %v2458 = vshrl.u32 %v2248, 16
    %v2460 = vrot.slane %v2458, 4
    %v2461 = vshll.u32 %v2248, 16
    %v2463 = vrot.slane %v2461, 5
    %v2464 = vor.u32 %v2460, %v2463
    %v2465 = vrot.slane %v2464, 4
    %v2467 = vshll.u32 %v2249, 16
    %v2469 = vrot.slane %v2467, 5
    %v2470 = vsel %vm2336, %v2465, %v2469
    %v2471 = vshrl.u32 %v2249, 16
    %v2473 = vrot.slane %v2471, 4
    %v2474 = vor.u32 %v2473, %v2469
    %v2475 = vrot.slane %v2474, 4
    %v2477 = vshll.u32 %v2307, 16
    %v2479 = vrot.slane %v2477, 5
    %v2480 = vsel %vm2336, %v2475, %v2479
    %v2482 = vshrl.u32 %v2250, 16
    %v2484 = vrot.slane %v2482, 4
    %v2485 = vshll.u32 %v2250, 16
    %v2487 = vrot.slane %v2485, 5
    %v2488 = vor.u32 %v2484, %v2487
    %v2489 = vrot.slane %v2488, 4
    %v2491 = vshll.u32 %v2251, 16
    %v2493 = vrot.slane %v2491, 5
    %v2494 = vsel %vm2336, %v2489, %v2493
    %v2495 = vshrl.u32 %v2251, 16
    %v2497 = vrot.slane %v2495, 4
    %v2498 = vor.u32 %v2497, %v2493
    %v2499 = vrot.slane %v2498, 4
    %v2501 = vshll.u32 %v2308, 16
    %v2503 = vrot.slane %v2501, 5
    %v2504 = vsel %vm2336, %v2499, %v2503
    %v2506 = vshrl.u32 %v2252, 16
    %v2508 = vrot.slane %v2506, 4
    %v2509 = vshll.u32 %v2252, 16
    %v2511 = vrot.slane %v2509, 5
    %v2512 = vor.u32 %v2508, %v2511
    %v2513 = vrot.slane %v2512, 4
    %v2515 = vshll.u32 %v2253, 16
    %v2517 = vrot.slane %v2515, 5
    %v2518 = vsel %vm2336, %v2513, %v2517
    %v2519 = vshrl.u32 %v2253, 16
    %v2521 = vrot.slane %v2519, 4
    %v2522 = vor.u32 %v2521, %v2517
    %v2523 = vrot.slane %v2522, 4
    %v2525 = vshll.u32 %v2309, 16
    %v2527 = vrot.slane %v2525, 5
    %v2528 = vsel %vm2336, %v2523, %v2527
    %v2530 = vshrl.u32 %v2254, 16
    %v2532 = vrot.slane %v2530, 4
    %v2533 = vshll.u32 %v2254, 16
    %v2535 = vrot.slane %v2533, 5
    %v2536 = vor.u32 %v2532, %v2535
    %v2537 = vrot.slane %v2536, 4
    %v2539 = vshll.u32 %v2255, 16
    %v2541 = vrot.slane %v2539, 5
    %v2542 = vsel %vm2336, %v2537, %v2541
    %v2543 = vshrl.u32 %v2255, 16
    %v2545 = vrot.slane %v2543, 4
    %v2546 = vor.u32 %v2545, %v2541
    %v2547 = vrot.slane %v2546, 4
    %v2549 = vshll.u32 %v2310, 16
    %v2551 = vrot.slane %v2549, 5
    %v2552 = vsel %vm2336, %v2547, %v2551
    %v2554 = vshrl.u32 %v2256, 16
    %v2556 = vrot.slane %v2554, 4
    %v2557 = vshll.u32 %v2256, 16
    %v2559 = vrot.slane %v2557, 5
    %v2560 = vor.u32 %v2556, %v2559
    %v2561 = vrot.slane %v2560, 4
    %v2563 = vshll.u32 %v2257, 16
    %v2565 = vrot.slane %v2563, 5
    %v2566 = vsel %vm2336, %v2561, %v2565
    %v2567 = vshrl.u32 %v2257, 16
    %v2569 = vrot.slane %v2567, 4
    %v2570 = vor.u32 %v2569, %v2565
    %v2571 = vrot.slane %v2570, 4
    %v2573 = vshll.u32 %v2311, 16
    %v2575 = vrot.slane %v2573, 5
    %v2576 = vsel %vm2336, %v2571, %v2575
    %v2578 = vshrl.u32 %v2258, 16
    %v2580 = vrot.slane %v2578, 4
    %v2581 = vshll.u32 %v2258, 16
    %v2583 = vrot.slane %v2581, 5
    %v2584 = vor.u32 %v2580, %v2583
    %v2585 = vrot.slane %v2584, 4
    %v2587 = vshll.u32 %v2259, 16
    %v2589 = vrot.slane %v2587, 5
    %v2590 = vsel %vm2336, %v2585, %v2589
    %v2591 = vshrl.u32 %v2259, 16
    %v2593 = vrot.slane %v2591, 4
    %v2594 = vor.u32 %v2593, %v2589
    %v2595 = vrot.slane %v2594, 4
    %v2597 = vshll.u32 %v2312, 16
    %v2599 = vrot.slane %v2597, 5
    %v2600 = vsel %vm2336, %v2595, %v2599
    %v2602 = vshrl.u32 %v2260, 16
    %v2604 = vrot.slane %v2602, 4
    %v2605 = vshll.u32 %v2260, 16
    %v2607 = vrot.slane %v2605, 5
    %v2608 = vor.u32 %v2604, %v2607
    %v2609 = vrot.slane %v2608, 4
    %v2611 = vshll.u32 %v2261, 16
    %v2613 = vrot.slane %v2611, 5
    %v2614 = vsel %vm2336, %v2609, %v2613
    %v2615 = vshrl.u32 %v2261, 16
    %v2617 = vrot.slane %v2615, 4
    %v2618 = vor.u32 %v2617, %v2613
    %v2619 = vrot.slane %v2618, 4
    %v2621 = vshll.u32 %v2313, 16
    %v2623 = vrot.slane %v2621, 5
    %v2624 = vsel %vm2336, %v2619, %v2623
    %v2626 = vshrl.u32 %v2262, 16
    %v2628 = vrot.slane %v2626, 4
    %v2629 = vshll.u32 %v2262, 16
    %v2631 = vrot.slane %v2629, 5
    %v2632 = vor.u32 %v2628, %v2631
    %v2633 = vrot.slane %v2632, 4
    %v2635 = vshll.u32 %v2263, 16
    %v2637 = vrot.slane %v2635, 5
    %v2638 = vsel %vm2336, %v2633, %v2637
    %v2639 = vshrl.u32 %v2263, 16
    %v2641 = vrot.slane %v2639, 4
    %v2642 = vor.u32 %v2641, %v2637
    %v2643 = vrot.slane %v2642, 4
    %v2645 = vshll.u32 %v2314, 16
    %v2647 = vrot.slane %v2645, 5
    %v2648 = vsel %vm2336, %v2643, %v2647
    %v2650 = vshrl.u32 %v2264, 16
    %v2652 = vrot.slane %v2650, 4
    %v2653 = vshll.u32 %v2264, 16
    %v2655 = vrot.slane %v2653, 5
    %v2656 = vor.u32 %v2652, %v2655
    %v2657 = vrot.slane %v2656, 4
    %v2659 = vshll.u32 %v2265, 16
    %v2661 = vrot.slane %v2659, 5
    %v2662 = vsel %vm2336, %v2657, %v2661
    %v2663 = vshrl.u32 %v2265, 16
    %v2665 = vrot.slane %v2663, 4
    %v2666 = vor.u32 %v2665, %v2661
    %v2667 = vrot.slane %v2666, 4
    %v2669 = vshll.u32 %v2315, 16
    %v2671 = vrot.slane %v2669, 5
    %v2672 = vsel %vm2336, %v2667, %v2671
    %v2674 = vshrl.u32 %v2266, 16
    %v2676 = vrot.slane %v2674, 4
    %v2677 = vshll.u32 %v2266, 16
    %v2679 = vrot.slane %v2677, 5
    %v2680 = vor.u32 %v2676, %v2679
    %v2681 = vrot.slane %v2680, 4
    %v2683 = vshll.u32 %v2267, 16
    %v2685 = vrot.slane %v2683, 5
    %v2686 = vsel %vm2336, %v2681, %v2685
    %v2687 = vshrl.u32 %v2267, 16
    %v2689 = vrot.slane %v2687, 4
    %v2690 = vor.u32 %v2689, %v2685
    %v2691 = vrot.slane %v2690, 4
    %v2693 = vshll.u32 %v2316, 16
    %v2695 = vrot.slane %v2693, 5
    %v2696 = vsel %vm2336, %v2691, %v2695
    %v2698 = vshrl.u32 %v2268, 16
    %v2700 = vrot.slane %v2698, 4
    %v2701 = vshll.u32 %v2268, 16
    %v2703 = vrot.slane %v2701, 5
    %v2704 = vor.u32 %v2700, %v2703
    %v2705 = vrot.slane %v2704, 4
    %v2707 = vshll.u32 %v2269, 16
    %v2709 = vrot.slane %v2707, 5
    %v2710 = vsel %vm2336, %v2705, %v2709
    %v2711 = vshrl.u32 %v2269, 16
    %v2713 = vrot.slane %v2711, 4
    %v2714 = vor.u32 %v2713, %v2709
    %v2715 = vrot.slane %v2714, 4
    %v2717 = vshll.u32 %v2317, 16
    %v2719 = vrot.slane %v2717, 5
    %v2720 = vsel %vm2336, %v2715, %v2719
    %v2722 = vshrl.u32 %v2270, 16
    %v2724 = vrot.slane %v2722, 4
    %v2725 = vshll.u32 %v2270, 16
    %v2727 = vrot.slane %v2725, 5
    %v2728 = vor.u32 %v2724, %v2727
    %v2729 = vrot.slane %v2728, 4
    %v2731 = vshll.u32 %v2271, 16
    %v2733 = vrot.slane %v2731, 5
    %v2734 = vsel %vm2336, %v2729, %v2733
    %v2735 = vshrl.u32 %v2271, 16
    %v2737 = vrot.slane %v2735, 4
    %v2738 = vor.u32 %v2737, %v2733
    %v2739 = vrot.slane %v2738, 4
    %v2741 = vshll.u32 %v2318, 16
    %v2743 = vrot.slane %v2741, 5
    %v2744 = vsel %vm2336, %v2739, %v2743
    %v2746 = vshrl.u32 %v2272, 16
    %v2748 = vrot.slane %v2746, 4
    %v2749 = vshll.u32 %v2272, 16
    %v2751 = vrot.slane %v2749, 5
    %v2752 = vor.u32 %v2748, %v2751
    %v2753 = vrot.slane %v2752, 4
    %v2755 = vshll.u32 %v2273, 16
    %v2757 = vrot.slane %v2755, 5
    %v2758 = vsel %vm2336, %v2753, %v2757
    %v2759 = vshrl.u32 %v2273, 16
    %v2761 = vrot.slane %v2759, 4
    %v2762 = vor.u32 %v2761, %v2757
    %v2763 = vrot.slane %v2762, 4
    %v2765 = vshll.u32 %v2319, 16
    %v2767 = vrot.slane %v2765, 5
    %v2768 = vsel %vm2336, %v2763, %v2767
    %v2770 = vshrl.u32 %v2274, 16
    %v2772 = vrot.slane %v2770, 4
    %v2773 = vshll.u32 %v2274, 16
    %v2775 = vrot.slane %v2773, 5
    %v2776 = vor.u32 %v2772, %v2775
    %v2777 = vrot.slane %v2776, 4
    %v2779 = vshll.u32 %v2275, 16
    %v2781 = vrot.slane %v2779, 5
    %v2782 = vsel %vm2336, %v2777, %v2781
    %v2783 = vshrl.u32 %v2275, 16
    %v2785 = vrot.slane %v2783, 4
    %v2786 = vor.u32 %v2785, %v2781
    %v2787 = vrot.slane %v2786, 4
    %v2789 = vshll.u32 %v2320, 16
    %v2791 = vrot.slane %v2789, 5
    %v2792 = vsel %vm2336, %v2787, %v2791
    %v2794 = vshrl.u32 %v2276, 16
    %v2796 = vrot.slane %v2794, 4
    %v2797 = vshll.u32 %v2276, 16
    %v2799 = vrot.slane %v2797, 5
    %v2800 = vor.u32 %v2796, %v2799
    %v2801 = vrot.slane %v2800, 4
    %v2803 = vshll.u32 %v2277, 16
    %v2805 = vrot.slane %v2803, 5
    %v2806 = vsel %vm2336, %v2801, %v2805
    %v2807 = vshrl.u32 %v2277, 16
    %v2809 = vrot.slane %v2807, 4
    %v2810 = vor.u32 %v2809, %v2805
    %v2811 = vrot.slane %v2810, 4
    %v2813 = vshll.u32 %v2321, 16
    %v2815 = vrot.slane %v2813, 5
    %v2816 = vsel %vm2336, %v2811, %v2815
    %v2818 = vshrl.u32 %v2278, 16
    %v2820 = vrot.slane %v2818, 4
    %v2821 = vshll.u32 %v2278, 16
    %v2823 = vrot.slane %v2821, 5
    %v2824 = vor.u32 %v2820, %v2823
    %v2825 = vrot.slane %v2824, 4
    %v2827 = vshll.u32 %v2279, 16
    %v2829 = vrot.slane %v2827, 5
    %v2830 = vsel %vm2336, %v2825, %v2829
    %v2831 = vshrl.u32 %v2279, 16
    %v2833 = vrot.slane %v2831, 4
    %v2834 = vor.u32 %v2833, %v2829
    %v2835 = vrot.slane %v2834, 4
    %v2837 = vshll.u32 %v2322, 16
    %v2839 = vrot.slane %v2837, 5
    %v2840 = vsel %vm2336, %v2835, %v2839
    %v2842 = vshrl.u32 %v2280, 16
    %v2844 = vrot.slane %v2842, 4
    %v2845 = vshll.u32 %v2280, 16
    %v2847 = vrot.slane %v2845, 5
    %v2848 = vor.u32 %v2844, %v2847
    %v2849 = vrot.slane %v2848, 4
    %v2851 = vshll.u32 %v2281, 16
    %v2853 = vrot.slane %v2851, 5
    %v2854 = vsel %vm2336, %v2849, %v2853
    %v2855 = vshrl.u32 %v2281, 16
    %v2857 = vrot.slane %v2855, 4
    %v2858 = vor.u32 %v2857, %v2853
    %v2859 = vrot.slane %v2858, 4
    %v2861 = vshll.u32 %v2323, 16
    %v2863 = vrot.slane %v2861, 5
    %v2864 = vsel %vm2336, %v2859, %v2863
    %v2866 = vshrl.u32 %v2282, 16
    %v2868 = vrot.slane %v2866, 4
    %v2869 = vshll.u32 %v2282, 16
    %v2871 = vrot.slane %v2869, 5
    %v2872 = vor.u32 %v2868, %v2871
    %v2873 = vrot.slane %v2872, 4
    %v2875 = vshll.u32 %v2283, 16
    %v2877 = vrot.slane %v2875, 5
    %v2878 = vsel %vm2336, %v2873, %v2877
    %v2879 = vshrl.u32 %v2283, 16
    %v2881 = vrot.slane %v2879, 4
    %v2882 = vor.u32 %v2881, %v2877
    %v2883 = vrot.slane %v2882, 4
    %v2885 = vshll.u32 %v2324, 16
    %v2887 = vrot.slane %v2885, 5
    %v2888 = vsel %vm2336, %v2883, %v2887
    %v2890 = vshrl.u32 %v2284, 16
    %v2892 = vrot.slane %v2890, 4
    %v2893 = vshll.u32 %v2284, 16
    %v2895 = vrot.slane %v2893, 5
    %v2896 = vor.u32 %v2892, %v2895
    %v2897 = vrot.slane %v2896, 4
    %v2899 = vshll.u32 %v2285, 16
    %v2901 = vrot.slane %v2899, 5
    %v2902 = vsel %vm2336, %v2897, %v2901
    %v2903 = vshrl.u32 %v2285, 16
    %v2905 = vrot.slane %v2903, 4
    %v2906 = vor.u32 %v2905, %v2901
    %v2907 = vrot.slane %v2906, 4
    %v2909 = vshll.u32 %v2325, 16
    %v2911 = vrot.slane %v2909, 5
    %v2912 = vsel %vm2336, %v2907, %v2911
    %v2914 = vshrl.u32 %v2286, 16
    %v2916 = vrot.slane %v2914, 4
    %v2917 = vshll.u32 %v2286, 16
    %v2919 = vrot.slane %v2917, 5
    %v2920 = vor.u32 %v2916, %v2919
    %v2921 = vrot.slane %v2920, 4
    %v2923 = vshll.u32 %v2287, 16
    %v2925 = vrot.slane %v2923, 5
    %v2926 = vsel %vm2336, %v2921, %v2925
    %v2927 = vshrl.u32 %v2287, 16
    %v2929 = vrot.slane %v2927, 4
    %v2930 = vor.u32 %v2929, %v2925
    %v2931 = vrot.slane %v2930, 4
    %v2933 = vshll.u32 %v2326, 16
    %v2935 = vrot.slane %v2933, 5
    %v2936 = vsel %vm2336, %v2931, %v2935
    %v2938 = vshrl.u32 %v2288, 16
    %v2940 = vrot.slane %v2938, 4
    %v2941 = vshll.u32 %v2288, 16
    %v2943 = vrot.slane %v2941, 5
    %v2944 = vor.u32 %v2940, %v2943
    %v2945 = vrot.slane %v2944, 4
    %v2947 = vshll.u32 %v2289, 16
    %v2949 = vrot.slane %v2947, 5
    %v2950 = vsel %vm2336, %v2945, %v2949
    %v2951 = vshrl.u32 %v2289, 16
    %v2953 = vrot.slane %v2951, 4
    %v2954 = vor.u32 %v2953, %v2949
    %v2955 = vrot.slane %v2954, 4
    %v2957 = vshll.u32 %v2327, 16
    %v2959 = vrot.slane %v2957, 5
    %v2960 = vsel %vm2336, %v2955, %v2959
    %v2962 = vshrl.u32 %v2290, 16
    %v2964 = vrot.slane %v2962, 4
    %v2965 = vshll.u32 %v2290, 16
    %v2967 = vrot.slane %v2965, 5
    %v2968 = vor.u32 %v2964, %v2967
    %v2969 = vrot.slane %v2968, 4
    %v2971 = vshll.u32 %v2291, 16
    %v2973 = vrot.slane %v2971, 5
    %v2974 = vsel %vm2336, %v2969, %v2973
    %v2975 = vshrl.u32 %v2291, 16
    %v2977 = vrot.slane %v2975, 4
    %v2978 = vor.u32 %v2977, %v2973
    %v2979 = vrot.slane %v2978, 4
    %v2981 = vshll.u32 %v2328, 16
    %v2983 = vrot.slane %v2981, 5
    %v2984 = vsel %vm2336, %v2979, %v2983
    %v2986 = vshrl.u32 %v2292, 16
    %v2988 = vrot.slane %v2986, 4
    %v2989 = vshll.u32 %v2292, 16
    %v2991 = vrot.slane %v2989, 5
    %v2992 = vor.u32 %v2988, %v2991
    %v2993 = vrot.slane %v2992, 4
    %v2995 = vshll.u32 %v2293, 16
    %v2997 = vrot.slane %v2995, 5
    %v2998 = vsel %vm2336, %v2993, %v2997
    %v2999 = vshrl.u32 %v2293, 16
    %v3001 = vrot.slane %v2999, 4
    %v3002 = vor.u32 %v3001, %v2997
    %v3003 = vrot.slane %v3002, 4
    %v3005 = vshll.u32 %v2329, 16
    %v3007 = vrot.slane %v3005, 5
    %v3008 = vsel %vm2336, %v3003, %v3007
    %v3010 = vshrl.u32 %v2294, 16
    %v3012 = vrot.slane %v3010, 4
    %v3013 = vshll.u32 %v2294, 16
    %v3015 = vrot.slane %v3013, 5
    %v3016 = vor.u32 %v3012, %v3015
    %v3017 = vrot.slane %v3016, 4
    %v3019 = vshll.u32 %v2295, 16
    %v3021 = vrot.slane %v3019, 5
    %v3022 = vsel %vm2336, %v3017, %v3021
    %v3023 = vshrl.u32 %v2295, 16
    %v3025 = vrot.slane %v3023, 4
    %v3026 = vor.u32 %v3025, %v3021
    %v3027 = vrot.slane %v3026, 4
    %v3029 = vshll.u32 %v2330, 16
    %v3031 = vrot.slane %v3029, 5
    %v3032 = vsel %vm2336, %v3027, %v3031
    %v3034 = vshrl.u32 %v2296, 16
    %v3036 = vrot.slane %v3034, 4
    %v3037 = vshll.u32 %v2296, 16
    %v3039 = vrot.slane %v3037, 5
    %v3040 = vor.u32 %v3036, %v3039
    %v3041 = vrot.slane %v3040, 4
    %v3043 = vshll.u32 %v2297, 16
    %v3045 = vrot.slane %v3043, 5
    %v3046 = vsel %vm2336, %v3041, %v3045
    %v3047 = vshrl.u32 %v2297, 16
    %v3049 = vrot.slane %v3047, 4
    %v3050 = vor.u32 %v3049, %v3045
    %v3051 = vrot.slane %v3050, 4
    %v3053 = vshll.u32 %v2331, 16
    %v3055 = vrot.slane %v3053, 5
    %v3056 = vsel %vm2336, %v3051, %v3055
    %v3058 = vshrl.u32 %v2298, 16
    %v3060 = vrot.slane %v3058, 4
    %v3061 = vshll.u32 %v2298, 16
    %v3063 = vrot.slane %v3061, 5
    %v3064 = vor.u32 %v3060, %v3063
    %v3065 = vrot.slane %v3064, 4
    %v3067 = vshll.u32 %v2299, 16
    %v3069 = vrot.slane %v3067, 5
    %v3070 = vsel %vm2336, %v3065, %v3069
    %v3071 = vshrl.u32 %v2299, 16
    %v3073 = vrot.slane %v3071, 4
    %v3074 = vor.u32 %v3073, %v3069
    %v3075 = vrot.slane %v3074, 4
    %v3077 = vshll.u32 %v2332, 16
    %v3079 = vrot.slane %v3077, 5
    %v3080 = vsel %vm2336, %v3075, %v3079
    %v3082 = vshrl.u32 %v2300, 16
    %v3084 = vrot.slane %v3082, 4
    %v3085 = vshll.u32 %v2300, 16
    %v3087 = vrot.slane %v3085, 5
    %v3088 = vor.u32 %v3084, %v3087
    %v3089 = vrot.slane %v3088, 4
    %v3091 = vshll.u32 %v2301, 16
    %v3093 = vrot.slane %v3091, 5
    %v3094 = vsel %vm2336, %v3089, %v3093
    %v3095 = vshrl.u32 %v2301, 16
    %v3097 = vrot.slane %v3095, 4
    %v3098 = vor.u32 %v3097, %v3093
    %v3099 = vrot.slane %v3098, 4
    %v3101 = vshll.u32 %v2333, 16
    %v3103 = vrot.slane %v3101, 5
    %v3104 = vsel %vm2336, %v3099, %v3103
    %v3105 = vld [vmem:[#allocation2] sm:$0xe]
    %v3106 = vld [vmem:[#allocation2 + $0xc] sm:$0xe]
    %v3107 = vld [vmem:[#allocation2 + $0x18] sm:$0xe]
    %v3108 = vld [vmem:[#allocation2 + $0x24] sm:$0xe]
    %v3109 = vld [vmem:[#allocation2 + $0x30] sm:$0xe]
    %v3110 = vld [vmem:[#allocation2 + $0x3c] sm:$0xe]
    %v3111 = vld [vmem:[#allocation2 + $0x48] sm:$0xe]
    %v3112 = vld [vmem:[#allocation2 + $0x54] sm:$0xe]
    %v3113 = vld [vmem:[#allocation2 + $0x60] sm:$0xe]
    %v3114 = vld [vmem:[#allocation2 + $0x6c] sm:$0xe]
    %v3115 = vld [vmem:[#allocation2 + $0x78] sm:$0xe]
    %v3116 = vld [vmem:[#allocation2 + $0x84] sm:$0xe]
    %v3117 = vld [vmem:[#allocation2 + $0x90] sm:$0xe]
    %v3118 = vld [vmem:[#allocation2 + $0x9c] sm:$0xe]
    %v3119 = vld [vmem:[#allocation2 + $0xa8] sm:$0xe]
    %v3120 = vld [vmem:[#allocation2 + $0xb4] sm:$0xe]
    %v3121 = vld [vmem:[#allocation2 + $0xd8] sm:$0xe]
    %v3122 = vld [vmem:[#allocation2 + $0xe4] sm:$0xe]
    %v3123 = vld [vmem:[#allocation2 + $0xf0] sm:$0xe]
    %v3124 = vld [vmem:[#allocation2 + $0xfc] sm:$0xe]
    %v3125 = vld [vmem:[#allocation2 + $0x108] sm:$0xe]
    %v3126 = vld [vmem:[#allocation2 + $0x114] sm:$0xe]
    %v3127 = vld [vmem:[#allocation2 + $0x120] sm:$0xe]
    %v3128 = vld [vmem:[#allocation2 + $0x12c] sm:$0xe]
    %v3129 = vld [vmem:[#allocation2 + $0x138] sm:$0xe]
    %v3130 = vld [vmem:[#allocation2 + $0x144] sm:$0xe]
    %v3131 = vld [vmem:[#allocation2 + $0x150] sm:$0xe]
    %v3132 = vld [vmem:[#allocation2 + $0x15c] sm:$0xe]
    %v3133 = vld [vmem:[#allocation2 + $0x168] sm:$0xe]
    %v3134 = vld [vmem:[#allocation2 + $0x174] sm:$0xe]
    %v3135 = vld [vmem:[#allocation2 + $0x180] sm:$0xe]
    %v3136 = vld [vmem:[#allocation2 + $0x18c] sm:$0xe]
    %vm3233 = vcmask 1042432
    %vm3234 = vcmask 1046532
    %vm3235 = vmor %vm3233, %vm3234
    %v3236 = vrot.slane %v3105, 5
    %v3237 = vrot.slane %v3236, 4
    %v3238 = vrot.slane %v2239, 5
    %v3239 = vsel %vm3235, %v3237, %v3238
    %v3240 = vrot.slane %v3238, 4
    %v3241 = vrot.slane %v2302, 5
    %v3242 = vsel %vm3235, %v3240, %v3241
    %v3243 = vrot.slane %v3106, 5
    %v3244 = vrot.slane %v3243, 4
    %v3245 = vrot.slane %v2241, 5
    %v3246 = vsel %vm3235, %v3244, %v3245
    %v3247 = vrot.slane %v3245, 4
    %v3248 = vrot.slane %v2303, 5
    %v3249 = vsel %vm3235, %v3247, %v3248
    %v3250 = vrot.slane %v3107, 5
    %v3251 = vrot.slane %v3250, 4
    %v3252 = vrot.slane %v2243, 5
    %v3253 = vsel %vm3235, %v3251, %v3252
    %v3254 = vrot.slane %v3252, 4
    %v3255 = vrot.slane %v2304, 5
    %v3256 = vsel %vm3235, %v3254, %v3255
    %v3257 = vrot.slane %v3108, 5
    %v3258 = vrot.slane %v3257, 4
    %v3259 = vrot.slane %v2245, 5
    %v3260 = vsel %vm3235, %v3258, %v3259
    %v3261 = vrot.slane %v3259, 4
    %v3262 = vrot.slane %v2305, 5
    %v3263 = vsel %vm3235, %v3261, %v3262
    %v3264 = vrot.slane %v3109, 5
    %v3265 = vrot.slane %v3264, 4
    %v3266 = vrot.slane %v2247, 5
    %v3267 = vsel %vm3235, %v3265, %v3266
    %v3268 = vrot.slane %v3266, 4
    %v3269 = vrot.slane %v2306, 5
    %v3270 = vsel %vm3235, %v3268, %v3269
    %v3271 = vrot.slane %v3110, 5
    %v3272 = vrot.slane %v3271, 4
    %v3273 = vrot.slane %v2249, 5
    %v3274 = vsel %vm3235, %v3272, %v3273
    %v3275 = vrot.slane %v3273, 4
    %v3276 = vrot.slane %v2307, 5
    %v3277 = vsel %vm3235, %v3275, %v3276
    %v3278 = vrot.slane %v3111, 5
    %v3279 = vrot.slane %v3278, 4
    %v3280 = vrot.slane %v2251, 5
    %v3281 = vsel %vm3235, %v3279, %v3280
    %v3282 = vrot.slane %v3280, 4
    %v3283 = vrot.slane %v2308, 5
    %v3284 = vsel %vm3235, %v3282, %v3283
    %v3285 = vrot.slane %v3112, 5
    %v3286 = vrot.slane %v3285, 4
    %v3287 = vrot.slane %v2253, 5
    %v3288 = vsel %vm3235, %v3286, %v3287
    %v3289 = vrot.slane %v3287, 4
    %v3290 = vrot.slane %v2309, 5
    %v3291 = vsel %vm3235, %v3289, %v3290
    %v3292 = vrot.slane %v3113, 5
    %v3293 = vrot.slane %v3292, 4
    %v3294 = vrot.slane %v2255, 5
    %v3295 = vsel %vm3235, %v3293, %v3294
    %v3296 = vrot.slane %v3294, 4
    %v3297 = vrot.slane %v2310, 5
    %v3298 = vsel %vm3235, %v3296, %v3297
    %v3299 = vrot.slane %v3114, 5
    %v3300 = vrot.slane %v3299, 4
    %v3301 = vrot.slane %v2257, 5
    %v3302 = vsel %vm3235, %v3300, %v3301
    %v3303 = vrot.slane %v3301, 4
    %v3304 = vrot.slane %v2311, 5
    %v3305 = vsel %vm3235, %v3303, %v3304
    %v3306 = vrot.slane %v3115, 5
    %v3307 = vrot.slane %v3306, 4
    %v3308 = vrot.slane %v2259, 5
    %v3309 = vsel %vm3235, %v3307, %v3308
    %v3310 = vrot.slane %v3308, 4
    %v3311 = vrot.slane %v2312, 5
    %v3312 = vsel %vm3235, %v3310, %v3311
    %v3313 = vrot.slane %v3116, 5
    %v3314 = vrot.slane %v3313, 4
    %v3315 = vrot.slane %v2261, 5
    %v3316 = vsel %vm3235, %v3314, %v3315
    %v3317 = vrot.slane %v3315, 4
    %v3318 = vrot.slane %v2313, 5
    %v3319 = vsel %vm3235, %v3317, %v3318
    %v3320 = vrot.slane %v3117, 5
    %v3321 = vrot.slane %v3320, 4
    %v3322 = vrot.slane %v2263, 5
    %v3323 = vsel %vm3235, %v3321, %v3322
    %v3324 = vrot.slane %v3322, 4
    %v3325 = vrot.slane %v2314, 5
    %v3326 = vsel %vm3235, %v3324, %v3325
    %v3327 = vrot.slane %v3118, 5
    %v3328 = vrot.slane %v3327, 4
    %v3329 = vrot.slane %v2265, 5
    %v3330 = vsel %vm3235, %v3328, %v3329
    %v3331 = vrot.slane %v3329, 4
    %v3332 = vrot.slane %v2315, 5
    %v3333 = vsel %vm3235, %v3331, %v3332
    %v3334 = vrot.slane %v3119, 5
    %v3335 = vrot.slane %v3334, 4
    %v3336 = vrot.slane %v2267, 5
    %v3337 = vsel %vm3235, %v3335, %v3336
    %v3338 = vrot.slane %v3336, 4
    %v3339 = vrot.slane %v2316, 5
    %v3340 = vsel %vm3235, %v3338, %v3339
    %v3341 = vrot.slane %v3120, 5
    %v3342 = vrot.slane %v3341, 4
    %v3343 = vrot.slane %v2269, 5
    %v3344 = vsel %vm3235, %v3342, %v3343
    %v3345 = vrot.slane %v3343, 4
    %v3346 = vrot.slane %v2317, 5
    %v3347 = vsel %vm3235, %v3345, %v3346
    %v3348 = vrot.slane %v3121, 5
    %v3349 = vrot.slane %v3348, 4
    %v3350 = vrot.slane %v2271, 5
    %v3351 = vsel %vm3235, %v3349, %v3350
    %v3352 = vrot.slane %v3350, 4
    %v3353 = vrot.slane %v2318, 5
    %v3354 = vsel %vm3235, %v3352, %v3353
    %v3355 = vrot.slane %v3122, 5
    %v3356 = vrot.slane %v3355, 4
    %v3357 = vrot.slane %v2273, 5
    %v3358 = vsel %vm3235, %v3356, %v3357
    %v3359 = vrot.slane %v3357, 4
    %v3360 = vrot.slane %v2319, 5
    %v3361 = vsel %vm3235, %v3359, %v3360
    %v3362 = vrot.slane %v3123, 5
    %v3363 = vrot.slane %v3362, 4
    %v3364 = vrot.slane %v2275, 5
    %v3365 = vsel %vm3235, %v3363, %v3364
    %v3366 = vrot.slane %v3364, 4
    %v3367 = vrot.slane %v2320, 5
    %v3368 = vsel %vm3235, %v3366, %v3367
    %v3369 = vrot.slane %v3124, 5
    %v3370 = vrot.slane %v3369, 4
    %v3371 = vrot.slane %v2277, 5
    %v3372 = vsel %vm3235, %v3370, %v3371
    %v3373 = vrot.slane %v3371, 4
    %v3374 = vrot.slane %v2321, 5
    %v3375 = vsel %vm3235, %v3373, %v3374
    %v3376 = vrot.slane %v3125, 5
    %v3377 = vrot.slane %v3376, 4
    %v3378 = vrot.slane %v2279, 5
    %v3379 = vsel %vm3235, %v3377, %v3378
    %v3380 = vrot.slane %v3378, 4
    %v3381 = vrot.slane %v2322, 5
    %v3382 = vsel %vm3235, %v3380, %v3381
    %v3383 = vrot.slane %v3126, 5
    %v3384 = vrot.slane %v3383, 4
    %v3385 = vrot.slane %v2281, 5
    %v3386 = vsel %vm3235, %v3384, %v3385
    %v3387 = vrot.slane %v3385, 4
    %v3388 = vrot.slane %v2323, 5
    %v3389 = vsel %vm3235, %v3387, %v3388
    %v3390 = vrot.slane %v3127, 5
    %v3391 = vrot.slane %v3390, 4
    %v3392 = vrot.slane %v2283, 5
    %v3393 = vsel %vm3235, %v3391, %v3392
    %v3394 = vrot.slane %v3392, 4
    %v3395 = vrot.slane %v2324, 5
    %v3396 = vsel %vm3235, %v3394, %v3395
    %v3397 = vrot.slane %v3128, 5
    %v3398 = vrot.slane %v3397, 4
    %v3399 = vrot.slane %v2285, 5
    %v3400 = vsel %vm3235, %v3398, %v3399
    %v3401 = vrot.slane %v3399, 4
    %v3402 = vrot.slane %v2325, 5
    %v3403 = vsel %vm3235, %v3401, %v3402
    %v3404 = vrot.slane %v3129, 5
    %v3405 = vrot.slane %v3404, 4
    %v3406 = vrot.slane %v2287, 5
    %v3407 = vsel %vm3235, %v3405, %v3406
    %v3408 = vrot.slane %v3406, 4
    %v3409 = vrot.slane %v2326, 5
    %v3410 = vsel %vm3235, %v3408, %v3409
    %v3411 = vrot.slane %v3130, 5
    %v3412 = vrot.slane %v3411, 4
    %v3413 = vrot.slane %v2289, 5
    %v3414 = vsel %vm3235, %v3412, %v3413
    %v3415 = vrot.slane %v3413, 4
    %v3416 = vrot.slane %v2327, 5
    %v3417 = vsel %vm3235, %v3415, %v3416
    %v3418 = vrot.slane %v3131, 5
    %v3419 = vrot.slane %v3418, 4
    %v3420 = vrot.slane %v2291, 5
    %v3421 = vsel %vm3235, %v3419, %v3420
    %v3422 = vrot.slane %v3420, 4
    %v3423 = vrot.slane %v2328, 5
    %v3424 = vsel %vm3235, %v3422, %v3423
    %v3425 = vrot.slane %v3132, 5
    %v3426 = vrot.slane %v3425, 4
    %v3427 = vrot.slane %v2293, 5
    %v3428 = vsel %vm3235, %v3426, %v3427
    %v3429 = vrot.slane %v3427, 4
    %v3430 = vrot.slane %v2329, 5
    %v3431 = vsel %vm3235, %v3429, %v3430
    %v3432 = vrot.slane %v3133, 5
    %v3433 = vrot.slane %v3432, 4
    %v3434 = vrot.slane %v2295, 5
    %v3435 = vsel %vm3235, %v3433, %v3434
    %v3436 = vrot.slane %v3434, 4
    %v3437 = vrot.slane %v2330, 5
    %v3438 = vsel %vm3235, %v3436, %v3437
    %v3439 = vrot.slane %v3134, 5
    %v3440 = vrot.slane %v3439, 4
    %v3441 = vrot.slane %v2297, 5
    %v3442 = vsel %vm3235, %v3440, %v3441
    %v3443 = vrot.slane %v3441, 4
    %v3444 = vrot.slane %v2331, 5
    %v3445 = vsel %vm3235, %v3443, %v3444
    %v3446 = vrot.slane %v3135, 5
    %v3447 = vrot.slane %v3446, 4
    %v3448 = vrot.slane %v2299, 5
    %v3449 = vsel %vm3235, %v3447, %v3448
    %v3450 = vrot.slane %v3448, 4
    %v3451 = vrot.slane %v2332, 5
    %v3452 = vsel %vm3235, %v3450, %v3451
    %v3453 = vrot.slane %v3136, 5
    %v3454 = vrot.slane %v3453, 4
    %v3455 = vrot.slane %v2301, 5
    %v3456 = vsel %vm3235, %v3454, %v3455
    %v3457 = vrot.slane %v3455, 4
    %v3458 = vrot.slane %v2333, 5
    %v3459 = vsel %vm3235, %v3457, %v3458
    %v3460 = vld [vmem:[%s2011] sm:$0xf]
    %v3461 = vld [vmem:[%s2011 + $0x4] sm:$0xf]
    %v3462 = vld [vmem:[%s2011 + $0xc] sm:$0xf]
    %v3463 = vld [vmem:[%s2011 + $0x10] sm:$0xf]
    %v3464 = vld [vmem:[%s2011 + $0x18] sm:$0xf]
    %v3465 = vld [vmem:[%s2011 + $0x1c] sm:$0xf]
    %v3466 = vld [vmem:[%s2011 + $0x24] sm:$0xf]
    %v3467 = vld [vmem:[%s2011 + $0x28] sm:$0xf]
    %v3468 = vld [vmem:[%s2011 + $0x30] sm:$0xf]
    %v3469 = vld [vmem:[%s2011 + $0x34] sm:$0xf]
    %v3470 = vld [vmem:[%s2011 + $0x3c] sm:$0xf]
    %v3471 = vld [vmem:[%s2011 + $0x40] sm:$0xf]
    %v3472 = vld [vmem:[%s2011 + $0x48] sm:$0xf]
    %v3473 = vld [vmem:[%s2011 + $0x4c] sm:$0xf]
    %v3474 = vld [vmem:[%s2011 + $0x54] sm:$0xf]
    %v3475 = vld [vmem:[%s2011 + $0x58] sm:$0xf]
    %v3476 = vld [vmem:[%s2011 + $0x60] sm:$0xf]
    %v3477 = vld [vmem:[%s2011 + $0x64] sm:$0xf]
    %v3478 = vld [vmem:[%s2011 + $0x6c] sm:$0xf]
    %v3479 = vld [vmem:[%s2011 + $0x70] sm:$0xf]
    %v3480 = vld [vmem:[%s2011 + $0x78] sm:$0xf]
    %v3481 = vld [vmem:[%s2011 + $0x7c] sm:$0xf]
    %v3482 = vld [vmem:[%s2011 + $0x84] sm:$0xf]
    %v3483 = vld [vmem:[%s2011 + $0x88] sm:$0xf]
    %v3484 = vld [vmem:[%s2011 + $0x90] sm:$0xf]
    %v3485 = vld [vmem:[%s2011 + $0x94] sm:$0xf]
    %v3486 = vld [vmem:[%s2011 + $0x9c] sm:$0xf]
    %v3487 = vld [vmem:[%s2011 + $0xa0] sm:$0xf]
    %v3488 = vld [vmem:[%s2011 + $0xa8] sm:$0xf]
    %v3489 = vld [vmem:[%s2011 + $0xac] sm:$0xf]
    %v3490 = vld [vmem:[%s2011 + $0xb4] sm:$0xf]
    %v3491 = vld [vmem:[%s2011 + $0xb8] sm:$0xf]
    %v3492 = vld [vmem:[%s2011 + $0xd8] sm:$0xf]
    %v3493 = vld [vmem:[%s2011 + $0xdc] sm:$0xf]
    %v3494 = vld [vmem:[%s2011 + $0xe4] sm:$0xf]
    %v3495 = vld [vmem:[%s2011 + $0xe8] sm:$0xf]
    %v3496 = vld [vmem:[%s2011 + $0xf0] sm:$0xf]
    %v3497 = vld [vmem:[%s2011 + $0xf4] sm:$0xf]
    %v3498 = vld [vmem:[%s2011 + $0xfc] sm:$0xf]
    %v3499 = vld [vmem:[%s2011 + $0x100] sm:$0xf]
    %v3500 = vld [vmem:[%s2011 + $0x108] sm:$0xf]
    %v3501 = vld [vmem:[%s2011 + $0x10c] sm:$0xf]
    %v3502 = vld [vmem:[%s2011 + $0x114] sm:$0xf]
    %v3503 = vld [vmem:[%s2011 + $0x118] sm:$0xf]
    %v3504 = vld [vmem:[%s2011 + $0x120] sm:$0xf]
    %v3505 = vld [vmem:[%s2011 + $0x124] sm:$0xf]
    %v3506 = vld [vmem:[%s2011 + $0x12c] sm:$0xf]
    %v3507 = vld [vmem:[%s2011 + $0x130] sm:$0xf]
    %v3508 = vld [vmem:[%s2011 + $0x138] sm:$0xf]
    %v3509 = vld [vmem:[%s2011 + $0x13c] sm:$0xf]
    %v3510 = vld [vmem:[%s2011 + $0x144] sm:$0xf]
    %v3511 = vld [vmem:[%s2011 + $0x148] sm:$0xf]
    %v3512 = vld [vmem:[%s2011 + $0x150] sm:$0xf]
    %v3513 = vld [vmem:[%s2011 + $0x154] sm:$0xf]
    %v3514 = vld [vmem:[%s2011 + $0x15c] sm:$0xf]
    %v3515 = vld [vmem:[%s2011 + $0x160] sm:$0xf]
    %v3516 = vld [vmem:[%s2011 + $0x168] sm:$0xf]
    %v3517 = vld [vmem:[%s2011 + $0x16c] sm:$0xf]
    %v3518 = vld [vmem:[%s2011 + $0x174] sm:$0xf]
    %v3519 = vld [vmem:[%s2011 + $0x178] sm:$0xf]
    %v3520 = vld [vmem:[%s2011 + $0x180] sm:$0xf]
    %v3521 = vld [vmem:[%s2011 + $0x184] sm:$0xf]
    %v3522 = vld [vmem:[%s2011 + $0x18c] sm:$0xf]
    %v3523 = vld [vmem:[%s2011 + $0x190] sm:$0xf]
    %v3524 = vld [vmem:[%s2011 + $0x8] sm:$0x1]
    %v3525 = vld [vmem:[%s2011 + $0x14] sm:$0x1]
    %v3526 = vld [vmem:[%s2011 + $0x20] sm:$0x1]
    %v3527 = vld [vmem:[%s2011 + $0x2c] sm:$0x1]
    %v3528 = vld [vmem:[%s2011 + $0x38] sm:$0x1]
    %v3529 = vld [vmem:[%s2011 + $0x44] sm:$0x1]
    %v3530 = vld [vmem:[%s2011 + $0x50] sm:$0x1]
    %v3531 = vld [vmem:[%s2011 + $0x5c] sm:$0x1]
    %v3532 = vld [vmem:[%s2011 + $0x68] sm:$0x1]
    %v3533 = vld [vmem:[%s2011 + $0x74] sm:$0x1]
    %v3534 = vld [vmem:[%s2011 + $0x80] sm:$0x1]
    %v3535 = vld [vmem:[%s2011 + $0x8c] sm:$0x1]
    %v3536 = vld [vmem:[%s2011 + $0x98] sm:$0x1]
    %v3537 = vld [vmem:[%s2011 + $0xa4] sm:$0x1]
    %v3538 = vld [vmem:[%s2011 + $0xb0] sm:$0x1]
    %v3539 = vld [vmem:[%s2011 + $0xbc] sm:$0x1]
    %v3540 = vld [vmem:[%s2011 + $0xe0] sm:$0x1]
    %v3541 = vld [vmem:[%s2011 + $0xec] sm:$0x1]
    %v3542 = vld [vmem:[%s2011 + $0xf8] sm:$0x1]
    %v3543 = vld [vmem:[%s2011 + $0x104] sm:$0x1]
    %v3544 = vld [vmem:[%s2011 + $0x110] sm:$0x1]
    %v3545 = vld [vmem:[%s2011 + $0x11c] sm:$0x1]
    %v3546 = vld [vmem:[%s2011 + $0x128] sm:$0x1]
    %v3547 = vld [vmem:[%s2011 + $0x134] sm:$0x1]
    %v3548 = vld [vmem:[%s2011 + $0x140] sm:$0x1]
    %v3549 = vld [vmem:[%s2011 + $0x14c] sm:$0x1]
    %v3550 = vld [vmem:[%s2011 + $0x158] sm:$0x1]
    %v3551 = vld [vmem:[%s2011 + $0x164] sm:$0x1]
    %v3552 = vld [vmem:[%s2011 + $0x170] sm:$0x1]
    %v3553 = vld [vmem:[%s2011 + $0x17c] sm:$0x1]
    %v3554 = vld [vmem:[%s2011 + $0x188] sm:$0x1]
    %v3555 = vld [vmem:[%s2011 + $0x194] sm:$0x1]
    %v3557 = vshrl.u32 %v3460, 16
    %v3559 = vrot.slane %v3557, 4
    %v3560 = vshll.u32 %v3460, 16
    %v3562 = vrot.slane %v3560, 5
    %v3563 = vor.u32 %v3559, %v3562
    %v3564 = vrot.slane %v3563, 4
    %v3566 = vshll.u32 %v3461, 16
    %v3568 = vrot.slane %v3566, 5
    %v3569 = vsel %vm2336, %v3564, %v3568
    %v3570 = vshrl.u32 %v3461, 16
    %v3572 = vrot.slane %v3570, 4
    %v3573 = vor.u32 %v3572, %v3568
    %v3574 = vrot.slane %v3573, 4
    %v3576 = vshll.u32 %v3524, 16
    %v3578 = vrot.slane %v3576, 5
    %v3579 = vsel %vm2336, %v3574, %v3578
    %v3581 = vshrl.u32 %v3462, 16
    %v3583 = vrot.slane %v3581, 4
    %v3584 = vshll.u32 %v3462, 16
    %v3586 = vrot.slane %v3584, 5
    %v3587 = vor.u32 %v3583, %v3586
    %v3588 = vrot.slane %v3587, 4
    %v3590 = vshll.u32 %v3463, 16
    %v3592 = vrot.slane %v3590, 5
    %v3593 = vsel %vm2336, %v3588, %v3592
    %v3594 = vshrl.u32 %v3463, 16
    %v3596 = vrot.slane %v3594, 4
    %v3597 = vor.u32 %v3596, %v3592
    %v3598 = vrot.slane %v3597, 4
    %v3600 = vshll.u32 %v3525, 16
    %v3602 = vrot.slane %v3600, 5
    %v3603 = vsel %vm2336, %v3598, %v3602
    %v3605 = vshrl.u32 %v3464, 16
    %v3607 = vrot.slane %v3605, 4
    %v3608 = vshll.u32 %v3464, 16
    %v3610 = vrot.slane %v3608, 5
    %v3611 = vor.u32 %v3607, %v3610
    %v3612 = vrot.slane %v3611, 4
    %v3614 = vshll.u32 %v3465, 16
    %v3616 = vrot.slane %v3614, 5
    %v3617 = vsel %vm2336, %v3612, %v3616
    %v3618 = vshrl.u32 %v3465, 16
    %v3620 = vrot.slane %v3618, 4
    %v3621 = vor.u32 %v3620, %v3616
    %v3622 = vrot.slane %v3621, 4
    %v3624 = vshll.u32 %v3526, 16
    %v3626 = vrot.slane %v3624, 5
    %v3627 = vsel %vm2336, %v3622, %v3626
    %v3629 = vshrl.u32 %v3466, 16
    %v3631 = vrot.slane %v3629, 4
    %v3632 = vshll.u32 %v3466, 16
    %v3634 = vrot.slane %v3632, 5
    %v3635 = vor.u32 %v3631, %v3634
    %v3636 = vrot.slane %v3635, 4
    %v3638 = vshll.u32 %v3467, 16
    %v3640 = vrot.slane %v3638, 5
    %v3641 = vsel %vm2336, %v3636, %v3640
    %v3642 = vshrl.u32 %v3467, 16
    %v3644 = vrot.slane %v3642, 4
    %v3645 = vor.u32 %v3644, %v3640
    %v3646 = vrot.slane %v3645, 4
    %v3648 = vshll.u32 %v3527, 16
    %v3650 = vrot.slane %v3648, 5
    %v3651 = vsel %vm2336, %v3646, %v3650
    %v3653 = vshrl.u32 %v3468, 16
    %v3655 = vrot.slane %v3653, 4
    %v3656 = vshll.u32 %v3468, 16
    %v3658 = vrot.slane %v3656, 5
    %v3659 = vor.u32 %v3655, %v3658
    %v3660 = vrot.slane %v3659, 4
    %v3662 = vshll.u32 %v3469, 16
    %v3664 = vrot.slane %v3662, 5
    %v3665 = vsel %vm2336, %v3660, %v3664
    %v3666 = vshrl.u32 %v3469, 16
    %v3668 = vrot.slane %v3666, 4
    %v3669 = vor.u32 %v3668, %v3664
    %v3670 = vrot.slane %v3669, 4
    %v3672 = vshll.u32 %v3528, 16
    %v3674 = vrot.slane %v3672, 5
    %v3675 = vsel %vm2336, %v3670, %v3674
    %v3677 = vshrl.u32 %v3470, 16
    %v3679 = vrot.slane %v3677, 4
    %v3680 = vshll.u32 %v3470, 16
    %v3682 = vrot.slane %v3680, 5
    %v3683 = vor.u32 %v3679, %v3682
    %v3684 = vrot.slane %v3683, 4
    %v3686 = vshll.u32 %v3471, 16
    %v3688 = vrot.slane %v3686, 5
    %v3689 = vsel %vm2336, %v3684, %v3688
    %v3690 = vshrl.u32 %v3471, 16
    %v3692 = vrot.slane %v3690, 4
    %v3693 = vor.u32 %v3692, %v3688
    %v3694 = vrot.slane %v3693, 4
    %v3696 = vshll.u32 %v3529, 16
    %v3698 = vrot.slane %v3696, 5
    %v3699 = vsel %vm2336, %v3694, %v3698
    %v3701 = vshrl.u32 %v3472, 16
    %v3703 = vrot.slane %v3701, 4
    %v3704 = vshll.u32 %v3472, 16
    %v3706 = vrot.slane %v3704, 5
    %v3707 = vor.u32 %v3703, %v3706
    %v3708 = vrot.slane %v3707, 4
    %v3710 = vshll.u32 %v3473, 16
    %v3712 = vrot.slane %v3710, 5
    %v3713 = vsel %vm2336, %v3708, %v3712
    %v3714 = vshrl.u32 %v3473, 16
    %v3716 = vrot.slane %v3714, 4
    %v3717 = vor.u32 %v3716, %v3712
    %v3718 = vrot.slane %v3717, 4
    %v3720 = vshll.u32 %v3530, 16
    %v3722 = vrot.slane %v3720, 5
    %v3723 = vsel %vm2336, %v3718, %v3722
    %v3725 = vshrl.u32 %v3474, 16
    %v3727 = vrot.slane %v3725, 4
    %v3728 = vshll.u32 %v3474, 16
    %v3730 = vrot.slane %v3728, 5
    %v3731 = vor.u32 %v3727, %v3730
    %v3732 = vrot.slane %v3731, 4
    %v3734 = vshll.u32 %v3475, 16
    %v3736 = vrot.slane %v3734, 5
    %v3737 = vsel %vm2336, %v3732, %v3736
    %v3738 = vshrl.u32 %v3475, 16
    %v3740 = vrot.slane %v3738, 4
    %v3741 = vor.u32 %v3740, %v3736
    %v3742 = vrot.slane %v3741, 4
    %v3744 = vshll.u32 %v3531, 16
    %v3746 = vrot.slane %v3744, 5
    %v3747 = vsel %vm2336, %v3742, %v3746
    %v3749 = vshrl.u32 %v3476, 16
    %v3751 = vrot.slane %v3749, 4
    %v3752 = vshll.u32 %v3476, 16
    %v3754 = vrot.slane %v3752, 5
    %v3755 = vor.u32 %v3751, %v3754
    %v3756 = vrot.slane %v3755, 4
    %v3758 = vshll.u32 %v3477, 16
    %v3760 = vrot.slane %v3758, 5
    %v3761 = vsel %vm2336, %v3756, %v3760
    %v3762 = vshrl.u32 %v3477, 16
    %v3764 = vrot.slane %v3762, 4
    %v3765 = vor.u32 %v3764, %v3760
    %v3766 = vrot.slane %v3765, 4
    %v3768 = vshll.u32 %v3532, 16
    %v3770 = vrot.slane %v3768, 5
    %v3771 = vsel %vm2336, %v3766, %v3770
    %v3773 = vshrl.u32 %v3478, 16
    %v3775 = vrot.slane %v3773, 4
    %v3776 = vshll.u32 %v3478, 16
    %v3778 = vrot.slane %v3776, 5
    %v3779 = vor.u32 %v3775, %v3778
    %v3780 = vrot.slane %v3779, 4
    %v3782 = vshll.u32 %v3479, 16
    %v3784 = vrot.slane %v3782, 5
    %v3785 = vsel %vm2336, %v3780, %v3784
    %v3786 = vshrl.u32 %v3479, 16
    %v3788 = vrot.slane %v3786, 4
    %v3789 = vor.u32 %v3788, %v3784
    %v3790 = vrot.slane %v3789, 4
    %v3792 = vshll.u32 %v3533, 16
    %v3794 = vrot.slane %v3792, 5
    %v3795 = vsel %vm2336, %v3790, %v3794
    %v3797 = vshrl.u32 %v3480, 16
    %v3799 = vrot.slane %v3797, 4
    %v3800 = vshll.u32 %v3480, 16
    %v3802 = vrot.slane %v3800, 5
    %v3803 = vor.u32 %v3799, %v3802
    %v3804 = vrot.slane %v3803, 4
    %v3806 = vshll.u32 %v3481, 16
    %v3808 = vrot.slane %v3806, 5
    %v3809 = vsel %vm2336, %v3804, %v3808
    %v3810 = vshrl.u32 %v3481, 16
    %v3812 = vrot.slane %v3810, 4
    %v3813 = vor.u32 %v3812, %v3808
    %v3814 = vrot.slane %v3813, 4
    %v3816 = vshll.u32 %v3534, 16
    %v3818 = vrot.slane %v3816, 5
    %v3819 = vsel %vm2336, %v3814, %v3818
    %v3821 = vshrl.u32 %v3482, 16
    %v3823 = vrot.slane %v3821, 4
    %v3824 = vshll.u32 %v3482, 16
    %v3826 = vrot.slane %v3824, 5
    %v3827 = vor.u32 %v3823, %v3826
    %v3828 = vrot.slane %v3827, 4
    %v3830 = vshll.u32 %v3483, 16
    %v3832 = vrot.slane %v3830, 5
    %v3833 = vsel %vm2336, %v3828, %v3832
    %v3834 = vshrl.u32 %v3483, 16
    %v3836 = vrot.slane %v3834, 4
    %v3837 = vor.u32 %v3836, %v3832
    %v3838 = vrot.slane %v3837, 4
    %v3840 = vshll.u32 %v3535, 16
    %v3842 = vrot.slane %v3840, 5
    %v3843 = vsel %vm2336, %v3838, %v3842
    %v3845 = vshrl.u32 %v3484, 16
    %v3847 = vrot.slane %v3845, 4
    %v3848 = vshll.u32 %v3484, 16
    %v3850 = vrot.slane %v3848, 5
    %v3851 = vor.u32 %v3847, %v3850
    %v3852 = vrot.slane %v3851, 4
    %v3854 = vshll.u32 %v3485, 16
    %v3856 = vrot.slane %v3854, 5
    %v3857 = vsel %vm2336, %v3852, %v3856
    %v3858 = vshrl.u32 %v3485, 16
    %v3860 = vrot.slane %v3858, 4
    %v3861 = vor.u32 %v3860, %v3856
    %v3862 = vrot.slane %v3861, 4
    %v3864 = vshll.u32 %v3536, 16
    %v3866 = vrot.slane %v3864, 5
    %v3867 = vsel %vm2336, %v3862, %v3866
    %v3869 = vshrl.u32 %v3486, 16
    %v3871 = vrot.slane %v3869, 4
    %v3872 = vshll.u32 %v3486, 16
    %v3874 = vrot.slane %v3872, 5
    %v3875 = vor.u32 %v3871, %v3874
    %v3876 = vrot.slane %v3875, 4
    %v3878 = vshll.u32 %v3487, 16
    %v3880 = vrot.slane %v3878, 5
    %v3881 = vsel %vm2336, %v3876, %v3880
    %v3882 = vshrl.u32 %v3487, 16
    %v3884 = vrot.slane %v3882, 4
    %v3885 = vor.u32 %v3884, %v3880
    %v3886 = vrot.slane %v3885, 4
    %v3888 = vshll.u32 %v3537, 16
    %v3890 = vrot.slane %v3888, 5
    %v3891 = vsel %vm2336, %v3886, %v3890
    %v3893 = vshrl.u32 %v3488, 16
    %v3895 = vrot.slane %v3893, 4
    %v3896 = vshll.u32 %v3488, 16
    %v3898 = vrot.slane %v3896, 5
    %v3899 = vor.u32 %v3895, %v3898
    %v3900 = vrot.slane %v3899, 4
    %v3902 = vshll.u32 %v3489, 16
    %v3904 = vrot.slane %v3902, 5
    %v3905 = vsel %vm2336, %v3900, %v3904
    %v3906 = vshrl.u32 %v3489, 16
    %v3908 = vrot.slane %v3906, 4
    %v3909 = vor.u32 %v3908, %v3904
    %v3910 = vrot.slane %v3909, 4
    %v3912 = vshll.u32 %v3538, 16
    %v3914 = vrot.slane %v3912, 5
    %v3915 = vsel %vm2336, %v3910, %v3914
    %v3917 = vshrl.u32 %v3490, 16
    %v3919 = vrot.slane %v3917, 4
    %v3920 = vshll.u32 %v3490, 16
    %v3922 = vrot.slane %v3920, 5
    %v3923 = vor.u32 %v3919, %v3922
    %v3924 = vrot.slane %v3923, 4
    %v3926 = vshll.u32 %v3491, 16
    %v3928 = vrot.slane %v3926, 5
    %v3929 = vsel %vm2336, %v3924, %v3928
    %v3930 = vshrl.u32 %v3491, 16
    %v3932 = vrot.slane %v3930, 4
    %v3933 = vor.u32 %v3932, %v3928
    %v3934 = vrot.slane %v3933, 4
    %v3936 = vshll.u32 %v3539, 16
    %v3938 = vrot.slane %v3936, 5
    %v3939 = vsel %vm2336, %v3934, %v3938
    %v3941 = vshrl.u32 %v3492, 16
    %v3943 = vrot.slane %v3941, 4
    %v3944 = vshll.u32 %v3492, 16
    %v3946 = vrot.slane %v3944, 5
    %v3947 = vor.u32 %v3943, %v3946
    %v3948 = vrot.slane %v3947, 4
    %v3950 = vshll.u32 %v3493, 16
    %v3952 = vrot.slane %v3950, 5
    %v3953 = vsel %vm2336, %v3948, %v3952
    %v3954 = vshrl.u32 %v3493, 16
    %v3956 = vrot.slane %v3954, 4
    %v3957 = vor.u32 %v3956, %v3952
    %v3958 = vrot.slane %v3957, 4
    %v3960 = vshll.u32 %v3540, 16
    %v3962 = vrot.slane %v3960, 5
    %v3963 = vsel %vm2336, %v3958, %v3962
    %v3965 = vshrl.u32 %v3494, 16
    %v3967 = vrot.slane %v3965, 4
    %v3968 = vshll.u32 %v3494, 16
    %v3970 = vrot.slane %v3968, 5
    %v3971 = vor.u32 %v3967, %v3970
    %v3972 = vrot.slane %v3971, 4
    %v3974 = vshll.u32 %v3495, 16
    %v3976 = vrot.slane %v3974, 5
    %v3977 = vsel %vm2336, %v3972, %v3976
    %v3978 = vshrl.u32 %v3495, 16
    %v3980 = vrot.slane %v3978, 4
    %v3981 = vor.u32 %v3980, %v3976
    %v3982 = vrot.slane %v3981, 4
    %v3984 = vshll.u32 %v3541, 16
    %v3986 = vrot.slane %v3984, 5
    %v3987 = vsel %vm2336, %v3982, %v3986
    %v3989 = vshrl.u32 %v3496, 16
    %v3991 = vrot.slane %v3989, 4
    %v3992 = vshll.u32 %v3496, 16
    %v3994 = vrot.slane %v3992, 5
    %v3995 = vor.u32 %v3991, %v3994
    %v3996 = vrot.slane %v3995, 4
    %v3998 = vshll.u32 %v3497, 16
    %v4000 = vrot.slane %v3998, 5
    %v4001 = vsel %vm2336, %v3996, %v4000
    %v4002 = vshrl.u32 %v3497, 16
    %v4004 = vrot.slane %v4002, 4
    %v4005 = vor.u32 %v4004, %v4000
    %v4006 = vrot.slane %v4005, 4
    %v4008 = vshll.u32 %v3542, 16
    %v4010 = vrot.slane %v4008, 5
    %v4011 = vsel %vm2336, %v4006, %v4010
    %v4013 = vshrl.u32 %v3498, 16
    %v4015 = vrot.slane %v4013, 4
    %v4016 = vshll.u32 %v3498, 16
    %v4018 = vrot.slane %v4016, 5
    %v4019 = vor.u32 %v4015, %v4018
    %v4020 = vrot.slane %v4019, 4
    %v4022 = vshll.u32 %v3499, 16
    %v4024 = vrot.slane %v4022, 5
    %v4025 = vsel %vm2336, %v4020, %v4024
    %v4026 = vshrl.u32 %v3499, 16
    %v4028 = vrot.slane %v4026, 4
    %v4029 = vor.u32 %v4028, %v4024
    %v4030 = vrot.slane %v4029, 4
    %v4032 = vshll.u32 %v3543, 16
    %v4034 = vrot.slane %v4032, 5
    %v4035 = vsel %vm2336, %v4030, %v4034
    %v4037 = vshrl.u32 %v3500, 16
    %v4039 = vrot.slane %v4037, 4
    %v4040 = vshll.u32 %v3500, 16
    %v4042 = vrot.slane %v4040, 5
    %v4043 = vor.u32 %v4039, %v4042
    %v4044 = vrot.slane %v4043, 4
    %v4046 = vshll.u32 %v3501, 16
    %v4048 = vrot.slane %v4046, 5
    %v4049 = vsel %vm2336, %v4044, %v4048
    %v4050 = vshrl.u32 %v3501, 16
    %v4052 = vrot.slane %v4050, 4
    %v4053 = vor.u32 %v4052, %v4048
    %v4054 = vrot.slane %v4053, 4
    %v4056 = vshll.u32 %v3544, 16
    %v4058 = vrot.slane %v4056, 5
    %v4059 = vsel %vm2336, %v4054, %v4058
    %v4061 = vshrl.u32 %v3502, 16
    %v4063 = vrot.slane %v4061, 4
    %v4064 = vshll.u32 %v3502, 16
    %v4066 = vrot.slane %v4064, 5
    %v4067 = vor.u32 %v4063, %v4066
    %v4068 = vrot.slane %v4067, 4
    %v4070 = vshll.u32 %v3503, 16
    %v4072 = vrot.slane %v4070, 5
    %v4073 = vsel %vm2336, %v4068, %v4072
    %v4074 = vshrl.u32 %v3503, 16
    %v4076 = vrot.slane %v4074, 4
    %v4077 = vor.u32 %v4076, %v4072
    %v4078 = vrot.slane %v4077, 4
    %v4080 = vshll.u32 %v3545, 16
    %v4082 = vrot.slane %v4080, 5
    %v4083 = vsel %vm2336, %v4078, %v4082
    %v4085 = vshrl.u32 %v3504, 16
    %v4087 = vrot.slane %v4085, 4
    %v4088 = vshll.u32 %v3504, 16
    %v4090 = vrot.slane %v4088, 5
    %v4091 = vor.u32 %v4087, %v4090
    %v4092 = vrot.slane %v4091, 4
    %v4094 = vshll.u32 %v3505, 16
    %v4096 = vrot.slane %v4094, 5
    %v4097 = vsel %vm2336, %v4092, %v4096
    %v4098 = vshrl.u32 %v3505, 16
    %v4100 = vrot.slane %v4098, 4
    %v4101 = vor.u32 %v4100, %v4096
    %v4102 = vrot.slane %v4101, 4
    %v4104 = vshll.u32 %v3546, 16
    %v4106 = vrot.slane %v4104, 5
    %v4107 = vsel %vm2336, %v4102, %v4106
    %v4109 = vshrl.u32 %v3506, 16
    %v4111 = vrot.slane %v4109, 4
    %v4112 = vshll.u32 %v3506, 16
    %v4114 = vrot.slane %v4112, 5
    %v4115 = vor.u32 %v4111, %v4114
    %v4116 = vrot.slane %v4115, 4
    %v4118 = vshll.u32 %v3507, 16
    %v4120 = vrot.slane %v4118, 5
    %v4121 = vsel %vm2336, %v4116, %v4120
    %v4122 = vshrl.u32 %v3507, 16
    %v4124 = vrot.slane %v4122, 4
    %v4125 = vor.u32 %v4124, %v4120
    %v4126 = vrot.slane %v4125, 4
    %v4128 = vshll.u32 %v3547, 16
    %v4130 = vrot.slane %v4128, 5
    %v4131 = vsel %vm2336, %v4126, %v4130
    %v4133 = vshrl.u32 %v3508, 16
    %v4135 = vrot.slane %v4133, 4
    %v4136 = vshll.u32 %v3508, 16
    %v4138 = vrot.slane %v4136, 5
    %v4139 = vor.u32 %v4135, %v4138
    %v4140 = vrot.slane %v4139, 4
    %v4142 = vshll.u32 %v3509, 16
    %v4144 = vrot.slane %v4142, 5
    %v4145 = vsel %vm2336, %v4140, %v4144
    %v4146 = vshrl.u32 %v3509, 16
    %v4148 = vrot.slane %v4146, 4
    %v4149 = vor.u32 %v4148, %v4144
    %v4150 = vrot.slane %v4149, 4
    %v4152 = vshll.u32 %v3548, 16
    %v4154 = vrot.slane %v4152, 5
    %v4155 = vsel %vm2336, %v4150, %v4154
    %v4157 = vshrl.u32 %v3510, 16
    %v4159 = vrot.slane %v4157, 4
    %v4160 = vshll.u32 %v3510, 16
    %v4162 = vrot.slane %v4160, 5
    %v4163 = vor.u32 %v4159, %v4162
    %v4164 = vrot.slane %v4163, 4
    %v4166 = vshll.u32 %v3511, 16
    %v4168 = vrot.slane %v4166, 5
    %v4169 = vsel %vm2336, %v4164, %v4168
    %v4170 = vshrl.u32 %v3511, 16
    %v4172 = vrot.slane %v4170, 4
    %v4173 = vor.u32 %v4172, %v4168
    %v4174 = vrot.slane %v4173, 4
    %v4176 = vshll.u32 %v3549, 16
    %v4178 = vrot.slane %v4176, 5
    %v4179 = vsel %vm2336, %v4174, %v4178
    %v4181 = vshrl.u32 %v3512, 16
    %v4183 = vrot.slane %v4181, 4
    %v4184 = vshll.u32 %v3512, 16
    %v4186 = vrot.slane %v4184, 5
    %v4187 = vor.u32 %v4183, %v4186
    %v4188 = vrot.slane %v4187, 4
    %v4190 = vshll.u32 %v3513, 16
    %v4192 = vrot.slane %v4190, 5
    %v4193 = vsel %vm2336, %v4188, %v4192
    %v4194 = vshrl.u32 %v3513, 16
    %v4196 = vrot.slane %v4194, 4
    %v4197 = vor.u32 %v4196, %v4192
    %v4198 = vrot.slane %v4197, 4
    %v4200 = vshll.u32 %v3550, 16
    %v4202 = vrot.slane %v4200, 5
    %v4203 = vsel %vm2336, %v4198, %v4202
    %v4205 = vshrl.u32 %v3514, 16
    %v4207 = vrot.slane %v4205, 4
    %v4208 = vshll.u32 %v3514, 16
    %v4210 = vrot.slane %v4208, 5
    %v4211 = vor.u32 %v4207, %v4210
    %v4212 = vrot.slane %v4211, 4
    %v4214 = vshll.u32 %v3515, 16
    %v4216 = vrot.slane %v4214, 5
    %v4217 = vsel %vm2336, %v4212, %v4216
    %v4218 = vshrl.u32 %v3515, 16
    %v4220 = vrot.slane %v4218, 4
    %v4221 = vor.u32 %v4220, %v4216
    %v4222 = vrot.slane %v4221, 4
    %v4224 = vshll.u32 %v3551, 16
    %v4226 = vrot.slane %v4224, 5
    %v4227 = vsel %vm2336, %v4222, %v4226
    %v4229 = vshrl.u32 %v3516, 16
    %v4231 = vrot.slane %v4229, 4
    %v4232 = vshll.u32 %v3516, 16
    %v4234 = vrot.slane %v4232, 5
    %v4235 = vor.u32 %v4231, %v4234
    %v4236 = vrot.slane %v4235, 4
    %v4238 = vshll.u32 %v3517, 16
    %v4240 = vrot.slane %v4238, 5
    %v4241 = vsel %vm2336, %v4236, %v4240
    %v4242 = vshrl.u32 %v3517, 16
    %v4244 = vrot.slane %v4242, 4
    %v4245 = vor.u32 %v4244, %v4240
    %v4246 = vrot.slane %v4245, 4
    %v4248 = vshll.u32 %v3552, 16
    %v4250 = vrot.slane %v4248, 5
    %v4251 = vsel %vm2336, %v4246, %v4250
    %v4253 = vshrl.u32 %v3518, 16
    %v4255 = vrot.slane %v4253, 4
    %v4256 = vshll.u32 %v3518, 16
    %v4258 = vrot.slane %v4256, 5
    %v4259 = vor.u32 %v4255, %v4258
    %v4260 = vrot.slane %v4259, 4
    %v4262 = vshll.u32 %v3519, 16
    %v4264 = vrot.slane %v4262, 5
    %v4265 = vsel %vm2336, %v4260, %v4264
    %v4266 = vshrl.u32 %v3519, 16
    %v4268 = vrot.slane %v4266, 4
    %v4269 = vor.u32 %v4268, %v4264
    %v4270 = vrot.slane %v4269, 4
    %v4272 = vshll.u32 %v3553, 16
    %v4274 = vrot.slane %v4272, 5
    %v4275 = vsel %vm2336, %v4270, %v4274
    %v4277 = vshrl.u32 %v3520, 16
    %v4279 = vrot.slane %v4277, 4
    %v4280 = vshll.u32 %v3520, 16
    %v4282 = vrot.slane %v4280, 5
    %v4283 = vor.u32 %v4279, %v4282
    %v4284 = vrot.slane %v4283, 4
    %v4286 = vshll.u32 %v3521, 16
    %v4288 = vrot.slane %v4286, 5
    %v4289 = vsel %vm2336, %v4284, %v4288
    %v4290 = vshrl.u32 %v3521, 16
    %v4292 = vrot.slane %v4290, 4
    %v4293 = vor.u32 %v4292, %v4288
    %v4294 = vrot.slane %v4293, 4
    %v4296 = vshll.u32 %v3554, 16
    %v4298 = vrot.slane %v4296, 5
    %v4299 = vsel %vm2336, %v4294, %v4298
    %v4301 = vshrl.u32 %v3522, 16
    %v4303 = vrot.slane %v4301, 4
    %v4304 = vshll.u32 %v3522, 16
    %v4306 = vrot.slane %v4304, 5
    %v4307 = vor.u32 %v4303, %v4306
    %v4308 = vrot.slane %v4307, 4
    %v4310 = vshll.u32 %v3523, 16
    %v4312 = vrot.slane %v4310, 5
    %v4313 = vsel %vm2336, %v4308, %v4312
    %v4314 = vshrl.u32 %v3523, 16
    %v4316 = vrot.slane %v4314, 4
    %v4317 = vor.u32 %v4316, %v4312
    %v4318 = vrot.slane %v4317, 4
    %v4320 = vshll.u32 %v3555, 16
    %v4322 = vrot.slane %v4320, 5
    %v4323 = vsel %vm2336, %v4318, %v4322
    %v4324 = vld [vmem:[%s2011] sm:$0xe]
    %v4325 = vld [vmem:[%s2011 + $0xc] sm:$0xe]
    %v4326 = vld [vmem:[%s2011 + $0x18] sm:$0xe]
    %v4327 = vld [vmem:[%s2011 + $0x24] sm:$0xe]
    %v4328 = vld [vmem:[%s2011 + $0x30] sm:$0xe]
    %v4329 = vld [vmem:[%s2011 + $0x3c] sm:$0xe]
    %v4330 = vld [vmem:[%s2011 + $0x48] sm:$0xe]
    %v4331 = vld [vmem:[%s2011 + $0x54] sm:$0xe]
    %v4332 = vld [vmem:[%s2011 + $0x60] sm:$0xe]
    %v4333 = vld [vmem:[%s2011 + $0x6c] sm:$0xe]
    %v4334 = vld [vmem:[%s2011 + $0x78] sm:$0xe]
    %v4335 = vld [vmem:[%s2011 + $0x84] sm:$0xe]
    %v4336 = vld [vmem:[%s2011 + $0x90] sm:$0xe]
    %v4337 = vld [vmem:[%s2011 + $0x9c] sm:$0xe]
    %v4338 = vld [vmem:[%s2011 + $0xa8] sm:$0xe]
    %v4339 = vld [vmem:[%s2011 + $0xb4] sm:$0xe]
    %v4340 = vld [vmem:[%s2011 + $0xd8] sm:$0xe]
    %v4341 = vld [vmem:[%s2011 + $0xe4] sm:$0xe]
    %v4342 = vld [vmem:[%s2011 + $0xf0] sm:$0xe]
    %v4343 = vld [vmem:[%s2011 + $0xfc] sm:$0xe]
    %v4344 = vld [vmem:[%s2011 + $0x108] sm:$0xe]
    %v4345 = vld [vmem:[%s2011 + $0x114] sm:$0xe]
    %v4346 = vld [vmem:[%s2011 + $0x120] sm:$0xe]
    %v4347 = vld [vmem:[%s2011 + $0x12c] sm:$0xe]
    %v4348 = vld [vmem:[%s2011 + $0x138] sm:$0xe]
    %v4349 = vld [vmem:[%s2011 + $0x144] sm:$0xe]
    %v4350 = vld [vmem:[%s2011 + $0x150] sm:$0xe]
    %v4351 = vld [vmem:[%s2011 + $0x15c] sm:$0xe]
    %v4352 = vld [vmem:[%s2011 + $0x168] sm:$0xe]
    %v4353 = vld [vmem:[%s2011 + $0x174] sm:$0xe]
    %v4354 = vld [vmem:[%s2011 + $0x180] sm:$0xe]
    %v4355 = vld [vmem:[%s2011 + $0x18c] sm:$0xe]
    %v4452 = vrot.slane %v4324, 5
    %v4453 = vrot.slane %v4452, 4
    %v4454 = vrot.slane %v3461, 5
    %v4455 = vsel %vm3235, %v4453, %v4454
    %v4456 = vrot.slane %v4454, 4
    %v4457 = vrot.slane %v3524, 5
    %v4458 = vsel %vm3235, %v4456, %v4457
    %v4459 = vrot.slane %v4325, 5
    %v4460 = vrot.slane %v4459, 4
    %v4461 = vrot.slane %v3463, 5
    %v4462 = vsel %vm3235, %v4460, %v4461
    %v4463 = vrot.slane %v4461, 4
    %v4464 = vrot.slane %v3525, 5
    %v4465 = vsel %vm3235, %v4463, %v4464
    %v4466 = vrot.slane %v4326, 5
    %v4467 = vrot.slane %v4466, 4
    %v4468 = vrot.slane %v3465, 5
    %v4469 = vsel %vm3235, %v4467, %v4468
    %v4470 = vrot.slane %v4468, 4
    %v4471 = vrot.slane %v3526, 5
    %v4472 = vsel %vm3235, %v4470, %v4471
    %v4473 = vrot.slane %v4327, 5
    %v4474 = vrot.slane %v4473, 4
    %v4475 = vrot.slane %v3467, 5
    %v4476 = vsel %vm3235, %v4474, %v4475
    %v4477 = vrot.slane %v4475, 4
    %v4478 = vrot.slane %v3527, 5
    %v4479 = vsel %vm3235, %v4477, %v4478
    %v4480 = vrot.slane %v4328, 5
    %v4481 = vrot.slane %v4480, 4
    %v4482 = vrot.slane %v3469, 5
    %v4483 = vsel %vm3235, %v4481, %v4482
    %v4484 = vrot.slane %v4482, 4
    %v4485 = vrot.slane %v3528, 5
    %v4486 = vsel %vm3235, %v4484, %v4485
    %v4487 = vrot.slane %v4329, 5
    %v4488 = vrot.slane %v4487, 4
    %v4489 = vrot.slane %v3471, 5
    %v4490 = vsel %vm3235, %v4488, %v4489
    %v4491 = vrot.slane %v4489, 4
    %v4492 = vrot.slane %v3529, 5
    %v4493 = vsel %vm3235, %v4491, %v4492
    %v4494 = vrot.slane %v4330, 5
    %v4495 = vrot.slane %v4494, 4
    %v4496 = vrot.slane %v3473, 5
    %v4497 = vsel %vm3235, %v4495, %v4496
    %v4498 = vrot.slane %v4496, 4
    %v4499 = vrot.slane %v3530, 5
    %v4500 = vsel %vm3235, %v4498, %v4499
    %v4501 = vrot.slane %v4331, 5
    %v4502 = vrot.slane %v4501, 4
    %v4503 = vrot.slane %v3475, 5
    %v4504 = vsel %vm3235, %v4502, %v4503
    %v4505 = vrot.slane %v4503, 4
    %v4506 = vrot.slane %v3531, 5
    %v4507 = vsel %vm3235, %v4505, %v4506
    %v4508 = vrot.slane %v4332, 5
    %v4509 = vrot.slane %v4508, 4
    %v4510 = vrot.slane %v3477, 5
    %v4511 = vsel %vm3235, %v4509, %v4510
    %v4512 = vrot.slane %v4510, 4
    %v4513 = vrot.slane %v3532, 5
    %v4514 = vsel %vm3235, %v4512, %v4513
    %v4515 = vrot.slane %v4333, 5
    %v4516 = vrot.slane %v4515, 4
    %v4517 = vrot.slane %v3479, 5
    %v4518 = vsel %vm3235, %v4516, %v4517
    %v4519 = vrot.slane %v4517, 4
    %v4520 = vrot.slane %v3533, 5
    %v4521 = vsel %vm3235, %v4519, %v4520
    %v4522 = vrot.slane %v4334, 5
    %v4523 = vrot.slane %v4522, 4
    %v4524 = vrot.slane %v3481, 5
    %v4525 = vsel %vm3235, %v4523, %v4524
    %v4526 = vrot.slane %v4524, 4
    %v4527 = vrot.slane %v3534, 5
    %v4528 = vsel %vm3235, %v4526, %v4527
    %v4529 = vrot.slane %v4335, 5
    %v4530 = vrot.slane %v4529, 4
    %v4531 = vrot.slane %v3483, 5
    %v4532 = vsel %vm3235, %v4530, %v4531
    %v4533 = vrot.slane %v4531, 4
    %v4534 = vrot.slane %v3535, 5
    %v4535 = vsel %vm3235, %v4533, %v4534
    %v4536 = vrot.slane %v4336, 5
    %v4537 = vrot.slane %v4536, 4
    %v4538 = vrot.slane %v3485, 5
    %v4539 = vsel %vm3235, %v4537, %v4538
    %v4540 = vrot.slane %v4538, 4
    %v4541 = vrot.slane %v3536, 5
    %v4542 = vsel %vm3235, %v4540, %v4541
    %v4543 = vrot.slane %v4337, 5
    %v4544 = vrot.slane %v4543, 4
    %v4545 = vrot.slane %v3487, 5
    %v4546 = vsel %vm3235, %v4544, %v4545
    %v4547 = vrot.slane %v4545, 4
    %v4548 = vrot.slane %v3537, 5
    %v4549 = vsel %vm3235, %v4547, %v4548
    %v4550 = vrot.slane %v4338, 5
    %v4551 = vrot.slane %v4550, 4
    %v4552 = vrot.slane %v3489, 5
    %v4553 = vsel %vm3235, %v4551, %v4552
    %v4554 = vrot.slane %v4552, 4
    %v4555 = vrot.slane %v3538, 5
    %v4556 = vsel %vm3235, %v4554, %v4555
    %v4557 = vrot.slane %v4339, 5
    %v4558 = vrot.slane %v4557, 4
    %v4559 = vrot.slane %v3491, 5
    %v4560 = vsel %vm3235, %v4558, %v4559
    %v4561 = vrot.slane %v4559, 4
    %v4562 = vrot.slane %v3539, 5
    %v4563 = vsel %vm3235, %v4561, %v4562
    %v4564 = vrot.slane %v4340, 5
    %v4565 = vrot.slane %v4564, 4
    %v4566 = vrot.slane %v3493, 5
    %v4567 = vsel %vm3235, %v4565, %v4566
    %v4568 = vrot.slane %v4566, 4
    %v4569 = vrot.slane %v3540, 5
    %v4570 = vsel %vm3235, %v4568, %v4569
    %v4571 = vrot.slane %v4341, 5
    %v4572 = vrot.slane %v4571, 4
    %v4573 = vrot.slane %v3495, 5
    %v4574 = vsel %vm3235, %v4572, %v4573
    %v4575 = vrot.slane %v4573, 4
    %v4576 = vrot.slane %v3541, 5
    %v4577 = vsel %vm3235, %v4575, %v4576
    %v4578 = vrot.slane %v4342, 5
    %v4579 = vrot.slane %v4578, 4
    %v4580 = vrot.slane %v3497, 5
    %v4581 = vsel %vm3235, %v4579, %v4580
    %v4582 = vrot.slane %v4580, 4
    %v4583 = vrot.slane %v3542, 5
    %v4584 = vsel %vm3235, %v4582, %v4583
    %v4585 = vrot.slane %v4343, 5
    %v4586 = vrot.slane %v4585, 4
    %v4587 = vrot.slane %v3499, 5
    %v4588 = vsel %vm3235, %v4586, %v4587
    %v4589 = vrot.slane %v4587, 4
    %v4590 = vrot.slane %v3543, 5
    %v4591 = vsel %vm3235, %v4589, %v4590
    %v4592 = vrot.slane %v4344, 5
    %v4593 = vrot.slane %v4592, 4
    %v4594 = vrot.slane %v3501, 5
    %v4595 = vsel %vm3235, %v4593, %v4594
    %v4596 = vrot.slane %v4594, 4
    %v4597 = vrot.slane %v3544, 5
    %v4598 = vsel %vm3235, %v4596, %v4597
    %v4599 = vrot.slane %v4345, 5
    %v4600 = vrot.slane %v4599, 4
    %v4601 = vrot.slane %v3503, 5
    %v4602 = vsel %vm3235, %v4600, %v4601
    %v4603 = vrot.slane %v4601, 4
    %v4604 = vrot.slane %v3545, 5
    %v4605 = vsel %vm3235, %v4603, %v4604
    %v4606 = vrot.slane %v4346, 5
    %v4607 = vrot.slane %v4606, 4
    %v4608 = vrot.slane %v3505, 5
    %v4609 = vsel %vm3235, %v4607, %v4608
    %v4610 = vrot.slane %v4608, 4
    %v4611 = vrot.slane %v3546, 5
    %v4612 = vsel %vm3235, %v4610, %v4611
    %v4613 = vrot.slane %v4347, 5
    %v4614 = vrot.slane %v4613, 4
    %v4615 = vrot.slane %v3507, 5
    %v4616 = vsel %vm3235, %v4614, %v4615
    %v4617 = vrot.slane %v4615, 4
    %v4618 = vrot.slane %v3547, 5
    %v4619 = vsel %vm3235, %v4617, %v4618
    %v4620 = vrot.slane %v4348, 5
    %v4621 = vrot.slane %v4620, 4
    %v4622 = vrot.slane %v3509, 5
    %v4623 = vsel %vm3235, %v4621, %v4622
    %v4624 = vrot.slane %v4622, 4
    %v4625 = vrot.slane %v3548, 5
    %v4626 = vsel %vm3235, %v4624, %v4625
    %v4627 = vrot.slane %v4349, 5
    %v4628 = vrot.slane %v4627, 4
    %v4629 = vrot.slane %v3511, 5
    %v4630 = vsel %vm3235, %v4628, %v4629
    %v4631 = vrot.slane %v4629, 4
    %v4632 = vrot.slane %v3549, 5
    %v4633 = vsel %vm3235, %v4631, %v4632
    %v4634 = vrot.slane %v4350, 5
    %v4635 = vrot.slane %v4634, 4
    %v4636 = vrot.slane %v3513, 5
    %v4637 = vsel %vm3235, %v4635, %v4636
    %v4638 = vrot.slane %v4636, 4
    %v4639 = vrot.slane %v3550, 5
    %v4640 = vsel %vm3235, %v4638, %v4639
    %v4641 = vrot.slane %v4351, 5
    %v4642 = vrot.slane %v4641, 4
    %v4643 = vrot.slane %v3515, 5
    %v4644 = vsel %vm3235, %v4642, %v4643
    %v4645 = vrot.slane %v4643, 4
    %v4646 = vrot.slane %v3551, 5
    %v4647 = vsel %vm3235, %v4645, %v4646
    %v4648 = vrot.slane %v4352, 5
    %v4649 = vrot.slane %v4648, 4
    %v4650 = vrot.slane %v3517, 5
    %v4651 = vsel %vm3235, %v4649, %v4650
    %v4652 = vrot.slane %v4650, 4
    %v4653 = vrot.slane %v3552, 5
    %v4654 = vsel %vm3235, %v4652, %v4653
    %v4655 = vrot.slane %v4353, 5
    %v4656 = vrot.slane %v4655, 4
    %v4657 = vrot.slane %v3519, 5
    %v4658 = vsel %vm3235, %v4656, %v4657
    %v4659 = vrot.slane %v4657, 4
    %v4660 = vrot.slane %v3553, 5
    %v4661 = vsel %vm3235, %v4659, %v4660
    %v4662 = vrot.slane %v4354, 5
    %v4663 = vrot.slane %v4662, 4
    %v4664 = vrot.slane %v3521, 5
    %v4665 = vsel %vm3235, %v4663, %v4664
    %v4666 = vrot.slane %v4664, 4
    %v4667 = vrot.slane %v3554, 5
    %v4668 = vsel %vm3235, %v4666, %v4667
    %v4669 = vrot.slane %v4355, 5
    %v4670 = vrot.slane %v4669, 4
    %v4671 = vrot.slane %v3523, 5
    %v4672 = vsel %vm3235, %v4670, %v4671
    %v4673 = vrot.slane %v4671, 4
    %v4674 = vrot.slane %v3555, 5
    %v4675 = vsel %vm3235, %v4673, %v4674
    %s4676 = scalar_lea.vmem [#allocation2], 24
    %v4677 = vld [vmem:[%s4676] sm:$0xf]
    %v4678 = vld [vmem:[%s4676 + $0x4] sm:$0xf]
    %v4679 = vld [vmem:[%s4676 + $0xc] sm:$0xf]
    %v4680 = vld [vmem:[%s4676 + $0x10] sm:$0xf]
    %v4681 = vld [vmem:[%s4676 + $0x18] sm:$0xf]
    %v4682 = vld [vmem:[%s4676 + $0x1c] sm:$0xf]
    %v4683 = vld [vmem:[%s4676 + $0x24] sm:$0xf]
    %v4684 = vld [vmem:[%s4676 + $0x28] sm:$0xf]
    %v4685 = vld [vmem:[%s4676 + $0x30] sm:$0xf]
    %v4686 = vld [vmem:[%s4676 + $0x34] sm:$0xf]
    %v4687 = vld [vmem:[%s4676 + $0x3c] sm:$0xf]
    %v4688 = vld [vmem:[%s4676 + $0x40] sm:$0xf]
    %v4689 = vld [vmem:[%s4676 + $0x48] sm:$0xf]
    %v4690 = vld [vmem:[%s4676 + $0x4c] sm:$0xf]
    %v4691 = vld [vmem:[%s4676 + $0x54] sm:$0xf]
    %v4692 = vld [vmem:[%s4676 + $0x58] sm:$0xf]
    %v4693 = vld [vmem:[%s4676 + $0x60] sm:$0xf]
    %v4694 = vld [vmem:[%s4676 + $0x64] sm:$0xf]
    %v4695 = vld [vmem:[%s4676 + $0x6c] sm:$0xf]
    %v4696 = vld [vmem:[%s4676 + $0x70] sm:$0xf]
    %v4697 = vld [vmem:[%s4676 + $0x78] sm:$0xf]
    %v4698 = vld [vmem:[%s4676 + $0x7c] sm:$0xf]
    %v4699 = vld [vmem:[%s4676 + $0x84] sm:$0xf]
    %v4700 = vld [vmem:[%s4676 + $0x88] sm:$0xf]
    %v4701 = vld [vmem:[%s4676 + $0x90] sm:$0xf]
    %v4702 = vld [vmem:[%s4676 + $0x94] sm:$0xf]
    %v4703 = vld [vmem:[%s4676 + $0x9c] sm:$0xf]
    %v4704 = vld [vmem:[%s4676 + $0xa0] sm:$0xf]
    %v4705 = vld [vmem:[%s4676 + $0xa8] sm:$0xf]
    %v4706 = vld [vmem:[%s4676 + $0xac] sm:$0xf]
    %v4707 = vld [vmem:[%s4676 + $0xb4] sm:$0xf]
    %v4708 = vld [vmem:[%s4676 + $0xb8] sm:$0xf]
    %v4709 = vld [vmem:[%s4676 + $0xd8] sm:$0xf]
    %v4710 = vld [vmem:[%s4676 + $0xdc] sm:$0xf]
    %v4711 = vld [vmem:[%s4676 + $0xe4] sm:$0xf]
    %v4712 = vld [vmem:[%s4676 + $0xe8] sm:$0xf]
    %v4713 = vld [vmem:[%s4676 + $0xf0] sm:$0xf]
    %v4714 = vld [vmem:[%s4676 + $0xf4] sm:$0xf]
    %v4715 = vld [vmem:[%s4676 + $0xfc] sm:$0xf]
    %v4716 = vld [vmem:[%s4676 + $0x100] sm:$0xf]
    %v4717 = vld [vmem:[%s4676 + $0x108] sm:$0xf]
    %v4718 = vld [vmem:[%s4676 + $0x10c] sm:$0xf]
    %v4719 = vld [vmem:[%s4676 + $0x114] sm:$0xf]
    %v4720 = vld [vmem:[%s4676 + $0x118] sm:$0xf]
    %v4721 = vld [vmem:[%s4676 + $0x120] sm:$0xf]
    %v4722 = vld [vmem:[%s4676 + $0x124] sm:$0xf]
    %v4723 = vld [vmem:[%s4676 + $0x12c] sm:$0xf]
    %v4724 = vld [vmem:[%s4676 + $0x130] sm:$0xf]
    %v4725 = vld [vmem:[%s4676 + $0x138] sm:$0xf]
    %v4726 = vld [vmem:[%s4676 + $0x13c] sm:$0xf]
    %v4727 = vld [vmem:[%s4676 + $0x144] sm:$0xf]
    %v4728 = vld [vmem:[%s4676 + $0x148] sm:$0xf]
    %v4729 = vld [vmem:[%s4676 + $0x150] sm:$0xf]
    %v4730 = vld [vmem:[%s4676 + $0x154] sm:$0xf]
    %v4731 = vld [vmem:[%s4676 + $0x15c] sm:$0xf]
    %v4732 = vld [vmem:[%s4676 + $0x160] sm:$0xf]
    %v4733 = vld [vmem:[%s4676 + $0x168] sm:$0xf]
    %v4734 = vld [vmem:[%s4676 + $0x16c] sm:$0xf]
    %v4735 = vld [vmem:[%s4676 + $0x174] sm:$0xf]
    %v4736 = vld [vmem:[%s4676 + $0x178] sm:$0xf]
    %v4737 = vld [vmem:[%s4676 + $0x180] sm:$0xf]
    %v4738 = vld [vmem:[%s4676 + $0x184] sm:$0xf]
    %v4739 = vld [vmem:[%s4676 + $0x18c] sm:$0xf]
    %v4740 = vld [vmem:[%s4676 + $0x190] sm:$0xf]
    %v4741 = vld [vmem:[%s4676 + $0x8] sm:$0x1]
    %v4742 = vld [vmem:[%s4676 + $0x14] sm:$0x1]
    %v4743 = vld [vmem:[%s4676 + $0x20] sm:$0x1]
    %v4744 = vld [vmem:[%s4676 + $0x2c] sm:$0x1]
    %v4745 = vld [vmem:[%s4676 + $0x38] sm:$0x1]
    %v4746 = vld [vmem:[%s4676 + $0x44] sm:$0x1]
    %v4747 = vld [vmem:[%s4676 + $0x50] sm:$0x1]
    %v4748 = vld [vmem:[%s4676 + $0x5c] sm:$0x1]
    %v4749 = vld [vmem:[%s4676 + $0x68] sm:$0x1]
    %v4750 = vld [vmem:[%s4676 + $0x74] sm:$0x1]
    %v4751 = vld [vmem:[%s4676 + $0x80] sm:$0x1]
    %v4752 = vld [vmem:[%s4676 + $0x8c] sm:$0x1]
    %v4753 = vld [vmem:[%s4676 + $0x98] sm:$0x1]
    %v4754 = vld [vmem:[%s4676 + $0xa4] sm:$0x1]
    %v4755 = vld [vmem:[%s4676 + $0xb0] sm:$0x1]
    %v4756 = vld [vmem:[%s4676 + $0xbc] sm:$0x1]
    %v4757 = vld [vmem:[%s4676 + $0xe0] sm:$0x1]
    %v4758 = vld [vmem:[%s4676 + $0xec] sm:$0x1]
    %v4759 = vld [vmem:[%s4676 + $0xf8] sm:$0x1]
    %v4760 = vld [vmem:[%s4676 + $0x104] sm:$0x1]
    %v4761 = vld [vmem:[%s4676 + $0x110] sm:$0x1]
    %v4762 = vld [vmem:[%s4676 + $0x11c] sm:$0x1]
    %v4763 = vld [vmem:[%s4676 + $0x128] sm:$0x1]
    %v4764 = vld [vmem:[%s4676 + $0x134] sm:$0x1]
    %v4765 = vld [vmem:[%s4676 + $0x140] sm:$0x1]
    %v4766 = vld [vmem:[%s4676 + $0x14c] sm:$0x1]
    %v4767 = vld [vmem:[%s4676 + $0x158] sm:$0x1]
    %v4768 = vld [vmem:[%s4676 + $0x164] sm:$0x1]
    %v4769 = vld [vmem:[%s4676 + $0x170] sm:$0x1]
    %v4770 = vld [vmem:[%s4676 + $0x17c] sm:$0x1]
    %v4771 = vld [vmem:[%s4676 + $0x188] sm:$0x1]
    %v4772 = vld [vmem:[%s4676 + $0x194] sm:$0x1]
    %v4774 = vshrl.u32 %v4677, 16
    %v4776 = vrot.slane %v4774, 4
    %v4777 = vshll.u32 %v4677, 16
    %v4779 = vrot.slane %v4777, 5
    %v4780 = vor.u32 %v4776, %v4779
    %v4781 = vrot.slane %v4780, 4
    %v4783 = vshll.u32 %v4678, 16
    %v4785 = vrot.slane %v4783, 5
    %v4786 = vsel %vm2336, %v4781, %v4785
    %v4787 = vshrl.u32 %v4678, 16
    %v4789 = vrot.slane %v4787, 4
    %v4790 = vor.u32 %v4789, %v4785
    %v4791 = vrot.slane %v4790, 4
    %v4793 = vshll.u32 %v4741, 16
    %v4795 = vrot.slane %v4793, 5
    %v4796 = vsel %vm2336, %v4791, %v4795
    %v4798 = vshrl.u32 %v4679, 16
    %v4800 = vrot.slane %v4798, 4
    %v4801 = vshll.u32 %v4679, 16
    %v4803 = vrot.slane %v4801, 5
    %v4804 = vor.u32 %v4800, %v4803
    %v4805 = vrot.slane %v4804, 4
    %v4807 = vshll.u32 %v4680, 16
    %v4809 = vrot.slane %v4807, 5
    %v4810 = vsel %vm2336, %v4805, %v4809
    %v4811 = vshrl.u32 %v4680, 16
    %v4813 = vrot.slane %v4811, 4
    %v4814 = vor.u32 %v4813, %v4809
    %v4815 = vrot.slane %v4814, 4
    %v4817 = vshll.u32 %v4742, 16
    %v4819 = vrot.slane %v4817, 5
    %v4820 = vsel %vm2336, %v4815, %v4819
    %v4822 = vshrl.u32 %v4681, 16
    %v4824 = vrot.slane %v4822, 4
    %v4825 = vshll.u32 %v4681, 16
    %v4827 = vrot.slane %v4825, 5
    %v4828 = vor.u32 %v4824, %v4827
    %v4829 = vrot.slane %v4828, 4
    %v4831 = vshll.u32 %v4682, 16
    %v4833 = vrot.slane %v4831, 5
    %v4834 = vsel %vm2336, %v4829, %v4833
    %v4835 = vshrl.u32 %v4682, 16
    %v4837 = vrot.slane %v4835, 4
    %v4838 = vor.u32 %v4837, %v4833
    %v4839 = vrot.slane %v4838, 4
    %v4841 = vshll.u32 %v4743, 16
    %v4843 = vrot.slane %v4841, 5
    %v4844 = vsel %vm2336, %v4839, %v4843
    %v4846 = vshrl.u32 %v4683, 16
    %v4848 = vrot.slane %v4846, 4
    %v4849 = vshll.u32 %v4683, 16
    %v4851 = vrot.slane %v4849, 5
    %v4852 = vor.u32 %v4848, %v4851
    %v4853 = vrot.slane %v4852, 4
    %v4855 = vshll.u32 %v4684, 16
    %v4857 = vrot.slane %v4855, 5
    %v4858 = vsel %vm2336, %v4853, %v4857
    %v4859 = vshrl.u32 %v4684, 16
    %v4861 = vrot.slane %v4859, 4
    %v4862 = vor.u32 %v4861, %v4857
    %v4863 = vrot.slane %v4862, 4
    %v4865 = vshll.u32 %v4744, 16
    %v4867 = vrot.slane %v4865, 5
    %v4868 = vsel %vm2336, %v4863, %v4867
    %v4870 = vshrl.u32 %v4685, 16
    %v4872 = vrot.slane %v4870, 4
    %v4873 = vshll.u32 %v4685, 16
    %v4875 = vrot.slane %v4873, 5
    %v4876 = vor.u32 %v4872, %v4875
    %v4877 = vrot.slane %v4876, 4
    %v4879 = vshll.u32 %v4686, 16
    %v4881 = vrot.slane %v4879, 5
    %v4882 = vsel %vm2336, %v4877, %v4881
    %v4883 = vshrl.u32 %v4686, 16
    %v4885 = vrot.slane %v4883, 4
    %v4886 = vor.u32 %v4885, %v4881
    %v4887 = vrot.slane %v4886, 4
    %v4889 = vshll.u32 %v4745, 16
    %v4891 = vrot.slane %v4889, 5
    %v4892 = vsel %vm2336, %v4887, %v4891
    %v4894 = vshrl.u32 %v4687, 16
    %v4896 = vrot.slane %v4894, 4
    %v4897 = vshll.u32 %v4687, 16
    %v4899 = vrot.slane %v4897, 5
    %v4900 = vor.u32 %v4896, %v4899
    %v4901 = vrot.slane %v4900, 4
    %v4903 = vshll.u32 %v4688, 16
    %v4905 = vrot.slane %v4903, 5
    %v4906 = vsel %vm2336, %v4901, %v4905
    %v4907 = vshrl.u32 %v4688, 16
    %v4909 = vrot.slane %v4907, 4
    %v4910 = vor.u32 %v4909, %v4905
    %v4911 = vrot.slane %v4910, 4
    %v4913 = vshll.u32 %v4746, 16
    %v4915 = vrot.slane %v4913, 5
    %v4916 = vsel %vm2336, %v4911, %v4915
    %v4918 = vshrl.u32 %v4689, 16
    %v4920 = vrot.slane %v4918, 4
    %v4921 = vshll.u32 %v4689, 16
    %v4923 = vrot.slane %v4921, 5
    %v4924 = vor.u32 %v4920, %v4923
    %v4925 = vrot.slane %v4924, 4
    %v4927 = vshll.u32 %v4690, 16
    %v4929 = vrot.slane %v4927, 5
    %v4930 = vsel %vm2336, %v4925, %v4929
    %v4931 = vshrl.u32 %v4690, 16
    %v4933 = vrot.slane %v4931, 4
    %v4934 = vor.u32 %v4933, %v4929
    %v4935 = vrot.slane %v4934, 4
    %v4937 = vshll.u32 %v4747, 16
    %v4939 = vrot.slane %v4937, 5
    %v4940 = vsel %vm2336, %v4935, %v4939
    %v4942 = vshrl.u32 %v4691, 16
    %v4944 = vrot.slane %v4942, 4
    %v4945 = vshll.u32 %v4691, 16
    %v4947 = vrot.slane %v4945, 5
    %v4948 = vor.u32 %v4944, %v4947
    %v4949 = vrot.slane %v4948, 4
    %v4951 = vshll.u32 %v4692, 16
    %v4953 = vrot.slane %v4951, 5
    %v4954 = vsel %vm2336, %v4949, %v4953
    %v4955 = vshrl.u32 %v4692, 16
    %v4957 = vrot.slane %v4955, 4
    %v4958 = vor.u32 %v4957, %v4953
    %v4959 = vrot.slane %v4958, 4
    %v4961 = vshll.u32 %v4748, 16
    %v4963 = vrot.slane %v4961, 5
    %v4964 = vsel %vm2336, %v4959, %v4963
    %v4966 = vshrl.u32 %v4693, 16
    %v4968 = vrot.slane %v4966, 4
    %v4969 = vshll.u32 %v4693, 16
    %v4971 = vrot.slane %v4969, 5
    %v4972 = vor.u32 %v4968, %v4971
    %v4973 = vrot.slane %v4972, 4
    %v4975 = vshll.u32 %v4694, 16
    %v4977 = vrot.slane %v4975, 5
    %v4978 = vsel %vm2336, %v4973, %v4977
    %v4979 = vshrl.u32 %v4694, 16
    %v4981 = vrot.slane %v4979, 4
    %v4982 = vor.u32 %v4981, %v4977
    %v4983 = vrot.slane %v4982, 4
    %v4985 = vshll.u32 %v4749, 16
    %v4987 = vrot.slane %v4985, 5
    %v4988 = vsel %vm2336, %v4983, %v4987
    %v4990 = vshrl.u32 %v4695, 16
    %v4992 = vrot.slane %v4990, 4
    %v4993 = vshll.u32 %v4695, 16
    %v4995 = vrot.slane %v4993, 5
    %v4996 = vor.u32 %v4992, %v4995
    %v4997 = vrot.slane %v4996, 4
    %v4999 = vshll.u32 %v4696, 16
    %v5001 = vrot.slane %v4999, 5
    %v5002 = vsel %vm2336, %v4997, %v5001
    %v5003 = vshrl.u32 %v4696, 16
    %v5005 = vrot.slane %v5003, 4
    %v5006 = vor.u32 %v5005, %v5001
    %v5007 = vrot.slane %v5006, 4
    %v5009 = vshll.u32 %v4750, 16
    %v5011 = vrot.slane %v5009, 5
    %v5012 = vsel %vm2336, %v5007, %v5011
    %v5014 = vshrl.u32 %v4697, 16
    %v5016 = vrot.slane %v5014, 4
    %v5017 = vshll.u32 %v4697, 16
    %v5019 = vrot.slane %v5017, 5
    %v5020 = vor.u32 %v5016, %v5019
    %v5021 = vrot.slane %v5020, 4
    %v5023 = vshll.u32 %v4698, 16
    %v5025 = vrot.slane %v5023, 5
    %v5026 = vsel %vm2336, %v5021, %v5025
    %v5027 = vshrl.u32 %v4698, 16
    %v5029 = vrot.slane %v5027, 4
    %v5030 = vor.u32 %v5029, %v5025
    %v5031 = vrot.slane %v5030, 4
    %v5033 = vshll.u32 %v4751, 16
    %v5035 = vrot.slane %v5033, 5
    %v5036 = vsel %vm2336, %v5031, %v5035
    %v5038 = vshrl.u32 %v4699, 16
    %v5040 = vrot.slane %v5038, 4
    %v5041 = vshll.u32 %v4699, 16
    %v5043 = vrot.slane %v5041, 5
    %v5044 = vor.u32 %v5040, %v5043
    %v5045 = vrot.slane %v5044, 4
    %v5047 = vshll.u32 %v4700, 16
    %v5049 = vrot.slane %v5047, 5
    %v5050 = vsel %vm2336, %v5045, %v5049
    %v5051 = vshrl.u32 %v4700, 16
    %v5053 = vrot.slane %v5051, 4
    %v5054 = vor.u32 %v5053, %v5049
    %v5055 = vrot.slane %v5054, 4
    %v5057 = vshll.u32 %v4752, 16
    %v5059 = vrot.slane %v5057, 5
    %v5060 = vsel %vm2336, %v5055, %v5059
    %v5062 = vshrl.u32 %v4701, 16
    %v5064 = vrot.slane %v5062, 4
    %v5065 = vshll.u32 %v4701, 16
    %v5067 = vrot.slane %v5065, 5
    %v5068 = vor.u32 %v5064, %v5067
    %v5069 = vrot.slane %v5068, 4
    %v5071 = vshll.u32 %v4702, 16
    %v5073 = vrot.slane %v5071, 5
    %v5074 = vsel %vm2336, %v5069, %v5073
    %v5075 = vshrl.u32 %v4702, 16
    %v5077 = vrot.slane %v5075, 4
    %v5078 = vor.u32 %v5077, %v5073
    %v5079 = vrot.slane %v5078, 4
    %v5081 = vshll.u32 %v4753, 16
    %v5083 = vrot.slane %v5081, 5
    %v5084 = vsel %vm2336, %v5079, %v5083
    %v5086 = vshrl.u32 %v4703, 16
    %v5088 = vrot.slane %v5086, 4
    %v5089 = vshll.u32 %v4703, 16
    %v5091 = vrot.slane %v5089, 5
    %v5092 = vor.u32 %v5088, %v5091
    %v5093 = vrot.slane %v5092, 4
    %v5095 = vshll.u32 %v4704, 16
    %v5097 = vrot.slane %v5095, 5
    %v5098 = vsel %vm2336, %v5093, %v5097
    %v5099 = vshrl.u32 %v4704, 16
    %v5101 = vrot.slane %v5099, 4
    %v5102 = vor.u32 %v5101, %v5097
    %v5103 = vrot.slane %v5102, 4
    %v5105 = vshll.u32 %v4754, 16
    %v5107 = vrot.slane %v5105, 5
    %v5108 = vsel %vm2336, %v5103, %v5107
    %v5110 = vshrl.u32 %v4705, 16
    %v5112 = vrot.slane %v5110, 4
    %v5113 = vshll.u32 %v4705, 16
    %v5115 = vrot.slane %v5113, 5
    %v5116 = vor.u32 %v5112, %v5115
    %v5117 = vrot.slane %v5116, 4
    %v5119 = vshll.u32 %v4706, 16
    %v5121 = vrot.slane %v5119, 5
    %v5122 = vsel %vm2336, %v5117, %v5121
    %v5123 = vshrl.u32 %v4706, 16
    %v5125 = vrot.slane %v5123, 4
    %v5126 = vor.u32 %v5125, %v5121
    %v5127 = vrot.slane %v5126, 4
    %v5129 = vshll.u32 %v4755, 16
    %v5131 = vrot.slane %v5129, 5
    %v5132 = vsel %vm2336, %v5127, %v5131
    %v5134 = vshrl.u32 %v4707, 16
    %v5136 = vrot.slane %v5134, 4
    %v5137 = vshll.u32 %v4707, 16
    %v5139 = vrot.slane %v5137, 5
    %v5140 = vor.u32 %v5136, %v5139
    %v5141 = vrot.slane %v5140, 4
    %v5143 = vshll.u32 %v4708, 16
    %v5145 = vrot.slane %v5143, 5
    %v5146 = vsel %vm2336, %v5141, %v5145
    %v5147 = vshrl.u32 %v4708, 16
    %v5149 = vrot.slane %v5147, 4
    %v5150 = vor.u32 %v5149, %v5145
    %v5151 = vrot.slane %v5150, 4
    %v5153 = vshll.u32 %v4756, 16
    %v5155 = vrot.slane %v5153, 5
    %v5156 = vsel %vm2336, %v5151, %v5155
    %v5158 = vshrl.u32 %v4709, 16
    %v5160 = vrot.slane %v5158, 4
    %v5161 = vshll.u32 %v4709, 16
    %v5163 = vrot.slane %v5161, 5
    %v5164 = vor.u32 %v5160, %v5163
    %v5165 = vrot.slane %v5164, 4
    %v5167 = vshll.u32 %v4710, 16
    %v5169 = vrot.slane %v5167, 5
    %v5170 = vsel %vm2336, %v5165, %v5169
    %v5171 = vshrl.u32 %v4710, 16
    %v5173 = vrot.slane %v5171, 4
    %v5174 = vor.u32 %v5173, %v5169
    %v5175 = vrot.slane %v5174, 4
    %v5177 = vshll.u32 %v4757, 16
    %v5179 = vrot.slane %v5177, 5
    %v5180 = vsel %vm2336, %v5175, %v5179
    %v5182 = vshrl.u32 %v4711, 16
    %v5184 = vrot.slane %v5182, 4
    %v5185 = vshll.u32 %v4711, 16
    %v5187 = vrot.slane %v5185, 5
    %v5188 = vor.u32 %v5184, %v5187
    %v5189 = vrot.slane %v5188, 4
    %v5191 = vshll.u32 %v4712, 16
    %v5193 = vrot.slane %v5191, 5
    %v5194 = vsel %vm2336, %v5189, %v5193
    %v5195 = vshrl.u32 %v4712, 16
    %v5197 = vrot.slane %v5195, 4
    %v5198 = vor.u32 %v5197, %v5193
    %v5199 = vrot.slane %v5198, 4
    %v5201 = vshll.u32 %v4758, 16
    %v5203 = vrot.slane %v5201, 5
    %v5204 = vsel %vm2336, %v5199, %v5203
    %v5206 = vshrl.u32 %v4713, 16
    %v5208 = vrot.slane %v5206, 4
    %v5209 = vshll.u32 %v4713, 16
    %v5211 = vrot.slane %v5209, 5
    %v5212 = vor.u32 %v5208, %v5211
    %v5213 = vrot.slane %v5212, 4
    %v5215 = vshll.u32 %v4714, 16
    %v5217 = vrot.slane %v5215, 5
    %v5218 = vsel %vm2336, %v5213, %v5217
    %v5219 = vshrl.u32 %v4714, 16
    %v5221 = vrot.slane %v5219, 4
    %v5222 = vor.u32 %v5221, %v5217
    %v5223 = vrot.slane %v5222, 4
    %v5225 = vshll.u32 %v4759, 16
    %v5227 = vrot.slane %v5225, 5
    %v5228 = vsel %vm2336, %v5223, %v5227
    %v5230 = vshrl.u32 %v4715, 16
    %v5232 = vrot.slane %v5230, 4
    %v5233 = vshll.u32 %v4715, 16
    %v5235 = vrot.slane %v5233, 5
    %v5236 = vor.u32 %v5232, %v5235
    %v5237 = vrot.slane %v5236, 4
    %v5239 = vshll.u32 %v4716, 16
    %v5241 = vrot.slane %v5239, 5
    %v5242 = vsel %vm2336, %v5237, %v5241
    %v5243 = vshrl.u32 %v4716, 16
    %v5245 = vrot.slane %v5243, 4
    %v5246 = vor.u32 %v5245, %v5241
    %v5247 = vrot.slane %v5246, 4
    %v5249 = vshll.u32 %v4760, 16
    %v5251 = vrot.slane %v5249, 5
    %v5252 = vsel %vm2336, %v5247, %v5251
    %v5254 = vshrl.u32 %v4717, 16
    %v5256 = vrot.slane %v5254, 4
    %v5257 = vshll.u32 %v4717, 16
    %v5259 = vrot.slane %v5257, 5
    %v5260 = vor.u32 %v5256, %v5259
    %v5261 = vrot.slane %v5260, 4
    %v5263 = vshll.u32 %v4718, 16
    %v5265 = vrot.slane %v5263, 5
    %v5266 = vsel %vm2336, %v5261, %v5265
    %v5267 = vshrl.u32 %v4718, 16
    %v5269 = vrot.slane %v5267, 4
    %v5270 = vor.u32 %v5269, %v5265
    %v5271 = vrot.slane %v5270, 4
    %v5273 = vshll.u32 %v4761, 16
    %v5275 = vrot.slane %v5273, 5
    %v5276 = vsel %vm2336, %v5271, %v5275
    %v5278 = vshrl.u32 %v4719, 16
    %v5280 = vrot.slane %v5278, 4
    %v5281 = vshll.u32 %v4719, 16
    %v5283 = vrot.slane %v5281, 5
    %v5284 = vor.u32 %v5280, %v5283
    %v5285 = vrot.slane %v5284, 4
    %v5287 = vshll.u32 %v4720, 16
    %v5289 = vrot.slane %v5287, 5
    %v5290 = vsel %vm2336, %v5285, %v5289
    %v5291 = vshrl.u32 %v4720, 16
    %v5293 = vrot.slane %v5291, 4
    %v5294 = vor.u32 %v5293, %v5289
    %v5295 = vrot.slane %v5294, 4
    %v5297 = vshll.u32 %v4762, 16
    %v5299 = vrot.slane %v5297, 5
    %v5300 = vsel %vm2336, %v5295, %v5299
    %v5302 = vshrl.u32 %v4721, 16
    %v5304 = vrot.slane %v5302, 4
    %v5305 = vshll.u32 %v4721, 16
    %v5307 = vrot.slane %v5305, 5
    %v5308 = vor.u32 %v5304, %v5307
    %v5309 = vrot.slane %v5308, 4
    %v5311 = vshll.u32 %v4722, 16
    %v5313 = vrot.slane %v5311, 5
    %v5314 = vsel %vm2336, %v5309, %v5313
    %v5315 = vshrl.u32 %v4722, 16
    %v5317 = vrot.slane %v5315, 4
    %v5318 = vor.u32 %v5317, %v5313
    %v5319 = vrot.slane %v5318, 4
    %v5321 = vshll.u32 %v4763, 16
    %v5323 = vrot.slane %v5321, 5
    %v5324 = vsel %vm2336, %v5319, %v5323
    %v5326 = vshrl.u32 %v4723, 16
    %v5328 = vrot.slane %v5326, 4
    %v5329 = vshll.u32 %v4723, 16
    %v5331 = vrot.slane %v5329, 5
    %v5332 = vor.u32 %v5328, %v5331
    %v5333 = vrot.slane %v5332, 4
    %v5335 = vshll.u32 %v4724, 16
    %v5337 = vrot.slane %v5335, 5
    %v5338 = vsel %vm2336, %v5333, %v5337
    %v5339 = vshrl.u32 %v4724, 16
    %v5341 = vrot.slane %v5339, 4
    %v5342 = vor.u32 %v5341, %v5337
    %v5343 = vrot.slane %v5342, 4
    %v5345 = vshll.u32 %v4764, 16
    %v5347 = vrot.slane %v5345, 5
    %v5348 = vsel %vm2336, %v5343, %v5347
    %v5350 = vshrl.u32 %v4725, 16
    %v5352 = vrot.slane %v5350, 4
    %v5353 = vshll.u32 %v4725, 16
    %v5355 = vrot.slane %v5353, 5
    %v5356 = vor.u32 %v5352, %v5355
    %v5357 = vrot.slane %v5356, 4
    %v5359 = vshll.u32 %v4726, 16
    %v5361 = vrot.slane %v5359, 5
    %v5362 = vsel %vm2336, %v5357, %v5361
    %v5363 = vshrl.u32 %v4726, 16
    %v5365 = vrot.slane %v5363, 4
    %v5366 = vor.u32 %v5365, %v5361
    %v5367 = vrot.slane %v5366, 4
    %v5369 = vshll.u32 %v4765, 16
    %v5371 = vrot.slane %v5369, 5
    %v5372 = vsel %vm2336, %v5367, %v5371
    %v5374 = vshrl.u32 %v4727, 16
    %v5376 = vrot.slane %v5374, 4
    %v5377 = vshll.u32 %v4727, 16
    %v5379 = vrot.slane %v5377, 5
    %v5380 = vor.u32 %v5376, %v5379
    %v5381 = vrot.slane %v5380, 4
    %v5383 = vshll.u32 %v4728, 16
    %v5385 = vrot.slane %v5383, 5
    %v5386 = vsel %vm2336, %v5381, %v5385
    %v5387 = vshrl.u32 %v4728, 16
    %v5389 = vrot.slane %v5387, 4
    %v5390 = vor.u32 %v5389, %v5385
    %v5391 = vrot.slane %v5390, 4
    %v5393 = vshll.u32 %v4766, 16
    %v5395 = vrot.slane %v5393, 5
    %v5396 = vsel %vm2336, %v5391, %v5395
    %v5398 = vshrl.u32 %v4729, 16
    %v5400 = vrot.slane %v5398, 4
    %v5401 = vshll.u32 %v4729, 16
    %v5403 = vrot.slane %v5401, 5
    %v5404 = vor.u32 %v5400, %v5403
    %v5405 = vrot.slane %v5404, 4
    %v5407 = vshll.u32 %v4730, 16
    %v5409 = vrot.slane %v5407, 5
    %v5410 = vsel %vm2336, %v5405, %v5409
    %v5411 = vshrl.u32 %v4730, 16
    %v5413 = vrot.slane %v5411, 4
    %v5414 = vor.u32 %v5413, %v5409
    %v5415 = vrot.slane %v5414, 4
    %v5417 = vshll.u32 %v4767, 16
    %v5419 = vrot.slane %v5417, 5
    %v5420 = vsel %vm2336, %v5415, %v5419
    %v5422 = vshrl.u32 %v4731, 16
    %v5424 = vrot.slane %v5422, 4
    %v5425 = vshll.u32 %v4731, 16
    %v5427 = vrot.slane %v5425, 5
    %v5428 = vor.u32 %v5424, %v5427
    %v5429 = vrot.slane %v5428, 4
    %v5431 = vshll.u32 %v4732, 16
    %v5433 = vrot.slane %v5431, 5
    %v5434 = vsel %vm2336, %v5429, %v5433
    %v5435 = vshrl.u32 %v4732, 16
    %v5437 = vrot.slane %v5435, 4
    %v5438 = vor.u32 %v5437, %v5433
    %v5439 = vrot.slane %v5438, 4
    %v5441 = vshll.u32 %v4768, 16
    %v5443 = vrot.slane %v5441, 5
    %v5444 = vsel %vm2336, %v5439, %v5443
    %v5446 = vshrl.u32 %v4733, 16
    %v5448 = vrot.slane %v5446, 4
    %v5449 = vshll.u32 %v4733, 16
    %v5451 = vrot.slane %v5449, 5
    %v5452 = vor.u32 %v5448, %v5451
    %v5453 = vrot.slane %v5452, 4
    %v5455 = vshll.u32 %v4734, 16
    %v5457 = vrot.slane %v5455, 5
    %v5458 = vsel %vm2336, %v5453, %v5457
    %v5459 = vshrl.u32 %v4734, 16
    %v5461 = vrot.slane %v5459, 4
    %v5462 = vor.u32 %v5461, %v5457
    %v5463 = vrot.slane %v5462, 4
    %v5465 = vshll.u32 %v4769, 16
    %v5467 = vrot.slane %v5465, 5
    %v5468 = vsel %vm2336, %v5463, %v5467
    %v5470 = vshrl.u32 %v4735, 16
    %v5472 = vrot.slane %v5470, 4
    %v5473 = vshll.u32 %v4735, 16
    %v5475 = vrot.slane %v5473, 5
    %v5476 = vor.u32 %v5472, %v5475
    %v5477 = vrot.slane %v5476, 4
    %v5479 = vshll.u32 %v4736, 16
    %v5481 = vrot.slane %v5479, 5
    %v5482 = vsel %vm2336, %v5477, %v5481
    %v5483 = vshrl.u32 %v4736, 16
    %v5485 = vrot.slane %v5483, 4
    %v5486 = vor.u32 %v5485, %v5481
    %v5487 = vrot.slane %v5486, 4
    %v5489 = vshll.u32 %v4770, 16
    %v5491 = vrot.slane %v5489, 5
    %v5492 = vsel %vm2336, %v5487, %v5491
    %v5494 = vshrl.u32 %v4737, 16
    %v5496 = vrot.slane %v5494, 4
    %v5497 = vshll.u32 %v4737, 16
    %v5499 = vrot.slane %v5497, 5
    %v5500 = vor.u32 %v5496, %v5499
    %v5501 = vrot.slane %v5500, 4
    %v5503 = vshll.u32 %v4738, 16
    %v5505 = vrot.slane %v5503, 5
    %v5506 = vsel %vm2336, %v5501, %v5505
    %v5507 = vshrl.u32 %v4738, 16
    %v5509 = vrot.slane %v5507, 4
    %v5510 = vor.u32 %v5509, %v5505
    %v5511 = vrot.slane %v5510, 4
    %v5513 = vshll.u32 %v4771, 16
    %v5515 = vrot.slane %v5513, 5
    %v5516 = vsel %vm2336, %v5511, %v5515
    %v5518 = vshrl.u32 %v4739, 16
    %v5520 = vrot.slane %v5518, 4
    %v5521 = vshll.u32 %v4739, 16
    %v5523 = vrot.slane %v5521, 5
    %v5524 = vor.u32 %v5520, %v5523
    %v5525 = vrot.slane %v5524, 4
    %v5527 = vshll.u32 %v4740, 16
    %v5529 = vrot.slane %v5527, 5
    %v5530 = vsel %vm2336, %v5525, %v5529
    %v5531 = vshrl.u32 %v4740, 16
    %v5533 = vrot.slane %v5531, 4
    %v5534 = vor.u32 %v5533, %v5529
    %v5535 = vrot.slane %v5534, 4
    %v5537 = vshll.u32 %v4772, 16
    %v5539 = vrot.slane %v5537, 5
    %v5540 = vsel %vm2336, %v5535, %v5539
    %v5541 = vld [vmem:[%s4676] sm:$0xe]
    %v5542 = vld [vmem:[%s4676 + $0xc] sm:$0xe]
    %v5543 = vld [vmem:[%s4676 + $0x18] sm:$0xe]
    %v5544 = vld [vmem:[%s4676 + $0x24] sm:$0xe]
    %v5545 = vld [vmem:[%s4676 + $0x30] sm:$0xe]
    %v5546 = vld [vmem:[%s4676 + $0x3c] sm:$0xe]
    %v5547 = vld [vmem:[%s4676 + $0x48] sm:$0xe]
    %v5548 = vld [vmem:[%s4676 + $0x54] sm:$0xe]
    %v5549 = vld [vmem:[%s4676 + $0x60] sm:$0xe]
    %v5550 = vld [vmem:[%s4676 + $0x6c] sm:$0xe]
    %v5551 = vld [vmem:[%s4676 + $0x78] sm:$0xe]
    %v5552 = vld [vmem:[%s4676 + $0x84] sm:$0xe]
    %v5553 = vld [vmem:[%s4676 + $0x90] sm:$0xe]
    %v5554 = vld [vmem:[%s4676 + $0x9c] sm:$0xe]
    %v5555 = vld [vmem:[%s4676 + $0xa8] sm:$0xe]
    %v5556 = vld [vmem:[%s4676 + $0xb4] sm:$0xe]
    %v5557 = vld [vmem:[%s4676 + $0xd8] sm:$0xe]
    %v5558 = vld [vmem:[%s4676 + $0xe4] sm:$0xe]
    %v5559 = vld [vmem:[%s4676 + $0xf0] sm:$0xe]
    %v5560 = vld [vmem:[%s4676 + $0xfc] sm:$0xe]
    %v5561 = vld [vmem:[%s4676 + $0x108] sm:$0xe]
    %v5562 = vld [vmem:[%s4676 + $0x114] sm:$0xe]
    %v5563 = vld [vmem:[%s4676 + $0x120] sm:$0xe]
    %v5564 = vld [vmem:[%s4676 + $0x12c] sm:$0xe]
    %v5565 = vld [vmem:[%s4676 + $0x138] sm:$0xe]
    %v5566 = vld [vmem:[%s4676 + $0x144] sm:$0xe]
    %v5567 = vld [vmem:[%s4676 + $0x150] sm:$0xe]
    %v5568 = vld [vmem:[%s4676 + $0x15c] sm:$0xe]
    %v5569 = vld [vmem:[%s4676 + $0x168] sm:$0xe]
    %v5570 = vld [vmem:[%s4676 + $0x174] sm:$0xe]
    %v5571 = vld [vmem:[%s4676 + $0x180] sm:$0xe]
    %v5572 = vld [vmem:[%s4676 + $0x18c] sm:$0xe]
    %v5669 = vrot.slane %v5541, 5
    %v5670 = vrot.slane %v5669, 4
    %v5671 = vrot.slane %v4678, 5
    %v5672 = vsel %vm3235, %v5670, %v5671
    %v5673 = vrot.slane %v5671, 4
    %v5674 = vrot.slane %v4741, 5
    %v5675 = vsel %vm3235, %v5673, %v5674
    %v5676 = vrot.slane %v5542, 5
    %v5677 = vrot.slane %v5676, 4
    %v5678 = vrot.slane %v4680, 5
    %v5679 = vsel %vm3235, %v5677, %v5678
    %v5680 = vrot.slane %v5678, 4
    %v5681 = vrot.slane %v4742, 5
    %v5682 = vsel %vm3235, %v5680, %v5681
    %v5683 = vrot.slane %v5543, 5
    %v5684 = vrot.slane %v5683, 4
    %v5685 = vrot.slane %v4682, 5
    %v5686 = vsel %vm3235, %v5684, %v5685
    %v5687 = vrot.slane %v5685, 4
    %v5688 = vrot.slane %v4743, 5
    %v5689 = vsel %vm3235, %v5687, %v5688
    %v5690 = vrot.slane %v5544, 5
    %v5691 = vrot.slane %v5690, 4
    %v5692 = vrot.slane %v4684, 5
    %v5693 = vsel %vm3235, %v5691, %v5692
    %v5694 = vrot.slane %v5692, 4
    %v5695 = vrot.slane %v4744, 5
    %v5696 = vsel %vm3235, %v5694, %v5695
    %v5697 = vrot.slane %v5545, 5
    %v5698 = vrot.slane %v5697, 4
    %v5699 = vrot.slane %v4686, 5
    %v5700 = vsel %vm3235, %v5698, %v5699
    %v5701 = vrot.slane %v5699, 4
    %v5702 = vrot.slane %v4745, 5
    %v5703 = vsel %vm3235, %v5701, %v5702
    %v5704 = vrot.slane %v5546, 5
    %v5705 = vrot.slane %v5704, 4
    %v5706 = vrot.slane %v4688, 5
    %v5707 = vsel %vm3235, %v5705, %v5706
    %v5708 = vrot.slane %v5706, 4
    %v5709 = vrot.slane %v4746, 5
    %v5710 = vsel %vm3235, %v5708, %v5709
    %v5711 = vrot.slane %v5547, 5
    %v5712 = vrot.slane %v5711, 4
    %v5713 = vrot.slane %v4690, 5
    %v5714 = vsel %vm3235, %v5712, %v5713
    %v5715 = vrot.slane %v5713, 4
    %v5716 = vrot.slane %v4747, 5
    %v5717 = vsel %vm3235, %v5715, %v5716
    %v5718 = vrot.slane %v5548, 5
    %v5719 = vrot.slane %v5718, 4
    %v5720 = vrot.slane %v4692, 5
    %v5721 = vsel %vm3235, %v5719, %v5720
    %v5722 = vrot.slane %v5720, 4
    %v5723 = vrot.slane %v4748, 5
    %v5724 = vsel %vm3235, %v5722, %v5723
    %v5725 = vrot.slane %v5549, 5
    %v5726 = vrot.slane %v5725, 4
    %v5727 = vrot.slane %v4694, 5
    %v5728 = vsel %vm3235, %v5726, %v5727
    %v5729 = vrot.slane %v5727, 4
    %v5730 = vrot.slane %v4749, 5
    %v5731 = vsel %vm3235, %v5729, %v5730
    %v5732 = vrot.slane %v5550, 5
    %v5733 = vrot.slane %v5732, 4
    %v5734 = vrot.slane %v4696, 5
    %v5735 = vsel %vm3235, %v5733, %v5734
    %v5736 = vrot.slane %v5734, 4
    %v5737 = vrot.slane %v4750, 5
    %v5738 = vsel %vm3235, %v5736, %v5737
    %v5739 = vrot.slane %v5551, 5
    %v5740 = vrot.slane %v5739, 4
    %v5741 = vrot.slane %v4698, 5
    %v5742 = vsel %vm3235, %v5740, %v5741
    %v5743 = vrot.slane %v5741, 4
    %v5744 = vrot.slane %v4751, 5
    %v5745 = vsel %vm3235, %v5743, %v5744
    %v5746 = vrot.slane %v5552, 5
    %v5747 = vrot.slane %v5746, 4
    %v5748 = vrot.slane %v4700, 5
    %v5749 = vsel %vm3235, %v5747, %v5748
    %v5750 = vrot.slane %v5748, 4
    %v5751 = vrot.slane %v4752, 5
    %v5752 = vsel %vm3235, %v5750, %v5751
    %v5753 = vrot.slane %v5553, 5
    %v5754 = vrot.slane %v5753, 4
    %v5755 = vrot.slane %v4702, 5
    %v5756 = vsel %vm3235, %v5754, %v5755
    %v5757 = vrot.slane %v5755, 4
    %v5758 = vrot.slane %v4753, 5
    %v5759 = vsel %vm3235, %v5757, %v5758
    %v5760 = vrot.slane %v5554, 5
    %v5761 = vrot.slane %v5760, 4
    %v5762 = vrot.slane %v4704, 5
    %v5763 = vsel %vm3235, %v5761, %v5762
    %v5764 = vrot.slane %v5762, 4
    %v5765 = vrot.slane %v4754, 5
    %v5766 = vsel %vm3235, %v5764, %v5765
    %v5767 = vrot.slane %v5555, 5
    %v5768 = vrot.slane %v5767, 4
    %v5769 = vrot.slane %v4706, 5
    %v5770 = vsel %vm3235, %v5768, %v5769
    %v5771 = vrot.slane %v5769, 4
    %v5772 = vrot.slane %v4755, 5
    %v5773 = vsel %vm3235, %v5771, %v5772
    %v5774 = vrot.slane %v5556, 5
    %v5775 = vrot.slane %v5774, 4
    %v5776 = vrot.slane %v4708, 5
    %v5777 = vsel %vm3235, %v5775, %v5776
    %v5778 = vrot.slane %v5776, 4
    %v5779 = vrot.slane %v4756, 5
    %v5780 = vsel %vm3235, %v5778, %v5779
    %v5781 = vrot.slane %v5557, 5
    %v5782 = vrot.slane %v5781, 4
    %v5783 = vrot.slane %v4710, 5
    %v5784 = vsel %vm3235, %v5782, %v5783
    %v5785 = vrot.slane %v5783, 4
    %v5786 = vrot.slane %v4757, 5
    %v5787 = vsel %vm3235, %v5785, %v5786
    %v5788 = vrot.slane %v5558, 5
    %v5789 = vrot.slane %v5788, 4
    %v5790 = vrot.slane %v4712, 5
    %v5791 = vsel %vm3235, %v5789, %v5790
    %v5792 = vrot.slane %v5790, 4
    %v5793 = vrot.slane %v4758, 5
    %v5794 = vsel %vm3235, %v5792, %v5793
    %v5795 = vrot.slane %v5559, 5
    %v5796 = vrot.slane %v5795, 4
    %v5797 = vrot.slane %v4714, 5
    %v5798 = vsel %vm3235, %v5796, %v5797
    %v5799 = vrot.slane %v5797, 4
    %v5800 = vrot.slane %v4759, 5
    %v5801 = vsel %vm3235, %v5799, %v5800
    %v5802 = vrot.slane %v5560, 5
    %v5803 = vrot.slane %v5802, 4
    %v5804 = vrot.slane %v4716, 5
    %v5805 = vsel %vm3235, %v5803, %v5804
    %v5806 = vrot.slane %v5804, 4
    %v5807 = vrot.slane %v4760, 5
    %v5808 = vsel %vm3235, %v5806, %v5807
    %v5809 = vrot.slane %v5561, 5
    %v5810 = vrot.slane %v5809, 4
    %v5811 = vrot.slane %v4718, 5
    %v5812 = vsel %vm3235, %v5810, %v5811
    %v5813 = vrot.slane %v5811, 4
    %v5814 = vrot.slane %v4761, 5
    %v5815 = vsel %vm3235, %v5813, %v5814
    %v5816 = vrot.slane %v5562, 5
    %v5817 = vrot.slane %v5816, 4
    %v5818 = vrot.slane %v4720, 5
    %v5819 = vsel %vm3235, %v5817, %v5818
    %v5820 = vrot.slane %v5818, 4
    %v5821 = vrot.slane %v4762, 5
    %v5822 = vsel %vm3235, %v5820, %v5821
    %v5823 = vrot.slane %v5563, 5
    %v5824 = vrot.slane %v5823, 4
    %v5825 = vrot.slane %v4722, 5
    %v5826 = vsel %vm3235, %v5824, %v5825
    %v5827 = vrot.slane %v5825, 4
    %v5828 = vrot.slane %v4763, 5
    %v5829 = vsel %vm3235, %v5827, %v5828
    %v5830 = vrot.slane %v5564, 5
    %v5831 = vrot.slane %v5830, 4
    %v5832 = vrot.slane %v4724, 5
    %v5833 = vsel %vm3235, %v5831, %v5832
    %v5834 = vrot.slane %v5832, 4
    %v5835 = vrot.slane %v4764, 5
    %v5836 = vsel %vm3235, %v5834, %v5835
    %v5837 = vrot.slane %v5565, 5
    %v5838 = vrot.slane %v5837, 4
    %v5839 = vrot.slane %v4726, 5
    %v5840 = vsel %vm3235, %v5838, %v5839
    %v5841 = vrot.slane %v5839, 4
    %v5842 = vrot.slane %v4765, 5
    %v5843 = vsel %vm3235, %v5841, %v5842
    %v5844 = vrot.slane %v5566, 5
    %v5845 = vrot.slane %v5844, 4
    %v5846 = vrot.slane %v4728, 5
    %v5847 = vsel %vm3235, %v5845, %v5846
    %v5848 = vrot.slane %v5846, 4
    %v5849 = vrot.slane %v4766, 5
    %v5850 = vsel %vm3235, %v5848, %v5849
    %v5851 = vrot.slane %v5567, 5
    %v5852 = vrot.slane %v5851, 4
    %v5853 = vrot.slane %v4730, 5
    %v5854 = vsel %vm3235, %v5852, %v5853
    %v5855 = vrot.slane %v5853, 4
    %v5856 = vrot.slane %v4767, 5
    %v5857 = vsel %vm3235, %v5855, %v5856
    %v5858 = vrot.slane %v5568, 5
    %v5859 = vrot.slane %v5858, 4
    %v5860 = vrot.slane %v4732, 5
    %v5861 = vsel %vm3235, %v5859, %v5860
    %v5862 = vrot.slane %v5860, 4
    %v5863 = vrot.slane %v4768, 5
    %v5864 = vsel %vm3235, %v5862, %v5863
    %v5865 = vrot.slane %v5569, 5
    %v5866 = vrot.slane %v5865, 4
    %v5867 = vrot.slane %v4734, 5
    %v5868 = vsel %vm3235, %v5866, %v5867
    %v5869 = vrot.slane %v5867, 4
    %v5870 = vrot.slane %v4769, 5
    %v5871 = vsel %vm3235, %v5869, %v5870
    %v5872 = vrot.slane %v5570, 5
    %v5873 = vrot.slane %v5872, 4
    %v5874 = vrot.slane %v4736, 5
    %v5875 = vsel %vm3235, %v5873, %v5874
    %v5876 = vrot.slane %v5874, 4
    %v5877 = vrot.slane %v4770, 5
    %v5878 = vsel %vm3235, %v5876, %v5877
    %v5879 = vrot.slane %v5571, 5
    %v5880 = vrot.slane %v5879, 4
    %v5881 = vrot.slane %v4738, 5
    %v5882 = vsel %vm3235, %v5880, %v5881
    %v5883 = vrot.slane %v5881, 4
    %v5884 = vrot.slane %v4771, 5
    %v5885 = vsel %vm3235, %v5883, %v5884
    %v5886 = vrot.slane %v5572, 5
    %v5887 = vrot.slane %v5886, 4
    %v5888 = vrot.slane %v4740, 5
    %v5889 = vsel %vm3235, %v5887, %v5888
    %v5890 = vrot.slane %v5888, 4
    %v5891 = vrot.slane %v4772, 5
    %v5892 = vsel %vm3235, %v5890, %v5891
    %v5925 = vunpack.c.l.b16 %v2238
    %v5926 = vunpack.c.l.b16 %v2239
    %v5927 = vunpack.c.l.b16 %v2240
    %v5928 = vunpack.c.l.b16 %v2241
    %v5929 = vunpack.c.l.b16 %v2242
    %v5930 = vunpack.c.l.b16 %v2243
    %v5931 = vunpack.c.l.b16 %v2244
    %v5932 = vunpack.c.l.b16 %v2245
    %v5933 = vunpack.c.l.b16 %v2246
    %v5934 = vunpack.c.l.b16 %v2247
    %v5935 = vunpack.c.l.b16 %v2248
    %v5936 = vunpack.c.l.b16 %v2249
    %v5937 = vunpack.c.l.b16 %v2250
    %v5938 = vunpack.c.l.b16 %v2251
    %v5939 = vunpack.c.l.b16 %v2252
    %v5940 = vunpack.c.l.b16 %v2253
    %v5941 = vunpack.c.l.b16 %v2254
    %v5942 = vunpack.c.l.b16 %v2255
    %v5943 = vunpack.c.l.b16 %v2256
    %v5944 = vunpack.c.l.b16 %v2257
    %v5945 = vunpack.c.l.b16 %v2258
    %v5946 = vunpack.c.l.b16 %v2259
    %v5947 = vunpack.c.l.b16 %v2260
    %v5948 = vunpack.c.l.b16 %v2261
    %v5949 = vunpack.c.l.b16 %v2262
    %v5950 = vunpack.c.l.b16 %v2263
    %v5951 = vunpack.c.l.b16 %v2264
    %v5952 = vunpack.c.l.b16 %v2265
    %v5953 = vunpack.c.l.b16 %v2266
    %v5954 = vunpack.c.l.b16 %v2267
    %v5955 = vunpack.c.l.b16 %v2268
    %v5956 = vunpack.c.l.b16 %v2269
    %v5957 = vunpack.c.l.b16 %v2270
    %v5958 = vunpack.c.l.b16 %v2271
    %v5959 = vunpack.c.l.b16 %v2272
    %v5960 = vunpack.c.l.b16 %v2273
    %v5961 = vunpack.c.l.b16 %v2274
    %v5962 = vunpack.c.l.b16 %v2275
    %v5963 = vunpack.c.l.b16 %v2276
    %v5964 = vunpack.c.l.b16 %v2277
    %v5965 = vunpack.c.l.b16 %v2278
    %v5966 = vunpack.c.l.b16 %v2279
    %v5967 = vunpack.c.l.b16 %v2280
    %v5968 = vunpack.c.l.b16 %v2281
    %v5969 = vunpack.c.l.b16 %v2282
    %v5970 = vunpack.c.l.b16 %v2283
    %v5971 = vunpack.c.l.b16 %v2284
    %v5972 = vunpack.c.l.b16 %v2285
    %v5973 = vunpack.c.l.b16 %v2286
    %v5974 = vunpack.c.l.b16 %v2287
    %v5975 = vunpack.c.l.b16 %v2288
    %v5976 = vunpack.c.l.b16 %v2289
    %v5977 = vunpack.c.l.b16 %v2290
    %v5978 = vunpack.c.l.b16 %v2291
    %v5979 = vunpack.c.l.b16 %v2292
    %v5980 = vunpack.c.l.b16 %v2293
    %v5981 = vunpack.c.l.b16 %v2294
    %v5982 = vunpack.c.l.b16 %v2295
    %v5983 = vunpack.c.l.b16 %v2296
    %v5984 = vunpack.c.l.b16 %v2297
    %v5985 = vunpack.c.l.b16 %v2298
    %v5986 = vunpack.c.l.b16 %v2299
    %v5987 = vunpack.c.l.b16 %v2300
    %v5988 = vunpack.c.l.b16 %v2301
    %v5989 = vpack.c.b16 %v5926, %v5925
    %v5990 = vpack.c.b16 %v5928, %v5927
    %v5991 = vpack.c.b16 %v5930, %v5929
    %v5992 = vpack.c.b16 %v5932, %v5931
    %v5993 = vpack.c.b16 %v5934, %v5933
    %v5994 = vpack.c.b16 %v5936, %v5935
    %v5995 = vpack.c.b16 %v5938, %v5937
    %v5996 = vpack.c.b16 %v5940, %v5939
    %v5997 = vpack.c.b16 %v5942, %v5941
    %v5998 = vpack.c.b16 %v5944, %v5943
    %v5999 = vpack.c.b16 %v5946, %v5945
    %v6000 = vpack.c.b16 %v5948, %v5947
    %v6001 = vpack.c.b16 %v5950, %v5949
    %v6002 = vpack.c.b16 %v5952, %v5951
    %v6003 = vpack.c.b16 %v5954, %v5953
    %v6004 = vpack.c.b16 %v5956, %v5955
    %v6005 = vpack.c.b16 %v5958, %v5957
    %v6006 = vpack.c.b16 %v5960, %v5959
    %v6007 = vpack.c.b16 %v5962, %v5961
    %v6008 = vpack.c.b16 %v5964, %v5963
    %v6009 = vpack.c.b16 %v5966, %v5965
    %v6010 = vpack.c.b16 %v5968, %v5967
    %v6011 = vpack.c.b16 %v5970, %v5969
    %v6012 = vpack.c.b16 %v5972, %v5971
    %v6013 = vpack.c.b16 %v5974, %v5973
    %v6014 = vpack.c.b16 %v5976, %v5975
    %v6015 = vpack.c.b16 %v5978, %v5977
    %v6016 = vpack.c.b16 %v5980, %v5979
    %v6017 = vpack.c.b16 %v5982, %v5981
    %v6018 = vpack.c.b16 %v5984, %v5983
    %v6019 = vpack.c.b16 %v5986, %v5985
    %v6020 = vpack.c.b16 %v5988, %v5987
    %v6053 = vunpack.c.l.b16 %v2350
    %v6054 = vunpack.c.l.b16 %v2360
    %v6055 = vunpack.c.l.b16 %v2374
    %v6056 = vunpack.c.l.b16 %v2384
    %v6057 = vunpack.c.l.b16 %v2398
    %v6058 = vunpack.c.l.b16 %v2408
    %v6059 = vunpack.c.l.b16 %v2422
    %v6060 = vunpack.c.l.b16 %v2432
    %v6061 = vunpack.c.l.b16 %v2446
    %v6062 = vunpack.c.l.b16 %v2456
    %v6063 = vunpack.c.l.b16 %v2470
    %v6064 = vunpack.c.l.b16 %v2480
    %v6065 = vunpack.c.l.b16 %v2494
    %v6066 = vunpack.c.l.b16 %v2504
    %v6067 = vunpack.c.l.b16 %v2518
    %v6068 = vunpack.c.l.b16 %v2528
    %v6069 = vunpack.c.l.b16 %v2542
    %v6070 = vunpack.c.l.b16 %v2552
    %v6071 = vunpack.c.l.b16 %v2566
    %v6072 = vunpack.c.l.b16 %v2576
    %v6073 = vunpack.c.l.b16 %v2590
    %v6074 = vunpack.c.l.b16 %v2600
    %v6075 = vunpack.c.l.b16 %v2614
    %v6076 = vunpack.c.l.b16 %v2624
    %v6077 = vunpack.c.l.b16 %v2638
    %v6078 = vunpack.c.l.b16 %v2648
    %v6079 = vunpack.c.l.b16 %v2662
    %v6080 = vunpack.c.l.b16 %v2672
    %v6081 = vunpack.c.l.b16 %v2686
    %v6082 = vunpack.c.l.b16 %v2696
    %v6083 = vunpack.c.l.b16 %v2710
    %v6084 = vunpack.c.l.b16 %v2720
    %v6085 = vunpack.c.l.b16 %v2734
    %v6086 = vunpack.c.l.b16 %v2744
    %v6087 = vunpack.c.l.b16 %v2758
    %v6088 = vunpack.c.l.b16 %v2768
    %v6089 = vunpack.c.l.b16 %v2782
    %v6090 = vunpack.c.l.b16 %v2792
    %v6091 = vunpack.c.l.b16 %v2806
    %v6092 = vunpack.c.l.b16 %v2816
    %v6093 = vunpack.c.l.b16 %v2830
    %v6094 = vunpack.c.l.b16 %v2840
    %v6095 = vunpack.c.l.b16 %v2854
    %v6096 = vunpack.c.l.b16 %v2864
    %v6097 = vunpack.c.l.b16 %v2878
    %v6098 = vunpack.c.l.b16 %v2888
    %v6099 = vunpack.c.l.b16 %v2902
    %v6100 = vunpack.c.l.b16 %v2912
    %v6101 = vunpack.c.l.b16 %v2926
    %v6102 = vunpack.c.l.b16 %v2936
    %v6103 = vunpack.c.l.b16 %v2950
    %v6104 = vunpack.c.l.b16 %v2960
    %v6105 = vunpack.c.l.b16 %v2974
    %v6106 = vunpack.c.l.b16 %v2984
    %v6107 = vunpack.c.l.b16 %v2998
    %v6108 = vunpack.c.l.b16 %v3008
    %v6109 = vunpack.c.l.b16 %v3022
    %v6110 = vunpack.c.l.b16 %v3032
    %v6111 = vunpack.c.l.b16 %v3046
    %v6112 = vunpack.c.l.b16 %v3056
    %v6113 = vunpack.c.l.b16 %v3070
    %v6114 = vunpack.c.l.b16 %v3080
    %v6115 = vunpack.c.l.b16 %v3094
    %v6116 = vunpack.c.l.b16 %v3104
    %v6117 = vpack.c.b16 %v6054, %v6053
    %v6118 = vpack.c.b16 %v6056, %v6055
    %v6119 = vpack.c.b16 %v6058, %v6057
    %v6120 = vpack.c.b16 %v6060, %v6059
    %v6121 = vpack.c.b16 %v6062, %v6061
    %v6122 = vpack.c.b16 %v6064, %v6063
    %v6123 = vpack.c.b16 %v6066, %v6065
    %v6124 = vpack.c.b16 %v6068, %v6067
    %v6125 = vpack.c.b16 %v6070, %v6069
    %v6126 = vpack.c.b16 %v6072, %v6071
    %v6127 = vpack.c.b16 %v6074, %v6073
    %v6128 = vpack.c.b16 %v6076, %v6075
    %v6129 = vpack.c.b16 %v6078, %v6077
    %v6130 = vpack.c.b16 %v6080, %v6079
    %v6131 = vpack.c.b16 %v6082, %v6081
    %v6132 = vpack.c.b16 %v6084, %v6083
    %v6133 = vpack.c.b16 %v6086, %v6085
    %v6134 = vpack.c.b16 %v6088, %v6087
    %v6135 = vpack.c.b16 %v6090, %v6089
    %v6136 = vpack.c.b16 %v6092, %v6091
    %v6137 = vpack.c.b16 %v6094, %v6093
    %v6138 = vpack.c.b16 %v6096, %v6095
    %v6139 = vpack.c.b16 %v6098, %v6097
    %v6140 = vpack.c.b16 %v6100, %v6099
    %v6141 = vpack.c.b16 %v6102, %v6101
    %v6142 = vpack.c.b16 %v6104, %v6103
    %v6143 = vpack.c.b16 %v6106, %v6105
    %v6144 = vpack.c.b16 %v6108, %v6107
    %v6145 = vpack.c.b16 %v6110, %v6109
    %v6146 = vpack.c.b16 %v6112, %v6111
    %v6147 = vpack.c.b16 %v6114, %v6113
    %v6148 = vpack.c.b16 %v6116, %v6115
    %v6181 = vunpack.c.l.b16 %v3239
    %v6182 = vunpack.c.l.b16 %v3242
    %v6183 = vunpack.c.l.b16 %v3246
    %v6184 = vunpack.c.l.b16 %v3249
    %v6185 = vunpack.c.l.b16 %v3253
    %v6186 = vunpack.c.l.b16 %v3256
    %v6187 = vunpack.c.l.b16 %v3260
    %v6188 = vunpack.c.l.b16 %v3263
    %v6189 = vunpack.c.l.b16 %v3267
    %v6190 = vunpack.c.l.b16 %v3270
    %v6191 = vunpack.c.l.b16 %v3274
    %v6192 = vunpack.c.l.b16 %v3277
    %v6193 = vunpack.c.l.b16 %v3281
    %v6194 = vunpack.c.l.b16 %v3284
    %v6195 = vunpack.c.l.b16 %v3288
    %v6196 = vunpack.c.l.b16 %v3291
    %v6197 = vunpack.c.l.b16 %v3295
    %v6198 = vunpack.c.l.b16 %v3298
    %v6199 = vunpack.c.l.b16 %v3302
    %v6200 = vunpack.c.l.b16 %v3305
    %v6201 = vunpack.c.l.b16 %v3309
    %v6202 = vunpack.c.l.b16 %v3312
    %v6203 = vunpack.c.l.b16 %v3316
    %v6204 = vunpack.c.l.b16 %v3319
    %v6205 = vunpack.c.l.b16 %v3323
    %v6206 = vunpack.c.l.b16 %v3326
    %v6207 = vunpack.c.l.b16 %v3330
    %v6208 = vunpack.c.l.b16 %v3333
    %v6209 = vunpack.c.l.b16 %v3337
    %v6210 = vunpack.c.l.b16 %v3340
    %v6211 = vunpack.c.l.b16 %v3344
    %v6212 = vunpack.c.l.b16 %v3347
    %v6213 = vunpack.c.l.b16 %v3351
    %v6214 = vunpack.c.l.b16 %v3354
    %v6215 = vunpack.c.l.b16 %v3358
    %v6216 = vunpack.c.l.b16 %v3361
    %v6217 = vunpack.c.l.b16 %v3365
    %v6218 = vunpack.c.l.b16 %v3368
    %v6219 = vunpack.c.l.b16 %v3372
    %v6220 = vunpack.c.l.b16 %v3375
    %v6221 = vunpack.c.l.b16 %v3379
    %v6222 = vunpack.c.l.b16 %v3382
    %v6223 = vunpack.c.l.b16 %v3386
    %v6224 = vunpack.c.l.b16 %v3389
    %v6225 = vunpack.c.l.b16 %v3393
    %v6226 = vunpack.c.l.b16 %v3396
    %v6227 = vunpack.c.l.b16 %v3400
    %v6228 = vunpack.c.l.b16 %v3403
    %v6229 = vunpack.c.l.b16 %v3407
    %v6230 = vunpack.c.l.b16 %v3410
    %v6231 = vunpack.c.l.b16 %v3414
    %v6232 = vunpack.c.l.b16 %v3417
    %v6233 = vunpack.c.l.b16 %v3421
    %v6234 = vunpack.c.l.b16 %v3424
    %v6235 = vunpack.c.l.b16 %v3428
    %v6236 = vunpack.c.l.b16 %v3431
    %v6237 = vunpack.c.l.b16 %v3435
    %v6238 = vunpack.c.l.b16 %v3438
    %v6239 = vunpack.c.l.b16 %v3442
    %v6240 = vunpack.c.l.b16 %v3445
    %v6241 = vunpack.c.l.b16 %v3449
    %v6242 = vunpack.c.l.b16 %v3452
    %v6243 = vunpack.c.l.b16 %v3456
    %v6244 = vunpack.c.l.b16 %v3459
    %v6245 = vpack.c.b16 %v6182, %v6181
    %v6246 = vpack.c.b16 %v6184, %v6183
    %v6247 = vpack.c.b16 %v6186, %v6185
    %v6248 = vpack.c.b16 %v6188, %v6187
    %v6249 = vpack.c.b16 %v6190, %v6189
    %v6250 = vpack.c.b16 %v6192, %v6191
    %v6251 = vpack.c.b16 %v6194, %v6193
    %v6252 = vpack.c.b16 %v6196, %v6195
    %v6253 = vpack.c.b16 %v6198, %v6197
    %v6254 = vpack.c.b16 %v6200, %v6199
    %v6255 = vpack.c.b16 %v6202, %v6201
    %v6256 = vpack.c.b16 %v6204, %v6203
    %v6257 = vpack.c.b16 %v6206, %v6205
    %v6258 = vpack.c.b16 %v6208, %v6207
    %v6259 = vpack.c.b16 %v6210, %v6209
    %v6260 = vpack.c.b16 %v6212, %v6211
    %v6261 = vpack.c.b16 %v6214, %v6213
    %v6262 = vpack.c.b16 %v6216, %v6215
    %v6263 = vpack.c.b16 %v6218, %v6217
    %v6264 = vpack.c.b16 %v6220, %v6219
    %v6265 = vpack.c.b16 %v6222, %v6221
    %v6266 = vpack.c.b16 %v6224, %v6223
    %v6267 = vpack.c.b16 %v6226, %v6225
    %v6268 = vpack.c.b16 %v6228, %v6227
    %v6269 = vpack.c.b16 %v6230, %v6229
    %v6270 = vpack.c.b16 %v6232, %v6231
    %v6271 = vpack.c.b16 %v6234, %v6233
    %v6272 = vpack.c.b16 %v6236, %v6235
    %v6273 = vpack.c.b16 %v6238, %v6237
    %v6274 = vpack.c.b16 %v6240, %v6239
    %v6275 = vpack.c.b16 %v6242, %v6241
    %v6276 = vpack.c.b16 %v6244, %v6243
    %v6341 = vunpack.c.l.b16 %v3460
    %v6342 = vunpack.c.l.b16 %v3461
    %v6343 = vunpack.c.l.b16 %v3462
    %v6344 = vunpack.c.l.b16 %v3463
    %v6345 = vunpack.c.l.b16 %v3464
    %v6346 = vunpack.c.l.b16 %v3465
    %v6347 = vunpack.c.l.b16 %v3466
    %v6348 = vunpack.c.l.b16 %v3467
    %v6349 = vunpack.c.l.b16 %v3468
    %v6350 = vunpack.c.l.b16 %v3469
    %v6351 = vunpack.c.l.b16 %v3470
    %v6352 = vunpack.c.l.b16 %v3471
    %v6353 = vunpack.c.l.b16 %v3472
    %v6354 = vunpack.c.l.b16 %v3473
    %v6355 = vunpack.c.l.b16 %v3474
    %v6356 = vunpack.c.l.b16 %v3475
    %v6357 = vunpack.c.l.b16 %v3476
    %v6358 = vunpack.c.l.b16 %v3477
    %v6359 = vunpack.c.l.b16 %v3478
    %v6360 = vunpack.c.l.b16 %v3479
    %v6361 = vunpack.c.l.b16 %v3480
    %v6362 = vunpack.c.l.b16 %v3481
    %v6363 = vunpack.c.l.b16 %v3482
    %v6364 = vunpack.c.l.b16 %v3483
    %v6365 = vunpack.c.l.b16 %v3484
    %v6366 = vunpack.c.l.b16 %v3485
    %v6367 = vunpack.c.l.b16 %v3486
    %v6368 = vunpack.c.l.b16 %v3487
    %v6369 = vunpack.c.l.b16 %v3488
    %v6370 = vunpack.c.l.b16 %v3489
    %v6371 = vunpack.c.l.b16 %v3490
    %v6372 = vunpack.c.l.b16 %v3491
    %v6373 = vunpack.c.l.b16 %v3492
    %v6374 = vunpack.c.l.b16 %v3493
    %v6375 = vunpack.c.l.b16 %v3494
    %v6376 = vunpack.c.l.b16 %v3495
    %v6377 = vunpack.c.l.b16 %v3496
    %v6378 = vunpack.c.l.b16 %v3497
    %v6379 = vunpack.c.l.b16 %v3498
    %v6380 = vunpack.c.l.b16 %v3499
    %v6381 = vunpack.c.l.b16 %v3500
    %v6382 = vunpack.c.l.b16 %v3501
    %v6383 = vunpack.c.l.b16 %v3502
    %v6384 = vunpack.c.l.b16 %v3503
    %v6385 = vunpack.c.l.b16 %v3504
    %v6386 = vunpack.c.l.b16 %v3505
    %v6387 = vunpack.c.l.b16 %v3506
    %v6388 = vunpack.c.l.b16 %v3507
    %v6389 = vunpack.c.l.b16 %v3508
    %v6390 = vunpack.c.l.b16 %v3509
    %v6391 = vunpack.c.l.b16 %v3510
    %v6392 = vunpack.c.l.b16 %v3511
    %v6393 = vunpack.c.l.b16 %v3512
    %v6394 = vunpack.c.l.b16 %v3513
    %v6395 = vunpack.c.l.b16 %v3514
    %v6396 = vunpack.c.l.b16 %v3515
    %v6397 = vunpack.c.l.b16 %v3516
    %v6398 = vunpack.c.l.b16 %v3517
    %v6399 = vunpack.c.l.b16 %v3518
    %v6400 = vunpack.c.l.b16 %v3519
    %v6401 = vunpack.c.l.b16 %v3520
    %v6402 = vunpack.c.l.b16 %v3521
    %v6403 = vunpack.c.l.b16 %v3522
    %v6404 = vunpack.c.l.b16 %v3523
    %v6405 = vpack.c.b16 %v6342, %v6341
    %v6406 = vpack.c.b16 %v6344, %v6343
    %v6407 = vpack.c.b16 %v6346, %v6345
    %v6408 = vpack.c.b16 %v6348, %v6347
    %v6409 = vpack.c.b16 %v6350, %v6349
    %v6410 = vpack.c.b16 %v6352, %v6351
    %v6411 = vpack.c.b16 %v6354, %v6353
    %v6412 = vpack.c.b16 %v6356, %v6355
    %v6413 = vpack.c.b16 %v6358, %v6357
    %v6414 = vpack.c.b16 %v6360, %v6359
    %v6415 = vpack.c.b16 %v6362, %v6361
    %v6416 = vpack.c.b16 %v6364, %v6363
    %v6417 = vpack.c.b16 %v6366, %v6365
    %v6418 = vpack.c.b16 %v6368, %v6367
    %v6419 = vpack.c.b16 %v6370, %v6369
    %v6420 = vpack.c.b16 %v6372, %v6371
    %v6421 = vpack.c.b16 %v6374, %v6373
    %v6422 = vpack.c.b16 %v6376, %v6375
    %v6423 = vpack.c.b16 %v6378, %v6377
    %v6424 = vpack.c.b16 %v6380, %v6379
    %v6425 = vpack.c.b16 %v6382, %v6381
    %v6426 = vpack.c.b16 %v6384, %v6383
    %v6427 = vpack.c.b16 %v6386, %v6385
    %v6428 = vpack.c.b16 %v6388, %v6387
    %v6429 = vpack.c.b16 %v6390, %v6389
    %v6430 = vpack.c.b16 %v6392, %v6391
    %v6431 = vpack.c.b16 %v6394, %v6393
    %v6432 = vpack.c.b16 %v6396, %v6395
    %v6433 = vpack.c.b16 %v6398, %v6397
    %v6434 = vpack.c.b16 %v6400, %v6399
    %v6435 = vpack.c.b16 %v6402, %v6401
    %v6436 = vpack.c.b16 %v6404, %v6403
    %v6469 = vunpack.c.l.b16 %v3569
    %v6470 = vunpack.c.l.b16 %v3579
    %v6471 = vunpack.c.l.b16 %v3593
    %v6472 = vunpack.c.l.b16 %v3603
    %v6473 = vunpack.c.l.b16 %v3617
    %v6474 = vunpack.c.l.b16 %v3627
    %v6475 = vunpack.c.l.b16 %v3641
    %v6476 = vunpack.c.l.b16 %v3651
    %v6477 = vunpack.c.l.b16 %v3665
    %v6478 = vunpack.c.l.b16 %v3675
    %v6479 = vunpack.c.l.b16 %v3689
    %v6480 = vunpack.c.l.b16 %v3699
    %v6481 = vunpack.c.l.b16 %v3713
    %v6482 = vunpack.c.l.b16 %v3723
    %v6483 = vunpack.c.l.b16 %v3737
    %v6484 = vunpack.c.l.b16 %v3747
    %v6485 = vunpack.c.l.b16 %v3761
    %v6486 = vunpack.c.l.b16 %v3771
    %v6487 = vunpack.c.l.b16 %v3785
    %v6488 = vunpack.c.l.b16 %v3795
    %v6489 = vunpack.c.l.b16 %v3809
    %v6490 = vunpack.c.l.b16 %v3819
    %v6491 = vunpack.c.l.b16 %v3833
    %v6492 = vunpack.c.l.b16 %v3843
    %v6493 = vunpack.c.l.b16 %v3857
    %v6494 = vunpack.c.l.b16 %v3867
    %v6495 = vunpack.c.l.b16 %v3881
    %v6496 = vunpack.c.l.b16 %v3891
    %v6497 = vunpack.c.l.b16 %v3905
    %v6498 = vunpack.c.l.b16 %v3915
    %v6499 = vunpack.c.l.b16 %v3929
    %v6500 = vunpack.c.l.b16 %v3939
    %v6501 = vunpack.c.l.b16 %v3953
    %v6502 = vunpack.c.l.b16 %v3963
    %v6503 = vunpack.c.l.b16 %v3977
    %v6504 = vunpack.c.l.b16 %v3987
    %v6505 = vunpack.c.l.b16 %v4001
    %v6506 = vunpack.c.l.b16 %v4011
    %v6507 = vunpack.c.l.b16 %v4025
    %v6508 = vunpack.c.l.b16 %v4035
    %v6509 = vunpack.c.l.b16 %v4049
    %v6510 = vunpack.c.l.b16 %v4059
    %v6511 = vunpack.c.l.b16 %v4073
    %v6512 = vunpack.c.l.b16 %v4083
    %v6513 = vunpack.c.l.b16 %v4097
    %v6514 = vunpack.c.l.b16 %v4107
    %v6515 = vunpack.c.l.b16 %v4121
    %v6516 = vunpack.c.l.b16 %v4131
    %v6517 = vunpack.c.l.b16 %v4145
    %v6518 = vunpack.c.l.b16 %v4155
    %v6519 = vunpack.c.l.b16 %v4169
    %v6520 = vunpack.c.l.b16 %v4179
    %v6521 = vunpack.c.l.b16 %v4193
    %v6522 = vunpack.c.l.b16 %v4203
    %v6523 = vunpack.c.l.b16 %v4217
    %v6524 = vunpack.c.l.b16 %v4227
    %v6525 = vunpack.c.l.b16 %v4241
    %v6526 = vunpack.c.l.b16 %v4251
    %v6527 = vunpack.c.l.b16 %v4265
    %v6528 = vunpack.c.l.b16 %v4275
    %v6529 = vunpack.c.l.b16 %v4289
    %v6530 = vunpack.c.l.b16 %v4299
    %v6531 = vunpack.c.l.b16 %v4313
    %v6532 = vunpack.c.l.b16 %v4323
    %v6533 = vpack.c.b16 %v6470, %v6469
    %v6534 = vpack.c.b16 %v6472, %v6471
    %v6535 = vpack.c.b16 %v6474, %v6473
    %v6536 = vpack.c.b16 %v6476, %v6475
    %v6537 = vpack.c.b16 %v6478, %v6477
    %v6538 = vpack.c.b16 %v6480, %v6479
    %v6539 = vpack.c.b16 %v6482, %v6481
    %v6540 = vpack.c.b16 %v6484, %v6483
    %v6541 = vpack.c.b16 %v6486, %v6485
    %v6542 = vpack.c.b16 %v6488, %v6487
    %v6543 = vpack.c.b16 %v6490, %v6489
    %v6544 = vpack.c.b16 %v6492, %v6491
    %v6545 = vpack.c.b16 %v6494, %v6493
    %v6546 = vpack.c.b16 %v6496, %v6495
    %v6547 = vpack.c.b16 %v6498, %v6497
    %v6548 = vpack.c.b16 %v6500, %v6499
    %v6549 = vpack.c.b16 %v6502, %v6501
    %v6550 = vpack.c.b16 %v6504, %v6503
    %v6551 = vpack.c.b16 %v6506, %v6505
    %v6552 = vpack.c.b16 %v6508, %v6507
    %v6553 = vpack.c.b16 %v6510, %v6509
    %v6554 = vpack.c.b16 %v6512, %v6511
    %v6555 = vpack.c.b16 %v6514, %v6513
    %v6556 = vpack.c.b16 %v6516, %v6515
    %v6557 = vpack.c.b16 %v6518, %v6517
    %v6558 = vpack.c.b16 %v6520, %v6519
    %v6559 = vpack.c.b16 %v6522, %v6521
    %v6560 = vpack.c.b16 %v6524, %v6523
    %v6561 = vpack.c.b16 %v6526, %v6525
    %v6562 = vpack.c.b16 %v6528, %v6527
    %v6563 = vpack.c.b16 %v6530, %v6529
    %v6564 = vpack.c.b16 %v6532, %v6531
    %v6597 = vunpack.c.l.b16 %v4455
    %v6598 = vunpack.c.l.b16 %v4458
    %v6599 = vunpack.c.l.b16 %v4462
    %v6600 = vunpack.c.l.b16 %v4465
    %v6601 = vunpack.c.l.b16 %v4469
    %v6602 = vunpack.c.l.b16 %v4472
    %v6603 = vunpack.c.l.b16 %v4476
    %v6604 = vunpack.c.l.b16 %v4479
    %v6605 = vunpack.c.l.b16 %v4483
    %v6606 = vunpack.c.l.b16 %v4486
    %v6607 = vunpack.c.l.b16 %v4490
    %v6608 = vunpack.c.l.b16 %v4493
    %v6609 = vunpack.c.l.b16 %v4497
    %v6610 = vunpack.c.l.b16 %v4500
    %v6611 = vunpack.c.l.b16 %v4504
    %v6612 = vunpack.c.l.b16 %v4507
    %v6613 = vunpack.c.l.b16 %v4511
    %v6614 = vunpack.c.l.b16 %v4514
    %v6615 = vunpack.c.l.b16 %v4518
    %v6616 = vunpack.c.l.b16 %v4521
    %v6617 = vunpack.c.l.b16 %v4525
    %v6618 = vunpack.c.l.b16 %v4528
    %v6619 = vunpack.c.l.b16 %v4532
    %v6620 = vunpack.c.l.b16 %v4535
    %v6621 = vunpack.c.l.b16 %v4539
    %v6622 = vunpack.c.l.b16 %v4542
    %v6623 = vunpack.c.l.b16 %v4546
    %v6624 = vunpack.c.l.b16 %v4549
    %v6625 = vunpack.c.l.b16 %v4553
    %v6626 = vunpack.c.l.b16 %v4556
    %v6627 = vunpack.c.l.b16 %v4560
    %v6628 = vunpack.c.l.b16 %v4563
    %v6629 = vunpack.c.l.b16 %v4567
    %v6630 = vunpack.c.l.b16 %v4570
    %v6631 = vunpack.c.l.b16 %v4574
    %v6632 = vunpack.c.l.b16 %v4577
    %v6633 = vunpack.c.l.b16 %v4581
    %v6634 = vunpack.c.l.b16 %v4584
    %v6635 = vunpack.c.l.b16 %v4588
    %v6636 = vunpack.c.l.b16 %v4591
    %v6637 = vunpack.c.l.b16 %v4595
    %v6638 = vunpack.c.l.b16 %v4598
    %v6639 = vunpack.c.l.b16 %v4602
    %v6640 = vunpack.c.l.b16 %v4605
    %v6641 = vunpack.c.l.b16 %v4609
    %v6642 = vunpack.c.l.b16 %v4612
    %v6643 = vunpack.c.l.b16 %v4616
    %v6644 = vunpack.c.l.b16 %v4619
    %v6645 = vunpack.c.l.b16 %v4623
    %v6646 = vunpack.c.l.b16 %v4626
    %v6647 = vunpack.c.l.b16 %v4630
    %v6648 = vunpack.c.l.b16 %v4633
    %v6649 = vunpack.c.l.b16 %v4637
    %v6650 = vunpack.c.l.b16 %v4640
    %v6651 = vunpack.c.l.b16 %v4644
    %v6652 = vunpack.c.l.b16 %v4647
    %v6653 = vunpack.c.l.b16 %v4651
    %v6654 = vunpack.c.l.b16 %v4654
    %v6655 = vunpack.c.l.b16 %v4658
    %v6656 = vunpack.c.l.b16 %v4661
    %v6657 = vunpack.c.l.b16 %v4665
    %v6658 = vunpack.c.l.b16 %v4668
    %v6659 = vunpack.c.l.b16 %v4672
    %v6660 = vunpack.c.l.b16 %v4675
    %v6661 = vpack.c.b16 %v6598, %v6597
    %v6662 = vpack.c.b16 %v6600, %v6599
    %v6663 = vpack.c.b16 %v6602, %v6601
    %v6664 = vpack.c.b16 %v6604, %v6603
    %v6665 = vpack.c.b16 %v6606, %v6605
    %v6666 = vpack.c.b16 %v6608, %v6607
    %v6667 = vpack.c.b16 %v6610, %v6609
    %v6668 = vpack.c.b16 %v6612, %v6611
    %v6669 = vpack.c.b16 %v6614, %v6613
    %v6670 = vpack.c.b16 %v6616, %v6615
    %v6671 = vpack.c.b16 %v6618, %v6617
    %v6672 = vpack.c.b16 %v6620, %v6619
    %v6673 = vpack.c.b16 %v6622, %v6621
    %v6674 = vpack.c.b16 %v6624, %v6623
    %v6675 = vpack.c.b16 %v6626, %v6625
    %v6676 = vpack.c.b16 %v6628, %v6627
    %v6677 = vpack.c.b16 %v6630, %v6629
    %v6678 = vpack.c.b16 %v6632, %v6631
    %v6679 = vpack.c.b16 %v6634, %v6633
    %v6680 = vpack.c.b16 %v6636, %v6635
    %v6681 = vpack.c.b16 %v6638, %v6637
    %v6682 = vpack.c.b16 %v6640, %v6639
    %v6683 = vpack.c.b16 %v6642, %v6641
    %v6684 = vpack.c.b16 %v6644, %v6643
    %v6685 = vpack.c.b16 %v6646, %v6645
    %v6686 = vpack.c.b16 %v6648, %v6647
    %v6687 = vpack.c.b16 %v6650, %v6649
    %v6688 = vpack.c.b16 %v6652, %v6651
    %v6689 = vpack.c.b16 %v6654, %v6653
    %v6690 = vpack.c.b16 %v6656, %v6655
    %v6691 = vpack.c.b16 %v6658, %v6657
    %v6692 = vpack.c.b16 %v6660, %v6659
    %v6757 = vunpack.c.l.b16 %v4677
    %v6758 = vunpack.c.l.b16 %v4678
    %v6759 = vunpack.c.l.b16 %v4679
    %v6760 = vunpack.c.l.b16 %v4680
    %v6761 = vunpack.c.l.b16 %v4681
    %v6762 = vunpack.c.l.b16 %v4682
    %v6763 = vunpack.c.l.b16 %v4683
    %v6764 = vunpack.c.l.b16 %v4684
    %v6765 = vunpack.c.l.b16 %v4685
    %v6766 = vunpack.c.l.b16 %v4686
    %v6767 = vunpack.c.l.b16 %v4687
    %v6768 = vunpack.c.l.b16 %v4688
    %v6769 = vunpack.c.l.b16 %v4689
    %v6770 = vunpack.c.l.b16 %v4690
    %v6771 = vunpack.c.l.b16 %v4691
    %v6772 = vunpack.c.l.b16 %v4692
    %v6773 = vunpack.c.l.b16 %v4693
    %v6774 = vunpack.c.l.b16 %v4694
    %v6775 = vunpack.c.l.b16 %v4695
    %v6776 = vunpack.c.l.b16 %v4696
    %v6777 = vunpack.c.l.b16 %v4697
    %v6778 = vunpack.c.l.b16 %v4698
    %v6779 = vunpack.c.l.b16 %v4699
    %v6780 = vunpack.c.l.b16 %v4700
    %v6781 = vunpack.c.l.b16 %v4701
    %v6782 = vunpack.c.l.b16 %v4702
    %v6783 = vunpack.c.l.b16 %v4703
    %v6784 = vunpack.c.l.b16 %v4704
    %v6785 = vunpack.c.l.b16 %v4705
    %v6786 = vunpack.c.l.b16 %v4706
    %v6787 = vunpack.c.l.b16 %v4707
    %v6788 = vunpack.c.l.b16 %v4708
    %v6789 = vunpack.c.l.b16 %v4709
    %v6790 = vunpack.c.l.b16 %v4710
    %v6791 = vunpack.c.l.b16 %v4711
    %v6792 = vunpack.c.l.b16 %v4712
    %v6793 = vunpack.c.l.b16 %v4713
    %v6794 = vunpack.c.l.b16 %v4714
    %v6795 = vunpack.c.l.b16 %v4715
    %v6796 = vunpack.c.l.b16 %v4716
    %v6797 = vunpack.c.l.b16 %v4717
    %v6798 = vunpack.c.l.b16 %v4718
    %v6799 = vunpack.c.l.b16 %v4719
    %v6800 = vunpack.c.l.b16 %v4720
    %v6801 = vunpack.c.l.b16 %v4721
    %v6802 = vunpack.c.l.b16 %v4722
    %v6803 = vunpack.c.l.b16 %v4723
    %v6804 = vunpack.c.l.b16 %v4724
    %v6805 = vunpack.c.l.b16 %v4725
    %v6806 = vunpack.c.l.b16 %v4726
    %v6807 = vunpack.c.l.b16 %v4727
    %v6808 = vunpack.c.l.b16 %v4728
    %v6809 = vunpack.c.l.b16 %v4729
    %v6810 = vunpack.c.l.b16 %v4730
    %v6811 = vunpack.c.l.b16 %v4731
    %v6812 = vunpack.c.l.b16 %v4732
    %v6813 = vunpack.c.l.b16 %v4733
    %v6814 = vunpack.c.l.b16 %v4734
    %v6815 = vunpack.c.l.b16 %v4735
    %v6816 = vunpack.c.l.b16 %v4736
    %v6817 = vunpack.c.l.b16 %v4737
    %v6818 = vunpack.c.l.b16 %v4738
    %v6819 = vunpack.c.l.b16 %v4739
    %v6820 = vunpack.c.l.b16 %v4740
    %v6821 = vpack.c.b16 %v6758, %v6757
    %v6822 = vpack.c.b16 %v6760, %v6759
    %v6823 = vpack.c.b16 %v6762, %v6761
    %v6824 = vpack.c.b16 %v6764, %v6763
    %v6825 = vpack.c.b16 %v6766, %v6765
    %v6826 = vpack.c.b16 %v6768, %v6767
    %v6827 = vpack.c.b16 %v6770, %v6769
    %v6828 = vpack.c.b16 %v6772, %v6771
    %v6829 = vpack.c.b16 %v6774, %v6773
    %v6830 = vpack.c.b16 %v6776, %v6775
    %v6831 = vpack.c.b16 %v6778, %v6777
    %v6832 = vpack.c.b16 %v6780, %v6779
    %v6833 = vpack.c.b16 %v6782, %v6781
    %v6834 = vpack.c.b16 %v6784, %v6783
    %v6835 = vpack.c.b16 %v6786, %v6785
    %v6836 = vpack.c.b16 %v6788, %v6787
    %v6837 = vpack.c.b16 %v6790, %v6789
    %v6838 = vpack.c.b16 %v6792, %v6791
    %v6839 = vpack.c.b16 %v6794, %v6793
    %v6840 = vpack.c.b16 %v6796, %v6795
    %v6841 = vpack.c.b16 %v6798, %v6797
    %v6842 = vpack.c.b16 %v6800, %v6799
    %v6843 = vpack.c.b16 %v6802, %v6801
    %v6844 = vpack.c.b16 %v6804, %v6803
    %v6845 = vpack.c.b16 %v6806, %v6805
    %v6846 = vpack.c.b16 %v6808, %v6807
    %v6847 = vpack.c.b16 %v6810, %v6809
    %v6848 = vpack.c.b16 %v6812, %v6811
    %v6849 = vpack.c.b16 %v6814, %v6813
    %v6850 = vpack.c.b16 %v6816, %v6815
    %v6851 = vpack.c.b16 %v6818, %v6817
    %v6852 = vpack.c.b16 %v6820, %v6819
    %v6885 = vunpack.c.l.b16 %v4786
    %v6886 = vunpack.c.l.b16 %v4796
    %v6887 = vunpack.c.l.b16 %v4810
    %v6888 = vunpack.c.l.b16 %v4820
    %v6889 = vunpack.c.l.b16 %v4834
    %v6890 = vunpack.c.l.b16 %v4844
    %v6891 = vunpack.c.l.b16 %v4858
    %v6892 = vunpack.c.l.b16 %v4868
    %v6893 = vunpack.c.l.b16 %v4882
    %v6894 = vunpack.c.l.b16 %v4892
    %v6895 = vunpack.c.l.b16 %v4906
    %v6896 = vunpack.c.l.b16 %v4916
    %v6897 = vunpack.c.l.b16 %v4930
    %v6898 = vunpack.c.l.b16 %v4940
    %v6899 = vunpack.c.l.b16 %v4954
    %v6900 = vunpack.c.l.b16 %v4964
    %v6901 = vunpack.c.l.b16 %v4978
    %v6902 = vunpack.c.l.b16 %v4988
    %v6903 = vunpack.c.l.b16 %v5002
    %v6904 = vunpack.c.l.b16 %v5012
    %v6905 = vunpack.c.l.b16 %v5026
    %v6906 = vunpack.c.l.b16 %v5036
    %v6907 = vunpack.c.l.b16 %v5050
    %v6908 = vunpack.c.l.b16 %v5060
    %v6909 = vunpack.c.l.b16 %v5074
    %v6910 = vunpack.c.l.b16 %v5084
    %v6911 = vunpack.c.l.b16 %v5098
    %v6912 = vunpack.c.l.b16 %v5108
    %v6913 = vunpack.c.l.b16 %v5122
    %v6914 = vunpack.c.l.b16 %v5132
    %v6915 = vunpack.c.l.b16 %v5146
    %v6916 = vunpack.c.l.b16 %v5156
    %v6917 = vunpack.c.l.b16 %v5170
    %v6918 = vunpack.c.l.b16 %v5180
    %v6919 = vunpack.c.l.b16 %v5194
    %v6920 = vunpack.c.l.b16 %v5204
    %v6921 = vunpack.c.l.b16 %v5218
    %v6922 = vunpack.c.l.b16 %v5228
    %v6923 = vunpack.c.l.b16 %v5242
    %v6924 = vunpack.c.l.b16 %v5252
    %v6925 = vunpack.c.l.b16 %v5266
    %v6926 = vunpack.c.l.b16 %v5276
    %v6927 = vunpack.c.l.b16 %v5290
    %v6928 = vunpack.c.l.b16 %v5300
    %v6929 = vunpack.c.l.b16 %v5314
    %v6930 = vunpack.c.l.b16 %v5324
    %v6931 = vunpack.c.l.b16 %v5338
    %v6932 = vunpack.c.l.b16 %v5348
    %v6933 = vunpack.c.l.b16 %v5362
    %v6934 = vunpack.c.l.b16 %v5372
    %v6935 = vunpack.c.l.b16 %v5386
    %v6936 = vunpack.c.l.b16 %v5396
    %v6937 = vunpack.c.l.b16 %v5410
    %v6938 = vunpack.c.l.b16 %v5420
    %v6939 = vunpack.c.l.b16 %v5434
    %v6940 = vunpack.c.l.b16 %v5444
    %v6941 = vunpack.c.l.b16 %v5458
    %v6942 = vunpack.c.l.b16 %v5468
    %v6943 = vunpack.c.l.b16 %v5482
    %v6944 = vunpack.c.l.b16 %v5492
    %v6945 = vunpack.c.l.b16 %v5506
    %v6946 = vunpack.c.l.b16 %v5516
    %v6947 = vunpack.c.l.b16 %v5530
    %v6948 = vunpack.c.l.b16 %v5540
    %v6949 = vpack.c.b16 %v6886, %v6885
    %v6950 = vpack.c.b16 %v6888, %v6887
    %v6951 = vpack.c.b16 %v6890, %v6889
    %v6952 = vpack.c.b16 %v6892, %v6891
    %v6953 = vpack.c.b16 %v6894, %v6893
    %v6954 = vpack.c.b16 %v6896, %v6895
    %v6955 = vpack.c.b16 %v6898, %v6897
    %v6956 = vpack.c.b16 %v6900, %v6899
    %v6957 = vpack.c.b16 %v6902, %v6901
    %v6958 = vpack.c.b16 %v6904, %v6903
    %v6959 = vpack.c.b16 %v6906, %v6905
    %v6960 = vpack.c.b16 %v6908, %v6907
    %v6961 = vpack.c.b16 %v6910, %v6909
    %v6962 = vpack.c.b16 %v6912, %v6911
    %v6963 = vpack.c.b16 %v6914, %v6913
    %v6964 = vpack.c.b16 %v6916, %v6915
    %v6965 = vpack.c.b16 %v6918, %v6917
    %v6966 = vpack.c.b16 %v6920, %v6919
    %v6967 = vpack.c.b16 %v6922, %v6921
    %v6968 = vpack.c.b16 %v6924, %v6923
    %v6969 = vpack.c.b16 %v6926, %v6925
    %v6970 = vpack.c.b16 %v6928, %v6927
    %v6971 = vpack.c.b16 %v6930, %v6929
    %v6972 = vpack.c.b16 %v6932, %v6931
    %v6973 = vpack.c.b16 %v6934, %v6933
    %v6974 = vpack.c.b16 %v6936, %v6935
    %v6975 = vpack.c.b16 %v6938, %v6937
    %v6976 = vpack.c.b16 %v6940, %v6939
    %v6977 = vpack.c.b16 %v6942, %v6941
    %v6978 = vpack.c.b16 %v6944, %v6943
    %v6979 = vpack.c.b16 %v6946, %v6945
    %v6980 = vpack.c.b16 %v6948, %v6947
    %v7013 = vunpack.c.l.b16 %v5672
    %v7014 = vunpack.c.l.b16 %v5675
    %v7015 = vunpack.c.l.b16 %v5679
    %v7016 = vunpack.c.l.b16 %v5682
    %v7017 = vunpack.c.l.b16 %v5686
    %v7018 = vunpack.c.l.b16 %v5689
    %v7019 = vunpack.c.l.b16 %v5693
    %v7020 = vunpack.c.l.b16 %v5696
    %v7021 = vunpack.c.l.b16 %v5700
    %v7022 = vunpack.c.l.b16 %v5703
    %v7023 = vunpack.c.l.b16 %v5707
    %v7024 = vunpack.c.l.b16 %v5710
    %v7025 = vunpack.c.l.b16 %v5714
    %v7026 = vunpack.c.l.b16 %v5717
    %v7027 = vunpack.c.l.b16 %v5721
    %v7028 = vunpack.c.l.b16 %v5724
    %v7029 = vunpack.c.l.b16 %v5728
    %v7030 = vunpack.c.l.b16 %v5731
    %v7031 = vunpack.c.l.b16 %v5735
    %v7032 = vunpack.c.l.b16 %v5738
    %v7033 = vunpack.c.l.b16 %v5742
    %v7034 = vunpack.c.l.b16 %v5745
    %v7035 = vunpack.c.l.b16 %v5749
    %v7036 = vunpack.c.l.b16 %v5752
    %v7037 = vunpack.c.l.b16 %v5756
    %v7038 = vunpack.c.l.b16 %v5759
    %v7039 = vunpack.c.l.b16 %v5763
    %v7040 = vunpack.c.l.b16 %v5766
    %v7041 = vunpack.c.l.b16 %v5770
    %v7042 = vunpack.c.l.b16 %v5773
    %v7043 = vunpack.c.l.b16 %v5777
    %v7044 = vunpack.c.l.b16 %v5780
    %v7045 = vunpack.c.l.b16 %v5784
    %v7046 = vunpack.c.l.b16 %v5787
    %v7047 = vunpack.c.l.b16 %v5791
    %v7048 = vunpack.c.l.b16 %v5794
    %v7049 = vunpack.c.l.b16 %v5798
    %v7050 = vunpack.c.l.b16 %v5801
    %v7051 = vunpack.c.l.b16 %v5805
    %v7052 = vunpack.c.l.b16 %v5808
    %v7053 = vunpack.c.l.b16 %v5812
    %v7054 = vunpack.c.l.b16 %v5815
    %v7055 = vunpack.c.l.b16 %v5819
    %v7056 = vunpack.c.l.b16 %v5822
    %v7057 = vunpack.c.l.b16 %v5826
    %v7058 = vunpack.c.l.b16 %v5829
    %v7059 = vunpack.c.l.b16 %v5833
    %v7060 = vunpack.c.l.b16 %v5836
    %v7061 = vunpack.c.l.b16 %v5840
    %v7062 = vunpack.c.l.b16 %v5843
    %v7063 = vunpack.c.l.b16 %v5847
    %v7064 = vunpack.c.l.b16 %v5850
    %v7065 = vunpack.c.l.b16 %v5854
    %v7066 = vunpack.c.l.b16 %v5857
    %v7067 = vunpack.c.l.b16 %v5861
    %v7068 = vunpack.c.l.b16 %v5864
    %v7069 = vunpack.c.l.b16 %v5868
    %v7070 = vunpack.c.l.b16 %v5871
    %v7071 = vunpack.c.l.b16 %v5875
    %v7072 = vunpack.c.l.b16 %v5878
    %v7073 = vunpack.c.l.b16 %v5882
    %v7074 = vunpack.c.l.b16 %v5885
    %v7075 = vunpack.c.l.b16 %v5889
    %v7076 = vunpack.c.l.b16 %v5892
    %v7077 = vpack.c.b16 %v7014, %v7013
    %v7078 = vpack.c.b16 %v7016, %v7015
    %v7079 = vpack.c.b16 %v7018, %v7017
    %v7080 = vpack.c.b16 %v7020, %v7019
    %v7081 = vpack.c.b16 %v7022, %v7021
    %v7082 = vpack.c.b16 %v7024, %v7023
    %v7083 = vpack.c.b16 %v7026, %v7025
    %v7084 = vpack.c.b16 %v7028, %v7027
    %v7085 = vpack.c.b16 %v7030, %v7029
    %v7086 = vpack.c.b16 %v7032, %v7031
    %v7087 = vpack.c.b16 %v7034, %v7033
    %v7088 = vpack.c.b16 %v7036, %v7035
    %v7089 = vpack.c.b16 %v7038, %v7037
    %v7090 = vpack.c.b16 %v7040, %v7039
    %v7091 = vpack.c.b16 %v7042, %v7041
    %v7092 = vpack.c.b16 %v7044, %v7043
    %v7093 = vpack.c.b16 %v7046, %v7045
    %v7094 = vpack.c.b16 %v7048, %v7047
    %v7095 = vpack.c.b16 %v7050, %v7049
    %v7096 = vpack.c.b16 %v7052, %v7051
    %v7097 = vpack.c.b16 %v7054, %v7053
    %v7098 = vpack.c.b16 %v7056, %v7055
    %v7099 = vpack.c.b16 %v7058, %v7057
    %v7100 = vpack.c.b16 %v7060, %v7059
    %v7101 = vpack.c.b16 %v7062, %v7061
    %v7102 = vpack.c.b16 %v7064, %v7063
    %v7103 = vpack.c.b16 %v7066, %v7065
    %v7104 = vpack.c.b16 %v7068, %v7067
    %v7105 = vpack.c.b16 %v7070, %v7069
    %v7106 = vpack.c.b16 %v7072, %v7071
    %v7107 = vpack.c.b16 %v7074, %v7073
    %v7108 = vpack.c.b16 %v7076, %v7075
    %v7141 = vld [vmem:[#allocation8] sm:$0xf]
    %v7142 = vld [vmem:[#allocation8 + $0x4] sm:$0xf]
    %v7143 = vld [vmem:[#allocation8 + $0x8] sm:$0xf]
    %v7144 = vld [vmem:[#allocation8 + $0xc] sm:$0xf]
    %v7145 = vld [vmem:[#allocation8 + $0x10] sm:$0xf]
    %v7146 = vld [vmem:[#allocation8 + $0x14] sm:$0xf]
    %v7147 = vld [vmem:[#allocation8 + $0x18] sm:$0xf]
    %v7148 = vld [vmem:[#allocation8 + $0x1c] sm:$0xf]
    %v7149 = vld [vmem:[#allocation8 + $0x20] sm:$0xf]
    %v7150 = vld [vmem:[#allocation8 + $0x24] sm:$0xf]
    %v7151 = vld [vmem:[#allocation8 + $0x28] sm:$0xf]
    %v7152 = vld [vmem:[#allocation8 + $0x2c] sm:$0xf]
    %v7153 = vld [vmem:[#allocation8 + $0x30] sm:$0xf]
    %v7154 = vld [vmem:[#allocation8 + $0x34] sm:$0xf]
    %v7155 = vld [vmem:[#allocation8 + $0x38] sm:$0xf]
    %v7156 = vld [vmem:[#allocation8 + $0x3c] sm:$0xf]
    %v7157 = vld [vmem:[#allocation8 + $0x40] sm:$0xf]
    %v7158 = vld [vmem:[#allocation8 + $0x44] sm:$0xf]
    %v7159 = vld [vmem:[#allocation8 + $0x48] sm:$0xf]
    %v7160 = vld [vmem:[#allocation8 + $0x4c] sm:$0xf]
    %v7161 = vld [vmem:[#allocation8 + $0x50] sm:$0xf]
    %v7162 = vld [vmem:[#allocation8 + $0x54] sm:$0xf]
    %v7163 = vld [vmem:[#allocation8 + $0x58] sm:$0xf]
    %v7164 = vld [vmem:[#allocation8 + $0x5c] sm:$0xf]
    %v7165 = vld [vmem:[#allocation8 + $0x60] sm:$0xf]
    %v7166 = vld [vmem:[#allocation8 + $0x64] sm:$0xf]
    %v7167 = vld [vmem:[#allocation8 + $0x68] sm:$0xf]
    %v7168 = vld [vmem:[#allocation8 + $0x6c] sm:$0xf]
    %v7169 = vld [vmem:[#allocation8 + $0x70] sm:$0xf]
    %v7170 = vld [vmem:[#allocation8 + $0x74] sm:$0xf]
    %v7171 = vld [vmem:[#allocation8 + $0x78] sm:$0xf]
    %v7172 = vld [vmem:[#allocation8 + $0x7c] sm:$0xf]
    %v7173 = vld [vmem:[#allocation8 + $0x80] sm:$0xf]
    %v7174 = vld [vmem:[#allocation8 + $0x84] sm:$0xf]
    %v7175 = vld [vmem:[#allocation8 + $0x88] sm:$0xf]
    %v7176 = vld [vmem:[#allocation8 + $0x8c] sm:$0xf]
    %v7177 = vld [vmem:[#allocation8 + $0x90] sm:$0xf]
    %v7178 = vld [vmem:[#allocation8 + $0x94] sm:$0xf]
    %v7179 = vld [vmem:[#allocation8 + $0x98] sm:$0xf]
    %v7180 = vld [vmem:[#allocation8 + $0x9c] sm:$0xf]
    %v7181 = vld [vmem:[#allocation8 + $0xa0] sm:$0xf]
    %v7182 = vld [vmem:[#allocation8 + $0xa4] sm:$0xf]
    %v7183 = vld [vmem:[#allocation8 + $0xa8] sm:$0xf]
    %v7184 = vld [vmem:[#allocation8 + $0xac] sm:$0xf]
    %v7185 = vld [vmem:[#allocation8 + $0xb0] sm:$0xf]
    %v7186 = vld [vmem:[#allocation8 + $0xb4] sm:$0xf]
    %v7187 = vld [vmem:[#allocation8 + $0xb8] sm:$0xf]
    %v7188 = vld [vmem:[#allocation8 + $0xbc] sm:$0xf]
    %v7189 = vld [vmem:[#allocation8 + $0xc0] sm:$0xf]
    %v7190 = vld [vmem:[#allocation8 + $0xc4] sm:$0xf]
    %v7191 = vld [vmem:[#allocation8 + $0xc8] sm:$0xf]
    %v7192 = vld [vmem:[#allocation8 + $0xcc] sm:$0xf]
    %v7193 = vld [vmem:[#allocation8 + $0xd0] sm:$0xf]
    %v7194 = vld [vmem:[#allocation8 + $0xd4] sm:$0xf]
    %v7195 = vld [vmem:[#allocation8 + $0xd8] sm:$0xf]
    %v7196 = vld [vmem:[#allocation8 + $0xdc] sm:$0xf]
    %v7197 = vld [vmem:[#allocation8 + $0xe0] sm:$0xf]
    %v7198 = vld [vmem:[#allocation8 + $0xe4] sm:$0xf]
    %v7199 = vld [vmem:[#allocation8 + $0xe8] sm:$0xf]
    %v7200 = vld [vmem:[#allocation8 + $0xec] sm:$0xf]
    %v7201 = vld [vmem:[#allocation8 + $0xf0] sm:$0xf]
    %v7202 = vld [vmem:[#allocation8 + $0xf4] sm:$0xf]
    %v7203 = vld [vmem:[#allocation8 + $0xf8] sm:$0xf]
    %v7204 = vld [vmem:[#allocation8 + $0xfc] sm:$0xf]
    %v7205 = vld [vmem:[#allocation8 + $0x100] sm:$0xf]
    %v7206 = vld [vmem:[#allocation8 + $0x104] sm:$0xf]
    %v7207 = vld [vmem:[#allocation8 + $0x108] sm:$0xf]
    %v7208 = vld [vmem:[#allocation8 + $0x10c] sm:$0xf]
    %v7209 = vld [vmem:[#allocation8 + $0x110] sm:$0xf]
    %v7210 = vld [vmem:[#allocation8 + $0x114] sm:$0xf]
    %v7211 = vld [vmem:[#allocation8 + $0x118] sm:$0xf]
    %v7212 = vld [vmem:[#allocation8 + $0x11c] sm:$0xf]
    %v7213 = vld [vmem:[#allocation8 + $0x120] sm:$0xf]
    %v7214 = vld [vmem:[#allocation8 + $0x124] sm:$0xf]
    %v7215 = vld [vmem:[#allocation8 + $0x128] sm:$0xf]
    %v7216 = vld [vmem:[#allocation8 + $0x12c] sm:$0xf]
    %v7217 = vld [vmem:[#allocation8 + $0x130] sm:$0xf]
    %v7218 = vld [vmem:[#allocation8 + $0x134] sm:$0xf]
    %v7219 = vld [vmem:[#allocation8 + $0x138] sm:$0xf]
    %v7220 = vld [vmem:[#allocation8 + $0x13c] sm:$0xf]
    %v7221 = vld [vmem:[#allocation8 + $0x140] sm:$0xf]
    %v7222 = vld [vmem:[#allocation8 + $0x144] sm:$0xf]
    %v7223 = vld [vmem:[#allocation8 + $0x148] sm:$0xf]
    %v7224 = vld [vmem:[#allocation8 + $0x14c] sm:$0xf]
    %v7225 = vld [vmem:[#allocation8 + $0x150] sm:$0xf]
    %v7226 = vld [vmem:[#allocation8 + $0x154] sm:$0xf]
    %v7227 = vld [vmem:[#allocation8 + $0x158] sm:$0xf]
    %v7228 = vld [vmem:[#allocation8 + $0x15c] sm:$0xf]
    %v7229 = vld [vmem:[#allocation8 + $0x160] sm:$0xf]
    %v7230 = vld [vmem:[#allocation8 + $0x164] sm:$0xf]
    %v7231 = vld [vmem:[#allocation8 + $0x168] sm:$0xf]
    %v7232 = vld [vmem:[#allocation8 + $0x16c] sm:$0xf]
    %v7233 = vld [vmem:[#allocation8 + $0x170] sm:$0xf]
    %v7234 = vld [vmem:[#allocation8 + $0x174] sm:$0xf]
    %v7235 = vld [vmem:[#allocation8 + $0x178] sm:$0xf]
    %v7236 = vld [vmem:[#allocation8 + $0x17c] sm:$0xf]
    %v7237 = vld [vmem:[#allocation8 + $0x180] sm:$0xf]
    %v7238 = vld [vmem:[#allocation8 + $0x184] sm:$0xf]
    %v7239 = vld [vmem:[#allocation8 + $0x188] sm:$0xf]
    %v7240 = vld [vmem:[#allocation8 + $0x18c] sm:$0xf]
    %v7241 = vld [vmem:[#allocation8 + $0x190] sm:$0xf]
    %v7242 = vld [vmem:[#allocation8 + $0x194] sm:$0xf]
    %v7243 = vld [vmem:[#allocation8 + $0x198] sm:$0xf]
    %v7244 = vld [vmem:[#allocation8 + $0x19c] sm:$0xf]
    %v7245 = vld [vmem:[#allocation8 + $0x1a0] sm:$0xf]
    %v7246 = vld [vmem:[#allocation8 + $0x1a4] sm:$0xf]
    %v7247 = vld [vmem:[#allocation8 + $0x1a8] sm:$0xf]
    %v7248 = vld [vmem:[#allocation8 + $0x1ac] sm:$0xf]
    %v7249 = vld [vmem:[#allocation8 + $0x1b0] sm:$0xf]
    %v7250 = vld [vmem:[#allocation8 + $0x1b4] sm:$0xf]
    %v7251 = vld [vmem:[#allocation8 + $0x1b8] sm:$0xf]
    %v7252 = vld [vmem:[#allocation8 + $0x1bc] sm:$0xf]
    %v7253 = vld [vmem:[#allocation8 + $0x1c0] sm:$0xf]
    %v7254 = vld [vmem:[#allocation8 + $0x1c4] sm:$0xf]
    %v7255 = vld [vmem:[#allocation8 + $0x1c8] sm:$0xf]
    %v7256 = vld [vmem:[#allocation8 + $0x1cc] sm:$0xf]
    %v7257 = vld [vmem:[#allocation8 + $0x1d0] sm:$0xf]
    %v7258 = vld [vmem:[#allocation8 + $0x1d4] sm:$0xf]
    %v7259 = vld [vmem:[#allocation8 + $0x1d8] sm:$0xf]
    %v7260 = vld [vmem:[#allocation8 + $0x1dc] sm:$0xf]
    %v7261 = vld [vmem:[#allocation8 + $0x1e0] sm:$0xf]
    %v7262 = vld [vmem:[#allocation8 + $0x1e4] sm:$0xf]
    %v7263 = vld [vmem:[#allocation8 + $0x1e8] sm:$0xf]
    %v7264 = vld [vmem:[#allocation8 + $0x1ec] sm:$0xf]
    %v7265 = vld [vmem:[#allocation8 + $0x1f0] sm:$0xf]
    %v7266 = vld [vmem:[#allocation8 + $0x1f4] sm:$0xf]
    %v7267 = vld [vmem:[#allocation8 + $0x1f8] sm:$0xf]
    %v7268 = vld [vmem:[#allocation8 + $0x1fc] sm:$0xf]
    %v7269 = vld [vmem:[#allocation8 + $0x200] sm:$0xf]
    %v7270 = vld [vmem:[#allocation8 + $0x204] sm:$0xf]
    %v7271 = vld [vmem:[#allocation8 + $0x208] sm:$0xf]
    %v7272 = vld [vmem:[#allocation8 + $0x20c] sm:$0xf]
    %v7273 = vld [vmem:[#allocation8 + $0x210] sm:$0xf]
    %v7274 = vld [vmem:[#allocation8 + $0x214] sm:$0xf]
    %v7275 = vld [vmem:[#allocation8 + $0x218] sm:$0xf]
    %v7276 = vld [vmem:[#allocation8 + $0x21c] sm:$0xf]
    %v7277 = vld [vmem:[#allocation8 + $0x220] sm:$0xf]
    %v7278 = vld [vmem:[#allocation8 + $0x224] sm:$0xf]
    %v7279 = vld [vmem:[#allocation8 + $0x228] sm:$0xf]
    %v7280 = vld [vmem:[#allocation8 + $0x22c] sm:$0xf]
    %v7281 = vld [vmem:[#allocation8 + $0x230] sm:$0xf]
    %v7282 = vld [vmem:[#allocation8 + $0x234] sm:$0xf]
    %v7283 = vld [vmem:[#allocation8 + $0x238] sm:$0xf]
    %v7284 = vld [vmem:[#allocation8 + $0x23c] sm:$0xf]
    %v7429 = vunpack.c.l.b16 %v7141
    %v7430 = vunpack.c.l.b16 %v7142
    %v7431 = vunpack.c.l.b16 %v7143
    %v7432 = vunpack.c.l.b16 %v7144
    %v7433 = vunpack.c.l.b16 %v7145
    %v7434 = vunpack.c.l.b16 %v7146
    %v7435 = vunpack.c.l.b16 %v7147
    %v7436 = vunpack.c.l.b16 %v7148
    %v7437 = vunpack.c.l.b16 %v7149
    %v7438 = vunpack.c.l.b16 %v7150
    %v7439 = vunpack.c.l.b16 %v7151
    %v7440 = vunpack.c.l.b16 %v7152
    %v7441 = vunpack.c.l.b16 %v7153
    %v7442 = vunpack.c.l.b16 %v7154
    %v7443 = vunpack.c.l.b16 %v7155
    %v7444 = vunpack.c.l.b16 %v7156
    %v7445 = vunpack.c.l.b16 %v7157
    %v7446 = vunpack.c.l.b16 %v7158
    %v7447 = vunpack.c.l.b16 %v7159
    %v7448 = vunpack.c.l.b16 %v7160
    %v7449 = vunpack.c.l.b16 %v7161
    %v7450 = vunpack.c.l.b16 %v7162
    %v7451 = vunpack.c.l.b16 %v7163
    %v7452 = vunpack.c.l.b16 %v7164
    %v7453 = vunpack.c.l.b16 %v7165
    %v7454 = vunpack.c.l.b16 %v7166
    %v7455 = vunpack.c.l.b16 %v7167
    %v7456 = vunpack.c.l.b16 %v7168
    %v7457 = vunpack.c.l.b16 %v7169
    %v7458 = vunpack.c.l.b16 %v7170
    %v7459 = vunpack.c.l.b16 %v7171
    %v7460 = vunpack.c.l.b16 %v7172
    %v7461 = vunpack.c.l.b16 %v7173
    %v7462 = vunpack.c.l.b16 %v7174
    %v7463 = vunpack.c.l.b16 %v7175
    %v7464 = vunpack.c.l.b16 %v7176
    %v7465 = vunpack.c.l.b16 %v7177
    %v7466 = vunpack.c.l.b16 %v7178
    %v7467 = vunpack.c.l.b16 %v7179
    %v7468 = vunpack.c.l.b16 %v7180
    %v7469 = vunpack.c.l.b16 %v7181
    %v7470 = vunpack.c.l.b16 %v7182
    %v7471 = vunpack.c.l.b16 %v7183
    %v7472 = vunpack.c.l.b16 %v7184
    %v7473 = vunpack.c.l.b16 %v7185
    %v7474 = vunpack.c.l.b16 %v7186
    %v7475 = vunpack.c.l.b16 %v7187
    %v7476 = vunpack.c.l.b16 %v7188
    %v7477 = vunpack.c.l.b16 %v7189
    %v7478 = vunpack.c.l.b16 %v7190
    %v7479 = vunpack.c.l.b16 %v7191
    %v7480 = vunpack.c.l.b16 %v7192
    %v7481 = vunpack.c.l.b16 %v7193
    %v7482 = vunpack.c.l.b16 %v7194
    %v7483 = vunpack.c.l.b16 %v7195
    %v7484 = vunpack.c.l.b16 %v7196
    %v7485 = vunpack.c.l.b16 %v7197
    %v7486 = vunpack.c.l.b16 %v7198
    %v7487 = vunpack.c.l.b16 %v7199
    %v7488 = vunpack.c.l.b16 %v7200
    %v7489 = vunpack.c.l.b16 %v7201
    %v7490 = vunpack.c.l.b16 %v7202
    %v7491 = vunpack.c.l.b16 %v7203
    %v7492 = vunpack.c.l.b16 %v7204
    %v7493 = vunpack.c.l.b16 %v7205
    %v7494 = vunpack.c.l.b16 %v7206
    %v7495 = vunpack.c.l.b16 %v7207
    %v7496 = vunpack.c.l.b16 %v7208
    %v7497 = vunpack.c.l.b16 %v7209
    %v7498 = vunpack.c.l.b16 %v7210
    %v7499 = vunpack.c.l.b16 %v7211
    %v7500 = vunpack.c.l.b16 %v7212
    %v7501 = vunpack.c.l.b16 %v7213
    %v7502 = vunpack.c.l.b16 %v7214
    %v7503 = vunpack.c.l.b16 %v7215
    %v7504 = vunpack.c.l.b16 %v7216
    %v7505 = vunpack.c.l.b16 %v7217
    %v7506 = vunpack.c.l.b16 %v7218
    %v7507 = vunpack.c.l.b16 %v7219
    %v7508 = vunpack.c.l.b16 %v7220
    %v7509 = vunpack.c.l.b16 %v7221
    %v7510 = vunpack.c.l.b16 %v7222
    %v7511 = vunpack.c.l.b16 %v7223
    %v7512 = vunpack.c.l.b16 %v7224
    %v7513 = vunpack.c.l.b16 %v7225
    %v7514 = vunpack.c.l.b16 %v7226
    %v7515 = vunpack.c.l.b16 %v7227
    %v7516 = vunpack.c.l.b16 %v7228
    %v7517 = vunpack.c.l.b16 %v7229
    %v7518 = vunpack.c.l.b16 %v7230
    %v7519 = vunpack.c.l.b16 %v7231
    %v7520 = vunpack.c.l.b16 %v7232
    %v7521 = vunpack.c.l.b16 %v7233
    %v7522 = vunpack.c.l.b16 %v7234
    %v7523 = vunpack.c.l.b16 %v7235
    %v7524 = vunpack.c.l.b16 %v7236
    %v7525 = vunpack.c.l.b16 %v7237
    %v7526 = vunpack.c.l.b16 %v7238
    %v7527 = vunpack.c.l.b16 %v7239
    %v7528 = vunpack.c.l.b16 %v7240
    %v7529 = vunpack.c.l.b16 %v7241
    %v7530 = vunpack.c.l.b16 %v7242
    %v7531 = vunpack.c.l.b16 %v7243
    %v7532 = vunpack.c.l.b16 %v7244
    %v7533 = vunpack.c.l.b16 %v7245
    %v7534 = vunpack.c.l.b16 %v7246
    %v7535 = vunpack.c.l.b16 %v7247
    %v7536 = vunpack.c.l.b16 %v7248
    %v7537 = vunpack.c.l.b16 %v7249
    %v7538 = vunpack.c.l.b16 %v7250
    %v7539 = vunpack.c.l.b16 %v7251
    %v7540 = vunpack.c.l.b16 %v7252
    %v7541 = vunpack.c.l.b16 %v7253
    %v7542 = vunpack.c.l.b16 %v7254
    %v7543 = vunpack.c.l.b16 %v7255
    %v7544 = vunpack.c.l.b16 %v7256
    %v7545 = vunpack.c.l.b16 %v7257
    %v7546 = vunpack.c.l.b16 %v7258
    %v7547 = vunpack.c.l.b16 %v7259
    %v7548 = vunpack.c.l.b16 %v7260
    %v7549 = vunpack.c.l.b16 %v7261
    %v7550 = vunpack.c.l.b16 %v7262
    %v7551 = vunpack.c.l.b16 %v7263
    %v7552 = vunpack.c.l.b16 %v7264
    %v7553 = vunpack.c.l.b16 %v7265
    %v7554 = vunpack.c.l.b16 %v7266
    %v7555 = vunpack.c.l.b16 %v7267
    %v7556 = vunpack.c.l.b16 %v7268
    %v7557 = vunpack.c.l.b16 %v7269
    %v7558 = vunpack.c.l.b16 %v7270
    %v7559 = vunpack.c.l.b16 %v7271
    %v7560 = vunpack.c.l.b16 %v7272
    %v7561 = vunpack.c.l.b16 %v7273
    %v7562 = vunpack.c.l.b16 %v7274
    %v7563 = vunpack.c.l.b16 %v7275
    %v7564 = vunpack.c.l.b16 %v7276
    %v7565 = vunpack.c.l.b16 %v7277
    %v7566 = vunpack.c.l.b16 %v7278
    %v7567 = vunpack.c.l.b16 %v7279
    %v7568 = vunpack.c.l.b16 %v7280
    %v7569 = vunpack.c.l.b16 %v7281
    %v7570 = vunpack.c.l.b16 %v7282
    %v7571 = vunpack.c.l.b16 %v7283
    %v7572 = vunpack.c.l.b16 %v7284
    %v7573 = vpack.c.b16 %v7430, %v7429
    %v7574 = vpack.c.b16 %v7432, %v7431
    %v7575 = vpack.c.b16 %v7434, %v7433
    %v7576 = vpack.c.b16 %v7436, %v7435
    %v7577 = vpack.c.b16 %v7438, %v7437
    %v7578 = vpack.c.b16 %v7440, %v7439
    %v7579 = vpack.c.b16 %v7442, %v7441
    %v7580 = vpack.c.b16 %v7444, %v7443
    %v7581 = vpack.c.b16 %v7446, %v7445
    %v7582 = vpack.c.b16 %v7448, %v7447
    %v7583 = vpack.c.b16 %v7450, %v7449
    %v7584 = vpack.c.b16 %v7452, %v7451
    %v7585 = vpack.c.b16 %v7454, %v7453
    %v7586 = vpack.c.b16 %v7456, %v7455
    %v7587 = vpack.c.b16 %v7458, %v7457
    %v7588 = vpack.c.b16 %v7460, %v7459
    %v7589 = vpack.c.b16 %v7462, %v7461
    %v7590 = vpack.c.b16 %v7464, %v7463
    %v7591 = vpack.c.b16 %v7466, %v7465
    %v7592 = vpack.c.b16 %v7468, %v7467
    %v7593 = vpack.c.b16 %v7470, %v7469
    %v7594 = vpack.c.b16 %v7472, %v7471
    %v7595 = vpack.c.b16 %v7474, %v7473
    %v7596 = vpack.c.b16 %v7476, %v7475
    %v7597 = vpack.c.b16 %v7478, %v7477
    %v7598 = vpack.c.b16 %v7480, %v7479
    %v7599 = vpack.c.b16 %v7482, %v7481
    %v7600 = vpack.c.b16 %v7484, %v7483
    %v7601 = vpack.c.b16 %v7486, %v7485
    %v7602 = vpack.c.b16 %v7488, %v7487
    %v7603 = vpack.c.b16 %v7490, %v7489
    %v7604 = vpack.c.b16 %v7492, %v7491
    %v7605 = vpack.c.b16 %v7494, %v7493
    %v7606 = vpack.c.b16 %v7496, %v7495
    %v7607 = vpack.c.b16 %v7498, %v7497
    %v7608 = vpack.c.b16 %v7500, %v7499
    %v7609 = vpack.c.b16 %v7502, %v7501
    %v7610 = vpack.c.b16 %v7504, %v7503
    %v7611 = vpack.c.b16 %v7506, %v7505
    %v7612 = vpack.c.b16 %v7508, %v7507
    %v7613 = vpack.c.b16 %v7510, %v7509
    %v7614 = vpack.c.b16 %v7512, %v7511
    %v7615 = vpack.c.b16 %v7514, %v7513
    %v7616 = vpack.c.b16 %v7516, %v7515
    %v7617 = vpack.c.b16 %v7518, %v7517
    %v7618 = vpack.c.b16 %v7520, %v7519
    %v7619 = vpack.c.b16 %v7522, %v7521
    %v7620 = vpack.c.b16 %v7524, %v7523
    %v7621 = vpack.c.b16 %v7526, %v7525
    %v7622 = vpack.c.b16 %v7528, %v7527
    %v7623 = vpack.c.b16 %v7530, %v7529
    %v7624 = vpack.c.b16 %v7532, %v7531
    %v7625 = vpack.c.b16 %v7534, %v7533
    %v7626 = vpack.c.b16 %v7536, %v7535
    %v7627 = vpack.c.b16 %v7538, %v7537
    %v7628 = vpack.c.b16 %v7540, %v7539
    %v7629 = vpack.c.b16 %v7542, %v7541
    %v7630 = vpack.c.b16 %v7544, %v7543
    %v7631 = vpack.c.b16 %v7546, %v7545
    %v7632 = vpack.c.b16 %v7548, %v7547
    %v7633 = vpack.c.b16 %v7550, %v7549
    %v7634 = vpack.c.b16 %v7552, %v7551
    %v7635 = vpack.c.b16 %v7554, %v7553
    %v7636 = vpack.c.b16 %v7556, %v7555
    %v7637 = vpack.c.b16 %v7558, %v7557
    %v7638 = vpack.c.b16 %v7560, %v7559
    %v7639 = vpack.c.b16 %v7562, %v7561
    %v7640 = vpack.c.b16 %v7564, %v7563
    %v7641 = vpack.c.b16 %v7566, %v7565
    %v7642 = vpack.c.b16 %v7568, %v7567
    %v7643 = vpack.c.b16 %v7570, %v7569
    %v7644 = vpack.c.b16 %v7572, %v7571
    %7717 = vmatpush.bf16.msra.mxu0 %v7580
    %7718 = vmatpush.bf16.msra.mxu0 %v7579
    %7719 = vmatpush.bf16.msra.mxu0 %v7578
    %7720 = vmatpush.bf16.msra.mxu0 %v7577
    %7721 = vmatpush.bf16.msra.mxu0 %v7576
    %7722 = vmatpush.bf16.msra.mxu0 %v7575
    %7723 = vmatpush.bf16.msra.mxu0 %v7574
    %7724 = vmatpush.bf16.msra.mxu0 %v7573
    %7725 = vmatmul.bf16.gmra.mxu0 %v5989
    %v7726 = vpop.f32.mrf.mxu0
    %v7727 = vadd.f32 0.0, %v7726
    %v7728 = vpop.f32.mrf.mxu0
    %v7729 = vadd.f32 0.0, %v7728
    %7730 = vmatmul.bf16.gmra.mxu0 %v5990
    %v7731 = vpop.f32.mrf.mxu0
    %v7732 = vadd.f32 0.0, %v7731
    %v7733 = vpop.f32.mrf.mxu0
    %v7734 = vadd.f32 0.0, %v7733
    %7735 = vmatmul.bf16.gmra.mxu0 %v5991
    %v7736 = vpop.f32.mrf.mxu0
    %v7737 = vadd.f32 0.0, %v7736
    %v7738 = vpop.f32.mrf.mxu0
    %v7739 = vadd.f32 0.0, %v7738
    %7740 = vmatmul.bf16.gmra.mxu0 %v5992
    %v7741 = vpop.f32.mrf.mxu0
    %v7742 = vadd.f32 0.0, %v7741
    %v7743 = vpop.f32.mrf.mxu0
    %v7744 = vadd.f32 0.0, %v7743
    %7745 = vmatmul.bf16.gmra.mxu0 %v5993
    %v7746 = vpop.f32.mrf.mxu0
    %v7747 = vadd.f32 0.0, %v7746
    %v7748 = vpop.f32.mrf.mxu0
    %v7749 = vadd.f32 0.0, %v7748
    %7750 = vmatmul.bf16.gmra.mxu0 %v5994
    %v7751 = vpop.f32.mrf.mxu0
    %v7752 = vadd.f32 0.0, %v7751
    %v7753 = vpop.f32.mrf.mxu0
    %v7754 = vadd.f32 0.0, %v7753
    %7755 = vmatmul.bf16.gmra.mxu0 %v5995
    %v7756 = vpop.f32.mrf.mxu0
    %v7757 = vadd.f32 0.0, %v7756
    %v7758 = vpop.f32.mrf.mxu0
    %v7759 = vadd.f32 0.0, %v7758
    %7760 = vmatmul.bf16.gmra.mxu0 %v5996
    %v7761 = vpop.f32.mrf.mxu0
    %v7762 = vadd.f32 0.0, %v7761
    %v7763 = vpop.f32.mrf.mxu0
    %v7764 = vadd.f32 0.0, %v7763
    %7765 = vmatmul.bf16.gmra.mxu0 %v5997
    %v7766 = vpop.f32.mrf.mxu0
    %v7767 = vadd.f32 0.0, %v7766
    %v7768 = vpop.f32.mrf.mxu0
    %v7769 = vadd.f32 0.0, %v7768
    %7770 = vmatmul.bf16.gmra.mxu0 %v5998
    %v7771 = vpop.f32.mrf.mxu0
    %v7772 = vadd.f32 0.0, %v7771
    %v7773 = vpop.f32.mrf.mxu0
    %v7774 = vadd.f32 0.0, %v7773
    %7775 = vmatmul.bf16.gmra.mxu0 %v5999
    %v7776 = vpop.f32.mrf.mxu0
    %v7777 = vadd.f32 0.0, %v7776
    %v7778 = vpop.f32.mrf.mxu0
    %v7779 = vadd.f32 0.0, %v7778
    %7780 = vmatmul.bf16.gmra.mxu0 %v6000
    %v7781 = vpop.f32.mrf.mxu0
    %v7782 = vadd.f32 0.0, %v7781
    %v7783 = vpop.f32.mrf.mxu0
    %v7784 = vadd.f32 0.0, %v7783
    %7785 = vmatmul.bf16.gmra.mxu0 %v6001
    %v7786 = vpop.f32.mrf.mxu0
    %v7787 = vadd.f32 0.0, %v7786
    %v7788 = vpop.f32.mrf.mxu0
    %v7789 = vadd.f32 0.0, %v7788
    %7790 = vmatmul.bf16.gmra.mxu0 %v6002
    %v7791 = vpop.f32.mrf.mxu0
    %v7792 = vadd.f32 0.0, %v7791
    %v7793 = vpop.f32.mrf.mxu0
    %v7794 = vadd.f32 0.0, %v7793
    %7795 = vmatmul.bf16.gmra.mxu0 %v6003
    %v7796 = vpop.f32.mrf.mxu0
    %v7797 = vadd.f32 0.0, %v7796
    %v7798 = vpop.f32.mrf.mxu0
    %v7799 = vadd.f32 0.0, %v7798
    %7800 = vmatmul.bf16.gmra.mxu0 %v6004
    %v7801 = vpop.f32.mrf.mxu0
    %v7802 = vadd.f32 0.0, %v7801
    %v7803 = vpop.f32.mrf.mxu0
    %v7804 = vadd.f32 0.0, %v7803
    %7805 = vmatmul.bf16.gmra.mxu0 %v6005
    %v7806 = vpop.f32.mrf.mxu0
    %v7807 = vadd.f32 0.0, %v7806
    %v7808 = vpop.f32.mrf.mxu0
    %v7809 = vadd.f32 0.0, %v7808
    %7810 = vmatmul.bf16.gmra.mxu0 %v6006
    %v7811 = vpop.f32.mrf.mxu0
    %v7812 = vadd.f32 0.0, %v7811
    %v7813 = vpop.f32.mrf.mxu0
    %v7814 = vadd.f32 0.0, %v7813
    %7815 = vmatmul.bf16.gmra.mxu0 %v6007
    %v7816 = vpop.f32.mrf.mxu0
    %v7817 = vadd.f32 0.0, %v7816
    %v7818 = vpop.f32.mrf.mxu0
    %v7819 = vadd.f32 0.0, %v7818
    %7820 = vmatmul.bf16.gmra.mxu0 %v6008
    %v7821 = vpop.f32.mrf.mxu0
    %v7822 = vadd.f32 0.0, %v7821
    %v7823 = vpop.f32.mrf.mxu0
    %v7824 = vadd.f32 0.0, %v7823
    %7825 = vmatmul.bf16.gmra.mxu0 %v6009
    %v7826 = vpop.f32.mrf.mxu0
    %v7827 = vadd.f32 0.0, %v7826
    %v7828 = vpop.f32.mrf.mxu0
    %v7829 = vadd.f32 0.0, %v7828
    %7830 = vmatmul.bf16.gmra.mxu0 %v6010
    %v7831 = vpop.f32.mrf.mxu0
    %v7832 = vadd.f32 0.0, %v7831
    %v7833 = vpop.f32.mrf.mxu0
    %v7834 = vadd.f32 0.0, %v7833
    %7835 = vmatmul.bf16.gmra.mxu0 %v6011
    %v7836 = vpop.f32.mrf.mxu0
    %v7837 = vadd.f32 0.0, %v7836
    %v7838 = vpop.f32.mrf.mxu0
    %v7839 = vadd.f32 0.0, %v7838
    %7840 = vmatmul.bf16.gmra.mxu0 %v6012
    %v7841 = vpop.f32.mrf.mxu0
    %v7842 = vadd.f32 0.0, %v7841
    %v7843 = vpop.f32.mrf.mxu0
    %v7844 = vadd.f32 0.0, %v7843
    %7845 = vmatmul.bf16.gmra.mxu0 %v6013
    %v7846 = vpop.f32.mrf.mxu0
    %v7847 = vadd.f32 0.0, %v7846
    %v7848 = vpop.f32.mrf.mxu0
    %v7849 = vadd.f32 0.0, %v7848
    %7850 = vmatmul.bf16.gmra.mxu0 %v6014
    %v7851 = vpop.f32.mrf.mxu0
    %v7852 = vadd.f32 0.0, %v7851
    %v7853 = vpop.f32.mrf.mxu0
    %v7854 = vadd.f32 0.0, %v7853
    %7855 = vmatmul.bf16.gmra.mxu0 %v6015
    %v7856 = vpop.f32.mrf.mxu0
    %v7857 = vadd.f32 0.0, %v7856
    %v7858 = vpop.f32.mrf.mxu0
    %v7859 = vadd.f32 0.0, %v7858
    %7860 = vmatmul.bf16.gmra.mxu0 %v6016
    %v7861 = vpop.f32.mrf.mxu0
    %v7862 = vadd.f32 0.0, %v7861
    %v7863 = vpop.f32.mrf.mxu0
    %v7864 = vadd.f32 0.0, %v7863
    %7865 = vmatmul.bf16.gmra.mxu0 %v6017
    %v7866 = vpop.f32.mrf.mxu0
    %v7867 = vadd.f32 0.0, %v7866
    %v7868 = vpop.f32.mrf.mxu0
    %v7869 = vadd.f32 0.0, %v7868
    %7870 = vmatmul.bf16.gmra.mxu0 %v6018
    %v7871 = vpop.f32.mrf.mxu0
    %v7872 = vadd.f32 0.0, %v7871
    %v7873 = vpop.f32.mrf.mxu0
    %v7874 = vadd.f32 0.0, %v7873
    %7875 = vmatmul.bf16.gmra.mxu0 %v6019
    %v7876 = vpop.f32.mrf.mxu0
    %v7877 = vadd.f32 0.0, %v7876
    %v7878 = vpop.f32.mrf.mxu0
    %v7879 = vadd.f32 0.0, %v7878
    %7880 = vmatmul.bf16.gmra.mxu0 %v6020
    %v7881 = vpop.f32.mrf.mxu0
    %v7882 = vadd.f32 0.0, %v7881
    %v7883 = vpop.f32.mrf.mxu0
    %v7884 = vadd.f32 0.0, %v7883
    %7885 = vdwg.mxu0
    %7886 = vmatpush.bf16.msra.mxu0 %v7588
    %7887 = vmatpush.bf16.msra.mxu0 %v7587
    %7888 = vmatpush.bf16.msra.mxu0 %v7586
    %7889 = vmatpush.bf16.msra.mxu0 %v7585
    %7890 = vmatpush.bf16.msra.mxu0 %v7584
    %7891 = vmatpush.bf16.msra.mxu0 %v7583
    %7892 = vmatpush.bf16.msra.mxu0 %v7582
    %7893 = vmatpush.bf16.msra.mxu0 %v7581
    %7894 = vmatmul.bf16.gmra.mxu0 %v6117
    %v7895 = vpop.f32.mrf.mxu0
    %v7896 = vadd.f32 %v7727, %v7895
    %v7897 = vpop.f32.mrf.mxu0
    %v7898 = vadd.f32 %v7729, %v7897
    %7899 = vmatmul.bf16.gmra.mxu0 %v6118
    %v7900 = vpop.f32.mrf.mxu0
    %v7901 = vadd.f32 %v7732, %v7900
    %v7902 = vpop.f32.mrf.mxu0
    %v7903 = vadd.f32 %v7734, %v7902
    %7904 = vmatmul.bf16.gmra.mxu0 %v6119
    %v7905 = vpop.f32.mrf.mxu0
    %v7906 = vadd.f32 %v7737, %v7905
    %v7907 = vpop.f32.mrf.mxu0
    %v7908 = vadd.f32 %v7739, %v7907
    %7909 = vmatmul.bf16.gmra.mxu0 %v6120
    %v7910 = vpop.f32.mrf.mxu0
    %v7911 = vadd.f32 %v7742, %v7910
    %v7912 = vpop.f32.mrf.mxu0
    %v7913 = vadd.f32 %v7744, %v7912
    %7914 = vmatmul.bf16.gmra.mxu0 %v6121
    %v7915 = vpop.f32.mrf.mxu0
    %v7916 = vadd.f32 %v7747, %v7915
    %v7917 = vpop.f32.mrf.mxu0
    %v7918 = vadd.f32 %v7749, %v7917
    %7919 = vmatmul.bf16.gmra.mxu0 %v6122
    %v7920 = vpop.f32.mrf.mxu0
    %v7921 = vadd.f32 %v7752, %v7920
    %v7922 = vpop.f32.mrf.mxu0
    %v7923 = vadd.f32 %v7754, %v7922
    %7924 = vmatmul.bf16.gmra.mxu0 %v6123
    %v7925 = vpop.f32.mrf.mxu0
    %v7926 = vadd.f32 %v7757, %v7925
    %v7927 = vpop.f32.mrf.mxu0
    %v7928 = vadd.f32 %v7759, %v7927
    %7929 = vmatmul.bf16.gmra.mxu0 %v6124
    %v7930 = vpop.f32.mrf.mxu0
    %v7931 = vadd.f32 %v7762, %v7930
    %v7932 = vpop.f32.mrf.mxu0
    %v7933 = vadd.f32 %v7764, %v7932
    %7934 = vmatmul.bf16.gmra.mxu0 %v6125
    %v7935 = vpop.f32.mrf.mxu0
    %v7936 = vadd.f32 %v7767, %v7935
    %v7937 = vpop.f32.mrf.mxu0
    %v7938 = vadd.f32 %v7769, %v7937
    %7939 = vmatmul.bf16.gmra.mxu0 %v6126
    %v7940 = vpop.f32.mrf.mxu0
    %v7941 = vadd.f32 %v7772, %v7940
    %v7942 = vpop.f32.mrf.mxu0
    %v7943 = vadd.f32 %v7774, %v7942
    %7944 = vmatmul.bf16.gmra.mxu0 %v6127
    %v7945 = vpop.f32.mrf.mxu0
    %v7946 = vadd.f32 %v7777, %v7945
    %v7947 = vpop.f32.mrf.mxu0
    %v7948 = vadd.f32 %v7779, %v7947
    %7949 = vmatmul.bf16.gmra.mxu0 %v6128
    %v7950 = vpop.f32.mrf.mxu0
    %v7951 = vadd.f32 %v7782, %v7950
    %v7952 = vpop.f32.mrf.mxu0
    %v7953 = vadd.f32 %v7784, %v7952
    %7954 = vmatmul.bf16.gmra.mxu0 %v6129
    %v7955 = vpop.f32.mrf.mxu0
    %v7956 = vadd.f32 %v7787, %v7955
    %v7957 = vpop.f32.mrf.mxu0
    %v7958 = vadd.f32 %v7789, %v7957
    %7959 = vmatmul.bf16.gmra.mxu0 %v6130
    %v7960 = vpop.f32.mrf.mxu0
    %v7961 = vadd.f32 %v7792, %v7960
    %v7962 = vpop.f32.mrf.mxu0
    %v7963 = vadd.f32 %v7794, %v7962
    %7964 = vmatmul.bf16.gmra.mxu0 %v6131
    %v7965 = vpop.f32.mrf.mxu0
    %v7966 = vadd.f32 %v7797, %v7965
    %v7967 = vpop.f32.mrf.mxu0
    %v7968 = vadd.f32 %v7799, %v7967
    %7969 = vmatmul.bf16.gmra.mxu0 %v6132
    %v7970 = vpop.f32.mrf.mxu0
    %v7971 = vadd.f32 %v7802, %v7970
    %v7972 = vpop.f32.mrf.mxu0
    %v7973 = vadd.f32 %v7804, %v7972
    %7974 = vmatmul.bf16.gmra.mxu0 %v6133
    %v7975 = vpop.f32.mrf.mxu0
    %v7976 = vadd.f32 %v7807, %v7975
    %v7977 = vpop.f32.mrf.mxu0
    %v7978 = vadd.f32 %v7809, %v7977
    %7979 = vmatmul.bf16.gmra.mxu0 %v6134
    %v7980 = vpop.f32.mrf.mxu0
    %v7981 = vadd.f32 %v7812, %v7980
    %v7982 = vpop.f32.mrf.mxu0
    %v7983 = vadd.f32 %v7814, %v7982
    %7984 = vmatmul.bf16.gmra.mxu0 %v6135
    %v7985 = vpop.f32.mrf.mxu0
    %v7986 = vadd.f32 %v7817, %v7985
    %v7987 = vpop.f32.mrf.mxu0
    %v7988 = vadd.f32 %v7819, %v7987
    %7989 = vmatmul.bf16.gmra.mxu0 %v6136
    %v7990 = vpop.f32.mrf.mxu0
    %v7991 = vadd.f32 %v7822, %v7990
    %v7992 = vpop.f32.mrf.mxu0
    %v7993 = vadd.f32 %v7824, %v7992
    %7994 = vmatmul.bf16.gmra.mxu0 %v6137
    %v7995 = vpop.f32.mrf.mxu0
    %v7996 = vadd.f32 %v7827, %v7995
    %v7997 = vpop.f32.mrf.mxu0
    %v7998 = vadd.f32 %v7829, %v7997
    %7999 = vmatmul.bf16.gmra.mxu0 %v6138
    %v8000 = vpop.f32.mrf.mxu0
    %v8001 = vadd.f32 %v7832, %v8000
    %v8002 = vpop.f32.mrf.mxu0
    %v8003 = vadd.f32 %v7834, %v8002
    %8004 = vmatmul.bf16.gmra.mxu0 %v6139
    %v8005 = vpop.f32.mrf.mxu0
    %v8006 = vadd.f32 %v7837, %v8005
    %v8007 = vpop.f32.mrf.mxu0
    %v8008 = vadd.f32 %v7839, %v8007
    %8009 = vmatmul.bf16.gmra.mxu0 %v6140
    %v8010 = vpop.f32.mrf.mxu0
    %v8011 = vadd.f32 %v7842, %v8010
    %v8012 = vpop.f32.mrf.mxu0
    %v8013 = vadd.f32 %v7844, %v8012
    %8014 = vmatmul.bf16.gmra.mxu0 %v6141
    %v8015 = vpop.f32.mrf.mxu0
    %v8016 = vadd.f32 %v7847, %v8015
    %v8017 = vpop.f32.mrf.mxu0
    %v8018 = vadd.f32 %v7849, %v8017
    %8019 = vmatmul.bf16.gmra.mxu0 %v6142
    %v8020 = vpop.f32.mrf.mxu0
    %v8021 = vadd.f32 %v7852, %v8020
    %v8022 = vpop.f32.mrf.mxu0
    %v8023 = vadd.f32 %v7854, %v8022
    %8024 = vmatmul.bf16.gmra.mxu0 %v6143
    %v8025 = vpop.f32.mrf.mxu0
    %v8026 = vadd.f32 %v7857, %v8025
    %v8027 = vpop.f32.mrf.mxu0
    %v8028 = vadd.f32 %v7859, %v8027
    %8029 = vmatmul.bf16.gmra.mxu0 %v6144
    %v8030 = vpop.f32.mrf.mxu0
    %v8031 = vadd.f32 %v7862, %v8030
    %v8032 = vpop.f32.mrf.mxu0
    %v8033 = vadd.f32 %v7864, %v8032
    %8034 = vmatmul.bf16.gmra.mxu0 %v6145
    %v8035 = vpop.f32.mrf.mxu0
    %v8036 = vadd.f32 %v7867, %v8035
    %v8037 = vpop.f32.mrf.mxu0
    %v8038 = vadd.f32 %v7869, %v8037
    %8039 = vmatmul.bf16.gmra.mxu0 %v6146
    %v8040 = vpop.f32.mrf.mxu0
    %v8041 = vadd.f32 %v7872, %v8040
    %v8042 = vpop.f32.mrf.mxu0
    %v8043 = vadd.f32 %v7874, %v8042
    %8044 = vmatmul.bf16.gmra.mxu0 %v6147
    %v8045 = vpop.f32.mrf.mxu0
    %v8046 = vadd.f32 %v7877, %v8045
    %v8047 = vpop.f32.mrf.mxu0
    %v8048 = vadd.f32 %v7879, %v8047
    %8049 = vmatmul.bf16.gmra.mxu0 %v6148
    %v8050 = vpop.f32.mrf.mxu0
    %v8051 = vadd.f32 %v7882, %v8050
    %v8052 = vpop.f32.mrf.mxu0
    %v8053 = vadd.f32 %v7884, %v8052
    %8054 = vdwg.mxu0
    %8055 = vmatpush.bf16.msra.mxu0 %v7596
    %8056 = vmatpush.bf16.msra.mxu0 %v7595
    %8057 = vmatpush.bf16.msra.mxu0 %v7594
    %8058 = vmatpush.bf16.msra.mxu0 %v7593
    %8059 = vmatpush.bf16.msra.mxu0 %v7592
    %8060 = vmatpush.bf16.msra.mxu0 %v7591
    %8061 = vmatpush.bf16.msra.mxu0 %v7590
    %8062 = vmatpush.bf16.msra.mxu0 %v7589
    %8063 = vmatmul.bf16.gmra.mxu0 %v6245
    %v8064 = vpop.f32.mrf.mxu0
    %v8065 = vadd.f32 %v7896, %v8064
    %v8066 = vpop.f32.mrf.mxu0
    %v8067 = vadd.f32 %v7898, %v8066
    %8068 = vmatmul.bf16.gmra.mxu0 %v6246
    %v8069 = vpop.f32.mrf.mxu0
    %v8070 = vadd.f32 %v7901, %v8069
    %v8071 = vpop.f32.mrf.mxu0
    %v8072 = vadd.f32 %v7903, %v8071
    %8073 = vmatmul.bf16.gmra.mxu0 %v6247
    %v8074 = vpop.f32.mrf.mxu0
    %v8075 = vadd.f32 %v7906, %v8074
    %v8076 = vpop.f32.mrf.mxu0
    %v8077 = vadd.f32 %v7908, %v8076
    %8078 = vmatmul.bf16.gmra.mxu0 %v6248
    %v8079 = vpop.f32.mrf.mxu0
    %v8080 = vadd.f32 %v7911, %v8079
    %v8081 = vpop.f32.mrf.mxu0
    %v8082 = vadd.f32 %v7913, %v8081
    %8083 = vmatmul.bf16.gmra.mxu0 %v6249
    %v8084 = vpop.f32.mrf.mxu0
    %v8085 = vadd.f32 %v7916, %v8084
    %v8086 = vpop.f32.mrf.mxu0
    %v8087 = vadd.f32 %v7918, %v8086
    %8088 = vmatmul.bf16.gmra.mxu0 %v6250
    %v8089 = vpop.f32.mrf.mxu0
    %v8090 = vadd.f32 %v7921, %v8089
    %v8091 = vpop.f32.mrf.mxu0
    %v8092 = vadd.f32 %v7923, %v8091
    %8093 = vmatmul.bf16.gmra.mxu0 %v6251
    %v8094 = vpop.f32.mrf.mxu0
    %v8095 = vadd.f32 %v7926, %v8094
    %v8096 = vpop.f32.mrf.mxu0
    %v8097 = vadd.f32 %v7928, %v8096
    %8098 = vmatmul.bf16.gmra.mxu0 %v6252
    %v8099 = vpop.f32.mrf.mxu0
    %v8100 = vadd.f32 %v7931, %v8099
    %v8101 = vpop.f32.mrf.mxu0
    %v8102 = vadd.f32 %v7933, %v8101
    %8103 = vmatmul.bf16.gmra.mxu0 %v6253
    %v8104 = vpop.f32.mrf.mxu0
    %v8105 = vadd.f32 %v7936, %v8104
    %v8106 = vpop.f32.mrf.mxu0
    %v8107 = vadd.f32 %v7938, %v8106
    %8108 = vmatmul.bf16.gmra.mxu0 %v6254
    %v8109 = vpop.f32.mrf.mxu0
    %v8110 = vadd.f32 %v7941, %v8109
    %v8111 = vpop.f32.mrf.mxu0
    %v8112 = vadd.f32 %v7943, %v8111
    %8113 = vmatmul.bf16.gmra.mxu0 %v6255
    %v8114 = vpop.f32.mrf.mxu0
    %v8115 = vadd.f32 %v7946, %v8114
    %v8116 = vpop.f32.mrf.mxu0
    %v8117 = vadd.f32 %v7948, %v8116
    %8118 = vmatmul.bf16.gmra.mxu0 %v6256
    %v8119 = vpop.f32.mrf.mxu0
    %v8120 = vadd.f32 %v7951, %v8119
    %v8121 = vpop.f32.mrf.mxu0
    %v8122 = vadd.f32 %v7953, %v8121
    %8123 = vmatmul.bf16.gmra.mxu0 %v6257
    %v8124 = vpop.f32.mrf.mxu0
    %v8125 = vadd.f32 %v7956, %v8124
    %v8126 = vpop.f32.mrf.mxu0
    %v8127 = vadd.f32 %v7958, %v8126
    %8128 = vmatmul.bf16.gmra.mxu0 %v6258
    %v8129 = vpop.f32.mrf.mxu0
    %v8130 = vadd.f32 %v7961, %v8129
    %v8131 = vpop.f32.mrf.mxu0
    %v8132 = vadd.f32 %v7963, %v8131
    %8133 = vmatmul.bf16.gmra.mxu0 %v6259
    %v8134 = vpop.f32.mrf.mxu0
    %v8135 = vadd.f32 %v7966, %v8134
    %v8136 = vpop.f32.mrf.mxu0
    %v8137 = vadd.f32 %v7968, %v8136
    %8138 = vmatmul.bf16.gmra.mxu0 %v6260
    %v8139 = vpop.f32.mrf.mxu0
    %v8140 = vadd.f32 %v7971, %v8139
    %v8141 = vpop.f32.mrf.mxu0
    %v8142 = vadd.f32 %v7973, %v8141
    %8143 = vmatmul.bf16.gmra.mxu0 %v6261
    %v8144 = vpop.f32.mrf.mxu0
    %v8145 = vadd.f32 %v7976, %v8144
    %v8146 = vpop.f32.mrf.mxu0
    %v8147 = vadd.f32 %v7978, %v8146
    %8148 = vmatmul.bf16.gmra.mxu0 %v6262
    %v8149 = vpop.f32.mrf.mxu0
    %v8150 = vadd.f32 %v7981, %v8149
    %v8151 = vpop.f32.mrf.mxu0
    %v8152 = vadd.f32 %v7983, %v8151
    %8153 = vmatmul.bf16.gmra.mxu0 %v6263
    %v8154 = vpop.f32.mrf.mxu0
    %v8155 = vadd.f32 %v7986, %v8154
    %v8156 = vpop.f32.mrf.mxu0
    %v8157 = vadd.f32 %v7988, %v8156
    %8158 = vmatmul.bf16.gmra.mxu0 %v6264
    %v8159 = vpop.f32.mrf.mxu0
    %v8160 = vadd.f32 %v7991, %v8159
    %v8161 = vpop.f32.mrf.mxu0
    %v8162 = vadd.f32 %v7993, %v8161
    %8163 = vmatmul.bf16.gmra.mxu0 %v6265
    %v8164 = vpop.f32.mrf.mxu0
    %v8165 = vadd.f32 %v7996, %v8164
    %v8166 = vpop.f32.mrf.mxu0
    %v8167 = vadd.f32 %v7998, %v8166
    %8168 = vmatmul.bf16.gmra.mxu0 %v6266
    %v8169 = vpop.f32.mrf.mxu0
    %v8170 = vadd.f32 %v8001, %v8169
    %v8171 = vpop.f32.mrf.mxu0
    %v8172 = vadd.f32 %v8003, %v8171
    %8173 = vmatmul.bf16.gmra.mxu0 %v6267
    %v8174 = vpop.f32.mrf.mxu0
    %v8175 = vadd.f32 %v8006, %v8174
    %v8176 = vpop.f32.mrf.mxu0
    %v8177 = vadd.f32 %v8008, %v8176
    %8178 = vmatmul.bf16.gmra.mxu0 %v6268
    %v8179 = vpop.f32.mrf.mxu0
    %v8180 = vadd.f32 %v8011, %v8179
    %v8181 = vpop.f32.mrf.mxu0
    %v8182 = vadd.f32 %v8013, %v8181
    %8183 = vmatmul.bf16.gmra.mxu0 %v6269
    %v8184 = vpop.f32.mrf.mxu0
    %v8185 = vadd.f32 %v8016, %v8184
    %v8186 = vpop.f32.mrf.mxu0
    %v8187 = vadd.f32 %v8018, %v8186
    %8188 = vmatmul.bf16.gmra.mxu0 %v6270
    %v8189 = vpop.f32.mrf.mxu0
    %v8190 = vadd.f32 %v8021, %v8189
    %v8191 = vpop.f32.mrf.mxu0
    %v8192 = vadd.f32 %v8023, %v8191
    %8193 = vmatmul.bf16.gmra.mxu0 %v6271
    %v8194 = vpop.f32.mrf.mxu0
    %v8195 = vadd.f32 %v8026, %v8194
    %v8196 = vpop.f32.mrf.mxu0
    %v8197 = vadd.f32 %v8028, %v8196
    %8198 = vmatmul.bf16.gmra.mxu0 %v6272
    %v8199 = vpop.f32.mrf.mxu0
    %v8200 = vadd.f32 %v8031, %v8199
    %v8201 = vpop.f32.mrf.mxu0
    %v8202 = vadd.f32 %v8033, %v8201
    %8203 = vmatmul.bf16.gmra.mxu0 %v6273
    %v8204 = vpop.f32.mrf.mxu0
    %v8205 = vadd.f32 %v8036, %v8204
    %v8206 = vpop.f32.mrf.mxu0
    %v8207 = vadd.f32 %v8038, %v8206
    %8208 = vmatmul.bf16.gmra.mxu0 %v6274
    %v8209 = vpop.f32.mrf.mxu0
    %v8210 = vadd.f32 %v8041, %v8209
    %v8211 = vpop.f32.mrf.mxu0
    %v8212 = vadd.f32 %v8043, %v8211
    %8213 = vmatmul.bf16.gmra.mxu0 %v6275
    %v8214 = vpop.f32.mrf.mxu0
    %v8215 = vadd.f32 %v8046, %v8214
    %v8216 = vpop.f32.mrf.mxu0
    %v8217 = vadd.f32 %v8048, %v8216
    %8218 = vmatmul.bf16.gmra.mxu0 %v6276
    %v8219 = vpop.f32.mrf.mxu0
    %v8220 = vadd.f32 %v8051, %v8219
    %v8221 = vpop.f32.mrf.mxu0
    %v8222 = vadd.f32 %v8053, %v8221
    %8223 = vdwg.mxu0
    %8224 = vmatpush.bf16.msra.mxu0 %v7604
    %8225 = vmatpush.bf16.msra.mxu0 %v7603
    %8226 = vmatpush.bf16.msra.mxu0 %v7602
    %8227 = vmatpush.bf16.msra.mxu0 %v7601
    %8228 = vmatpush.bf16.msra.mxu0 %v7600
    %8229 = vmatpush.bf16.msra.mxu0 %v7599
    %8230 = vmatpush.bf16.msra.mxu0 %v7598
    %8231 = vmatpush.bf16.msra.mxu0 %v7597
    %8232 = vmatmul.bf16.gmra.mxu0 %v6405
    %v8233 = vpop.f32.mrf.mxu0
    %v8234 = vadd.f32 %v8065, %v8233
    %v8235 = vpop.f32.mrf.mxu0
    %v8236 = vadd.f32 %v8067, %v8235
    %8237 = vmatmul.bf16.gmra.mxu0 %v6406
    %v8238 = vpop.f32.mrf.mxu0
    %v8239 = vadd.f32 %v8070, %v8238
    %v8240 = vpop.f32.mrf.mxu0
    %v8241 = vadd.f32 %v8072, %v8240
    %8242 = vmatmul.bf16.gmra.mxu0 %v6407
    %v8243 = vpop.f32.mrf.mxu0
    %v8244 = vadd.f32 %v8075, %v8243
    %v8245 = vpop.f32.mrf.mxu0
    %v8246 = vadd.f32 %v8077, %v8245
    %8247 = vmatmul.bf16.gmra.mxu0 %v6408
    %v8248 = vpop.f32.mrf.mxu0
    %v8249 = vadd.f32 %v8080, %v8248
    %v8250 = vpop.f32.mrf.mxu0
    %v8251 = vadd.f32 %v8082, %v8250
    %8252 = vmatmul.bf16.gmra.mxu0 %v6409
    %v8253 = vpop.f32.mrf.mxu0
    %v8254 = vadd.f32 %v8085, %v8253
    %v8255 = vpop.f32.mrf.mxu0
    %v8256 = vadd.f32 %v8087, %v8255
    %8257 = vmatmul.bf16.gmra.mxu0 %v6410
    %v8258 = vpop.f32.mrf.mxu0
    %v8259 = vadd.f32 %v8090, %v8258
    %v8260 = vpop.f32.mrf.mxu0
    %v8261 = vadd.f32 %v8092, %v8260
    %8262 = vmatmul.bf16.gmra.mxu0 %v6411
    %v8263 = vpop.f32.mrf.mxu0
    %v8264 = vadd.f32 %v8095, %v8263
    %v8265 = vpop.f32.mrf.mxu0
    %v8266 = vadd.f32 %v8097, %v8265
    %8267 = vmatmul.bf16.gmra.mxu0 %v6412
    %v8268 = vpop.f32.mrf.mxu0
    %v8269 = vadd.f32 %v8100, %v8268
    %v8270 = vpop.f32.mrf.mxu0
    %v8271 = vadd.f32 %v8102, %v8270
    %8272 = vmatmul.bf16.gmra.mxu0 %v6413
    %v8273 = vpop.f32.mrf.mxu0
    %v8274 = vadd.f32 %v8105, %v8273
    %v8275 = vpop.f32.mrf.mxu0
    %v8276 = vadd.f32 %v8107, %v8275
    %8277 = vmatmul.bf16.gmra.mxu0 %v6414
    %v8278 = vpop.f32.mrf.mxu0
    %v8279 = vadd.f32 %v8110, %v8278
    %v8280 = vpop.f32.mrf.mxu0
    %v8281 = vadd.f32 %v8112, %v8280
    %8282 = vmatmul.bf16.gmra.mxu0 %v6415
    %v8283 = vpop.f32.mrf.mxu0
    %v8284 = vadd.f32 %v8115, %v8283
    %v8285 = vpop.f32.mrf.mxu0
    %v8286 = vadd.f32 %v8117, %v8285
    %8287 = vmatmul.bf16.gmra.mxu0 %v6416
    %v8288 = vpop.f32.mrf.mxu0
    %v8289 = vadd.f32 %v8120, %v8288
    %v8290 = vpop.f32.mrf.mxu0
    %v8291 = vadd.f32 %v8122, %v8290
    %8292 = vmatmul.bf16.gmra.mxu0 %v6417
    %v8293 = vpop.f32.mrf.mxu0
    %v8294 = vadd.f32 %v8125, %v8293
    %v8295 = vpop.f32.mrf.mxu0
    %v8296 = vadd.f32 %v8127, %v8295
    %8297 = vmatmul.bf16.gmra.mxu0 %v6418
    %v8298 = vpop.f32.mrf.mxu0
    %v8299 = vadd.f32 %v8130, %v8298
    %v8300 = vpop.f32.mrf.mxu0
    %v8301 = vadd.f32 %v8132, %v8300
    %8302 = vmatmul.bf16.gmra.mxu0 %v6419
    %v8303 = vpop.f32.mrf.mxu0
    %v8304 = vadd.f32 %v8135, %v8303
    %v8305 = vpop.f32.mrf.mxu0
    %v8306 = vadd.f32 %v8137, %v8305
    %8307 = vmatmul.bf16.gmra.mxu0 %v6420
    %v8308 = vpop.f32.mrf.mxu0
    %v8309 = vadd.f32 %v8140, %v8308
    %v8310 = vpop.f32.mrf.mxu0
    %v8311 = vadd.f32 %v8142, %v8310
    %8312 = vmatmul.bf16.gmra.mxu0 %v6421
    %v8313 = vpop.f32.mrf.mxu0
    %v8314 = vadd.f32 %v8145, %v8313
    %v8315 = vpop.f32.mrf.mxu0
    %v8316 = vadd.f32 %v8147, %v8315
    %8317 = vmatmul.bf16.gmra.mxu0 %v6422
    %v8318 = vpop.f32.mrf.mxu0
    %v8319 = vadd.f32 %v8150, %v8318
    %v8320 = vpop.f32.mrf.mxu0
    %v8321 = vadd.f32 %v8152, %v8320
    %8322 = vmatmul.bf16.gmra.mxu0 %v6423
    %v8323 = vpop.f32.mrf.mxu0
    %v8324 = vadd.f32 %v8155, %v8323
    %v8325 = vpop.f32.mrf.mxu0
    %v8326 = vadd.f32 %v8157, %v8325
    %8327 = vmatmul.bf16.gmra.mxu0 %v6424
    %v8328 = vpop.f32.mrf.mxu0
    %v8329 = vadd.f32 %v8160, %v8328
    %v8330 = vpop.f32.mrf.mxu0
    %v8331 = vadd.f32 %v8162, %v8330
    %8332 = vmatmul.bf16.gmra.mxu0 %v6425
    %v8333 = vpop.f32.mrf.mxu0
    %v8334 = vadd.f32 %v8165, %v8333
    %v8335 = vpop.f32.mrf.mxu0
    %v8336 = vadd.f32 %v8167, %v8335
    %8337 = vmatmul.bf16.gmra.mxu0 %v6426
    %v8338 = vpop.f32.mrf.mxu0
    %v8339 = vadd.f32 %v8170, %v8338
    %v8340 = vpop.f32.mrf.mxu0
    %v8341 = vadd.f32 %v8172, %v8340
    %8342 = vmatmul.bf16.gmra.mxu0 %v6427
    %v8343 = vpop.f32.mrf.mxu0
    %v8344 = vadd.f32 %v8175, %v8343
    %v8345 = vpop.f32.mrf.mxu0
    %v8346 = vadd.f32 %v8177, %v8345
    %8347 = vmatmul.bf16.gmra.mxu0 %v6428
    %v8348 = vpop.f32.mrf.mxu0
    %v8349 = vadd.f32 %v8180, %v8348
    %v8350 = vpop.f32.mrf.mxu0
    %v8351 = vadd.f32 %v8182, %v8350
    %8352 = vmatmul.bf16.gmra.mxu0 %v6429
    %v8353 = vpop.f32.mrf.mxu0
    %v8354 = vadd.f32 %v8185, %v8353
    %v8355 = vpop.f32.mrf.mxu0
    %v8356 = vadd.f32 %v8187, %v8355
    %8357 = vmatmul.bf16.gmra.mxu0 %v6430
    %v8358 = vpop.f32.mrf.mxu0
    %v8359 = vadd.f32 %v8190, %v8358
    %v8360 = vpop.f32.mrf.mxu0
    %v8361 = vadd.f32 %v8192, %v8360
    %8362 = vmatmul.bf16.gmra.mxu0 %v6431
    %v8363 = vpop.f32.mrf.mxu0
    %v8364 = vadd.f32 %v8195, %v8363
    %v8365 = vpop.f32.mrf.mxu0
    %v8366 = vadd.f32 %v8197, %v8365
    %8367 = vmatmul.bf16.gmra.mxu0 %v6432
    %v8368 = vpop.f32.mrf.mxu0
    %v8369 = vadd.f32 %v8200, %v8368
    %v8370 = vpop.f32.mrf.mxu0
    %v8371 = vadd.f32 %v8202, %v8370
    %8372 = vmatmul.bf16.gmra.mxu0 %v6433
    %v8373 = vpop.f32.mrf.mxu0
    %v8374 = vadd.f32 %v8205, %v8373
    %v8375 = vpop.f32.mrf.mxu0
    %v8376 = vadd.f32 %v8207, %v8375
    %8377 = vmatmul.bf16.gmra.mxu0 %v6434
    %v8378 = vpop.f32.mrf.mxu0
    %v8379 = vadd.f32 %v8210, %v8378
    %v8380 = vpop.f32.mrf.mxu0
    %v8381 = vadd.f32 %v8212, %v8380
    %8382 = vmatmul.bf16.gmra.mxu0 %v6435
    %v8383 = vpop.f32.mrf.mxu0
    %v8384 = vadd.f32 %v8215, %v8383
    %v8385 = vpop.f32.mrf.mxu0
    %v8386 = vadd.f32 %v8217, %v8385
    %8387 = vmatmul.bf16.gmra.mxu0 %v6436
    %v8388 = vpop.f32.mrf.mxu0
    %v8389 = vadd.f32 %v8220, %v8388
    %v8390 = vpop.f32.mrf.mxu0
    %v8391 = vadd.f32 %v8222, %v8390
    %8392 = vdwg.mxu0
    %8393 = vmatpush.bf16.msra.mxu0 %v7612
    %8394 = vmatpush.bf16.msra.mxu0 %v7611
    %8395 = vmatpush.bf16.msra.mxu0 %v7610
    %8396 = vmatpush.bf16.msra.mxu0 %v7609
    %8397 = vmatpush.bf16.msra.mxu0 %v7608
    %8398 = vmatpush.bf16.msra.mxu0 %v7607
    %8399 = vmatpush.bf16.msra.mxu0 %v7606
    %8400 = vmatpush.bf16.msra.mxu0 %v7605
    %8401 = vmatmul.bf16.gmra.mxu0 %v6533
    %v8402 = vpop.f32.mrf.mxu0
    %v8403 = vadd.f32 %v8234, %v8402
    %v8404 = vpop.f32.mrf.mxu0
    %v8405 = vadd.f32 %v8236, %v8404
    %8406 = vmatmul.bf16.gmra.mxu0 %v6534
    %v8407 = vpop.f32.mrf.mxu0
    %v8408 = vadd.f32 %v8239, %v8407
    %v8409 = vpop.f32.mrf.mxu0
    %v8410 = vadd.f32 %v8241, %v8409
    %8411 = vmatmul.bf16.gmra.mxu0 %v6535
    %v8412 = vpop.f32.mrf.mxu0
    %v8413 = vadd.f32 %v8244, %v8412
    %v8414 = vpop.f32.mrf.mxu0
    %v8415 = vadd.f32 %v8246, %v8414
    %8416 = vmatmul.bf16.gmra.mxu0 %v6536
    %v8417 = vpop.f32.mrf.mxu0
    %v8418 = vadd.f32 %v8249, %v8417
    %v8419 = vpop.f32.mrf.mxu0
    %v8420 = vadd.f32 %v8251, %v8419
    %8421 = vmatmul.bf16.gmra.mxu0 %v6537
    %v8422 = vpop.f32.mrf.mxu0
    %v8423 = vadd.f32 %v8254, %v8422
    %v8424 = vpop.f32.mrf.mxu0
    %v8425 = vadd.f32 %v8256, %v8424
    %8426 = vmatmul.bf16.gmra.mxu0 %v6538
    %v8427 = vpop.f32.mrf.mxu0
    %v8428 = vadd.f32 %v8259, %v8427
    %v8429 = vpop.f32.mrf.mxu0
    %v8430 = vadd.f32 %v8261, %v8429
    %8431 = vmatmul.bf16.gmra.mxu0 %v6539
    %v8432 = vpop.f32.mrf.mxu0
    %v8433 = vadd.f32 %v8264, %v8432
    %v8434 = vpop.f32.mrf.mxu0
    %v8435 = vadd.f32 %v8266, %v8434
    %8436 = vmatmul.bf16.gmra.mxu0 %v6540
    %v8437 = vpop.f32.mrf.mxu0
    %v8438 = vadd.f32 %v8269, %v8437
    %v8439 = vpop.f32.mrf.mxu0
    %v8440 = vadd.f32 %v8271, %v8439
    %8441 = vmatmul.bf16.gmra.mxu0 %v6541
    %v8442 = vpop.f32.mrf.mxu0
    %v8443 = vadd.f32 %v8274, %v8442
    %v8444 = vpop.f32.mrf.mxu0
    %v8445 = vadd.f32 %v8276, %v8444
    %8446 = vmatmul.bf16.gmra.mxu0 %v6542
    %v8447 = vpop.f32.mrf.mxu0
    %v8448 = vadd.f32 %v8279, %v8447
    %v8449 = vpop.f32.mrf.mxu0
    %v8450 = vadd.f32 %v8281, %v8449
    %8451 = vmatmul.bf16.gmra.mxu0 %v6543
    %v8452 = vpop.f32.mrf.mxu0
    %v8453 = vadd.f32 %v8284, %v8452
    %v8454 = vpop.f32.mrf.mxu0
    %v8455 = vadd.f32 %v8286, %v8454
    %8456 = vmatmul.bf16.gmra.mxu0 %v6544
    %v8457 = vpop.f32.mrf.mxu0
    %v8458 = vadd.f32 %v8289, %v8457
    %v8459 = vpop.f32.mrf.mxu0
    %v8460 = vadd.f32 %v8291, %v8459
    %8461 = vmatmul.bf16.gmra.mxu0 %v6545
    %v8462 = vpop.f32.mrf.mxu0
    %v8463 = vadd.f32 %v8294, %v8462
    %v8464 = vpop.f32.mrf.mxu0
    %v8465 = vadd.f32 %v8296, %v8464
    %8466 = vmatmul.bf16.gmra.mxu0 %v6546
    %v8467 = vpop.f32.mrf.mxu0
    %v8468 = vadd.f32 %v8299, %v8467
    %v8469 = vpop.f32.mrf.mxu0
    %v8470 = vadd.f32 %v8301, %v8469
    %8471 = vmatmul.bf16.gmra.mxu0 %v6547
    %v8472 = vpop.f32.mrf.mxu0
    %v8473 = vadd.f32 %v8304, %v8472
    %v8474 = vpop.f32.mrf.mxu0
    %v8475 = vadd.f32 %v8306, %v8474
    %8476 = vmatmul.bf16.gmra.mxu0 %v6548
    %v8477 = vpop.f32.mrf.mxu0
    %v8478 = vadd.f32 %v8309, %v8477
    %v8479 = vpop.f32.mrf.mxu0
    %v8480 = vadd.f32 %v8311, %v8479
    %8481 = vmatmul.bf16.gmra.mxu0 %v6549
    %v8482 = vpop.f32.mrf.mxu0
    %v8483 = vadd.f32 %v8314, %v8482
    %v8484 = vpop.f32.mrf.mxu0
    %v8485 = vadd.f32 %v8316, %v8484
    %8486 = vmatmul.bf16.gmra.mxu0 %v6550
    %v8487 = vpop.f32.mrf.mxu0
    %v8488 = vadd.f32 %v8319, %v8487
    %v8489 = vpop.f32.mrf.mxu0
    %v8490 = vadd.f32 %v8321, %v8489
    %8491 = vmatmul.bf16.gmra.mxu0 %v6551
    %v8492 = vpop.f32.mrf.mxu0
    %v8493 = vadd.f32 %v8324, %v8492
    %v8494 = vpop.f32.mrf.mxu0
    %v8495 = vadd.f32 %v8326, %v8494
    %8496 = vmatmul.bf16.gmra.mxu0 %v6552
    %v8497 = vpop.f32.mrf.mxu0
    %v8498 = vadd.f32 %v8329, %v8497
    %v8499 = vpop.f32.mrf.mxu0
    %v8500 = vadd.f32 %v8331, %v8499
    %8501 = vmatmul.bf16.gmra.mxu0 %v6553
    %v8502 = vpop.f32.mrf.mxu0
    %v8503 = vadd.f32 %v8334, %v8502
    %v8504 = vpop.f32.mrf.mxu0
    %v8505 = vadd.f32 %v8336, %v8504
    %8506 = vmatmul.bf16.gmra.mxu0 %v6554
    %v8507 = vpop.f32.mrf.mxu0
    %v8508 = vadd.f32 %v8339, %v8507
    %v8509 = vpop.f32.mrf.mxu0
    %v8510 = vadd.f32 %v8341, %v8509
    %8511 = vmatmul.bf16.gmra.mxu0 %v6555
    %v8512 = vpop.f32.mrf.mxu0
    %v8513 = vadd.f32 %v8344, %v8512
    %v8514 = vpop.f32.mrf.mxu0
    %v8515 = vadd.f32 %v8346, %v8514
    %8516 = vmatmul.bf16.gmra.mxu0 %v6556
    %v8517 = vpop.f32.mrf.mxu0
    %v8518 = vadd.f32 %v8349, %v8517
    %v8519 = vpop.f32.mrf.mxu0
    %v8520 = vadd.f32 %v8351, %v8519
    %8521 = vmatmul.bf16.gmra.mxu0 %v6557
    %v8522 = vpop.f32.mrf.mxu0
    %v8523 = vadd.f32 %v8354, %v8522
    %v8524 = vpop.f32.mrf.mxu0
    %v8525 = vadd.f32 %v8356, %v8524
    %8526 = vmatmul.bf16.gmra.mxu0 %v6558
    %v8527 = vpop.f32.mrf.mxu0
    %v8528 = vadd.f32 %v8359, %v8527
    %v8529 = vpop.f32.mrf.mxu0
    %v8530 = vadd.f32 %v8361, %v8529
    %8531 = vmatmul.bf16.gmra.mxu0 %v6559
    %v8532 = vpop.f32.mrf.mxu0
    %v8533 = vadd.f32 %v8364, %v8532
    %v8534 = vpop.f32.mrf.mxu0
    %v8535 = vadd.f32 %v8366, %v8534
    %8536 = vmatmul.bf16.gmra.mxu0 %v6560
    %v8537 = vpop.f32.mrf.mxu0
    %v8538 = vadd.f32 %v8369, %v8537
    %v8539 = vpop.f32.mrf.mxu0
    %v8540 = vadd.f32 %v8371, %v8539
    %8541 = vmatmul.bf16.gmra.mxu0 %v6561
    %v8542 = vpop.f32.mrf.mxu0
    %v8543 = vadd.f32 %v8374, %v8542
    %v8544 = vpop.f32.mrf.mxu0
    %v8545 = vadd.f32 %v8376, %v8544
    %8546 = vmatmul.bf16.gmra.mxu0 %v6562
    %v8547 = vpop.f32.mrf.mxu0
    %v8548 = vadd.f32 %v8379, %v8547
    %v8549 = vpop.f32.mrf.mxu0
    %v8550 = vadd.f32 %v8381, %v8549
    %8551 = vmatmul.bf16.gmra.mxu0 %v6563
    %v8552 = vpop.f32.mrf.mxu0
    %v8553 = vadd.f32 %v8384, %v8552
    %v8554 = vpop.f32.mrf.mxu0
    %v8555 = vadd.f32 %v8386, %v8554
    %8556 = vmatmul.bf16.gmra.mxu0 %v6564
    %v8557 = vpop.f32.mrf.mxu0
    %v8558 = vadd.f32 %v8389, %v8557
    %v8559 = vpop.f32.mrf.mxu0
    %v8560 = vadd.f32 %v8391, %v8559
    %8561 = vdwg.mxu0
    %8562 = vmatpush.bf16.msra.mxu0 %v7620
    %8563 = vmatpush.bf16.msra.mxu0 %v7619
    %8564 = vmatpush.bf16.msra.mxu0 %v7618
    %8565 = vmatpush.bf16.msra.mxu0 %v7617
    %8566 = vmatpush.bf16.msra.mxu0 %v7616
    %8567 = vmatpush.bf16.msra.mxu0 %v7615
    %8568 = vmatpush.bf16.msra.mxu0 %v7614
    %8569 = vmatpush.bf16.msra.mxu0 %v7613
    %8570 = vmatmul.bf16.gmra.mxu0 %v6661
    %v8571 = vpop.f32.mrf.mxu0
    %v8572 = vadd.f32 %v8403, %v8571
    %v8573 = vpop.f32.mrf.mxu0
    %v8574 = vadd.f32 %v8405, %v8573
    %8575 = vmatmul.bf16.gmra.mxu0 %v6662
    %v8576 = vpop.f32.mrf.mxu0
    %v8577 = vadd.f32 %v8408, %v8576
    %v8578 = vpop.f32.mrf.mxu0
    %v8579 = vadd.f32 %v8410, %v8578
    %8580 = vmatmul.bf16.gmra.mxu0 %v6663
    %v8581 = vpop.f32.mrf.mxu0
    %v8582 = vadd.f32 %v8413, %v8581
    %v8583 = vpop.f32.mrf.mxu0
    %v8584 = vadd.f32 %v8415, %v8583
    %8585 = vmatmul.bf16.gmra.mxu0 %v6664
    %v8586 = vpop.f32.mrf.mxu0
    %v8587 = vadd.f32 %v8418, %v8586
    %v8588 = vpop.f32.mrf.mxu0
    %v8589 = vadd.f32 %v8420, %v8588
    %8590 = vmatmul.bf16.gmra.mxu0 %v6665
    %v8591 = vpop.f32.mrf.mxu0
    %v8592 = vadd.f32 %v8423, %v8591
    %v8593 = vpop.f32.mrf.mxu0
    %v8594 = vadd.f32 %v8425, %v8593
    %8595 = vmatmul.bf16.gmra.mxu0 %v6666
    %v8596 = vpop.f32.mrf.mxu0
    %v8597 = vadd.f32 %v8428, %v8596
    %v8598 = vpop.f32.mrf.mxu0
    %v8599 = vadd.f32 %v8430, %v8598
    %8600 = vmatmul.bf16.gmra.mxu0 %v6667
    %v8601 = vpop.f32.mrf.mxu0
    %v8602 = vadd.f32 %v8433, %v8601
    %v8603 = vpop.f32.mrf.mxu0
    %v8604 = vadd.f32 %v8435, %v8603
    %8605 = vmatmul.bf16.gmra.mxu0 %v6668
    %v8606 = vpop.f32.mrf.mxu0
    %v8607 = vadd.f32 %v8438, %v8606
    %v8608 = vpop.f32.mrf.mxu0
    %v8609 = vadd.f32 %v8440, %v8608
    %8610 = vmatmul.bf16.gmra.mxu0 %v6669
    %v8611 = vpop.f32.mrf.mxu0
    %v8612 = vadd.f32 %v8443, %v8611
    %v8613 = vpop.f32.mrf.mxu0
    %v8614 = vadd.f32 %v8445, %v8613
    %8615 = vmatmul.bf16.gmra.mxu0 %v6670
    %v8616 = vpop.f32.mrf.mxu0
    %v8617 = vadd.f32 %v8448, %v8616
    %v8618 = vpop.f32.mrf.mxu0
    %v8619 = vadd.f32 %v8450, %v8618
    %8620 = vmatmul.bf16.gmra.mxu0 %v6671
    %v8621 = vpop.f32.mrf.mxu0
    %v8622 = vadd.f32 %v8453, %v8621
    %v8623 = vpop.f32.mrf.mxu0
    %v8624 = vadd.f32 %v8455, %v8623
    %8625 = vmatmul.bf16.gmra.mxu0 %v6672
    %v8626 = vpop.f32.mrf.mxu0
    %v8627 = vadd.f32 %v8458, %v8626
    %v8628 = vpop.f32.mrf.mxu0
    %v8629 = vadd.f32 %v8460, %v8628
    %8630 = vmatmul.bf16.gmra.mxu0 %v6673
    %v8631 = vpop.f32.mrf.mxu0
    %v8632 = vadd.f32 %v8463, %v8631
    %v8633 = vpop.f32.mrf.mxu0
    %v8634 = vadd.f32 %v8465, %v8633
    %8635 = vmatmul.bf16.gmra.mxu0 %v6674
    %v8636 = vpop.f32.mrf.mxu0
    %v8637 = vadd.f32 %v8468, %v8636
    %v8638 = vpop.f32.mrf.mxu0
    %v8639 = vadd.f32 %v8470, %v8638
    %8640 = vmatmul.bf16.gmra.mxu0 %v6675
    %v8641 = vpop.f32.mrf.mxu0
    %v8642 = vadd.f32 %v8473, %v8641
    %v8643 = vpop.f32.mrf.mxu0
    %v8644 = vadd.f32 %v8475, %v8643
    %8645 = vmatmul.bf16.gmra.mxu0 %v6676
    %v8646 = vpop.f32.mrf.mxu0
    %v8647 = vadd.f32 %v8478, %v8646
    %v8648 = vpop.f32.mrf.mxu0
    %v8649 = vadd.f32 %v8480, %v8648
    %8650 = vmatmul.bf16.gmra.mxu0 %v6677
    %v8651 = vpop.f32.mrf.mxu0
    %v8652 = vadd.f32 %v8483, %v8651
    %v8653 = vpop.f32.mrf.mxu0
    %v8654 = vadd.f32 %v8485, %v8653
    %8655 = vmatmul.bf16.gmra.mxu0 %v6678
    %v8656 = vpop.f32.mrf.mxu0
    %v8657 = vadd.f32 %v8488, %v8656
    %v8658 = vpop.f32.mrf.mxu0
    %v8659 = vadd.f32 %v8490, %v8658
    %8660 = vmatmul.bf16.gmra.mxu0 %v6679
    %v8661 = vpop.f32.mrf.mxu0
    %v8662 = vadd.f32 %v8493, %v8661
    %v8663 = vpop.f32.mrf.mxu0
    %v8664 = vadd.f32 %v8495, %v8663
    %8665 = vmatmul.bf16.gmra.mxu0 %v6680
    %v8666 = vpop.f32.mrf.mxu0
    %v8667 = vadd.f32 %v8498, %v8666
    %v8668 = vpop.f32.mrf.mxu0
    %v8669 = vadd.f32 %v8500, %v8668
    %8670 = vmatmul.bf16.gmra.mxu0 %v6681
    %v8671 = vpop.f32.mrf.mxu0
    %v8672 = vadd.f32 %v8503, %v8671
    %v8673 = vpop.f32.mrf.mxu0
    %v8674 = vadd.f32 %v8505, %v8673
    %8675 = vmatmul.bf16.gmra.mxu0 %v6682
    %v8676 = vpop.f32.mrf.mxu0
    %v8677 = vadd.f32 %v8508, %v8676
    %v8678 = vpop.f32.mrf.mxu0
    %v8679 = vadd.f32 %v8510, %v8678
    %8680 = vmatmul.bf16.gmra.mxu0 %v6683
    %v8681 = vpop.f32.mrf.mxu0
    %v8682 = vadd.f32 %v8513, %v8681
    %v8683 = vpop.f32.mrf.mxu0
    %v8684 = vadd.f32 %v8515, %v8683
    %8685 = vmatmul.bf16.gmra.mxu0 %v6684
    %v8686 = vpop.f32.mrf.mxu0
    %v8687 = vadd.f32 %v8518, %v8686
    %v8688 = vpop.f32.mrf.mxu0
    %v8689 = vadd.f32 %v8520, %v8688
    %8690 = vmatmul.bf16.gmra.mxu0 %v6685
    %v8691 = vpop.f32.mrf.mxu0
    %v8692 = vadd.f32 %v8523, %v8691
    %v8693 = vpop.f32.mrf.mxu0
    %v8694 = vadd.f32 %v8525, %v8693
    %8695 = vmatmul.bf16.gmra.mxu0 %v6686
    %v8696 = vpop.f32.mrf.mxu0
    %v8697 = vadd.f32 %v8528, %v8696
    %v8698 = vpop.f32.mrf.mxu0
    %v8699 = vadd.f32 %v8530, %v8698
    %8700 = vmatmul.bf16.gmra.mxu0 %v6687
    %v8701 = vpop.f32.mrf.mxu0
    %v8702 = vadd.f32 %v8533, %v8701
    %v8703 = vpop.f32.mrf.mxu0
    %v8704 = vadd.f32 %v8535, %v8703
    %8705 = vmatmul.bf16.gmra.mxu0 %v6688
    %v8706 = vpop.f32.mrf.mxu0
    %v8707 = vadd.f32 %v8538, %v8706
    %v8708 = vpop.f32.mrf.mxu0
    %v8709 = vadd.f32 %v8540, %v8708
    %8710 = vmatmul.bf16.gmra.mxu0 %v6689
    %v8711 = vpop.f32.mrf.mxu0
    %v8712 = vadd.f32 %v8543, %v8711
    %v8713 = vpop.f32.mrf.mxu0
    %v8714 = vadd.f32 %v8545, %v8713
    %8715 = vmatmul.bf16.gmra.mxu0 %v6690
    %v8716 = vpop.f32.mrf.mxu0
    %v8717 = vadd.f32 %v8548, %v8716
    %v8718 = vpop.f32.mrf.mxu0
    %v8719 = vadd.f32 %v8550, %v8718
    %8720 = vmatmul.bf16.gmra.mxu0 %v6691
    %v8721 = vpop.f32.mrf.mxu0
    %v8722 = vadd.f32 %v8553, %v8721
    %v8723 = vpop.f32.mrf.mxu0
    %v8724 = vadd.f32 %v8555, %v8723
    %8725 = vmatmul.bf16.gmra.mxu0 %v6692
    %v8726 = vpop.f32.mrf.mxu0
    %v8727 = vadd.f32 %v8558, %v8726
    %v8728 = vpop.f32.mrf.mxu0
    %v8729 = vadd.f32 %v8560, %v8728
    %8730 = vdwg.mxu0
    %8731 = vmatpush.bf16.msra.mxu0 %v7628
    %8732 = vmatpush.bf16.msra.mxu0 %v7627
    %8733 = vmatpush.bf16.msra.mxu0 %v7626
    %8734 = vmatpush.bf16.msra.mxu0 %v7625
    %8735 = vmatpush.bf16.msra.mxu0 %v7624
    %8736 = vmatpush.bf16.msra.mxu0 %v7623
    %8737 = vmatpush.bf16.msra.mxu0 %v7622
    %8738 = vmatpush.bf16.msra.mxu0 %v7621
    %8739 = vmatmul.bf16.gmra.mxu0 %v6821
    %v8740 = vpop.f32.mrf.mxu0
    %v8741 = vadd.f32 %v8572, %v8740
    %v8742 = vpop.f32.mrf.mxu0
    %v8743 = vadd.f32 %v8574, %v8742
    %8744 = vmatmul.bf16.gmra.mxu0 %v6822
    %v8745 = vpop.f32.mrf.mxu0
    %v8746 = vadd.f32 %v8577, %v8745
    %v8747 = vpop.f32.mrf.mxu0
    %v8748 = vadd.f32 %v8579, %v8747
    %8749 = vmatmul.bf16.gmra.mxu0 %v6823
    %v8750 = vpop.f32.mrf.mxu0
    %v8751 = vadd.f32 %v8582, %v8750
    %v8752 = vpop.f32.mrf.mxu0
    %v8753 = vadd.f32 %v8584, %v8752
    %8754 = vmatmul.bf16.gmra.mxu0 %v6824
    %v8755 = vpop.f32.mrf.mxu0
    %v8756 = vadd.f32 %v8587, %v8755
    %v8757 = vpop.f32.mrf.mxu0
    %v8758 = vadd.f32 %v8589, %v8757
    %8759 = vmatmul.bf16.gmra.mxu0 %v6825
    %v8760 = vpop.f32.mrf.mxu0
    %v8761 = vadd.f32 %v8592, %v8760
    %v8762 = vpop.f32.mrf.mxu0
    %v8763 = vadd.f32 %v8594, %v8762
    %8764 = vmatmul.bf16.gmra.mxu0 %v6826
    %v8765 = vpop.f32.mrf.mxu0
    %v8766 = vadd.f32 %v8597, %v8765
    %v8767 = vpop.f32.mrf.mxu0
    %v8768 = vadd.f32 %v8599, %v8767
    %8769 = vmatmul.bf16.gmra.mxu0 %v6827
    %v8770 = vpop.f32.mrf.mxu0
    %v8771 = vadd.f32 %v8602, %v8770
    %v8772 = vpop.f32.mrf.mxu0
    %v8773 = vadd.f32 %v8604, %v8772
    %8774 = vmatmul.bf16.gmra.mxu0 %v6828
    %v8775 = vpop.f32.mrf.mxu0
    %v8776 = vadd.f32 %v8607, %v8775
    %v8777 = vpop.f32.mrf.mxu0
    %v8778 = vadd.f32 %v8609, %v8777
    %8779 = vmatmul.bf16.gmra.mxu0 %v6829
    %v8780 = vpop.f32.mrf.mxu0
    %v8781 = vadd.f32 %v8612, %v8780
    %v8782 = vpop.f32.mrf.mxu0
    %v8783 = vadd.f32 %v8614, %v8782
    %8784 = vmatmul.bf16.gmra.mxu0 %v6830
    %v8785 = vpop.f32.mrf.mxu0
    %v8786 = vadd.f32 %v8617, %v8785
    %v8787 = vpop.f32.mrf.mxu0
    %v8788 = vadd.f32 %v8619, %v8787
    %8789 = vmatmul.bf16.gmra.mxu0 %v6831
    %v8790 = vpop.f32.mrf.mxu0
    %v8791 = vadd.f32 %v8622, %v8790
    %v8792 = vpop.f32.mrf.mxu0
    %v8793 = vadd.f32 %v8624, %v8792
    %8794 = vmatmul.bf16.gmra.mxu0 %v6832
    %v8795 = vpop.f32.mrf.mxu0
    %v8796 = vadd.f32 %v8627, %v8795
    %v8797 = vpop.f32.mrf.mxu0
    %v8798 = vadd.f32 %v8629, %v8797
    %8799 = vmatmul.bf16.gmra.mxu0 %v6833
    %v8800 = vpop.f32.mrf.mxu0
    %v8801 = vadd.f32 %v8632, %v8800
    %v8802 = vpop.f32.mrf.mxu0
    %v8803 = vadd.f32 %v8634, %v8802
    %8804 = vmatmul.bf16.gmra.mxu0 %v6834
    %v8805 = vpop.f32.mrf.mxu0
    %v8806 = vadd.f32 %v8637, %v8805
    %v8807 = vpop.f32.mrf.mxu0
    %v8808 = vadd.f32 %v8639, %v8807
    %8809 = vmatmul.bf16.gmra.mxu0 %v6835
    %v8810 = vpop.f32.mrf.mxu0
    %v8811 = vadd.f32 %v8642, %v8810
    %v8812 = vpop.f32.mrf.mxu0
    %v8813 = vadd.f32 %v8644, %v8812
    %8814 = vmatmul.bf16.gmra.mxu0 %v6836
    %v8815 = vpop.f32.mrf.mxu0
    %v8816 = vadd.f32 %v8647, %v8815
    %v8817 = vpop.f32.mrf.mxu0
    %v8818 = vadd.f32 %v8649, %v8817
    %8819 = vmatmul.bf16.gmra.mxu0 %v6837
    %v8820 = vpop.f32.mrf.mxu0
    %v8821 = vadd.f32 %v8652, %v8820
    %v8822 = vpop.f32.mrf.mxu0
    %v8823 = vadd.f32 %v8654, %v8822
    %8824 = vmatmul.bf16.gmra.mxu0 %v6838
    %v8825 = vpop.f32.mrf.mxu0
    %v8826 = vadd.f32 %v8657, %v8825
    %v8827 = vpop.f32.mrf.mxu0
    %v8828 = vadd.f32 %v8659, %v8827
    %8829 = vmatmul.bf16.gmra.mxu0 %v6839
    %v8830 = vpop.f32.mrf.mxu0
    %v8831 = vadd.f32 %v8662, %v8830
    %v8832 = vpop.f32.mrf.mxu0
    %v8833 = vadd.f32 %v8664, %v8832
    %8834 = vmatmul.bf16.gmra.mxu0 %v6840
    %v8835 = vpop.f32.mrf.mxu0
    %v8836 = vadd.f32 %v8667, %v8835
    %v8837 = vpop.f32.mrf.mxu0
    %v8838 = vadd.f32 %v8669, %v8837
    %8839 = vmatmul.bf16.gmra.mxu0 %v6841
    %v8840 = vpop.f32.mrf.mxu0
    %v8841 = vadd.f32 %v8672, %v8840
    %v8842 = vpop.f32.mrf.mxu0
    %v8843 = vadd.f32 %v8674, %v8842
    %8844 = vmatmul.bf16.gmra.mxu0 %v6842
    %v8845 = vpop.f32.mrf.mxu0
    %v8846 = vadd.f32 %v8677, %v8845
    %v8847 = vpop.f32.mrf.mxu0
    %v8848 = vadd.f32 %v8679, %v8847
    %8849 = vmatmul.bf16.gmra.mxu0 %v6843
    %v8850 = vpop.f32.mrf.mxu0
    %v8851 = vadd.f32 %v8682, %v8850
    %v8852 = vpop.f32.mrf.mxu0
    %v8853 = vadd.f32 %v8684, %v8852
    %8854 = vmatmul.bf16.gmra.mxu0 %v6844
    %v8855 = vpop.f32.mrf.mxu0
    %v8856 = vadd.f32 %v8687, %v8855
    %v8857 = vpop.f32.mrf.mxu0
    %v8858 = vadd.f32 %v8689, %v8857
    %8859 = vmatmul.bf16.gmra.mxu0 %v6845
    %v8860 = vpop.f32.mrf.mxu0
    %v8861 = vadd.f32 %v8692, %v8860
    %v8862 = vpop.f32.mrf.mxu0
    %v8863 = vadd.f32 %v8694, %v8862
    %8864 = vmatmul.bf16.gmra.mxu0 %v6846
    %v8865 = vpop.f32.mrf.mxu0
    %v8866 = vadd.f32 %v8697, %v8865
    %v8867 = vpop.f32.mrf.mxu0
    %v8868 = vadd.f32 %v8699, %v8867
    %8869 = vmatmul.bf16.gmra.mxu0 %v6847
    %v8870 = vpop.f32.mrf.mxu0
    %v8871 = vadd.f32 %v8702, %v8870
    %v8872 = vpop.f32.mrf.mxu0
    %v8873 = vadd.f32 %v8704, %v8872
    %8874 = vmatmul.bf16.gmra.mxu0 %v6848
    %v8875 = vpop.f32.mrf.mxu0
    %v8876 = vadd.f32 %v8707, %v8875
    %v8877 = vpop.f32.mrf.mxu0
    %v8878 = vadd.f32 %v8709, %v8877
    %8879 = vmatmul.bf16.gmra.mxu0 %v6849
    %v8880 = vpop.f32.mrf.mxu0
    %v8881 = vadd.f32 %v8712, %v8880
    %v8882 = vpop.f32.mrf.mxu0
    %v8883 = vadd.f32 %v8714, %v8882
    %8884 = vmatmul.bf16.gmra.mxu0 %v6850
    %v8885 = vpop.f32.mrf.mxu0
    %v8886 = vadd.f32 %v8717, %v8885
    %v8887 = vpop.f32.mrf.mxu0
    %v8888 = vadd.f32 %v8719, %v8887
    %8889 = vmatmul.bf16.gmra.mxu0 %v6851
    %v8890 = vpop.f32.mrf.mxu0
    %v8891 = vadd.f32 %v8722, %v8890
    %v8892 = vpop.f32.mrf.mxu0
    %v8893 = vadd.f32 %v8724, %v8892
    %8894 = vmatmul.bf16.gmra.mxu0 %v6852
    %v8895 = vpop.f32.mrf.mxu0
    %v8896 = vadd.f32 %v8727, %v8895
    %v8897 = vpop.f32.mrf.mxu0
    %v8898 = vadd.f32 %v8729, %v8897
    %8899 = vdwg.mxu0
    %8900 = vmatpush.bf16.msra.mxu0 %v7636
    %8901 = vmatpush.bf16.msra.mxu0 %v7635
    %8902 = vmatpush.bf16.msra.mxu0 %v7634
    %8903 = vmatpush.bf16.msra.mxu0 %v7633
    %8904 = vmatpush.bf16.msra.mxu0 %v7632
    %8905 = vmatpush.bf16.msra.mxu0 %v7631
    %8906 = vmatpush.bf16.msra.mxu0 %v7630
    %8907 = vmatpush.bf16.msra.mxu0 %v7629
    %8908 = vmatmul.bf16.gmra.mxu0 %v6949
    %v8909 = vpop.f32.mrf.mxu0
    %v8910 = vadd.f32 %v8741, %v8909
    %v8911 = vpop.f32.mrf.mxu0
    %v8912 = vadd.f32 %v8743, %v8911
    %8913 = vmatmul.bf16.gmra.mxu0 %v6950
    %v8914 = vpop.f32.mrf.mxu0
    %v8915 = vadd.f32 %v8746, %v8914
    %v8916 = vpop.f32.mrf.mxu0
    %v8917 = vadd.f32 %v8748, %v8916
    %8918 = vmatmul.bf16.gmra.mxu0 %v6951
    %v8919 = vpop.f32.mrf.mxu0
    %v8920 = vadd.f32 %v8751, %v8919
    %v8921 = vpop.f32.mrf.mxu0
    %v8922 = vadd.f32 %v8753, %v8921
    %8923 = vmatmul.bf16.gmra.mxu0 %v6952
    %v8924 = vpop.f32.mrf.mxu0
    %v8925 = vadd.f32 %v8756, %v8924
    %v8926 = vpop.f32.mrf.mxu0
    %v8927 = vadd.f32 %v8758, %v8926
    %8928 = vmatmul.bf16.gmra.mxu0 %v6953
    %v8929 = vpop.f32.mrf.mxu0
    %v8930 = vadd.f32 %v8761, %v8929
    %v8931 = vpop.f32.mrf.mxu0
    %v8932 = vadd.f32 %v8763, %v8931
    %8933 = vmatmul.bf16.gmra.mxu0 %v6954
    %v8934 = vpop.f32.mrf.mxu0
    %v8935 = vadd.f32 %v8766, %v8934
    %v8936 = vpop.f32.mrf.mxu0
    %v8937 = vadd.f32 %v8768, %v8936
    %8938 = vmatmul.bf16.gmra.mxu0 %v6955
    %v8939 = vpop.f32.mrf.mxu0
    %v8940 = vadd.f32 %v8771, %v8939
    %v8941 = vpop.f32.mrf.mxu0
    %v8942 = vadd.f32 %v8773, %v8941
    %8943 = vmatmul.bf16.gmra.mxu0 %v6956
    %v8944 = vpop.f32.mrf.mxu0
    %v8945 = vadd.f32 %v8776, %v8944
    %v8946 = vpop.f32.mrf.mxu0
    %v8947 = vadd.f32 %v8778, %v8946
    %8948 = vmatmul.bf16.gmra.mxu0 %v6957
    %v8949 = vpop.f32.mrf.mxu0
    %v8950 = vadd.f32 %v8781, %v8949
    %v8951 = vpop.f32.mrf.mxu0
    %v8952 = vadd.f32 %v8783, %v8951
    %8953 = vmatmul.bf16.gmra.mxu0 %v6958
    %v8954 = vpop.f32.mrf.mxu0
    %v8955 = vadd.f32 %v8786, %v8954
    %v8956 = vpop.f32.mrf.mxu0
    %v8957 = vadd.f32 %v8788, %v8956
    %8958 = vmatmul.bf16.gmra.mxu0 %v6959
    %v8959 = vpop.f32.mrf.mxu0
    %v8960 = vadd.f32 %v8791, %v8959
    %v8961 = vpop.f32.mrf.mxu0
    %v8962 = vadd.f32 %v8793, %v8961
    %8963 = vmatmul.bf16.gmra.mxu0 %v6960
    %v8964 = vpop.f32.mrf.mxu0
    %v8965 = vadd.f32 %v8796, %v8964
    %v8966 = vpop.f32.mrf.mxu0
    %v8967 = vadd.f32 %v8798, %v8966
    %8968 = vmatmul.bf16.gmra.mxu0 %v6961
    %v8969 = vpop.f32.mrf.mxu0
    %v8970 = vadd.f32 %v8801, %v8969
    %v8971 = vpop.f32.mrf.mxu0
    %v8972 = vadd.f32 %v8803, %v8971
    %8973 = vmatmul.bf16.gmra.mxu0 %v6962
    %v8974 = vpop.f32.mrf.mxu0
    %v8975 = vadd.f32 %v8806, %v8974
    %v8976 = vpop.f32.mrf.mxu0
    %v8977 = vadd.f32 %v8808, %v8976
    %8978 = vmatmul.bf16.gmra.mxu0 %v6963
    %v8979 = vpop.f32.mrf.mxu0
    %v8980 = vadd.f32 %v8811, %v8979
    %v8981 = vpop.f32.mrf.mxu0
    %v8982 = vadd.f32 %v8813, %v8981
    %8983 = vmatmul.bf16.gmra.mxu0 %v6964
    %v8984 = vpop.f32.mrf.mxu0
    %v8985 = vadd.f32 %v8816, %v8984
    %v8986 = vpop.f32.mrf.mxu0
    %v8987 = vadd.f32 %v8818, %v8986
    %8988 = vmatmul.bf16.gmra.mxu0 %v6965
    %v8989 = vpop.f32.mrf.mxu0
    %v8990 = vadd.f32 %v8821, %v8989
    %v8991 = vpop.f32.mrf.mxu0
    %v8992 = vadd.f32 %v8823, %v8991
    %8993 = vmatmul.bf16.gmra.mxu0 %v6966
    %v8994 = vpop.f32.mrf.mxu0
    %v8995 = vadd.f32 %v8826, %v8994
    %v8996 = vpop.f32.mrf.mxu0
    %v8997 = vadd.f32 %v8828, %v8996
    %8998 = vmatmul.bf16.gmra.mxu0 %v6967
    %v8999 = vpop.f32.mrf.mxu0
    %v9000 = vadd.f32 %v8831, %v8999
    %v9001 = vpop.f32.mrf.mxu0
    %v9002 = vadd.f32 %v8833, %v9001
    %9003 = vmatmul.bf16.gmra.mxu0 %v6968
    %v9004 = vpop.f32.mrf.mxu0
    %v9005 = vadd.f32 %v8836, %v9004
    %v9006 = vpop.f32.mrf.mxu0
    %v9007 = vadd.f32 %v8838, %v9006
    %9008 = vmatmul.bf16.gmra.mxu0 %v6969
    %v9009 = vpop.f32.mrf.mxu0
    %v9010 = vadd.f32 %v8841, %v9009
    %v9011 = vpop.f32.mrf.mxu0
    %v9012 = vadd.f32 %v8843, %v9011
    %9013 = vmatmul.bf16.gmra.mxu0 %v6970
    %v9014 = vpop.f32.mrf.mxu0
    %v9015 = vadd.f32 %v8846, %v9014
    %v9016 = vpop.f32.mrf.mxu0
    %v9017 = vadd.f32 %v8848, %v9016
    %9018 = vmatmul.bf16.gmra.mxu0 %v6971
    %v9019 = vpop.f32.mrf.mxu0
    %v9020 = vadd.f32 %v8851, %v9019
    %v9021 = vpop.f32.mrf.mxu0
    %v9022 = vadd.f32 %v8853, %v9021
    %9023 = vmatmul.bf16.gmra.mxu0 %v6972
    %v9024 = vpop.f32.mrf.mxu0
    %v9025 = vadd.f32 %v8856, %v9024
    %v9026 = vpop.f32.mrf.mxu0
    %v9027 = vadd.f32 %v8858, %v9026
    %9028 = vmatmul.bf16.gmra.mxu0 %v6973
    %v9029 = vpop.f32.mrf.mxu0
    %v9030 = vadd.f32 %v8861, %v9029
    %v9031 = vpop.f32.mrf.mxu0
    %v9032 = vadd.f32 %v8863, %v9031
    %9033 = vmatmul.bf16.gmra.mxu0 %v6974
    %v9034 = vpop.f32.mrf.mxu0
    %v9035 = vadd.f32 %v8866, %v9034
    %v9036 = vpop.f32.mrf.mxu0
    %v9037 = vadd.f32 %v8868, %v9036
    %9038 = vmatmul.bf16.gmra.mxu0 %v6975
    %v9039 = vpop.f32.mrf.mxu0
    %v9040 = vadd.f32 %v8871, %v9039
    %v9041 = vpop.f32.mrf.mxu0
    %v9042 = vadd.f32 %v8873, %v9041
    %9043 = vmatmul.bf16.gmra.mxu0 %v6976
    %v9044 = vpop.f32.mrf.mxu0
    %v9045 = vadd.f32 %v8876, %v9044
    %v9046 = vpop.f32.mrf.mxu0
    %v9047 = vadd.f32 %v8878, %v9046
    %9048 = vmatmul.bf16.gmra.mxu0 %v6977
    %v9049 = vpop.f32.mrf.mxu0
    %v9050 = vadd.f32 %v8881, %v9049
    %v9051 = vpop.f32.mrf.mxu0
    %v9052 = vadd.f32 %v8883, %v9051
    %9053 = vmatmul.bf16.gmra.mxu0 %v6978
    %v9054 = vpop.f32.mrf.mxu0
    %v9055 = vadd.f32 %v8886, %v9054
    %v9056 = vpop.f32.mrf.mxu0
    %v9057 = vadd.f32 %v8888, %v9056
    %9058 = vmatmul.bf16.gmra.mxu0 %v6979
    %v9059 = vpop.f32.mrf.mxu0
    %v9060 = vadd.f32 %v8891, %v9059
    %v9061 = vpop.f32.mrf.mxu0
    %v9062 = vadd.f32 %v8893, %v9061
    %9063 = vmatmul.bf16.gmra.mxu0 %v6980
    %v9064 = vpop.f32.mrf.mxu0
    %v9065 = vadd.f32 %v8896, %v9064
    %v9066 = vpop.f32.mrf.mxu0
    %v9067 = vadd.f32 %v8898, %v9066
    %9068 = vdwg.mxu0
    %9069 = vmatpush.bf16.msra.mxu0 %v7644
    %9070 = vmatpush.bf16.msra.mxu0 %v7643
    %9071 = vmatpush.bf16.msra.mxu0 %v7642
    %9072 = vmatpush.bf16.msra.mxu0 %v7641
    %9073 = vmatpush.bf16.msra.mxu0 %v7640
    %9074 = vmatpush.bf16.msra.mxu0 %v7639
    %9075 = vmatpush.bf16.msra.mxu0 %v7638
    %9076 = vmatpush.bf16.msra.mxu0 %v7637
    %9077 = vmatmul.bf16.gmra.mxu0 %v7077
    %v9078 = vpop.f32.mrf.mxu0
    %v9079 = vadd.f32 %v8910, %v9078
    %v9080 = vpop.f32.mrf.mxu0
    %v9081 = vadd.f32 %v8912, %v9080
    %9082 = vmatmul.bf16.gmra.mxu0 %v7078
    %v9083 = vpop.f32.mrf.mxu0
    %v9084 = vadd.f32 %v8915, %v9083
    %v9085 = vpop.f32.mrf.mxu0
    %v9086 = vadd.f32 %v8917, %v9085
    %9087 = vmatmul.bf16.gmra.mxu0 %v7079
    %v9088 = vpop.f32.mrf.mxu0
    %v9089 = vadd.f32 %v8920, %v9088
    %v9090 = vpop.f32.mrf.mxu0
    %v9091 = vadd.f32 %v8922, %v9090
    %9092 = vmatmul.bf16.gmra.mxu0 %v7080
    %v9093 = vpop.f32.mrf.mxu0
    %v9094 = vadd.f32 %v8925, %v9093
    %v9095 = vpop.f32.mrf.mxu0
    %v9096 = vadd.f32 %v8927, %v9095
    %9097 = vmatmul.bf16.gmra.mxu0 %v7081
    %v9098 = vpop.f32.mrf.mxu0
    %v9099 = vadd.f32 %v8930, %v9098
    %v9100 = vpop.f32.mrf.mxu0
    %v9101 = vadd.f32 %v8932, %v9100
    %9102 = vmatmul.bf16.gmra.mxu0 %v7082
    %v9103 = vpop.f32.mrf.mxu0
    %v9104 = vadd.f32 %v8935, %v9103
    %v9105 = vpop.f32.mrf.mxu0
    %v9106 = vadd.f32 %v8937, %v9105
    %9107 = vmatmul.bf16.gmra.mxu0 %v7083
    %v9108 = vpop.f32.mrf.mxu0
    %v9109 = vadd.f32 %v8940, %v9108
    %v9110 = vpop.f32.mrf.mxu0
    %v9111 = vadd.f32 %v8942, %v9110
    %9112 = vmatmul.bf16.gmra.mxu0 %v7084
    %v9113 = vpop.f32.mrf.mxu0
    %v9114 = vadd.f32 %v8945, %v9113
    %v9115 = vpop.f32.mrf.mxu0
    %v9116 = vadd.f32 %v8947, %v9115
    %9117 = vmatmul.bf16.gmra.mxu0 %v7085
    %v9118 = vpop.f32.mrf.mxu0
    %v9119 = vadd.f32 %v8950, %v9118
    %v9120 = vpop.f32.mrf.mxu0
    %v9121 = vadd.f32 %v8952, %v9120
    %9122 = vmatmul.bf16.gmra.mxu0 %v7086
    %v9123 = vpop.f32.mrf.mxu0
    %v9124 = vadd.f32 %v8955, %v9123
    %v9125 = vpop.f32.mrf.mxu0
    %v9126 = vadd.f32 %v8957, %v9125
    %9127 = vmatmul.bf16.gmra.mxu0 %v7087
    %v9128 = vpop.f32.mrf.mxu0
    %v9129 = vadd.f32 %v8960, %v9128
    %v9130 = vpop.f32.mrf.mxu0
    %v9131 = vadd.f32 %v8962, %v9130
    %9132 = vmatmul.bf16.gmra.mxu0 %v7088
    %v9133 = vpop.f32.mrf.mxu0
    %v9134 = vadd.f32 %v8965, %v9133
    %v9135 = vpop.f32.mrf.mxu0
    %v9136 = vadd.f32 %v8967, %v9135
    %9137 = vmatmul.bf16.gmra.mxu0 %v7089
    %v9138 = vpop.f32.mrf.mxu0
    %v9139 = vadd.f32 %v8970, %v9138
    %v9140 = vpop.f32.mrf.mxu0
    %v9141 = vadd.f32 %v8972, %v9140
    %9142 = vmatmul.bf16.gmra.mxu0 %v7090
    %v9143 = vpop.f32.mrf.mxu0
    %v9144 = vadd.f32 %v8975, %v9143
    %v9145 = vpop.f32.mrf.mxu0
    %v9146 = vadd.f32 %v8977, %v9145
    %9147 = vmatmul.bf16.gmra.mxu0 %v7091
    %v9148 = vpop.f32.mrf.mxu0
    %v9149 = vadd.f32 %v8980, %v9148
    %v9150 = vpop.f32.mrf.mxu0
    %v9151 = vadd.f32 %v8982, %v9150
    %9152 = vmatmul.bf16.gmra.mxu0 %v7092
    %v9153 = vpop.f32.mrf.mxu0
    %v9154 = vadd.f32 %v8985, %v9153
    %v9155 = vpop.f32.mrf.mxu0
    %v9156 = vadd.f32 %v8987, %v9155
    %9157 = vmatmul.bf16.gmra.mxu0 %v7093
    %v9158 = vpop.f32.mrf.mxu0
    %v9159 = vadd.f32 %v8990, %v9158
    %v9160 = vpop.f32.mrf.mxu0
    %v9161 = vadd.f32 %v8992, %v9160
    %9162 = vmatmul.bf16.gmra.mxu0 %v7094
    %v9163 = vpop.f32.mrf.mxu0
    %v9164 = vadd.f32 %v8995, %v9163
    %v9165 = vpop.f32.mrf.mxu0
    %v9166 = vadd.f32 %v8997, %v9165
    %9167 = vmatmul.bf16.gmra.mxu0 %v7095
    %v9168 = vpop.f32.mrf.mxu0
    %v9169 = vadd.f32 %v9000, %v9168
    %v9170 = vpop.f32.mrf.mxu0
    %v9171 = vadd.f32 %v9002, %v9170
    %9172 = vmatmul.bf16.gmra.mxu0 %v7096
    %v9173 = vpop.f32.mrf.mxu0
    %v9174 = vadd.f32 %v9005, %v9173
    %v9175 = vpop.f32.mrf.mxu0
    %v9176 = vadd.f32 %v9007, %v9175
    %9177 = vmatmul.bf16.gmra.mxu0 %v7097
    %v9178 = vpop.f32.mrf.mxu0
    %v9179 = vadd.f32 %v9010, %v9178
    %v9180 = vpop.f32.mrf.mxu0
    %v9181 = vadd.f32 %v9012, %v9180
    %9182 = vmatmul.bf16.gmra.mxu0 %v7098
    %v9183 = vpop.f32.mrf.mxu0
    %v9184 = vadd.f32 %v9015, %v9183
    %v9185 = vpop.f32.mrf.mxu0
    %v9186 = vadd.f32 %v9017, %v9185
    %9187 = vmatmul.bf16.gmra.mxu0 %v7099
    %v9188 = vpop.f32.mrf.mxu0
    %v9189 = vadd.f32 %v9020, %v9188
    %v9190 = vpop.f32.mrf.mxu0
    %v9191 = vadd.f32 %v9022, %v9190
    %9192 = vmatmul.bf16.gmra.mxu0 %v7100
    %v9193 = vpop.f32.mrf.mxu0
    %v9194 = vadd.f32 %v9025, %v9193
    %v9195 = vpop.f32.mrf.mxu0
    %v9196 = vadd.f32 %v9027, %v9195
    %9197 = vmatmul.bf16.gmra.mxu0 %v7101
    %v9198 = vpop.f32.mrf.mxu0
    %v9199 = vadd.f32 %v9030, %v9198
    %v9200 = vpop.f32.mrf.mxu0
    %v9201 = vadd.f32 %v9032, %v9200
    %9202 = vmatmul.bf16.gmra.mxu0 %v7102
    %v9203 = vpop.f32.mrf.mxu0
    %v9204 = vadd.f32 %v9035, %v9203
    %v9205 = vpop.f32.mrf.mxu0
    %v9206 = vadd.f32 %v9037, %v9205
    %9207 = vmatmul.bf16.gmra.mxu0 %v7103
    %v9208 = vpop.f32.mrf.mxu0
    %v9209 = vadd.f32 %v9040, %v9208
    %v9210 = vpop.f32.mrf.mxu0
    %v9211 = vadd.f32 %v9042, %v9210
    %9212 = vmatmul.bf16.gmra.mxu0 %v7104
    %v9213 = vpop.f32.mrf.mxu0
    %v9214 = vadd.f32 %v9045, %v9213
    %v9215 = vpop.f32.mrf.mxu0
    %v9216 = vadd.f32 %v9047, %v9215
    %9217 = vmatmul.bf16.gmra.mxu0 %v7105
    %v9218 = vpop.f32.mrf.mxu0
    %v9219 = vadd.f32 %v9050, %v9218
    %v9220 = vpop.f32.mrf.mxu0
    %v9221 = vadd.f32 %v9052, %v9220
    %9222 = vmatmul.bf16.gmra.mxu0 %v7106
    %v9223 = vpop.f32.mrf.mxu0
    %v9224 = vadd.f32 %v9055, %v9223
    %v9225 = vpop.f32.mrf.mxu0
    %v9226 = vadd.f32 %v9057, %v9225
    %9227 = vmatmul.bf16.gmra.mxu0 %v7107
    %v9228 = vpop.f32.mrf.mxu0
    %v9229 = vadd.f32 %v9060, %v9228
    %v9230 = vpop.f32.mrf.mxu0
    %v9231 = vadd.f32 %v9062, %v9230
    %9232 = vmatmul.bf16.gmra.mxu0 %v7108
    %v9233 = vpop.f32.mrf.mxu0
    %v9234 = vadd.f32 %v9065, %v9233
    %v9235 = vpop.f32.mrf.mxu0
    %v9236 = vadd.f32 %v9067, %v9235
    %9237 = vdwg.mxu0
    %v9238 = vld [vmem:[%s5] sm:$0x1]
    %v9239 = vld [vmem:[%s6] sm:$0x1]
    %v9240 = vadd.f32 %v9079, %v9081
    %v9241 = vadd.f32 %v9240, %v9084
    %v9242 = vadd.f32 %v9241, %v9086
    %v9243 = vadd.f32 %v9242, %v9089
    %v9244 = vadd.f32 %v9243, %v9091
    %v9245 = vadd.f32 %v9244, %v9094
    %v9246 = vadd.f32 %v9245, %v9096
    %v9247 = vadd.f32 %v9246, %v9099
    %v9248 = vadd.f32 %v9247, %v9101
    %v9249 = vadd.f32 %v9248, %v9104
    %v9250 = vadd.f32 %v9249, %v9106
    %v9251 = vadd.f32 %v9250, %v9109
    %v9252 = vadd.f32 %v9251, %v9111
    %v9253 = vadd.f32 %v9252, %v9114
    %v9254 = vadd.f32 %v9253, %v9116
    %v9255 = vadd.f32 %v9254, %v9119
    %v9256 = vadd.f32 %v9255, %v9121
    %v9257 = vadd.f32 %v9256, %v9124
    %v9258 = vadd.f32 %v9257, %v9126
    %v9259 = vadd.f32 %v9258, %v9129
    %v9260 = vadd.f32 %v9259, %v9131
    %v9261 = vadd.f32 %v9260, %v9134
    %v9262 = vadd.f32 %v9261, %v9136
    %v9263 = vadd.f32 %v9262, %v9139
    %v9264 = vadd.f32 %v9263, %v9141
    %v9265 = vadd.f32 %v9264, %v9144
    %v9266 = vadd.f32 %v9265, %v9146
    %v9267 = vadd.f32 %v9266, %v9149
    %v9268 = vadd.f32 %v9267, %v9151
    %v9269 = vadd.f32 %v9268, %v9154
    %v9270 = vadd.f32 %v9269, %v9156
    %v9271 = vadd.f32 %v9270, %v9159
    %v9272 = vadd.f32 %v9271, %v9161
    %v9273 = vadd.f32 %v9272, %v9164
    %v9274 = vadd.f32 %v9273, %v9166
    %v9275 = vadd.f32 %v9274, %v9169
    %v9276 = vadd.f32 %v9275, %v9171
    %v9277 = vadd.f32 %v9276, %v9174
    %v9278 = vadd.f32 %v9277, %v9176
    %v9279 = vadd.f32 %v9278, %v9179
    %v9280 = vadd.f32 %v9279, %v9181
    %v9281 = vadd.f32 %v9280, %v9184
    %v9282 = vadd.f32 %v9281, %v9186
    %v9283 = vadd.f32 %v9282, %v9189
    %v9284 = vadd.f32 %v9283, %v9191
    %v9285 = vadd.f32 %v9284, %v9194
    %v9286 = vadd.f32 %v9285, %v9196
    %v9287 = vadd.f32 %v9286, %v9199
    %v9288 = vadd.f32 %v9287, %v9201
    %v9289 = vadd.f32 %v9288, %v9204
    %v9290 = vadd.f32 %v9289, %v9206
    %v9291 = vadd.f32 %v9290, %v9209
    %v9292 = vadd.f32 %v9291, %v9211
    %v9293 = vadd.f32 %v9292, %v9214
    %v9294 = vadd.f32 %v9293, %v9216
    %v9295 = vadd.f32 %v9294, %v9219
    %v9296 = vadd.f32 %v9295, %v9221
    %v9297 = vadd.f32 %v9296, %v9224
    %v9298 = vadd.f32 %v9297, %v9226
    %v9299 = vadd.f32 %v9298, %v9229
    %v9300 = vadd.f32 %v9299, %v9231
    %v9301 = vadd.f32 %v9300, %v9234
    %v9302 = vadd.f32 %v9301, %v9236
    %v9303 = vrot.slane %v9302, 4
    %v9304 = vadd.f32 %v9302, %v9303
    %v9305 = vrot.slane %v9304, 2
    %v9306 = vadd.f32 %v9304, %v9305
    %v9307 = vrot.slane %v9306, 1
    %v9308 = vadd.f32 %v9306, %v9307
    %v9309 = vmul.f32 %v9308, %v660
    %v9310 = vmul.f32 %v9079, %v9079
    %v9311 = vmul.f32 %v9081, %v9081
    %v9312 = vmul.f32 %v9084, %v9084
    %v9313 = vmul.f32 %v9086, %v9086
    %v9314 = vmul.f32 %v9089, %v9089
    %v9315 = vmul.f32 %v9091, %v9091
    %v9316 = vmul.f32 %v9094, %v9094
    %v9317 = vmul.f32 %v9096, %v9096
    %v9318 = vmul.f32 %v9099, %v9099
    %v9319 = vmul.f32 %v9101, %v9101
    %v9320 = vmul.f32 %v9104, %v9104
    %v9321 = vmul.f32 %v9106, %v9106
    %v9322 = vmul.f32 %v9109, %v9109
    %v9323 = vmul.f32 %v9111, %v9111
    %v9324 = vmul.f32 %v9114, %v9114
    %v9325 = vmul.f32 %v9116, %v9116
    %v9326 = vmul.f32 %v9119, %v9119
    %v9327 = vmul.f32 %v9121, %v9121
    %v9328 = vmul.f32 %v9124, %v9124
    %v9329 = vmul.f32 %v9126, %v9126
    %v9330 = vmul.f32 %v9129, %v9129
    %v9331 = vmul.f32 %v9131, %v9131
    %v9332 = vmul.f32 %v9134, %v9134
    %v9333 = vmul.f32 %v9136, %v9136
    %v9334 = vmul.f32 %v9139, %v9139
    %v9335 = vmul.f32 %v9141, %v9141
    %v9336 = vmul.f32 %v9144, %v9144
    %v9337 = vmul.f32 %v9146, %v9146
    %v9338 = vmul.f32 %v9149, %v9149
    %v9339 = vmul.f32 %v9151, %v9151
    %v9340 = vmul.f32 %v9154, %v9154
    %v9341 = vmul.f32 %v9156, %v9156
    %v9342 = vmul.f32 %v9159, %v9159
    %v9343 = vmul.f32 %v9161, %v9161
    %v9344 = vmul.f32 %v9164, %v9164
    %v9345 = vmul.f32 %v9166, %v9166
    %v9346 = vmul.f32 %v9169, %v9169
    %v9347 = vmul.f32 %v9171, %v9171
    %v9348 = vmul.f32 %v9174, %v9174
    %v9349 = vmul.f32 %v9176, %v9176
    %v9350 = vmul.f32 %v9179, %v9179
    %v9351 = vmul.f32 %v9181, %v9181
    %v9352 = vmul.f32 %v9184, %v9184
    %v9353 = vmul.f32 %v9186, %v9186
    %v9354 = vmul.f32 %v9189, %v9189
    %v9355 = vmul.f32 %v9191, %v9191
    %v9356 = vmul.f32 %v9194, %v9194
    %v9357 = vmul.f32 %v9196, %v9196
    %v9358 = vmul.f32 %v9199, %v9199
    %v9359 = vmul.f32 %v9201, %v9201
    %v9360 = vmul.f32 %v9204, %v9204
    %v9361 = vmul.f32 %v9206, %v9206
    %v9362 = vmul.f32 %v9209, %v9209
    %v9363 = vmul.f32 %v9211, %v9211
    %v9364 = vmul.f32 %v9214, %v9214
    %v9365 = vmul.f32 %v9216, %v9216
    %v9366 = vmul.f32 %v9219, %v9219
    %v9367 = vmul.f32 %v9221, %v9221
    %v9368 = vmul.f32 %v9224, %v9224
    %v9369 = vmul.f32 %v9226, %v9226
    %v9370 = vmul.f32 %v9229, %v9229
    %v9371 = vmul.f32 %v9231, %v9231
    %v9372 = vmul.f32 %v9234, %v9234
    %v9373 = vmul.f32 %v9236, %v9236
    %v9374 = vadd.f32 %v9310, %v9311
    %v9375 = vadd.f32 %v9374, %v9312
    %v9376 = vadd.f32 %v9375, %v9313
    %v9377 = vadd.f32 %v9376, %v9314
    %v9378 = vadd.f32 %v9377, %v9315
    %v9379 = vadd.f32 %v9378, %v9316
    %v9380 = vadd.f32 %v9379, %v9317
    %v9381 = vadd.f32 %v9380, %v9318
    %v9382 = vadd.f32 %v9381, %v9319
    %v9383 = vadd.f32 %v9382, %v9320
    %v9384 = vadd.f32 %v9383, %v9321
    %v9385 = vadd.f32 %v9384, %v9322
    %v9386 = vadd.f32 %v9385, %v9323
    %v9387 = vadd.f32 %v9386, %v9324
    %v9388 = vadd.f32 %v9387, %v9325
    %v9389 = vadd.f32 %v9388, %v9326
    %v9390 = vadd.f32 %v9389, %v9327
    %v9391 = vadd.f32 %v9390, %v9328
    %v9392 = vadd.f32 %v9391, %v9329
    %v9393 = vadd.f32 %v9392, %v9330
    %v9394 = vadd.f32 %v9393, %v9331
    %v9395 = vadd.f32 %v9394, %v9332
    %v9396 = vadd.f32 %v9395, %v9333
    %v9397 = vadd.f32 %v9396, %v9334
    %v9398 = vadd.f32 %v9397, %v9335
    %v9399 = vadd.f32 %v9398, %v9336
    %v9400 = vadd.f32 %v9399, %v9337
    %v9401 = vadd.f32 %v9400, %v9338
    %v9402 = vadd.f32 %v9401, %v9339
    %v9403 = vadd.f32 %v9402, %v9340
    %v9404 = vadd.f32 %v9403, %v9341
    %v9405 = vadd.f32 %v9404, %v9342
    %v9406 = vadd.f32 %v9405, %v9343
    %v9407 = vadd.f32 %v9406, %v9344
    %v9408 = vadd.f32 %v9407, %v9345
    %v9409 = vadd.f32 %v9408, %v9346
    %v9410 = vadd.f32 %v9409, %v9347
    %v9411 = vadd.f32 %v9410, %v9348
    %v9412 = vadd.f32 %v9411, %v9349
    %v9413 = vadd.f32 %v9412, %v9350
    %v9414 = vadd.f32 %v9413, %v9351
    %v9415 = vadd.f32 %v9414, %v9352
    %v9416 = vadd.f32 %v9415, %v9353
    %v9417 = vadd.f32 %v9416, %v9354
    %v9418 = vadd.f32 %v9417, %v9355
    %v9419 = vadd.f32 %v9418, %v9356
    %v9420 = vadd.f32 %v9419, %v9357
    %v9421 = vadd.f32 %v9420, %v9358
    %v9422 = vadd.f32 %v9421, %v9359
    %v9423 = vadd.f32 %v9422, %v9360
    %v9424 = vadd.f32 %v9423, %v9361
    %v9425 = vadd.f32 %v9424, %v9362
    %v9426 = vadd.f32 %v9425, %v9363
    %v9427 = vadd.f32 %v9426, %v9364
    %v9428 = vadd.f32 %v9427, %v9365
    %v9429 = vadd.f32 %v9428, %v9366
    %v9430 = vadd.f32 %v9429, %v9367
    %v9431 = vadd.f32 %v9430, %v9368
    %v9432 = vadd.f32 %v9431, %v9369
    %v9433 = vadd.f32 %v9432, %v9370
    %v9434 = vadd.f32 %v9433, %v9371
    %v9435 = vadd.f32 %v9434, %v9372
    %v9436 = vadd.f32 %v9435, %v9373
    %v9437 = vrot.slane %v9436, 4
    %v9438 = vadd.f32 %v9436, %v9437
    %v9439 = vrot.slane %v9438, 2
    %v9440 = vadd.f32 %v9438, %v9439
    %v9441 = vrot.slane %v9440, 1
    %v9442 = vadd.f32 %v9440, %v9441
    %v9443 = vmul.f32 %v9442, %v660
    %v9444 = vmul.f32 %v9309, %v9309
    %v9445 = vsub.f32 %v9443, %v9444
    %v9446 = vmax.f32 %v9445, 0.0
    %v9447 = vadd.f32 %v9446, 1e-05
    %v9448 = vrsqrt.pop %v9447
    %v9449 = vmul.f32 %v9448, %v9447
    %v9450 = vmul.f32 %v9449, %v9448
    %v9451 = vmul.f32 0.5, %v9450
    %v9452 = vsub.f32 1.5, %v9451
    %v9453 = vmul.f32 %v9448, %v9452
    %vm9454 = vweird.f32 %v9447
    %vm9455 = vweird.f32 %v9448
    %vm9456 = vmor %vm9454, %vm9455
    %v9457 = vsel %vm9456, %v9448, %v9453
    %v9458 = vsub.f32 %v9079, %v9309
    %v9459 = vsub.f32 %v9081, %v9309
    %v9460 = vsub.f32 %v9084, %v9309
    %v9461 = vsub.f32 %v9086, %v9309
    %v9462 = vsub.f32 %v9089, %v9309
    %v9463 = vsub.f32 %v9091, %v9309
    %v9464 = vsub.f32 %v9094, %v9309
    %v9465 = vsub.f32 %v9096, %v9309
    %v9466 = vsub.f32 %v9099, %v9309
    %v9467 = vsub.f32 %v9101, %v9309
    %v9468 = vsub.f32 %v9104, %v9309
    %v9469 = vsub.f32 %v9106, %v9309
    %v9470 = vsub.f32 %v9109, %v9309
    %v9471 = vsub.f32 %v9111, %v9309
    %v9472 = vsub.f32 %v9114, %v9309
    %v9473 = vsub.f32 %v9116, %v9309
    %v9474 = vsub.f32 %v9119, %v9309
    %v9475 = vsub.f32 %v9121, %v9309
    %v9476 = vsub.f32 %v9124, %v9309
    %v9477 = vsub.f32 %v9126, %v9309
    %v9478 = vsub.f32 %v9129, %v9309
    %v9479 = vsub.f32 %v9131, %v9309
    %v9480 = vsub.f32 %v9134, %v9309
    %v9481 = vsub.f32 %v9136, %v9309
    %v9482 = vsub.f32 %v9139, %v9309
    %v9483 = vsub.f32 %v9141, %v9309
    %v9484 = vsub.f32 %v9144, %v9309
    %v9485 = vsub.f32 %v9146, %v9309
    %v9486 = vsub.f32 %v9149, %v9309
    %v9487 = vsub.f32 %v9151, %v9309
    %v9488 = vsub.f32 %v9154, %v9309
    %v9489 = vsub.f32 %v9156, %v9309
    %v9490 = vsub.f32 %v9159, %v9309
    %v9491 = vsub.f32 %v9161, %v9309
    %v9492 = vsub.f32 %v9164, %v9309
    %v9493 = vsub.f32 %v9166, %v9309
    %v9494 = vsub.f32 %v9169, %v9309
    %v9495 = vsub.f32 %v9171, %v9309
    %v9496 = vsub.f32 %v9174, %v9309
    %v9497 = vsub.f32 %v9176, %v9309
    %v9498 = vsub.f32 %v9179, %v9309
    %v9499 = vsub.f32 %v9181, %v9309
    %v9500 = vsub.f32 %v9184, %v9309
    %v9501 = vsub.f32 %v9186, %v9309
    %v9502 = vsub.f32 %v9189, %v9309
    %v9503 = vsub.f32 %v9191, %v9309
    %v9504 = vsub.f32 %v9194, %v9309
    %v9505 = vsub.f32 %v9196, %v9309
    %v9506 = vsub.f32 %v9199, %v9309
    %v9507 = vsub.f32 %v9201, %v9309
    %v9508 = vsub.f32 %v9204, %v9309
    %v9509 = vsub.f32 %v9206, %v9309
    %v9510 = vsub.f32 %v9209, %v9309
    %v9511 = vsub.f32 %v9211, %v9309
    %v9512 = vsub.f32 %v9214, %v9309
    %v9513 = vsub.f32 %v9216, %v9309
    %v9514 = vsub.f32 %v9219, %v9309
    %v9515 = vsub.f32 %v9221, %v9309
    %v9516 = vsub.f32 %v9224, %v9309
    %v9517 = vsub.f32 %v9226, %v9309
    %v9518 = vsub.f32 %v9229, %v9309
    %v9519 = vsub.f32 %v9231, %v9309
    %v9520 = vsub.f32 %v9234, %v9309
    %v9521 = vsub.f32 %v9236, %v9309
    %v9522 = vmul.f32 %v9457, %v9238
    %v9523 = vperm.slane %v9522, 0
    %v9524 = vmul.f32 %v9458, %v9523
    %v9525 = vmul.f32 %v9459, %v9523
    %v9526 = vmul.f32 %v9460, %v9523
    %v9527 = vmul.f32 %v9461, %v9523
    %v9528 = vmul.f32 %v9462, %v9523
    %v9529 = vmul.f32 %v9463, %v9523
    %v9530 = vmul.f32 %v9464, %v9523
    %v9531 = vmul.f32 %v9465, %v9523
    %v9532 = vmul.f32 %v9466, %v9523
    %v9533 = vmul.f32 %v9467, %v9523
    %v9534 = vmul.f32 %v9468, %v9523
    %v9535 = vmul.f32 %v9469, %v9523
    %v9536 = vmul.f32 %v9470, %v9523
    %v9537 = vmul.f32 %v9471, %v9523
    %v9538 = vmul.f32 %v9472, %v9523
    %v9539 = vmul.f32 %v9473, %v9523
    %v9540 = vmul.f32 %v9474, %v9523
    %v9541 = vmul.f32 %v9475, %v9523
    %v9542 = vmul.f32 %v9476, %v9523
    %v9543 = vmul.f32 %v9477, %v9523
    %v9544 = vmul.f32 %v9478, %v9523
    %v9545 = vmul.f32 %v9479, %v9523
    %v9546 = vmul.f32 %v9480, %v9523
    %v9547 = vmul.f32 %v9481, %v9523
    %v9548 = vmul.f32 %v9482, %v9523
    %v9549 = vmul.f32 %v9483, %v9523
    %v9550 = vmul.f32 %v9484, %v9523
    %v9551 = vmul.f32 %v9485, %v9523
    %v9552 = vmul.f32 %v9486, %v9523
    %v9553 = vmul.f32 %v9487, %v9523
    %v9554 = vmul.f32 %v9488, %v9523
    %v9555 = vmul.f32 %v9489, %v9523
    %v9556 = vmul.f32 %v9490, %v9523
    %v9557 = vmul.f32 %v9491, %v9523
    %v9558 = vmul.f32 %v9492, %v9523
    %v9559 = vmul.f32 %v9493, %v9523
    %v9560 = vmul.f32 %v9494, %v9523
    %v9561 = vmul.f32 %v9495, %v9523
    %v9562 = vmul.f32 %v9496, %v9523
    %v9563 = vmul.f32 %v9497, %v9523
    %v9564 = vmul.f32 %v9498, %v9523
    %v9565 = vmul.f32 %v9499, %v9523
    %v9566 = vmul.f32 %v9500, %v9523
    %v9567 = vmul.f32 %v9501, %v9523
    %v9568 = vmul.f32 %v9502, %v9523
    %v9569 = vmul.f32 %v9503, %v9523
    %v9570 = vmul.f32 %v9504, %v9523
    %v9571 = vmul.f32 %v9505, %v9523
    %v9572 = vmul.f32 %v9506, %v9523
    %v9573 = vmul.f32 %v9507, %v9523
    %v9574 = vmul.f32 %v9508, %v9523
    %v9575 = vmul.f32 %v9509, %v9523
    %v9576 = vmul.f32 %v9510, %v9523
    %v9577 = vmul.f32 %v9511, %v9523
    %v9578 = vmul.f32 %v9512, %v9523
    %v9579 = vmul.f32 %v9513, %v9523
    %v9580 = vmul.f32 %v9514, %v9523
    %v9581 = vmul.f32 %v9515, %v9523
    %v9582 = vmul.f32 %v9516, %v9523
    %v9583 = vmul.f32 %v9517, %v9523
    %v9584 = vmul.f32 %v9518, %v9523
    %v9585 = vmul.f32 %v9519, %v9523
    %v9586 = vmul.f32 %v9520, %v9523
    %v9587 = vmul.f32 %v9521, %v9523
    %v9589 = vperm.slane %v9239, 0
    %v9591 = vadd.f32 %v9524, %v9589
    %v9592 = vadd.f32 %v9525, %v9589
    %v9593 = vadd.f32 %v9526, %v9589
    %v9594 = vadd.f32 %v9527, %v9589
    %v9595 = vadd.f32 %v9528, %v9589
    %v9596 = vadd.f32 %v9529, %v9589
    %v9597 = vadd.f32 %v9530, %v9589
    %v9598 = vadd.f32 %v9531, %v9589
    %v9599 = vadd.f32 %v9532, %v9589
    %v9600 = vadd.f32 %v9533, %v9589
    %v9601 = vadd.f32 %v9534, %v9589
    %v9602 = vadd.f32 %v9535, %v9589
    %v9603 = vadd.f32 %v9536, %v9589
    %v9604 = vadd.f32 %v9537, %v9589
    %v9605 = vadd.f32 %v9538, %v9589
    %v9606 = vadd.f32 %v9539, %v9589
    %v9607 = vadd.f32 %v9540, %v9589
    %v9608 = vadd.f32 %v9541, %v9589
    %v9609 = vadd.f32 %v9542, %v9589
    %v9610 = vadd.f32 %v9543, %v9589
    %v9611 = vadd.f32 %v9544, %v9589
    %v9612 = vadd.f32 %v9545, %v9589
    %v9613 = vadd.f32 %v9546, %v9589
    %v9614 = vadd.f32 %v9547, %v9589
    %v9615 = vadd.f32 %v9548, %v9589
    %v9616 = vadd.f32 %v9549, %v9589
    %v9617 = vadd.f32 %v9550, %v9589
    %v9618 = vadd.f32 %v9551, %v9589
    %v9619 = vadd.f32 %v9552, %v9589
    %v9620 = vadd.f32 %v9553, %v9589
    %v9621 = vadd.f32 %v9554, %v9589
    %v9622 = vadd.f32 %v9555, %v9589
    %v9623 = vadd.f32 %v9556, %v9589
    %v9624 = vadd.f32 %v9557, %v9589
    %v9625 = vadd.f32 %v9558, %v9589
    %v9626 = vadd.f32 %v9559, %v9589
    %v9627 = vadd.f32 %v9560, %v9589
    %v9628 = vadd.f32 %v9561, %v9589
    %v9629 = vadd.f32 %v9562, %v9589
    %v9630 = vadd.f32 %v9563, %v9589
    %v9631 = vadd.f32 %v9564, %v9589
    %v9632 = vadd.f32 %v9565, %v9589
    %v9633 = vadd.f32 %v9566, %v9589
    %v9634 = vadd.f32 %v9567, %v9589
    %v9635 = vadd.f32 %v9568, %v9589
    %v9636 = vadd.f32 %v9569, %v9589
    %v9637 = vadd.f32 %v9570, %v9589
    %v9638 = vadd.f32 %v9571, %v9589
    %v9639 = vadd.f32 %v9572, %v9589
    %v9640 = vadd.f32 %v9573, %v9589
    %v9641 = vadd.f32 %v9574, %v9589
    %v9642 = vadd.f32 %v9575, %v9589
    %v9643 = vadd.f32 %v9576, %v9589
    %v9644 = vadd.f32 %v9577, %v9589
    %v9645 = vadd.f32 %v9578, %v9589
    %v9646 = vadd.f32 %v9579, %v9589
    %v9647 = vadd.f32 %v9580, %v9589
    %v9648 = vadd.f32 %v9581, %v9589
    %v9649 = vadd.f32 %v9582, %v9589
    %v9650 = vadd.f32 %v9583, %v9589
    %v9651 = vadd.f32 %v9584, %v9589
    %v9652 = vadd.f32 %v9585, %v9589
    %v9653 = vadd.f32 %v9586, %v9589
    %v9654 = vadd.f32 %v9587, %v9589
    %v9655 = vmax.f32 %v9591, 0.0
    %v9656 = vmax.f32 %v9592, 0.0
    %v9657 = vmax.f32 %v9593, 0.0
    %v9658 = vmax.f32 %v9594, 0.0
    %v9659 = vmax.f32 %v9595, 0.0
    %v9660 = vmax.f32 %v9596, 0.0
    %v9661 = vmax.f32 %v9597, 0.0
    %v9662 = vmax.f32 %v9598, 0.0
    %v9663 = vmax.f32 %v9599, 0.0
    %v9664 = vmax.f32 %v9600, 0.0
    %v9665 = vmax.f32 %v9601, 0.0
    %v9666 = vmax.f32 %v9602, 0.0
    %v9667 = vmax.f32 %v9603, 0.0
    %v9668 = vmax.f32 %v9604, 0.0
    %v9669 = vmax.f32 %v9605, 0.0
    %v9670 = vmax.f32 %v9606, 0.0
    %v9671 = vmax.f32 %v9607, 0.0
    %v9672 = vmax.f32 %v9608, 0.0
    %v9673 = vmax.f32 %v9609, 0.0
    %v9674 = vmax.f32 %v9610, 0.0
    %v9675 = vmax.f32 %v9611, 0.0
    %v9676 = vmax.f32 %v9612, 0.0
    %v9677 = vmax.f32 %v9613, 0.0
    %v9678 = vmax.f32 %v9614, 0.0
    %v9679 = vmax.f32 %v9615, 0.0
    %v9680 = vmax.f32 %v9616, 0.0
    %v9681 = vmax.f32 %v9617, 0.0
    %v9682 = vmax.f32 %v9618, 0.0
    %v9683 = vmax.f32 %v9619, 0.0
    %v9684 = vmax.f32 %v9620, 0.0
    %v9685 = vmax.f32 %v9621, 0.0
    %v9686 = vmax.f32 %v9622, 0.0
    %v9687 = vmax.f32 %v9623, 0.0
    %v9688 = vmax.f32 %v9624, 0.0
    %v9689 = vmax.f32 %v9625, 0.0
    %v9690 = vmax.f32 %v9626, 0.0
    %v9691 = vmax.f32 %v9627, 0.0
    %v9692 = vmax.f32 %v9628, 0.0
    %v9693 = vmax.f32 %v9629, 0.0
    %v9694 = vmax.f32 %v9630, 0.0
    %v9695 = vmax.f32 %v9631, 0.0
    %v9696 = vmax.f32 %v9632, 0.0
    %v9697 = vmax.f32 %v9633, 0.0
    %v9698 = vmax.f32 %v9634, 0.0
    %v9699 = vmax.f32 %v9635, 0.0
    %v9700 = vmax.f32 %v9636, 0.0
    %v9701 = vmax.f32 %v9637, 0.0
    %v9702 = vmax.f32 %v9638, 0.0
    %v9703 = vmax.f32 %v9639, 0.0
    %v9704 = vmax.f32 %v9640, 0.0
    %v9705 = vmax.f32 %v9641, 0.0
    %v9706 = vmax.f32 %v9642, 0.0
    %v9707 = vmax.f32 %v9643, 0.0
    %v9708 = vmax.f32 %v9644, 0.0
    %v9709 = vmax.f32 %v9645, 0.0
    %v9710 = vmax.f32 %v9646, 0.0
    %v9711 = vmax.f32 %v9647, 0.0
    %v9712 = vmax.f32 %v9648, 0.0
    %v9713 = vmax.f32 %v9649, 0.0
    %v9714 = vmax.f32 %v9650, 0.0
    %v9715 = vmax.f32 %v9651, 0.0
    %v9716 = vmax.f32 %v9652, 0.0
    %v9717 = vmax.f32 %v9653, 0.0
    %v9718 = vmax.f32 %v9654, 0.0
    %v9719 = vld [vmem:[#allocation9] sm:$0xf]
    %v9720 = vld [vmem:[#allocation9 + $0x4] sm:$0xf]
    %v9721 = vld [vmem:[#allocation9 + $0x8] sm:$0xf]
    %v9722 = vld [vmem:[#allocation9 + $0xc] sm:$0xf]
    %v9723 = vld [vmem:[#allocation9 + $0x10] sm:$0xf]
    %v9724 = vld [vmem:[#allocation9 + $0x14] sm:$0xf]
    %v9725 = vld [vmem:[#allocation9 + $0x18] sm:$0xf]
    %v9726 = vld [vmem:[#allocation9 + $0x1c] sm:$0xf]
    %v9727 = vld [vmem:[#allocation9 + $0x20] sm:$0xf]
    %v9728 = vld [vmem:[#allocation9 + $0x24] sm:$0xf]
    %v9729 = vld [vmem:[#allocation9 + $0x28] sm:$0xf]
    %v9730 = vld [vmem:[#allocation9 + $0x2c] sm:$0xf]
    %v9731 = vld [vmem:[#allocation9 + $0x30] sm:$0xf]
    %v9732 = vld [vmem:[#allocation9 + $0x34] sm:$0xf]
    %v9733 = vld [vmem:[#allocation9 + $0x38] sm:$0xf]
    %v9734 = vld [vmem:[#allocation9 + $0x3c] sm:$0xf]
    %v9735 = vld [vmem:[#allocation9 + $0x40] sm:$0xf]
    %v9736 = vld [vmem:[#allocation9 + $0x44] sm:$0xf]
    %v9737 = vld [vmem:[#allocation9 + $0x48] sm:$0xf]
    %v9738 = vld [vmem:[#allocation9 + $0x4c] sm:$0xf]
    %v9739 = vld [vmem:[#allocation9 + $0x50] sm:$0xf]
    %v9740 = vld [vmem:[#allocation9 + $0x54] sm:$0xf]
    %v9741 = vld [vmem:[#allocation9 + $0x58] sm:$0xf]
    %v9742 = vld [vmem:[#allocation9 + $0x5c] sm:$0xf]
    %v9743 = vld [vmem:[#allocation9 + $0x60] sm:$0xf]
    %v9744 = vld [vmem:[#allocation9 + $0x64] sm:$0xf]
    %v9745 = vld [vmem:[#allocation9 + $0x68] sm:$0xf]
    %v9746 = vld [vmem:[#allocation9 + $0x6c] sm:$0xf]
    %v9747 = vld [vmem:[#allocation9 + $0x70] sm:$0xf]
    %v9748 = vld [vmem:[#allocation9 + $0x74] sm:$0xf]
    %v9749 = vld [vmem:[#allocation9 + $0x78] sm:$0xf]
    %v9750 = vld [vmem:[#allocation9 + $0x7c] sm:$0xf]
    %v9751 = vld [vmem:[#allocation9 + $0x80] sm:$0xf]
    %v9752 = vld [vmem:[#allocation9 + $0x84] sm:$0xf]
    %v9753 = vld [vmem:[#allocation9 + $0x88] sm:$0xf]
    %v9754 = vld [vmem:[#allocation9 + $0x8c] sm:$0xf]
    %v9755 = vld [vmem:[#allocation9 + $0x90] sm:$0xf]
    %v9756 = vld [vmem:[#allocation9 + $0x94] sm:$0xf]
    %v9757 = vld [vmem:[#allocation9 + $0x98] sm:$0xf]
    %v9758 = vld [vmem:[#allocation9 + $0x9c] sm:$0xf]
    %v9759 = vld [vmem:[#allocation9 + $0xa0] sm:$0xf]
    %v9760 = vld [vmem:[#allocation9 + $0xa4] sm:$0xf]
    %v9761 = vld [vmem:[#allocation9 + $0xa8] sm:$0xf]
    %v9762 = vld [vmem:[#allocation9 + $0xac] sm:$0xf]
    %v9763 = vld [vmem:[#allocation9 + $0xb0] sm:$0xf]
    %v9764 = vld [vmem:[#allocation9 + $0xb4] sm:$0xf]
    %v9765 = vld [vmem:[#allocation9 + $0xb8] sm:$0xf]
    %v9766 = vld [vmem:[#allocation9 + $0xbc] sm:$0xf]
    %v9767 = vld [vmem:[#allocation9 + $0xc0] sm:$0xf]
    %v9768 = vld [vmem:[#allocation9 + $0xc4] sm:$0xf]
    %v9769 = vld [vmem:[#allocation9 + $0xc8] sm:$0xf]
    %v9770 = vld [vmem:[#allocation9 + $0xcc] sm:$0xf]
    %v9771 = vld [vmem:[#allocation9 + $0xd0] sm:$0xf]
    %v9772 = vld [vmem:[#allocation9 + $0xd4] sm:$0xf]
    %v9773 = vld [vmem:[#allocation9 + $0xd8] sm:$0xf]
    %v9774 = vld [vmem:[#allocation9 + $0xdc] sm:$0xf]
    %v9775 = vld [vmem:[#allocation9 + $0xe0] sm:$0xf]
    %v9776 = vld [vmem:[#allocation9 + $0xe4] sm:$0xf]
    %v9777 = vld [vmem:[#allocation9 + $0xe8] sm:$0xf]
    %v9778 = vld [vmem:[#allocation9 + $0xec] sm:$0xf]
    %v9779 = vld [vmem:[#allocation9 + $0xf0] sm:$0xf]
    %v9780 = vld [vmem:[#allocation9 + $0xf4] sm:$0xf]
    %v9781 = vld [vmem:[#allocation9 + $0xf8] sm:$0xf]
    %v9782 = vld [vmem:[#allocation9 + $0xfc] sm:$0xf]
    %v9783 = vunpack.c.l.bf16 %v9719
    %v9784 = vunpack.c.l.bf16 %v9720
    %v9785 = vunpack.c.l.bf16 %v9721
    %v9786 = vunpack.c.l.bf16 %v9722
    %v9787 = vunpack.c.l.bf16 %v9723
    %v9788 = vunpack.c.l.bf16 %v9724
    %v9789 = vunpack.c.l.bf16 %v9725
    %v9790 = vunpack.c.l.bf16 %v9726
    %v9791 = vunpack.c.l.bf16 %v9727
    %v9792 = vunpack.c.l.bf16 %v9728
    %v9793 = vunpack.c.l.bf16 %v9729
    %v9794 = vunpack.c.l.bf16 %v9730
    %v9795 = vunpack.c.l.bf16 %v9731
    %v9796 = vunpack.c.l.bf16 %v9732
    %v9797 = vunpack.c.l.bf16 %v9733
    %v9798 = vunpack.c.l.bf16 %v9734
    %v9799 = vunpack.c.l.bf16 %v9735
    %v9800 = vunpack.c.l.bf16 %v9736
    %v9801 = vunpack.c.l.bf16 %v9737
    %v9802 = vunpack.c.l.bf16 %v9738
    %v9803 = vunpack.c.l.bf16 %v9739
    %v9804 = vunpack.c.l.bf16 %v9740
    %v9805 = vunpack.c.l.bf16 %v9741
    %v9806 = vunpack.c.l.bf16 %v9742
    %v9807 = vunpack.c.l.bf16 %v9743
    %v9808 = vunpack.c.l.bf16 %v9744
    %v9809 = vunpack.c.l.bf16 %v9745
    %v9810 = vunpack.c.l.bf16 %v9746
    %v9811 = vunpack.c.l.bf16 %v9747
    %v9812 = vunpack.c.l.bf16 %v9748
    %v9813 = vunpack.c.l.bf16 %v9749
    %v9814 = vunpack.c.l.bf16 %v9750
    %v9815 = vunpack.c.l.bf16 %v9751
    %v9816 = vunpack.c.l.bf16 %v9752
    %v9817 = vunpack.c.l.bf16 %v9753
    %v9818 = vunpack.c.l.bf16 %v9754
    %v9819 = vunpack.c.l.bf16 %v9755
    %v9820 = vunpack.c.l.bf16 %v9756
    %v9821 = vunpack.c.l.bf16 %v9757
    %v9822 = vunpack.c.l.bf16 %v9758
    %v9823 = vunpack.c.l.bf16 %v9759
    %v9824 = vunpack.c.l.bf16 %v9760
    %v9825 = vunpack.c.l.bf16 %v9761
    %v9826 = vunpack.c.l.bf16 %v9762
    %v9827 = vunpack.c.l.bf16 %v9763
    %v9828 = vunpack.c.l.bf16 %v9764
    %v9829 = vunpack.c.l.bf16 %v9765
    %v9830 = vunpack.c.l.bf16 %v9766
    %v9831 = vunpack.c.l.bf16 %v9767
    %v9832 = vunpack.c.l.bf16 %v9768
    %v9833 = vunpack.c.l.bf16 %v9769
    %v9834 = vunpack.c.l.bf16 %v9770
    %v9835 = vunpack.c.l.bf16 %v9771
    %v9836 = vunpack.c.l.bf16 %v9772
    %v9837 = vunpack.c.l.bf16 %v9773
    %v9838 = vunpack.c.l.bf16 %v9774
    %v9839 = vunpack.c.l.bf16 %v9775
    %v9840 = vunpack.c.l.bf16 %v9776
    %v9841 = vunpack.c.l.bf16 %v9777
    %v9842 = vunpack.c.l.bf16 %v9778
    %v9843 = vunpack.c.l.bf16 %v9779
    %v9844 = vunpack.c.l.bf16 %v9780
    %v9845 = vunpack.c.l.bf16 %v9781
    %v9846 = vunpack.c.l.bf16 %v9782
    %v9847 = vadd.f32 %v9655, %v9783
    %v9848 = vadd.f32 %v9656, %v9784
    %v9849 = vadd.f32 %v9657, %v9785
    %v9850 = vadd.f32 %v9658, %v9786
    %v9851 = vadd.f32 %v9659, %v9787
    %v9852 = vadd.f32 %v9660, %v9788
    %v9853 = vadd.f32 %v9661, %v9789
    %v9854 = vadd.f32 %v9662, %v9790
    %v9855 = vadd.f32 %v9663, %v9791
    %v9856 = vadd.f32 %v9664, %v9792
    %v9857 = vadd.f32 %v9665, %v9793
    %v9858 = vadd.f32 %v9666, %v9794
    %v9859 = vadd.f32 %v9667, %v9795
    %v9860 = vadd.f32 %v9668, %v9796
    %v9861 = vadd.f32 %v9669, %v9797
    %v9862 = vadd.f32 %v9670, %v9798
    %v9863 = vadd.f32 %v9671, %v9799
    %v9864 = vadd.f32 %v9672, %v9800
    %v9865 = vadd.f32 %v9673, %v9801
    %v9866 = vadd.f32 %v9674, %v9802
    %v9867 = vadd.f32 %v9675, %v9803
    %v9868 = vadd.f32 %v9676, %v9804
    %v9869 = vadd.f32 %v9677, %v9805
    %v9870 = vadd.f32 %v9678, %v9806
    %v9871 = vadd.f32 %v9679, %v9807
    %v9872 = vadd.f32 %v9680, %v9808
    %v9873 = vadd.f32 %v9681, %v9809
    %v9874 = vadd.f32 %v9682, %v9810
    %v9875 = vadd.f32 %v9683, %v9811
    %v9876 = vadd.f32 %v9684, %v9812
    %v9877 = vadd.f32 %v9685, %v9813
    %v9878 = vadd.f32 %v9686, %v9814
    %v9879 = vadd.f32 %v9687, %v9815
    %v9880 = vadd.f32 %v9688, %v9816
    %v9881 = vadd.f32 %v9689, %v9817
    %v9882 = vadd.f32 %v9690, %v9818
    %v9883 = vadd.f32 %v9691, %v9819
    %v9884 = vadd.f32 %v9692, %v9820
    %v9885 = vadd.f32 %v9693, %v9821
    %v9886 = vadd.f32 %v9694, %v9822
    %v9887 = vadd.f32 %v9695, %v9823
    %v9888 = vadd.f32 %v9696, %v9824
    %v9889 = vadd.f32 %v9697, %v9825
    %v9890 = vadd.f32 %v9698, %v9826
    %v9891 = vadd.f32 %v9699, %v9827
    %v9892 = vadd.f32 %v9700, %v9828
    %v9893 = vadd.f32 %v9701, %v9829
    %v9894 = vadd.f32 %v9702, %v9830
    %v9895 = vadd.f32 %v9703, %v9831
    %v9896 = vadd.f32 %v9704, %v9832
    %v9897 = vadd.f32 %v9705, %v9833
    %v9898 = vadd.f32 %v9706, %v9834
    %v9899 = vadd.f32 %v9707, %v9835
    %v9900 = vadd.f32 %v9708, %v9836
    %v9901 = vadd.f32 %v9709, %v9837
    %v9902 = vadd.f32 %v9710, %v9838
    %v9903 = vadd.f32 %v9711, %v9839
    %v9904 = vadd.f32 %v9712, %v9840
    %v9905 = vadd.f32 %v9713, %v9841
    %v9906 = vadd.f32 %v9714, %v9842
    %v9907 = vadd.f32 %v9715, %v9843
    %v9908 = vadd.f32 %v9716, %v9844
    %v9909 = vadd.f32 %v9717, %v9845
    %v9910 = vadd.f32 %v9718, %v9846
    %v9911 = vmax.f32 %v9847, %v9849
    %v9912 = vmax.f32 %v9848, %v9850
    %v9913 = vmax.f32 %v9851, %v9853
    %v9914 = vmax.f32 %v9852, %v9854
    %v9915 = vmax.f32 %v9855, %v9857
    %v9916 = vmax.f32 %v9856, %v9858
    %v9917 = vmax.f32 %v9859, %v9861
    %v9918 = vmax.f32 %v9860, %v9862
    %v9919 = vmax.f32 %v9863, %v9865
    %v9920 = vmax.f32 %v9864, %v9866
    %v9921 = vmax.f32 %v9867, %v9869
    %v9922 = vmax.f32 %v9868, %v9870
    %v9923 = vmax.f32 %v9871, %v9873
    %v9924 = vmax.f32 %v9872, %v9874
    %v9925 = vmax.f32 %v9875, %v9877
    %v9926 = vmax.f32 %v9876, %v9878
    %v9927 = vmax.f32 %v9879, %v9881
    %v9928 = vmax.f32 %v9880, %v9882
    %v9929 = vmax.f32 %v9883, %v9885
    %v9930 = vmax.f32 %v9884, %v9886
    %v9931 = vmax.f32 %v9887, %v9889
    %v9932 = vmax.f32 %v9888, %v9890
    %v9933 = vmax.f32 %v9891, %v9893
    %v9934 = vmax.f32 %v9892, %v9894
    %v9935 = vmax.f32 %v9895, %v9897
    %v9936 = vmax.f32 %v9896, %v9898
    %v9937 = vmax.f32 %v9899, %v9901
    %v9938 = vmax.f32 %v9900, %v9902
    %v9939 = vmax.f32 %v9903, %v9905
    %v9940 = vmax.f32 %v9904, %v9906
    %v9941 = vmax.f32 %v9907, %v9909
    %v9942 = vmax.f32 %v9908, %v9910
    %v9944 = vunpack.c.l.s4 1966171168
    %v9945 = vunpack.c.0.s8 %v9944
    %v9946 = vperm.slane %v9911, %v9945
    %v9948 = vunpack.c.l.s4 1966171168
    %v9949 = vunpack.c.0.s8 %v9948
    %v9950 = vperm.slane %v9912, %v9949
    %v9952 = vunpack.c.l.s4 1966171168
    %v9953 = vunpack.c.0.s8 %v9952
    %v9954 = vperm.slane %v9913, %v9953
    %v9956 = vunpack.c.l.s4 1966171168
    %v9957 = vunpack.c.0.s8 %v9956
    %v9958 = vperm.slane %v9914, %v9957
    %v9960 = vunpack.c.l.s4 1966171168
    %v9961 = vunpack.c.0.s8 %v9960
    %v9962 = vperm.slane %v9915, %v9961
    %v9964 = vunpack.c.l.s4 1966171168
    %v9965 = vunpack.c.0.s8 %v9964
    %v9966 = vperm.slane %v9916, %v9965
    %v9968 = vunpack.c.l.s4 1966171168
    %v9969 = vunpack.c.0.s8 %v9968
    %v9970 = vperm.slane %v9917, %v9969
    %v9972 = vunpack.c.l.s4 1966171168
    %v9973 = vunpack.c.0.s8 %v9972
    %v9974 = vperm.slane %v9918, %v9973
    %v9976 = vunpack.c.l.s4 1966171168
    %v9977 = vunpack.c.0.s8 %v9976
    %v9978 = vperm.slane %v9919, %v9977
    %v9980 = vunpack.c.l.s4 1966171168
    %v9981 = vunpack.c.0.s8 %v9980
    %v9982 = vperm.slane %v9920, %v9981
    %v9984 = vunpack.c.l.s4 1966171168
    %v9985 = vunpack.c.0.s8 %v9984
    %v9986 = vperm.slane %v9921, %v9985
    %v9988 = vunpack.c.l.s4 1966171168
    %v9989 = vunpack.c.0.s8 %v9988
    %v9990 = vperm.slane %v9922, %v9989
    %v9992 = vunpack.c.l.s4 1966171168
    %v9993 = vunpack.c.0.s8 %v9992
    %v9994 = vperm.slane %v9923, %v9993
    %v9996 = vunpack.c.l.s4 1966171168
    %v9997 = vunpack.c.0.s8 %v9996
    %v9998 = vperm.slane %v9924, %v9997
    %v10000 = vunpack.c.l.s4 1966171168
    %v10001 = vunpack.c.0.s8 %v10000
    %v10002 = vperm.slane %v9925, %v10001
    %v10004 = vunpack.c.l.s4 1966171168
    %v10005 = vunpack.c.0.s8 %v10004
    %v10006 = vperm.slane %v9926, %v10005
    %v10008 = vunpack.c.l.s4 1966171168
    %v10009 = vunpack.c.0.s8 %v10008
    %v10010 = vperm.slane %v9927, %v10009
    %v10012 = vunpack.c.l.s4 1966171168
    %v10013 = vunpack.c.0.s8 %v10012
    %v10014 = vperm.slane %v9928, %v10013
    %v10016 = vunpack.c.l.s4 1966171168
    %v10017 = vunpack.c.0.s8 %v10016
    %v10018 = vperm.slane %v9929, %v10017
    %v10020 = vunpack.c.l.s4 1966171168
    %v10021 = vunpack.c.0.s8 %v10020
    %v10022 = vperm.slane %v9930, %v10021
    %v10024 = vunpack.c.l.s4 1966171168
    %v10025 = vunpack.c.0.s8 %v10024
    %v10026 = vperm.slane %v9931, %v10025
    %v10028 = vunpack.c.l.s4 1966171168
    %v10029 = vunpack.c.0.s8 %v10028
    %v10030 = vperm.slane %v9932, %v10029
    %v10032 = vunpack.c.l.s4 1966171168
    %v10033 = vunpack.c.0.s8 %v10032
    %v10034 = vperm.slane %v9933, %v10033
    %v10036 = vunpack.c.l.s4 1966171168
    %v10037 = vunpack.c.0.s8 %v10036
    %v10038 = vperm.slane %v9934, %v10037
    %v10040 = vunpack.c.l.s4 1966171168
    %v10041 = vunpack.c.0.s8 %v10040
    %v10042 = vperm.slane %v9935, %v10041
    %v10044 = vunpack.c.l.s4 1966171168
    %v10045 = vunpack.c.0.s8 %v10044
    %v10046 = vperm.slane %v9936, %v10045
    %v10048 = vunpack.c.l.s4 1966171168
    %v10049 = vunpack.c.0.s8 %v10048
    %v10050 = vperm.slane %v9937, %v10049
    %v10052 = vunpack.c.l.s4 1966171168
    %v10053 = vunpack.c.0.s8 %v10052
    %v10054 = vperm.slane %v9938, %v10053
    %v10056 = vunpack.c.l.s4 1966171168
    %v10057 = vunpack.c.0.s8 %v10056
    %v10058 = vperm.slane %v9939, %v10057
    %v10060 = vunpack.c.l.s4 1966171168
    %v10061 = vunpack.c.0.s8 %v10060
    %v10062 = vperm.slane %v9940, %v10061
    %v10064 = vunpack.c.l.s4 1966171168
    %v10065 = vunpack.c.0.s8 %v10064
    %v10066 = vperm.slane %v9941, %v10065
    %v10068 = vunpack.c.l.s4 1966171168
    %v10069 = vunpack.c.0.s8 %v10068
    %v10070 = vperm.slane %v9942, %v10069
    %v10103 = vrot.slane %v9946, 4
    %v10104 = vrot.slane %v9950, 4
    %v10105 = vrot.slane %v9954, 4
    %v10106 = vrot.slane %v9958, 4
    %v10107 = vrot.slane %v9962, 4
    %v10108 = vrot.slane %v9966, 4
    %v10109 = vrot.slane %v9970, 4
    %v10110 = vrot.slane %v9974, 4
    %v10111 = vrot.slane %v9978, 4
    %v10112 = vrot.slane %v9982, 4
    %v10113 = vrot.slane %v9986, 4
    %v10114 = vrot.slane %v9990, 4
    %v10115 = vrot.slane %v9994, 4
    %v10116 = vrot.slane %v9998, 4
    %v10117 = vrot.slane %v10002, 4
    %v10118 = vrot.slane %v10006, 4
    %v10119 = vrot.slane %v10010, 4
    %v10120 = vrot.slane %v10014, 4
    %v10121 = vrot.slane %v10018, 4
    %v10122 = vrot.slane %v10022, 4
    %v10123 = vrot.slane %v10026, 4
    %v10124 = vrot.slane %v10030, 4
    %v10125 = vrot.slane %v10034, 4
    %v10126 = vrot.slane %v10038, 4
    %v10127 = vrot.slane %v10042, 4
    %v10128 = vrot.slane %v10046, 4
    %v10129 = vrot.slane %v10050, 4
    %v10130 = vrot.slane %v10054, 4
    %v10131 = vrot.slane %v10058, 4
    %v10132 = vrot.slane %v10062, 4
    %v10133 = vrot.slane %v10066, 4
    %v10134 = vrot.slane %v10070, 4
    %v10167 = vmax.f32 %v9946, %v10103
    %v10168 = vmax.f32 %v9950, %v10104
    %v10169 = vmax.f32 %v9954, %v10105
    %v10170 = vmax.f32 %v9958, %v10106
    %v10171 = vmax.f32 %v9962, %v10107
    %v10172 = vmax.f32 %v9966, %v10108
    %v10173 = vmax.f32 %v9970, %v10109
    %v10174 = vmax.f32 %v9974, %v10110
    %v10175 = vmax.f32 %v9978, %v10111
    %v10176 = vmax.f32 %v9982, %v10112
    %v10177 = vmax.f32 %v9986, %v10113
    %v10178 = vmax.f32 %v9990, %v10114
    %v10179 = vmax.f32 %v9994, %v10115
    %v10180 = vmax.f32 %v9998, %v10116
    %v10181 = vmax.f32 %v10002, %v10117
    %v10182 = vmax.f32 %v10006, %v10118
    %v10183 = vmax.f32 %v10010, %v10119
    %v10184 = vmax.f32 %v10014, %v10120
    %v10185 = vmax.f32 %v10018, %v10121
    %v10186 = vmax.f32 %v10022, %v10122
    %v10187 = vmax.f32 %v10026, %v10123
    %v10188 = vmax.f32 %v10030, %v10124
    %v10189 = vmax.f32 %v10034, %v10125
    %v10190 = vmax.f32 %v10038, %v10126
    %v10191 = vmax.f32 %v10042, %v10127
    %v10192 = vmax.f32 %v10046, %v10128
    %v10193 = vmax.f32 %v10050, %v10129
    %v10194 = vmax.f32 %v10054, %v10130
    %v10195 = vmax.f32 %v10058, %v10131
    %v10196 = vmax.f32 %v10062, %v10132
    %v10197 = vmax.f32 %v10066, %v10133
    %v10198 = vmax.f32 %v10070, %v10134
    %10231 = vst [vmem:[#allocation1] ss:$2 sm:$0xff] %v10167
    %s10232 = scalar_lea.vmem [#allocation1], 1
    %10233 = vst [vmem:[%s10232] ss:$2 sm:$0xff] %v10168
    %v10234 = vld.sshfl [vmem:[#allocation1] sm:$0xff pattern:$0x75316420]
    %s10235 = scalar_lea.vmem [#allocation1], 16
    %10236 = vst [vmem:[%s10235] ss:$2 sm:$0xff] %v10169
    %s10237 = scalar_lea.vmem [#allocation1], 17
    %10238 = vst [vmem:[%s10237] ss:$2 sm:$0xff] %v10170
    %v10239 = vld.sshfl [vmem:[#allocation1 + $0x10] sm:$0xff pattern:$0x75316420]
    %s10240 = scalar_lea.vmem [#allocation1], 32
    %10241 = vst [vmem:[%s10240] ss:$2 sm:$0xff] %v10171
    %s10242 = scalar_lea.vmem [#allocation1], 33
    %10243 = vst [vmem:[%s10242] ss:$2 sm:$0xff] %v10172
    %v10244 = vld.sshfl [vmem:[#allocation1 + $0x20] sm:$0xff pattern:$0x75316420]
    %s10245 = scalar_lea.vmem [#allocation1], 48
    %10246 = vst [vmem:[%s10245] ss:$2 sm:$0xff] %v10173
    %s10247 = scalar_lea.vmem [#allocation1], 49
    %10248 = vst [vmem:[%s10247] ss:$2 sm:$0xff] %v10174
    %v10249 = vld.sshfl [vmem:[#allocation1 + $0x30] sm:$0xff pattern:$0x75316420]
    %10250 = vst [vmem:[#allocation1] ss:$2 sm:$0xff] %v10175
    %10251 = vst [vmem:[%s10232] ss:$2 sm:$0xff] %v10176
    %v10252 = vld.sshfl [vmem:[#allocation1] sm:$0xff pattern:$0x75316420]
    %10253 = vst [vmem:[%s10235] ss:$2 sm:$0xff] %v10177
    %10254 = vst [vmem:[%s10237] ss:$2 sm:$0xff] %v10178
    %v10255 = vld.sshfl [vmem:[#allocation1 + $0x10] sm:$0xff pattern:$0x75316420]
    %10256 = vst [vmem:[%s10240] ss:$2 sm:$0xff] %v10179
    %10257 = vst [vmem:[%s10242] ss:$2 sm:$0xff] %v10180
    %v10258 = vld.sshfl [vmem:[#allocation1 + $0x20] sm:$0xff pattern:$0x75316420]
    %10259 = vst [vmem:[%s10245] ss:$2 sm:$0xff] %v10181
    %10260 = vst [vmem:[%s10247] ss:$2 sm:$0xff] %v10182
    %v10261 = vld.sshfl [vmem:[#allocation1 + $0x30] sm:$0xff pattern:$0x75316420]
    %10262 = vst [vmem:[#allocation1] ss:$2 sm:$0xff] %v10183
    %10263 = vst [vmem:[%s10232] ss:$2 sm:$0xff] %v10184
    %v10264 = vld.sshfl [vmem:[#allocation1] sm:$0xff pattern:$0x75316420]
    %10265 = vst [vmem:[%s10235] ss:$2 sm:$0xff] %v10185
    %10266 = vst [vmem:[%s10237] ss:$2 sm:$0xff] %v10186
    %v10267 = vld.sshfl [vmem:[#allocation1 + $0x10] sm:$0xff pattern:$0x75316420]
    %10268 = vst [vmem:[%s10240] ss:$2 sm:$0xff] %v10187
    %10269 = vst [vmem:[%s10242] ss:$2 sm:$0xff] %v10188
    %v10270 = vld.sshfl [vmem:[#allocation1 + $0x20] sm:$0xff pattern:$0x75316420]
    %10271 = vst [vmem:[%s10245] ss:$2 sm:$0xff] %v10189
    %10272 = vst [vmem:[%s10247] ss:$2 sm:$0xff] %v10190
    %v10273 = vld.sshfl [vmem:[#allocation1 + $0x30] sm:$0xff pattern:$0x75316420]
    %10274 = vst [vmem:[#allocation1] ss:$2 sm:$0xff] %v10191
    %10275 = vst [vmem:[%s10232] ss:$2 sm:$0xff] %v10192
    %v10276 = vld.sshfl [vmem:[#allocation1] sm:$0xff pattern:$0x75316420]
    %10277 = vst [vmem:[%s10235] ss:$2 sm:$0xff] %v10193
    %10278 = vst [vmem:[%s10237] ss:$2 sm:$0xff] %v10194
    %v10279 = vld.sshfl [vmem:[#allocation1 + $0x10] sm:$0xff pattern:$0x75316420]
    %10280 = vst [vmem:[%s10240] ss:$2 sm:$0xff] %v10195
    %10281 = vst [vmem:[%s10242] ss:$2 sm:$0xff] %v10196
    %v10282 = vld.sshfl [vmem:[#allocation1 + $0x20] sm:$0xff pattern:$0x75316420]
    %10283 = vst [vmem:[%s10245] ss:$2 sm:$0xff] %v10197
    %10284 = vst [vmem:[%s10247] ss:$2 sm:$0xff] %v10198
    %v10285 = vld.sshfl [vmem:[#allocation1 + $0x30] sm:$0xff pattern:$0x75316420]
    %10302 = vst [vmem:[#allocation11] sm:$0xff] %v10234
    %10303 = vst [vmem:[#allocation11 + $0x8] sm:$0xff] %v10239
    %10304 = vst [vmem:[#allocation11 + $0x10] sm:$0xff] %v10244
    %10305 = vst [vmem:[#allocation11 + $0x18] sm:$0xff] %v10249
    %10306 = vst [vmem:[#allocation11 + $0x20] sm:$0xff] %v10252
    %10307 = vst [vmem:[#allocation11 + $0x28] sm:$0xff] %v10255
    %10308 = vst [vmem:[#allocation11 + $0x30] sm:$0xff] %v10258
    %10309 = vst [vmem:[#allocation11 + $0x38] sm:$0xff] %v10261
    %10310 = vst [vmem:[#allocation11 + $0x40] sm:$0xff] %v10264
    %10311 = vst [vmem:[#allocation11 + $0x48] sm:$0xff] %v10267
    %10312 = vst [vmem:[#allocation11 + $0x50] sm:$0xff] %v10270
    %10313 = vst [vmem:[#allocation11 + $0x58] sm:$0xff] %v10273
    %10314 = vst [vmem:[#allocation11 + $0x60] sm:$0xff] %v10276
    %10315 = vst [vmem:[#allocation11 + $0x68] sm:$0xff] %v10279
    %10316 = vst [vmem:[#allocation11 + $0x70] sm:$0xff] %v10282
    %10317 = vst [vmem:[#allocation11 + $0x78] sm:$0xff] %v10285
    // Predicated region
    $region50: #{tpu_custom_call.1} parent=1 // pred_check
      _
    $region51: #{tpu_custom_call.1} parent=1 // pred_check_branch
      %10319 = sbr.rel (0) target = $region53
    $region52: #{tpu_custom_call.1} parent=1 // pred_region
      %10321 = vsyncadd [#allocation5], 0
      %s10322 = sshll.u32 [#allocation11], 4
      %s10323 = int_to_ptr.vmem [resolvable:$true] %s10322
      %s10324 = sshll.u32 %s8, 4
      %s10325 = int_to_ptr.hbm [resolvable:$true] %s10324
      %10330 = dma.vmem_to_hbm [thread:$0]  %s10323, 2048, %s10325, [#allocation5], 128, 128, 8
    $region53: #{tpu_custom_call.1} parent=1 // pred_fallthru
      _
    // Predicated region
    $region54: #{tpu_custom_call.1} parent=1 // pred_check
      _
    $region55: #{tpu_custom_call.1} parent=1 // pred_check_branch
      %10332 = sbr.rel (0) target = $region57
    $region56: #{tpu_custom_call.1} parent=1 // pred_region
      %10334 = dma.done [#allocation5], 2048
    $region57: #{tpu_custom_call.1} parent=1 // pred_fallthru
      _
    %10335 = vsyncpa [#allocation4], 1
    %10336 = vsyncpa [#allocation7], 1
    %10337 = vsyncpa [#allocation10], 1
    %10338 = vsyncpa [#allocation5], 1

</llo_original>
